<compile_context>
chip_gen: v7x
topology: tpu7x:2x2x1
jax: 0.10.0
libtpu: 0.0.40
codegen_flags: <defaults>
</compile_context>

<pallas_src>
import jax
import jax.numpy as jnp
from jax import lax
from jax.experimental import pallas as pl
from jax.experimental.pallas import tpu as pltpu

B, T, E, H, NUM_CLASSES, VOCAB = 2, 8, 32, 32, 3, 50

_VMEM = pl.BlockSpec(memory_space=pltpu.MemorySpace.VMEM)


# ----------------------------- fused Pallas kernel ---------------------------

def _drlstm_kernel(x_ref, mbf_ref, mtm_ref, m3_ref,
                   wih1_ref, whh1_ref, b1_ref,
                   wih2_ref, whh2_ref, b2_ref,
                   wih3_ref, whh3_ref, b3_ref,
                   wih4_ref, whh4_ref, b4_ref,
                   pw_ref, pb_ref, cw1_ref, cb1_ref, cw2_ref, cb2_ref,
                   o_ref, enc_a_ref, enc_b_ref):
    """Whole DRLSTM forward (post-embedding) in one kernel.

    x_ref   : [T*NC, E]  time-major embedded tokens (row = t*NC + c); columns
              are [premise_0..premise_{B-1}, hypothesis_0..hypothesis_{B-1}].
    mbf_ref : [NC, T], mtm_ref: [T, NC], m3_ref: [T, NC, 1] validity masks.
    w*_ref  : per-encoder [2, D, 4H] / [2, H, 4H] / [2, 1, 4H] (dir 0=fwd,
              1=bwd), PyTorch gate order i,f,g,o; bias = b_ih + b_hh.
    o_ref   : [B, NUM_CLASSES] logits.
    enc_a_ref / enc_b_ref : [T, NC, 2H] VMEM scratch holding the stage-A (enc2)
              and stage-B (enc4) bidirectional outputs.
    """
    Tt, NC, D2 = enc_a_ref.shape
    Hh = D2 // 2
    NS = 2 * NC
    Bb = NC // 2

    row_is_fwd = lax.broadcasted_iota(jnp.int32, (NS, 1), 0) < NC

    # ---- dual BiLSTM: encoder A (zero init) feeds crossed finals into B ----
    def dual_bilstm(x2, wihA_ref, whhA_ref, bA_ref, wihB_ref, whhB_ref, bB_ref,
                    y_ref):
        def run(wih_ref, whh_ref, b_ref, h0, c0, write_y):
            # Hoisted input projection + bias: off the recurrent critical path.
            gx_f = jnp.dot(x2, wih_ref[0], preferred_element_type=jnp.float32) + b_ref[0]
            gx_b = jnp.dot(x2, wih_ref[1], preferred_element_type=jnp.float32) + b_ref[1]
            w_f = whh_ref[0]
            w_b = whh_ref[1]
            h, c = h0, c0
            for t in range(Tt):                               # static -> fully unrolled
                tb = Tt - 1 - t                               # backward-direction time idx
                gx_t = jnp.concatenate(
                    [gx_f[t * NC:(t + 1) * NC], gx_b[tb * NC:(tb + 1) * NC]], axis=0)
                rec = jnp.where(row_is_fwd,
                                jnp.dot(h, w_f, preferred_element_type=jnp.float32),
                                jnp.dot(h, w_b, preferred_element_type=jnp.float32))
                gates = gx_t + rec                            # [NS, 4H]
                i_g = jax.nn.sigmoid(gates[:, 0:Hh])
                f_g = jax.nn.sigmoid(gates[:, Hh:2 * Hh])
                g_g = jnp.tanh(gates[:, 2 * Hh:3 * Hh])
                o_g = jax.nn.sigmoid(gates[:, 3 * Hh:4 * Hh])
                c = f_g * c + i_g * g_g
                h = o_g * jnp.tanh(c)
                if write_y:
                    y_ref[t, :, 0:Hh] = h[0:NC]               # fwd outputs at time t
                    y_ref[tb, :, Hh:2 * Hh] = h[NC:NS]        # bwd outputs at time T-1-t
            return h, c

        zeros = jnp.zeros((NS, Hh), jnp.float32)
        hA, cA = run(wihA_ref, whhA_ref, bA_ref, zeros, zeros, write_y=False)

        def swap_ph(s):  # swap premise/hypothesis columns within each direction block
            return jnp.concatenate(
                [s[Bb:NC], s[0:Bb], s[NC + Bb:NS], s[NC:NC + Bb]], axis=0)

        run(wihB_ref, whhB_ref, bB_ref, swap_ph(hA), swap_ph(cA), write_y=True)

    # ---- Stage A: enc1 (zero init) -> enc2 (crossed finals) ----
    dual_bilstm(x_ref[...], wih1_ref, whh1_ref, b1_ref,
                wih2_ref, whh2_ref, b2_ref, enc_a_ref)

    # ---- SoftmaxAttention + enhancement (cat,diff,prod) + projection ----
    enc = enc_a_ref[...]                                      # [T, NC, 2H]
    mbf = mbf_ref[...]
    mtm = mtm_ref[...]

    def masked_softmax(scores, key_mask_row):                 # mask over last axis
        s = scores * key_mask_row
        s = s - jnp.max(s, axis=-1, keepdims=True)
        e = jnp.exp(s) * key_mask_row
        inv = pl.reciprocal(jnp.sum(e, axis=-1, keepdims=True) + 1e-13, approx=True)
        return e * inv

    enh_p, enh_h = [], []
    for b in range(Bb):                                       # static: B = 2
        ep = enc[:, b, :]                                     # [Tp, 2H] premise b
        eh = enc[:, Bb + b, :]                                # [Th, 2H] hypothesis b
        pm_row = mbf[b:b + 1, :]                              # [1, Tp]
        hm_row = mbf[Bb + b:Bb + b + 1, :]                    # [1, Th]
        pm_col = mtm[:, b:b + 1]                              # [Tp, 1]
        hm_col = mtm[:, Bb + b:Bb + b + 1]                    # [Th, 1]

        sim_ph = jnp.einsum('pd,qd->pq', ep, eh, preferred_element_type=jnp.float32)
        sim_hp = jnp.einsum('qd,pd->qp', eh, ep, preferred_element_type=jnp.float32)
        attn_p = masked_softmax(sim_ph, hm_row)               # [Tp, Th]
        attn_h = masked_softmax(sim_hp, pm_row)               # [Th, Tp]
        att_p = jnp.dot(attn_p, eh, preferred_element_type=jnp.float32) * pm_col
        att_h = jnp.dot(attn_h, ep, preferred_element_type=jnp.float32) * hm_col

        enh_p.append(jnp.concatenate([ep, att_p, ep - att_p, ep * att_p], axis=-1))
        enh_h.append(jnp.concatenate([eh, att_h, eh - att_h, eh * att_h], axis=-1))

    # Dropout is identity at inference; one sublane-dense projection matmul for
    # all rows of both sentences (rows in (c, t) order).
    enh_all = jnp.concatenate(enh_p + enh_h, axis=0)          # [NC*T, 8H]
    proj = jnp.dot(enh_all, pw_ref[...], preferred_element_type=jnp.float32) + pb_ref[...]
    proj = jnp.maximum(proj, 0.0)                             # [NC*T, H]

    # Interleave rows (c, t) -> (t, c) for the stage-B stacked recurrence.
    x2b = jnp.concatenate(
        [proj[c * Tt + t:c * Tt + t + 1, :] for t in range(Tt) for c in range(NC)],
        axis=0)                                               # [T*NC, H]

    # ---- Stage B: enc3 (zero init) -> enc4 (crossed finals) ----
    dual_bilstm(x2b, wih3_ref, whh3_ref, b3_ref,
                wih4_ref, whh4_ref, b4_ref, enc_b_ref)

    # ---- WordSentencePooling('max','avg') for premise & hypothesis + classifier ----
    # TODO(synk): WordSentencePooling/check_pool_out_dim source is not provided;
    # reconstructed per pooling_method_lst=('max','avg','max','avg') as masked
    # max over stage-A encodings + masked avg over stage-B encodings over the
    # length mask, giving an 8*H classifier input.
    m = m3_ref[...]                                           # [T, NC, 1]
    mx = jnp.max(jnp.where(m > 0.0, enc_a_ref[...], -1e30), axis=0)      # [NC, 2H]
    ssum = jnp.sum(enc_b_ref[...] * m, axis=0)                            # [NC, 2H]
    avg = ssum * pl.reciprocal(jnp.sum(m, axis=0), approx=True)           # [NC, 2H]
    feat = jnp.concatenate([mx[0:Bb], avg[0:Bb], mx[Bb:NC], avg[Bb:NC]], axis=-1)  # [B, 8H]
    hid = jnp.tanh(jnp.dot(feat, cw1_ref[...], preferred_element_type=jnp.float32)
                   + cb1_ref[...])
    o_ref[...] = (jnp.dot(hid, cw2_ref[...], preferred_element_type=jnp.float32)
                  + cb2_ref[...])


# ----------------------------- parameters -----------------------------------

def _glorot(key, shape):
    fan_in, fan_out = shape
    lim = (6.0 / (fan_in + fan_out)) ** 0.5
    return jax.random.uniform(key, shape, jnp.float32, -lim, lim)


def _bilstm_params(key, d_in, hidden):
    """Bidirectional LSTM params stacked on a leading direction axis (0=fwd)."""
    def one(k):
        k1, k2 = jax.random.split(k)
        w_ih = _glorot(k1, (d_in, 4 * hidden))                # stored transposed vs torch
        w_hh = jnp.transpose(jax.nn.initializers.orthogonal()(k2, (4 * hidden, hidden)))
        # bias = b_ih + b_hh; torch init sets the b_hh forget-gate segment to 1.0
        b = jnp.zeros((1, 4 * hidden), jnp.float32).at[0, hidden:2 * hidden].set(1.0)
        return w_ih, w_hh, b

    kf, kb = jax.random.split(key)
    wif, whf, bf = one(kf)
    wib, whb, bb = one(kb)
    return {'w_ih': jnp.stack([wif, wib]),
            'w_hh': jnp.stack([whf, whb]),
            'b': jnp.stack([bf, bb])}


def init_params(key):
    keys = jax.random.split(key, 8)
    return {
        'embedding': jax.random.normal(keys[0], (VOCAB, E), jnp.float32) * 0.1,
        'enc1': _bilstm_params(keys[1], E, H),
        'enc2': _bilstm_params(keys[2], E, H),
        'enc3': _bilstm_params(keys[3], H, H),
        'enc4': _bilstm_params(keys[4], H, H),
        'proj_w': _glorot(keys[5], (8 * H, H)),
        'proj_b': jnp.zeros((1, H), jnp.float32),
        'cls_w1': _glorot(keys[6], (8 * H, H)),
        'cls_b1': jnp.zeros((1, H), jnp.float32),
        'cls_w2': _glorot(keys[7], (H, NUM_CLASSES)),
        'cls_b2': jnp.zeros((1, NUM_CLASSES), jnp.float32),
    }


# ----------------------------- model glue ------------------------------------

def drlstm_forward(params, premises, premises_lengths, hypotheses, hypotheses_lengths):
    # TODO(synk): pack_padded_sequence reverses only the valid prefix per row;
    # here full lengths are used so in-kernel full-sequence reversal matches.
    Bb, Tt = premises.shape
    NC = 2 * Bb

    lengths = jnp.concatenate([premises_lengths, hypotheses_lengths], axis=0)   # [NC]
    pos = jnp.arange(Tt)
    mask_bf = (pos[None, :] < lengths[:, None]).astype(jnp.float32)             # [NC, T]
    mask_tm = (pos[:, None] < lengths[None, :]).astype(jnp.float32)             # [T, NC]
    mask_tm3 = mask_tm[:, :, None]                                              # [T, NC, 1]

    # Embedding lookup (gather stays in XLA), already time-major flattened:
    # row t*NC + c holds token embedding of sequence-column c at time t.
    tok = jnp.concatenate([premises, hypotheses], axis=0)                       # [NC, T]
    x2d = jnp.take(params['embedding'], jnp.transpose(tok).reshape(-1), axis=0)  # [T*NC, E]

    logits = pl.pallas_call(
        _drlstm_kernel,
        out_shape=jax.ShapeDtypeStruct((Bb, NUM_CLASSES), jnp.float32),
        in_specs=[_VMEM] * 22,
        out_specs=_VMEM,
        scratch_shapes=[pltpu.VMEM((Tt, NC, 2 * H), jnp.float32),   # stage-A encodings
                        pltpu.VMEM((Tt, NC, 2 * H), jnp.float32)],  # stage-B encodings
    )(x2d, mask_bf, mask_tm, mask_tm3,
      params['enc1']['w_ih'], params['enc1']['w_hh'], params['enc1']['b'],
      params['enc2']['w_ih'], params['enc2']['w_hh'], params['enc2']['b'],
      params['enc3']['w_ih'], params['enc3']['w_hh'], params['enc3']['b'],
      params['enc4']['w_ih'], params['enc4']['w_hh'], params['enc4']['b'],
      params['proj_w'], params['proj_b'],
      params['cls_w1'], params['cls_b1'], params['cls_w2'], params['cls_b2'])
    return logits


if __name__ == "__main__":
    key = jax.random.PRNGKey(0)
    kp, kh, kw = jax.random.split(key, 3)
    premises = jax.random.randint(kp, (B, T), 1, VOCAB)
    hypotheses = jax.random.randint(kh, (B, T), 1, VOCAB)
    premises_lengths = jnp.full((B,), T, dtype=jnp.int32)
    hypotheses_lengths = jnp.full((B,), T, dtype=jnp.int32)
    params = init_params(kw)

    logits = jax.jit(drlstm_forward)(params, premises, premises_lengths,
                                     hypotheses, hypotheses_lengths)
    jax.block_until_ready(logits)
    assert logits.shape == (B, NUM_CLASSES)
    print("KERNEL_OK")
</pallas_src>

<mosaic_0001>
module attributes {stable_mosaic.version = 11 : i64} {
  func.func @_drlstm_kernel(%arg0: memref<32x32xf32, #tpu.memory_space<vmem>>, %arg1: memref<4x8xf32, #tpu.memory_space<vmem>>, %arg2: memref<8x4xf32, #tpu.memory_space<vmem>>, %arg3: memref<8x4x1xf32, #tpu.memory_space<vmem>>, %arg4: memref<2x32x128xf32, #tpu.memory_space<vmem>>, %arg5: memref<2x32x128xf32, #tpu.memory_space<vmem>>, %arg6: memref<2x1x128xf32, #tpu.memory_space<vmem>>, %arg7: memref<2x32x128xf32, #tpu.memory_space<vmem>>, %arg8: memref<2x32x128xf32, #tpu.memory_space<vmem>>, %arg9: memref<2x1x128xf32, #tpu.memory_space<vmem>>, %arg10: memref<2x32x128xf32, #tpu.memory_space<vmem>>, %arg11: memref<2x32x128xf32, #tpu.memory_space<vmem>>, %arg12: memref<2x1x128xf32, #tpu.memory_space<vmem>>, %arg13: memref<2x32x128xf32, #tpu.memory_space<vmem>>, %arg14: memref<2x32x128xf32, #tpu.memory_space<vmem>>, %arg15: memref<2x1x128xf32, #tpu.memory_space<vmem>>, %arg16: memref<256x32xf32, #tpu.memory_space<vmem>>, %arg17: memref<1x32xf32, #tpu.memory_space<vmem>>, %arg18: memref<256x32xf32, #tpu.memory_space<vmem>>, %arg19: memref<1x32xf32, #tpu.memory_space<vmem>>, %arg20: memref<32x3xf32, #tpu.memory_space<vmem>>, %arg21: memref<1x3xf32, #tpu.memory_space<vmem>>, %arg22: memref<2x3xf32, #tpu.memory_space<vmem>>, %arg23: memref<8x4x64xf32, #tpu.memory_space<vmem>>, %arg24: memref<8x4x64xf32, #tpu.memory_space<vmem>>) attributes {dimension_semantics = [], scalar_prefetch = 0 : i64, scratch_operands = 2 : i64, tpu.core_type = #tpu.core_type<tc>} {
    %0 = tpu.iota {dimensions = array<i32: 0>} : vector<8x1xi32>
    %c4_i32 = arith.constant 4 : i32
    %1 = vector.broadcast %c4_i32 : i32 to vector<8x1xi32>
    %2 = arith.cmpi slt, %0, %1 : vector<8x1xi32>
    %c0 = arith.constant 0 : index
    %c0_0 = arith.constant 0 : index
    %3 = vector.load %arg0[%c0, %c0_0] : memref<32x32xf32, #tpu.memory_space<vmem>>, vector<32x32xf32>
    %cst = arith.constant 0.000000e+00 : f32
    %4 = vector.broadcast %cst : f32 to vector<8x32xf32>
    %c0_1 = arith.constant 0 : index
    %c0_2 = arith.constant 0 : index
    %c0_3 = arith.constant 0 : index
    %5 = vector.load %arg4[%c0_1, %c0_2, %c0_3] : memref<2x32x128xf32, #tpu.memory_space<vmem>>, vector<1x32x128xf32>
    %6 = vector.shape_cast %5 : vector<1x32x128xf32> to vector<32x128xf32>
    %cst_4 = arith.constant dense<0.000000e+00> : vector<32x128xf32>
    %7 = tpu.matmul %3, %6, %cst_4 {dimension_numbers = #tpu.dot_dimension_numbers<[1], [0], [0], [1], [0, 0, 1, 1], [], []>} : vector<32x32xf32>, vector<32x128xf32>, vector<32x128xf32> -> vector<32x128xf32>
    %c0_5 = arith.constant 0 : index
    %c0_6 = arith.constant 0 : index
    %c0_7 = arith.constant 0 : index
    %8 = vector.load %arg6[%c0_5, %c0_6, %c0_7] : memref<2x1x128xf32, #tpu.memory_space<vmem>>, vector<1x1x128xf32>
    %9 = vector.shape_cast %8 : vector<1x1x128xf32> to vector<1x128xf32>
    %10 = vector.broadcast %9 : vector<1x128xf32> to vector<32x128xf32>
    %11 = arith.addf %7, %10 : vector<32x128xf32>
    %c1 = arith.constant 1 : index
    %c0_8 = arith.constant 0 : index
    %c0_9 = arith.constant 0 : index
    %12 = vector.load %arg4[%c1, %c0_8, %c0_9] : memref<2x32x128xf32, #tpu.memory_space<vmem>>, vector<1x32x128xf32>
    %13 = vector.shape_cast %12 : vector<1x32x128xf32> to vector<32x128xf32>
    %cst_10 = arith.constant dense<0.000000e+00> : vector<32x128xf32>
    %14 = tpu.matmul %3, %13, %cst_10 {dimension_numbers = #tpu.dot_dimension_numbers<[1], [0], [0], [1], [0, 0, 1, 1], [], []>} : vector<32x32xf32>, vector<32x128xf32>, vector<32x128xf32> -> vector<32x128xf32>
    %c1_11 = arith.constant 1 : index
    %c0_12 = arith.constant 0 : index
    %c0_13 = arith.constant 0 : index
    %15 = vector.load %arg6[%c1_11, %c0_12, %c0_13] : memref<2x1x128xf32, #tpu.memory_space<vmem>>, vector<1x1x128xf32>
    %16 = vector.shape_cast %15 : vector<1x1x128xf32> to vector<1x128xf32>
    %17 = vector.broadcast %16 : vector<1x128xf32> to vector<32x128xf32>
    %18 = arith.addf %14, %17 : vector<32x128xf32>
    %c0_14 = arith.constant 0 : index
    %c0_15 = arith.constant 0 : index
    %c0_16 = arith.constant 0 : index
    %19 = vector.load %arg5[%c0_14, %c0_15, %c0_16] : memref<2x32x128xf32, #tpu.memory_space<vmem>>, vector<1x32x128xf32>
    %20 = vector.shape_cast %19 : vector<1x32x128xf32> to vector<32x128xf32>
    %c1_17 = arith.constant 1 : index
    %c0_18 = arith.constant 0 : index
    %c0_19 = arith.constant 0 : index
    %21 = vector.load %arg5[%c1_17, %c0_18, %c0_19] : memref<2x32x128xf32, #tpu.memory_space<vmem>>, vector<1x32x128xf32>
    %22 = vector.shape_cast %21 : vector<1x32x128xf32> to vector<32x128xf32>
    %23 = vector.extract_strided_slice %11 {offsets = [0, 0], sizes = [4, 128], strides = [1, 1]} : vector<32x128xf32> to vector<4x128xf32>
    %24 = vector.extract_strided_slice %18 {offsets = [28, 0], sizes = [4, 128], strides = [1, 1]} : vector<32x128xf32> to vector<4x128xf32>
    %25 = tpu.concatenate %23, %24 in 0 : vector<4x128xf32>, vector<4x128xf32> -> vector<8x128xf32>
    %cst_20 = arith.constant dense<0.000000e+00> : vector<8x128xf32>
    %26 = tpu.matmul %4, %20, %cst_20 {dimension_numbers = #tpu.dot_dimension_numbers<[1], [0], [0], [1], [0, 0, 1, 1], [], []>} : vector<8x32xf32>, vector<32x128xf32>, vector<8x128xf32> -> vector<8x128xf32>
    %cst_21 = arith.constant dense<0.000000e+00> : vector<8x128xf32>
    %27 = tpu.matmul %4, %22, %cst_21 {dimension_numbers = #tpu.dot_dimension_numbers<[1], [0], [0], [1], [0, 0, 1, 1], [], []>} : vector<8x32xf32>, vector<32x128xf32>, vector<8x128xf32> -> vector<8x128xf32>
    %28 = vector.shape_cast %2 : vector<8x1xi1> to vector<8x1xi1>
    %29 = vector.broadcast %28 : vector<8x1xi1> to vector<8x128xi1>
    %30 = arith.select %29, %26, %27 : vector<8x128xi1>, vector<8x128xf32>
    %31 = arith.addf %25, %30 : vector<8x128xf32>
    %32 = vector.extract_strided_slice %31 {offsets = [0, 0], sizes = [8, 32], strides = [1, 1]} : vector<8x128xf32> to vector<8x32xf32>
    %33 = arith.negf %32 : vector<8x32xf32>
    %34 = math.exp %33 : vector<8x32xf32>
    %cst_22 = arith.constant 1.000000e+00 : f32
    %35 = vector.broadcast %cst_22 : f32 to vector<8x32xf32>
    %36 = arith.addf %35, %34 : vector<8x32xf32>
    %37 = arith.divf %35, %36 : vector<8x32xf32>
    %38 = vector.extract_strided_slice %31 {offsets = [0, 32], sizes = [8, 32], strides = [1, 1]} : vector<8x128xf32> to vector<8x32xf32>
    %39 = arith.negf %38 : vector<8x32xf32>
    %40 = math.exp %39 : vector<8x32xf32>
    %cst_23 = arith.constant 1.000000e+00 : f32
    %41 = vector.broadcast %cst_23 : f32 to vector<8x32xf32>
    %42 = arith.addf %41, %40 : vector<8x32xf32>
    %43 = arith.divf %41, %42 : vector<8x32xf32>
    %44 = vector.extract_strided_slice %31 {offsets = [0, 64], sizes = [8, 32], strides = [1, 1]} : vector<8x128xf32> to vector<8x32xf32>
    %45 = math.tanh %44 : vector<8x32xf32>
    %46 = vector.extract_strided_slice %31 {offsets = [0, 96], sizes = [8, 32], strides = [1, 1]} : vector<8x128xf32> to vector<8x32xf32>
    %47 = arith.negf %46 : vector<8x32xf32>
    %48 = math.exp %47 : vector<8x32xf32>
    %cst_24 = arith.constant 1.000000e+00 : f32
    %49 = vector.broadcast %cst_24 : f32 to vector<8x32xf32>
    %50 = arith.addf %49, %48 : vector<8x32xf32>
    %51 = arith.divf %49, %50 : vector<8x32xf32>
    %52 = arith.mulf %43, %4 : vector<8x32xf32>
    %53 = arith.mulf %37, %45 : vector<8x32xf32>
    %54 = arith.addf %52, %53 : vector<8x32xf32>
    %55 = math.tanh %54 : vector<8x32xf32>
    %56 = arith.mulf %51, %55 : vector<8x32xf32>
    %57 = vector.extract_strided_slice %11 {offsets = [4, 0], sizes = [4, 128], strides = [1, 1]} : vector<32x128xf32> to vector<4x128xf32>
    %58 = vector.extract_strided_slice %18 {offsets = [24, 0], sizes = [4, 128], strides = [1, 1]} : vector<32x128xf32> to vector<4x128xf32>
    %59 = tpu.concatenate %57, %58 in 0 : vector<4x128xf32>, vector<4x128xf32> -> vector<8x128xf32>
    %cst_25 = arith.constant dense<0.000000e+00> : vector<8x128xf32>
    %60 = tpu.matmul %56, %20, %cst_25 {dimension_numbers = #tpu.dot_dimension_numbers<[1], [0], [0], [1], [0, 0, 1, 1], [], []>} : vector<8x32xf32>, vector<32x128xf32>, vector<8x128xf32> -> vector<8x128xf32>
    %cst_26 = arith.constant dense<0.000000e+00> : vector<8x128xf32>
    %61 = tpu.matmul %56, %22, %cst_26 {dimension_numbers = #tpu.dot_dimension_numbers<[1], [0], [0], [1], [0, 0, 1, 1], [], []>} : vector<8x32xf32>, vector<32x128xf32>, vector<8x128xf32> -> vector<8x128xf32>
    %62 = vector.shape_cast %2 : vector<8x1xi1> to vector<8x1xi1>
    %63 = vector.broadcast %62 : vector<8x1xi1> to vector<8x128xi1>
    %64 = arith.select %63, %60, %61 : vector<8x128xi1>, vector<8x128xf32>
    %65 = arith.addf %59, %64 : vector<8x128xf32>
    %66 = vector.extract_strided_slice %65 {offsets = [0, 0], sizes = [8, 32], strides = [1, 1]} : vector<8x128xf32> to vector<8x32xf32>
    %67 = arith.negf %66 : vector<8x32xf32>
    %68 = math.exp %67 : vector<8x32xf32>
    %cst_27 = arith.constant 1.000000e+00 : f32
    %69 = vector.broadcast %cst_27 : f32 to vector<8x32xf32>
    %70 = arith.addf %69, %68 : vector<8x32xf32>
    %71 = arith.divf %69, %70 : vector<8x32xf32>
    %72 = vector.extract_strided_slice %65 {offsets = [0, 32], sizes = [8, 32], strides = [1, 1]} : vector<8x128xf32> to vector<8x32xf32>
    %73 = arith.negf %72 : vector<8x32xf32>
    %74 = math.exp %73 : vector<8x32xf32>
    %cst_28 = arith.constant 1.000000e+00 : f32
    %75 = vector.broadcast %cst_28 : f32 to vector<8x32xf32>
    %76 = arith.addf %75, %74 : vector<8x32xf32>
    %77 = arith.divf %75, %76 : vector<8x32xf32>
    %78 = vector.extract_strided_slice %65 {offsets = [0, 64], sizes = [8, 32], strides = [1, 1]} : vector<8x128xf32> to vector<8x32xf32>
    %79 = math.tanh %78 : vector<8x32xf32>
    %80 = vector.extract_strided_slice %65 {offsets = [0, 96], sizes = [8, 32], strides = [1, 1]} : vector<8x128xf32> to vector<8x32xf32>
    %81 = arith.negf %80 : vector<8x32xf32>
    %82 = math.exp %81 : vector<8x32xf32>
    %cst_29 = arith.constant 1.000000e+00 : f32
    %83 = vector.broadcast %cst_29 : f32 to vector<8x32xf32>
    %84 = arith.addf %83, %82 : vector<8x32xf32>
    %85 = arith.divf %83, %84 : vector<8x32xf32>
    %86 = arith.mulf %77, %54 : vector<8x32xf32>
    %87 = arith.mulf %71, %79 : vector<8x32xf32>
    %88 = arith.addf %86, %87 : vector<8x32xf32>
    %89 = math.tanh %88 : vector<8x32xf32>
    %90 = arith.mulf %85, %89 : vector<8x32xf32>
    %91 = vector.extract_strided_slice %11 {offsets = [8, 0], sizes = [4, 128], strides = [1, 1]} : vector<32x128xf32> to vector<4x128xf32>
    %92 = vector.extract_strided_slice %18 {offsets = [20, 0], sizes = [4, 128], strides = [1, 1]} : vector<32x128xf32> to vector<4x128xf32>
    %93 = tpu.concatenate %91, %92 in 0 : vector<4x128xf32>, vector<4x128xf32> -> vector<8x128xf32>
    %cst_30 = arith.constant dense<0.000000e+00> : vector<8x128xf32>
    %94 = tpu.matmul %90, %20, %cst_30 {dimension_numbers = #tpu.dot_dimension_numbers<[1], [0], [0], [1], [0, 0, 1, 1], [], []>} : vector<8x32xf32>, vector<32x128xf32>, vector<8x128xf32> -> vector<8x128xf32>
    %cst_31 = arith.constant dense<0.000000e+00> : vector<8x128xf32>
    %95 = tpu.matmul %90, %22, %cst_31 {dimension_numbers = #tpu.dot_dimension_numbers<[1], [0], [0], [1], [0, 0, 1, 1], [], []>} : vector<8x32xf32>, vector<32x128xf32>, vector<8x128xf32> -> vector<8x128xf32>
    %96 = vector.shape_cast %2 : vector<8x1xi1> to vector<8x1xi1>
    %97 = vector.broadcast %96 : vector<8x1xi1> to vector<8x128xi1>
    %98 = arith.select %97, %94, %95 : vector<8x128xi1>, vector<8x128xf32>
    %99 = arith.addf %93, %98 : vector<8x128xf32>
    %100 = vector.extract_strided_slice %99 {offsets = [0, 0], sizes = [8, 32], strides = [1, 1]} : vector<8x128xf32> to vector<8x32xf32>
    %101 = arith.negf %100 : vector<8x32xf32>
    %102 = math.exp %101 : vector<8x32xf32>
    %cst_32 = arith.constant 1.000000e+00 : f32
    %103 = vector.broadcast %cst_32 : f32 to vector<8x32xf32>
    %104 = arith.addf %103, %102 : vector<8x32xf32>
    %105 = arith.divf %103, %104 : vector<8x32xf32>
    %106 = vector.extract_strided_slice %99 {offsets = [0, 32], sizes = [8, 32], strides = [1, 1]} : vector<8x128xf32> to vector<8x32xf32>
    %107 = arith.negf %106 : vector<8x32xf32>
    %108 = math.exp %107 : vector<8x32xf32>
    %cst_33 = arith.constant 1.000000e+00 : f32
    %109 = vector.broadcast %cst_33 : f32 to vector<8x32xf32>
    %110 = arith.addf %109, %108 : vector<8x32xf32>
    %111 = arith.divf %109, %110 : vector<8x32xf32>
    %112 = vector.extract_strided_slice %99 {offsets = [0, 64], sizes = [8, 32], strides = [1, 1]} : vector<8x128xf32> to vector<8x32xf32>
    %113 = math.tanh %112 : vector<8x32xf32>
    %114 = vector.extract_strided_slice %99 {offsets = [0, 96], sizes = [8, 32], strides = [1, 1]} : vector<8x128xf32> to vector<8x32xf32>
    %115 = arith.negf %114 : vector<8x32xf32>
    %116 = math.exp %115 : vector<8x32xf32>
    %cst_34 = arith.constant 1.000000e+00 : f32
    %117 = vector.broadcast %cst_34 : f32 to vector<8x32xf32>
    %118 = arith.addf %117, %116 : vector<8x32xf32>
    %119 = arith.divf %117, %118 : vector<8x32xf32>
    %120 = arith.mulf %111, %88 : vector<8x32xf32>
    %121 = arith.mulf %105, %113 : vector<8x32xf32>
    %122 = arith.addf %120, %121 : vector<8x32xf32>
    %123 = math.tanh %122 : vector<8x32xf32>
    %124 = arith.mulf %119, %123 : vector<8x32xf32>
    %125 = vector.extract_strided_slice %11 {offsets = [12, 0], sizes = [4, 128], strides = [1, 1]} : vector<32x128xf32> to vector<4x128xf32>
    %126 = vector.extract_strided_slice %18 {offsets = [16, 0], sizes = [4, 128], strides = [1, 1]} : vector<32x128xf32> to vector<4x128xf32>
    %127 = tpu.concatenate %125, %126 in 0 : vector<4x128xf32>, vector<4x128xf32> -> vector<8x128xf32>
    %cst_35 = arith.constant dense<0.000000e+00> : vector<8x128xf32>
    %128 = tpu.matmul %124, %20, %cst_35 {dimension_numbers = #tpu.dot_dimension_numbers<[1], [0], [0], [1], [0, 0, 1, 1], [], []>} : vector<8x32xf32>, vector<32x128xf32>, vector<8x128xf32> -> vector<8x128xf32>
    %cst_36 = arith.constant dense<0.000000e+00> : vector<8x128xf32>
    %129 = tpu.matmul %124, %22, %cst_36 {dimension_numbers = #tpu.dot_dimension_numbers<[1], [0], [0], [1], [0, 0, 1, 1], [], []>} : vector<8x32xf32>, vector<32x128xf32>, vector<8x128xf32> -> vector<8x128xf32>
    %130 = vector.shape_cast %2 : vector<8x1xi1> to vector<8x1xi1>
    %131 = vector.broadcast %130 : vector<8x1xi1> to vector<8x128xi1>
    %132 = arith.select %131, %128, %129 : vector<8x128xi1>, vector<8x128xf32>
    %133 = arith.addf %127, %132 : vector<8x128xf32>
    %134 = vector.extract_strided_slice %133 {offsets = [0, 0], sizes = [8, 32], strides = [1, 1]} : vector<8x128xf32> to vector<8x32xf32>
    %135 = arith.negf %134 : vector<8x32xf32>
    %136 = math.exp %135 : vector<8x32xf32>
    %cst_37 = arith.constant 1.000000e+00 : f32
    %137 = vector.broadcast %cst_37 : f32 to vector<8x32xf32>
    %138 = arith.addf %137, %136 : vector<8x32xf32>
    %139 = arith.divf %137, %138 : vector<8x32xf32>
    %140 = vector.extract_strided_slice %133 {offsets = [0, 32], sizes = [8, 32], strides = [1, 1]} : vector<8x128xf32> to vector<8x32xf32>
    %141 = arith.negf %140 : vector<8x32xf32>
    %142 = math.exp %141 : vector<8x32xf32>
    %cst_38 = arith.constant 1.000000e+00 : f32
    %143 = vector.broadcast %cst_38 : f32 to vector<8x32xf32>
    %144 = arith.addf %143, %142 : vector<8x32xf32>
    %145 = arith.divf %143, %144 : vector<8x32xf32>
    %146 = vector.extract_strided_slice %133 {offsets = [0, 64], sizes = [8, 32], strides = [1, 1]} : vector<8x128xf32> to vector<8x32xf32>
    %147 = math.tanh %146 : vector<8x32xf32>
    %148 = vector.extract_strided_slice %133 {offsets = [0, 96], sizes = [8, 32], strides = [1, 1]} : vector<8x128xf32> to vector<8x32xf32>
    %149 = arith.negf %148 : vector<8x32xf32>
    %150 = math.exp %149 : vector<8x32xf32>
    %cst_39 = arith.constant 1.000000e+00 : f32
    %151 = vector.broadcast %cst_39 : f32 to vector<8x32xf32>
    %152 = arith.addf %151, %150 : vector<8x32xf32>
    %153 = arith.divf %151, %152 : vector<8x32xf32>
    %154 = arith.mulf %145, %122 : vector<8x32xf32>
    %155 = arith.mulf %139, %147 : vector<8x32xf32>
    %156 = arith.addf %154, %155 : vector<8x32xf32>
    %157 = math.tanh %156 : vector<8x32xf32>
    %158 = arith.mulf %153, %157 : vector<8x32xf32>
    %159 = vector.extract_strided_slice %11 {offsets = [16, 0], sizes = [4, 128], strides = [1, 1]} : vector<32x128xf32> to vector<4x128xf32>
    %160 = vector.extract_strided_slice %18 {offsets = [12, 0], sizes = [4, 128], strides = [1, 1]} : vector<32x128xf32> to vector<4x128xf32>
    %161 = tpu.concatenate %159, %160 in 0 : vector<4x128xf32>, vector<4x128xf32> -> vector<8x128xf32>
    %cst_40 = arith.constant dense<0.000000e+00> : vector<8x128xf32>
    %162 = tpu.matmul %158, %20, %cst_40 {dimension_numbers = #tpu.dot_dimension_numbers<[1], [0], [0], [1], [0, 0, 1, 1], [], []>} : vector<8x32xf32>, vector<32x128xf32>, vector<8x128xf32> -> vector<8x128xf32>
    %cst_41 = arith.constant dense<0.000000e+00> : vector<8x128xf32>
    %163 = tpu.matmul %158, %22, %cst_41 {dimension_numbers = #tpu.dot_dimension_numbers<[1], [0], [0], [1], [0, 0, 1, 1], [], []>} : vector<8x32xf32>, vector<32x128xf32>, vector<8x128xf32> -> vector<8x128xf32>
    %164 = vector.shape_cast %2 : vector<8x1xi1> to vector<8x1xi1>
    %165 = vector.broadcast %164 : vector<8x1xi1> to vector<8x128xi1>
    %166 = arith.select %165, %162, %163 : vector<8x128xi1>, vector<8x128xf32>
    %167 = arith.addf %161, %166 : vector<8x128xf32>
    %168 = vector.extract_strided_slice %167 {offsets = [0, 0], sizes = [8, 32], strides = [1, 1]} : vector<8x128xf32> to vector<8x32xf32>
    %169 = arith.negf %168 : vector<8x32xf32>
    %170 = math.exp %169 : vector<8x32xf32>
    %cst_42 = arith.constant 1.000000e+00 : f32
    %171 = vector.broadcast %cst_42 : f32 to vector<8x32xf32>
    %172 = arith.addf %171, %170 : vector<8x32xf32>
    %173 = arith.divf %171, %172 : vector<8x32xf32>
    %174 = vector.extract_strided_slice %167 {offsets = [0, 32], sizes = [8, 32], strides = [1, 1]} : vector<8x128xf32> to vector<8x32xf32>
    %175 = arith.negf %174 : vector<8x32xf32>
    %176 = math.exp %175 : vector<8x32xf32>
    %cst_43 = arith.constant 1.000000e+00 : f32
    %177 = vector.broadcast %cst_43 : f32 to vector<8x32xf32>
    %178 = arith.addf %177, %176 : vector<8x32xf32>
    %179 = arith.divf %177, %178 : vector<8x32xf32>
    %180 = vector.extract_strided_slice %167 {offsets = [0, 64], sizes = [8, 32], strides = [1, 1]} : vector<8x128xf32> to vector<8x32xf32>
    %181 = math.tanh %180 : vector<8x32xf32>
    %182 = vector.extract_strided_slice %167 {offsets = [0, 96], sizes = [8, 32], strides = [1, 1]} : vector<8x128xf32> to vector<8x32xf32>
    %183 = arith.negf %182 : vector<8x32xf32>
    %184 = math.exp %183 : vector<8x32xf32>
    %cst_44 = arith.constant 1.000000e+00 : f32
    %185 = vector.broadcast %cst_44 : f32 to vector<8x32xf32>
    %186 = arith.addf %185, %184 : vector<8x32xf32>
    %187 = arith.divf %185, %186 : vector<8x32xf32>
    %188 = arith.mulf %179, %156 : vector<8x32xf32>
    %189 = arith.mulf %173, %181 : vector<8x32xf32>
    %190 = arith.addf %188, %189 : vector<8x32xf32>
    %191 = math.tanh %190 : vector<8x32xf32>
    %192 = arith.mulf %187, %191 : vector<8x32xf32>
    %193 = vector.extract_strided_slice %11 {offsets = [20, 0], sizes = [4, 128], strides = [1, 1]} : vector<32x128xf32> to vector<4x128xf32>
    %194 = vector.extract_strided_slice %18 {offsets = [8, 0], sizes = [4, 128], strides = [1, 1]} : vector<32x128xf32> to vector<4x128xf32>
    %195 = tpu.concatenate %193, %194 in 0 : vector<4x128xf32>, vector<4x128xf32> -> vector<8x128xf32>
    %cst_45 = arith.constant dense<0.000000e+00> : vector<8x128xf32>
    %196 = tpu.matmul %192, %20, %cst_45 {dimension_numbers = #tpu.dot_dimension_numbers<[1], [0], [0], [1], [0, 0, 1, 1], [], []>} : vector<8x32xf32>, vector<32x128xf32>, vector<8x128xf32> -> vector<8x128xf32>
    %cst_46 = arith.constant dense<0.000000e+00> : vector<8x128xf32>
    %197 = tpu.matmul %192, %22, %cst_46 {dimension_numbers = #tpu.dot_dimension_numbers<[1], [0], [0], [1], [0, 0, 1, 1], [], []>} : vector<8x32xf32>, vector<32x128xf32>, vector<8x128xf32> -> vector<8x128xf32>
    %198 = vector.shape_cast %2 : vector<8x1xi1> to vector<8x1xi1>
    %199 = vector.broadcast %198 : vector<8x1xi1> to vector<8x128xi1>
    %200 = arith.select %199, %196, %197 : vector<8x128xi1>, vector<8x128xf32>
    %201 = arith.addf %195, %200 : vector<8x128xf32>
    %202 = vector.extract_strided_slice %201 {offsets = [0, 0], sizes = [8, 32], strides = [1, 1]} : vector<8x128xf32> to vector<8x32xf32>
    %203 = arith.negf %202 : vector<8x32xf32>
    %204 = math.exp %203 : vector<8x32xf32>
    %cst_47 = arith.constant 1.000000e+00 : f32
    %205 = vector.broadcast %cst_47 : f32 to vector<8x32xf32>
    %206 = arith.addf %205, %204 : vector<8x32xf32>
    %207 = arith.divf %205, %206 : vector<8x32xf32>
    %208 = vector.extract_strided_slice %201 {offsets = [0, 32], sizes = [8, 32], strides = [1, 1]} : vector<8x128xf32> to vector<8x32xf32>
    %209 = arith.negf %208 : vector<8x32xf32>
    %210 = math.exp %209 : vector<8x32xf32>
    %cst_48 = arith.constant 1.000000e+00 : f32
    %211 = vector.broadcast %cst_48 : f32 to vector<8x32xf32>
    %212 = arith.addf %211, %210 : vector<8x32xf32>
    %213 = arith.divf %211, %212 : vector<8x32xf32>
    %214 = vector.extract_strided_slice %201 {offsets = [0, 64], sizes = [8, 32], strides = [1, 1]} : vector<8x128xf32> to vector<8x32xf32>
    %215 = math.tanh %214 : vector<8x32xf32>
    %216 = vector.extract_strided_slice %201 {offsets = [0, 96], sizes = [8, 32], strides = [1, 1]} : vector<8x128xf32> to vector<8x32xf32>
    %217 = arith.negf %216 : vector<8x32xf32>
    %218 = math.exp %217 : vector<8x32xf32>
    %cst_49 = arith.constant 1.000000e+00 : f32
    %219 = vector.broadcast %cst_49 : f32 to vector<8x32xf32>
    %220 = arith.addf %219, %218 : vector<8x32xf32>
    %221 = arith.divf %219, %220 : vector<8x32xf32>
    %222 = arith.mulf %213, %190 : vector<8x32xf32>
    %223 = arith.mulf %207, %215 : vector<8x32xf32>
    %224 = arith.addf %222, %223 : vector<8x32xf32>
    %225 = math.tanh %224 : vector<8x32xf32>
    %226 = arith.mulf %221, %225 : vector<8x32xf32>
    %227 = vector.extract_strided_slice %11 {offsets = [24, 0], sizes = [4, 128], strides = [1, 1]} : vector<32x128xf32> to vector<4x128xf32>
    %228 = vector.extract_strided_slice %18 {offsets = [4, 0], sizes = [4, 128], strides = [1, 1]} : vector<32x128xf32> to vector<4x128xf32>
    %229 = tpu.concatenate %227, %228 in 0 : vector<4x128xf32>, vector<4x128xf32> -> vector<8x128xf32>
    %cst_50 = arith.constant dense<0.000000e+00> : vector<8x128xf32>
    %230 = tpu.matmul %226, %20, %cst_50 {dimension_numbers = #tpu.dot_dimension_numbers<[1], [0], [0], [1], [0, 0, 1, 1], [], []>} : vector<8x32xf32>, vector<32x128xf32>, vector<8x128xf32> -> vector<8x128xf32>
    %cst_51 = arith.constant dense<0.000000e+00> : vector<8x128xf32>
    %231 = tpu.matmul %226, %22, %cst_51 {dimension_numbers = #tpu.dot_dimension_numbers<[1], [0], [0], [1], [0, 0, 1, 1], [], []>} : vector<8x32xf32>, vector<32x128xf32>, vector<8x128xf32> -> vector<8x128xf32>
    %232 = vector.shape_cast %2 : vector<8x1xi1> to vector<8x1xi1>
    %233 = vector.broadcast %232 : vector<8x1xi1> to vector<8x128xi1>
    %234 = arith.select %233, %230, %231 : vector<8x128xi1>, vector<8x128xf32>
    %235 = arith.addf %229, %234 : vector<8x128xf32>
    %236 = vector.extract_strided_slice %235 {offsets = [0, 0], sizes = [8, 32], strides = [1, 1]} : vector<8x128xf32> to vector<8x32xf32>
    %237 = arith.negf %236 : vector<8x32xf32>
    %238 = math.exp %237 : vector<8x32xf32>
    %cst_52 = arith.constant 1.000000e+00 : f32
    %239 = vector.broadcast %cst_52 : f32 to vector<8x32xf32>
    %240 = arith.addf %239, %238 : vector<8x32xf32>
    %241 = arith.divf %239, %240 : vector<8x32xf32>
    %242 = vector.extract_strided_slice %235 {offsets = [0, 32], sizes = [8, 32], strides = [1, 1]} : vector<8x128xf32> to vector<8x32xf32>
    %243 = arith.negf %242 : vector<8x32xf32>
    %244 = math.exp %243 : vector<8x32xf32>
    %cst_53 = arith.constant 1.000000e+00 : f32
    %245 = vector.broadcast %cst_53 : f32 to vector<8x32xf32>
    %246 = arith.addf %245, %244 : vector<8x32xf32>
    %247 = arith.divf %245, %246 : vector<8x32xf32>
    %248 = vector.extract_strided_slice %235 {offsets = [0, 64], sizes = [8, 32], strides = [1, 1]} : vector<8x128xf32> to vector<8x32xf32>
    %249 = math.tanh %248 : vector<8x32xf32>
    %250 = vector.extract_strided_slice %235 {offsets = [0, 96], sizes = [8, 32], strides = [1, 1]} : vector<8x128xf32> to vector<8x32xf32>
    %251 = arith.negf %250 : vector<8x32xf32>
    %252 = math.exp %251 : vector<8x32xf32>
    %cst_54 = arith.constant 1.000000e+00 : f32
    %253 = vector.broadcast %cst_54 : f32 to vector<8x32xf32>
    %254 = arith.addf %253, %252 : vector<8x32xf32>
    %255 = arith.divf %253, %254 : vector<8x32xf32>
    %256 = arith.mulf %247, %224 : vector<8x32xf32>
    %257 = arith.mulf %241, %249 : vector<8x32xf32>
    %258 = arith.addf %256, %257 : vector<8x32xf32>
    %259 = math.tanh %258 : vector<8x32xf32>
    %260 = arith.mulf %255, %259 : vector<8x32xf32>
    %261 = vector.extract_strided_slice %11 {offsets = [28, 0], sizes = [4, 128], strides = [1, 1]} : vector<32x128xf32> to vector<4x128xf32>
    %262 = vector.extract_strided_slice %18 {offsets = [0, 0], sizes = [4, 128], strides = [1, 1]} : vector<32x128xf32> to vector<4x128xf32>
    %263 = tpu.concatenate %261, %262 in 0 : vector<4x128xf32>, vector<4x128xf32> -> vector<8x128xf32>
    %cst_55 = arith.constant dense<0.000000e+00> : vector<8x128xf32>
    %264 = tpu.matmul %260, %20, %cst_55 {dimension_numbers = #tpu.dot_dimension_numbers<[1], [0], [0], [1], [0, 0, 1, 1], [], []>} : vector<8x32xf32>, vector<32x128xf32>, vector<8x128xf32> -> vector<8x128xf32>
    %cst_56 = arith.constant dense<0.000000e+00> : vector<8x128xf32>
    %265 = tpu.matmul %260, %22, %cst_56 {dimension_numbers = #tpu.dot_dimension_numbers<[1], [0], [0], [1], [0, 0, 1, 1], [], []>} : vector<8x32xf32>, vector<32x128xf32>, vector<8x128xf32> -> vector<8x128xf32>
    %266 = vector.shape_cast %2 : vector<8x1xi1> to vector<8x1xi1>
    %267 = vector.broadcast %266 : vector<8x1xi1> to vector<8x128xi1>
    %268 = arith.select %267, %264, %265 : vector<8x128xi1>, vector<8x128xf32>
    %269 = arith.addf %263, %268 : vector<8x128xf32>
    %270 = vector.extract_strided_slice %269 {offsets = [0, 0], sizes = [8, 32], strides = [1, 1]} : vector<8x128xf32> to vector<8x32xf32>
    %271 = arith.negf %270 : vector<8x32xf32>
    %272 = math.exp %271 : vector<8x32xf32>
    %cst_57 = arith.constant 1.000000e+00 : f32
    %273 = vector.broadcast %cst_57 : f32 to vector<8x32xf32>
    %274 = arith.addf %273, %272 : vector<8x32xf32>
    %275 = arith.divf %273, %274 : vector<8x32xf32>
    %276 = vector.extract_strided_slice %269 {offsets = [0, 32], sizes = [8, 32], strides = [1, 1]} : vector<8x128xf32> to vector<8x32xf32>
    %277 = arith.negf %276 : vector<8x32xf32>
    %278 = math.exp %277 : vector<8x32xf32>
    %cst_58 = arith.constant 1.000000e+00 : f32
    %279 = vector.broadcast %cst_58 : f32 to vector<8x32xf32>
    %280 = arith.addf %279, %278 : vector<8x32xf32>
    %281 = arith.divf %279, %280 : vector<8x32xf32>
    %282 = vector.extract_strided_slice %269 {offsets = [0, 64], sizes = [8, 32], strides = [1, 1]} : vector<8x128xf32> to vector<8x32xf32>
    %283 = math.tanh %282 : vector<8x32xf32>
    %284 = vector.extract_strided_slice %269 {offsets = [0, 96], sizes = [8, 32], strides = [1, 1]} : vector<8x128xf32> to vector<8x32xf32>
    %285 = arith.negf %284 : vector<8x32xf32>
    %286 = math.exp %285 : vector<8x32xf32>
    %cst_59 = arith.constant 1.000000e+00 : f32
    %287 = vector.broadcast %cst_59 : f32 to vector<8x32xf32>
    %288 = arith.addf %287, %286 : vector<8x32xf32>
    %289 = arith.divf %287, %288 : vector<8x32xf32>
    %290 = arith.mulf %281, %258 : vector<8x32xf32>
    %291 = arith.mulf %275, %283 : vector<8x32xf32>
    %292 = arith.addf %290, %291 : vector<8x32xf32>
    %293 = math.tanh %292 : vector<8x32xf32>
    %294 = arith.mulf %289, %293 : vector<8x32xf32>
    %295 = vector.extract_strided_slice %294 {offsets = [2, 0], sizes = [2, 32], strides = [1, 1]} : vector<8x32xf32> to vector<2x32xf32>
    %296 = vector.extract_strided_slice %294 {offsets = [0, 0], sizes = [2, 32], strides = [1, 1]} : vector<8x32xf32> to vector<2x32xf32>
    %297 = vector.extract_strided_slice %294 {offsets = [6, 0], sizes = [2, 32], strides = [1, 1]} : vector<8x32xf32> to vector<2x32xf32>
    %298 = vector.extract_strided_slice %294 {offsets = [4, 0], sizes = [2, 32], strides = [1, 1]} : vector<8x32xf32> to vector<2x32xf32>
    %299 = tpu.concatenate %295, %296, %297, %298 in 0 : vector<2x32xf32>, vector<2x32xf32>, vector<2x32xf32>, vector<2x32xf32> -> vector<8x32xf32>
    %300 = vector.extract_strided_slice %292 {offsets = [2, 0], sizes = [2, 32], strides = [1, 1]} : vector<8x32xf32> to vector<2x32xf32>
    %301 = vector.extract_strided_slice %292 {offsets = [0, 0], sizes = [2, 32], strides = [1, 1]} : vector<8x32xf32> to vector<2x32xf32>
    %302 = vector.extract_strided_slice %292 {offsets = [6, 0], sizes = [2, 32], strides = [1, 1]} : vector<8x32xf32> to vector<2x32xf32>
    %303 = vector.extract_strided_slice %292 {offsets = [4, 0], sizes = [2, 32], strides = [1, 1]} : vector<8x32xf32> to vector<2x32xf32>
    %304 = tpu.concatenate %300, %301, %302, %303 in 0 : vector<2x32xf32>, vector<2x32xf32>, vector<2x32xf32>, vector<2x32xf32> -> vector<8x32xf32>
    %c0_60 = arith.constant 0 : index
    %c0_61 = arith.constant 0 : index
    %c0_62 = arith.constant 0 : index
    %305 = vector.load %arg7[%c0_60, %c0_61, %c0_62] : memref<2x32x128xf32, #tpu.memory_space<vmem>>, vector<1x32x128xf32>
    %306 = vector.shape_cast %305 : vector<1x32x128xf32> to vector<32x128xf32>
    %cst_63 = arith.constant dense<0.000000e+00> : vector<32x128xf32>
    %307 = tpu.matmul %3, %306, %cst_63 {dimension_numbers = #tpu.dot_dimension_numbers<[1], [0], [0], [1], [0, 0, 1, 1], [], []>} : vector<32x32xf32>, vector<32x128xf32>, vector<32x128xf32> -> vector<32x128xf32>
    %c0_64 = arith.constant 0 : index
    %c0_65 = arith.constant 0 : index
    %c0_66 = arith.constant 0 : index
    %308 = vector.load %arg9[%c0_64, %c0_65, %c0_66] : memref<2x1x128xf32, #tpu.memory_space<vmem>>, vector<1x1x128xf32>
    %309 = vector.shape_cast %308 : vector<1x1x128xf32> to vector<1x128xf32>
    %310 = vector.broadcast %309 : vector<1x128xf32> to vector<32x128xf32>
    %311 = arith.addf %307, %310 : vector<32x128xf32>
    %c1_67 = arith.constant 1 : index
    %c0_68 = arith.constant 0 : index
    %c0_69 = arith.constant 0 : index
    %312 = vector.load %arg7[%c1_67, %c0_68, %c0_69] : memref<2x32x128xf32, #tpu.memory_space<vmem>>, vector<1x32x128xf32>
    %313 = vector.shape_cast %312 : vector<1x32x128xf32> to vector<32x128xf32>
    %cst_70 = arith.constant dense<0.000000e+00> : vector<32x128xf32>
    %314 = tpu.matmul %3, %313, %cst_70 {dimension_numbers = #tpu.dot_dimension_numbers<[1], [0], [0], [1], [0, 0, 1, 1], [], []>} : vector<32x32xf32>, vector<32x128xf32>, vector<32x128xf32> -> vector<32x128xf32>
    %c1_71 = arith.constant 1 : index
    %c0_72 = arith.constant 0 : index
    %c0_73 = arith.constant 0 : index
    %315 = vector.load %arg9[%c1_71, %c0_72, %c0_73] : memref<2x1x128xf32, #tpu.memory_space<vmem>>, vector<1x1x128xf32>
    %316 = vector.shape_cast %315 : vector<1x1x128xf32> to vector<1x128xf32>
    %317 = vector.broadcast %316 : vector<1x128xf32> to vector<32x128xf32>
    %318 = arith.addf %314, %317 : vector<32x128xf32>
    %c0_74 = arith.constant 0 : index
    %c0_75 = arith.constant 0 : index
    %c0_76 = arith.constant 0 : index
    %319 = vector.load %arg8[%c0_74, %c0_75, %c0_76] : memref<2x32x128xf32, #tpu.memory_space<vmem>>, vector<1x32x128xf32>
    %320 = vector.shape_cast %319 : vector<1x32x128xf32> to vector<32x128xf32>
    %c1_77 = arith.constant 1 : index
    %c0_78 = arith.constant 0 : index
    %c0_79 = arith.constant 0 : index
    %321 = vector.load %arg8[%c1_77, %c0_78, %c0_79] : memref<2x32x128xf32, #tpu.memory_space<vmem>>, vector<1x32x128xf32>
    %322 = vector.shape_cast %321 : vector<1x32x128xf32> to vector<32x128xf32>
    %323 = vector.extract_strided_slice %311 {offsets = [0, 0], sizes = [4, 128], strides = [1, 1]} : vector<32x128xf32> to vector<4x128xf32>
    %324 = vector.extract_strided_slice %318 {offsets = [28, 0], sizes = [4, 128], strides = [1, 1]} : vector<32x128xf32> to vector<4x128xf32>
    %325 = tpu.concatenate %323, %324 in 0 : vector<4x128xf32>, vector<4x128xf32> -> vector<8x128xf32>
    %cst_80 = arith.constant dense<0.000000e+00> : vector<8x128xf32>
    %326 = tpu.matmul %299, %320, %cst_80 {dimension_numbers = #tpu.dot_dimension_numbers<[1], [0], [0], [1], [0, 0, 1, 1], [], []>} : vector<8x32xf32>, vector<32x128xf32>, vector<8x128xf32> -> vector<8x128xf32>
    %cst_81 = arith.constant dense<0.000000e+00> : vector<8x128xf32>
    %327 = tpu.matmul %299, %322, %cst_81 {dimension_numbers = #tpu.dot_dimension_numbers<[1], [0], [0], [1], [0, 0, 1, 1], [], []>} : vector<8x32xf32>, vector<32x128xf32>, vector<8x128xf32> -> vector<8x128xf32>
    %328 = vector.shape_cast %2 : vector<8x1xi1> to vector<8x1xi1>
    %329 = vector.broadcast %328 : vector<8x1xi1> to vector<8x128xi1>
    %330 = arith.select %329, %326, %327 : vector<8x128xi1>, vector<8x128xf32>
    %331 = arith.addf %325, %330 : vector<8x128xf32>
    %332 = vector.extract_strided_slice %331 {offsets = [0, 0], sizes = [8, 32], strides = [1, 1]} : vector<8x128xf32> to vector<8x32xf32>
    %333 = arith.negf %332 : vector<8x32xf32>
    %334 = math.exp %333 : vector<8x32xf32>
    %cst_82 = arith.constant 1.000000e+00 : f32
    %335 = vector.broadcast %cst_82 : f32 to vector<8x32xf32>
    %336 = arith.addf %335, %334 : vector<8x32xf32>
    %337 = arith.divf %335, %336 : vector<8x32xf32>
    %338 = vector.extract_strided_slice %331 {offsets = [0, 32], sizes = [8, 32], strides = [1, 1]} : vector<8x128xf32> to vector<8x32xf32>
    %339 = arith.negf %338 : vector<8x32xf32>
    %340 = math.exp %339 : vector<8x32xf32>
    %cst_83 = arith.constant 1.000000e+00 : f32
    %341 = vector.broadcast %cst_83 : f32 to vector<8x32xf32>
    %342 = arith.addf %341, %340 : vector<8x32xf32>
    %343 = arith.divf %341, %342 : vector<8x32xf32>
    %344 = vector.extract_strided_slice %331 {offsets = [0, 64], sizes = [8, 32], strides = [1, 1]} : vector<8x128xf32> to vector<8x32xf32>
    %345 = math.tanh %344 : vector<8x32xf32>
    %346 = vector.extract_strided_slice %331 {offsets = [0, 96], sizes = [8, 32], strides = [1, 1]} : vector<8x128xf32> to vector<8x32xf32>
    %347 = arith.negf %346 : vector<8x32xf32>
    %348 = math.exp %347 : vector<8x32xf32>
    %cst_84 = arith.constant 1.000000e+00 : f32
    %349 = vector.broadcast %cst_84 : f32 to vector<8x32xf32>
    %350 = arith.addf %349, %348 : vector<8x32xf32>
    %351 = arith.divf %349, %350 : vector<8x32xf32>
    %352 = arith.mulf %343, %304 : vector<8x32xf32>
    %353 = arith.mulf %337, %345 : vector<8x32xf32>
    %354 = arith.addf %352, %353 : vector<8x32xf32>
    %355 = math.tanh %354 : vector<8x32xf32>
    %356 = arith.mulf %351, %355 : vector<8x32xf32>
    %357 = vector.extract_strided_slice %356 {offsets = [0, 0], sizes = [4, 32], strides = [1, 1]} : vector<8x32xf32> to vector<4x32xf32>
    %c0_85 = arith.constant 0 : index
    %c0_86 = arith.constant 0 : index
    %c0_87 = arith.constant 0 : index
    %358 = vector.load %arg23[%c0_85, %c0_86, %c0_87] : memref<8x4x64xf32, #tpu.memory_space<vmem>>, vector<1x4x32xf32>
    %359 = vector.shape_cast %358 : vector<1x4x32xf32> to vector<4x32xf32>
    %360 = vector.shape_cast %357 : vector<4x32xf32> to vector<1x4x32xf32>
    tpu.vector_store %arg23[%c0_85, %c0_86, %c0_87], %360 {strides = array<i32>} : memref<8x4x64xf32, #tpu.memory_space<vmem>>, vector<1x4x32xf32>,
    %361 = vector.extract_strided_slice %356 {offsets = [4, 0], sizes = [4, 32], strides = [1, 1]} : vector<8x32xf32> to vector<4x32xf32>
    %c7 = arith.constant 7 : index
    %c0_88 = arith.constant 0 : index
    %c32 = arith.constant 32 : index
    %362 = vector.load %arg23[%c7, %c0_88, %c32] : memref<8x4x64xf32, #tpu.memory_space<vmem>>, vector<1x4x32xf32>
    %363 = vector.shape_cast %362 : vector<1x4x32xf32> to vector<4x32xf32>
    %364 = vector.shape_cast %361 : vector<4x32xf32> to vector<1x4x32xf32>
    tpu.vector_store %arg23[%c7, %c0_88, %c32], %364 {strides = array<i32>} : memref<8x4x64xf32, #tpu.memory_space<vmem>>, vector<1x4x32xf32>,
    %365 = vector.extract_strided_slice %311 {offsets = [4, 0], sizes = [4, 128], strides = [1, 1]} : vector<32x128xf32> to vector<4x128xf32>
    %366 = vector.extract_strided_slice %318 {offsets = [24, 0], sizes = [4, 128], strides = [1, 1]} : vector<32x128xf32> to vector<4x128xf32>
    %367 = tpu.concatenate %365, %366 in 0 : vector<4x128xf32>, vector<4x128xf32> -> vector<8x128xf32>
    %cst_89 = arith.constant dense<0.000000e+00> : vector<8x128xf32>
    %368 = tpu.matmul %356, %320, %cst_89 {dimension_numbers = #tpu.dot_dimension_numbers<[1], [0], [0], [1], [0, 0, 1, 1], [], []>} : vector<8x32xf32>, vector<32x128xf32>, vector<8x128xf32> -> vector<8x128xf32>
    %cst_90 = arith.constant dense<0.000000e+00> : vector<8x128xf32>
    %369 = tpu.matmul %356, %322, %cst_90 {dimension_numbers = #tpu.dot_dimension_numbers<[1], [0], [0], [1], [0, 0, 1, 1], [], []>} : vector<8x32xf32>, vector<32x128xf32>, vector<8x128xf32> -> vector<8x128xf32>
    %370 = vector.shape_cast %2 : vector<8x1xi1> to vector<8x1xi1>
    %371 = vector.broadcast %370 : vector<8x1xi1> to vector<8x128xi1>
    %372 = arith.select %371, %368, %369 : vector<8x128xi1>, vector<8x128xf32>
    %373 = arith.addf %367, %372 : vector<8x128xf32>
    %374 = vector.extract_strided_slice %373 {offsets = [0, 0], sizes = [8, 32], strides = [1, 1]} : vector<8x128xf32> to vector<8x32xf32>
    %375 = arith.negf %374 : vector<8x32xf32>
    %376 = math.exp %375 : vector<8x32xf32>
    %cst_91 = arith.constant 1.000000e+00 : f32
    %377 = vector.broadcast %cst_91 : f32 to vector<8x32xf32>
    %378 = arith.addf %377, %376 : vector<8x32xf32>
    %379 = arith.divf %377, %378 : vector<8x32xf32>
    %380 = vector.extract_strided_slice %373 {offsets = [0, 32], sizes = [8, 32], strides = [1, 1]} : vector<8x128xf32> to vector<8x32xf32>
    %381 = arith.negf %380 : vector<8x32xf32>
    %382 = math.exp %381 : vector<8x32xf32>
    %cst_92 = arith.constant 1.000000e+00 : f32
    %383 = vector.broadcast %cst_92 : f32 to vector<8x32xf32>
    %384 = arith.addf %383, %382 : vector<8x32xf32>
    %385 = arith.divf %383, %384 : vector<8x32xf32>
    %386 = vector.extract_strided_slice %373 {offsets = [0, 64], sizes = [8, 32], strides = [1, 1]} : vector<8x128xf32> to vector<8x32xf32>
    %387 = math.tanh %386 : vector<8x32xf32>
    %388 = vector.extract_strided_slice %373 {offsets = [0, 96], sizes = [8, 32], strides = [1, 1]} : vector<8x128xf32> to vector<8x32xf32>
    %389 = arith.negf %388 : vector<8x32xf32>
    %390 = math.exp %389 : vector<8x32xf32>
    %cst_93 = arith.constant 1.000000e+00 : f32
    %391 = vector.broadcast %cst_93 : f32 to vector<8x32xf32>
    %392 = arith.addf %391, %390 : vector<8x32xf32>
    %393 = arith.divf %391, %392 : vector<8x32xf32>
    %394 = arith.mulf %385, %354 : vector<8x32xf32>
    %395 = arith.mulf %379, %387 : vector<8x32xf32>
    %396 = arith.addf %394, %395 : vector<8x32xf32>
    %397 = math.tanh %396 : vector<8x32xf32>
    %398 = arith.mulf %393, %397 : vector<8x32xf32>
    %399 = vector.extract_strided_slice %398 {offsets = [0, 0], sizes = [4, 32], strides = [1, 1]} : vector<8x32xf32> to vector<4x32xf32>
    %c1_94 = arith.constant 1 : index
    %c0_95 = arith.constant 0 : index
    %c0_96 = arith.constant 0 : index
    %400 = vector.load %arg23[%c1_94, %c0_95, %c0_96] : memref<8x4x64xf32, #tpu.memory_space<vmem>>, vector<1x4x32xf32>
    %401 = vector.shape_cast %400 : vector<1x4x32xf32> to vector<4x32xf32>
    %402 = vector.shape_cast %399 : vector<4x32xf32> to vector<1x4x32xf32>
    tpu.vector_store %arg23[%c1_94, %c0_95, %c0_96], %402 {strides = array<i32>} : memref<8x4x64xf32, #tpu.memory_space<vmem>>, vector<1x4x32xf32>,
    %403 = vector.extract_strided_slice %398 {offsets = [4, 0], sizes = [4, 32], strides = [1, 1]} : vector<8x32xf32> to vector<4x32xf32>
    %c6 = arith.constant 6 : index
    %c0_97 = arith.constant 0 : index
    %c32_98 = arith.constant 32 : index
    %404 = vector.load %arg23[%c6, %c0_97, %c32_98] : memref<8x4x64xf32, #tpu.memory_space<vmem>>, vector<1x4x32xf32>
    %405 = vector.shape_cast %404 : vector<1x4x32xf32> to vector<4x32xf32>
    %406 = vector.shape_cast %403 : vector<4x32xf32> to vector<1x4x32xf32>
    tpu.vector_store %arg23[%c6, %c0_97, %c32_98], %406 {strides = array<i32>} : memref<8x4x64xf32, #tpu.memory_space<vmem>>, vector<1x4x32xf32>,
    %407 = vector.extract_strided_slice %311 {offsets = [8, 0], sizes = [4, 128], strides = [1, 1]} : vector<32x128xf32> to vector<4x128xf32>
    %408 = vector.extract_strided_slice %318 {offsets = [20, 0], sizes = [4, 128], strides = [1, 1]} : vector<32x128xf32> to vector<4x128xf32>
    %409 = tpu.concatenate %407, %408 in 0 : vector<4x128xf32>, vector<4x128xf32> -> vector<8x128xf32>
    %cst_99 = arith.constant dense<0.000000e+00> : vector<8x128xf32>
    %410 = tpu.matmul %398, %320, %cst_99 {dimension_numbers = #tpu.dot_dimension_numbers<[1], [0], [0], [1], [0, 0, 1, 1], [], []>} : vector<8x32xf32>, vector<32x128xf32>, vector<8x128xf32> -> vector<8x128xf32>
    %cst_100 = arith.constant dense<0.000000e+00> : vector<8x128xf32>
    %411 = tpu.matmul %398, %322, %cst_100 {dimension_numbers = #tpu.dot_dimension_numbers<[1], [0], [0], [1], [0, 0, 1, 1], [], []>} : vector<8x32xf32>, vector<32x128xf32>, vector<8x128xf32> -> vector<8x128xf32>
    %412 = vector.shape_cast %2 : vector<8x1xi1> to vector<8x1xi1>
    %413 = vector.broadcast %412 : vector<8x1xi1> to vector<8x128xi1>
    %414 = arith.select %413, %410, %411 : vector<8x128xi1>, vector<8x128xf32>
    %415 = arith.addf %409, %414 : vector<8x128xf32>
    %416 = vector.extract_strided_slice %415 {offsets = [0, 0], sizes = [8, 32], strides = [1, 1]} : vector<8x128xf32> to vector<8x32xf32>
    %417 = arith.negf %416 : vector<8x32xf32>
    %418 = math.exp %417 : vector<8x32xf32>
    %cst_101 = arith.constant 1.000000e+00 : f32
    %419 = vector.broadcast %cst_101 : f32 to vector<8x32xf32>
    %420 = arith.addf %419, %418 : vector<8x32xf32>
    %421 = arith.divf %419, %420 : vector<8x32xf32>
    %422 = vector.extract_strided_slice %415 {offsets = [0, 32], sizes = [8, 32], strides = [1, 1]} : vector<8x128xf32> to vector<8x32xf32>
    %423 = arith.negf %422 : vector<8x32xf32>
    %424 = math.exp %423 : vector<8x32xf32>
    %cst_102 = arith.constant 1.000000e+00 : f32
    %425 = vector.broadcast %cst_102 : f32 to vector<8x32xf32>
    %426 = arith.addf %425, %424 : vector<8x32xf32>
    %427 = arith.divf %425, %426 : vector<8x32xf32>
    %428 = vector.extract_strided_slice %415 {offsets = [0, 64], sizes = [8, 32], strides = [1, 1]} : vector<8x128xf32> to vector<8x32xf32>
    %429 = math.tanh %428 : vector<8x32xf32>
    %430 = vector.extract_strided_slice %415 {offsets = [0, 96], sizes = [8, 32], strides = [1, 1]} : vector<8x128xf32> to vector<8x32xf32>
    %431 = arith.negf %430 : vector<8x32xf32>
    %432 = math.exp %431 : vector<8x32xf32>
    %cst_103 = arith.constant 1.000000e+00 : f32
    %433 = vector.broadcast %cst_103 : f32 to vector<8x32xf32>
    %434 = arith.addf %433, %432 : vector<8x32xf32>
    %435 = arith.divf %433, %434 : vector<8x32xf32>
    %436 = arith.mulf %427, %396 : vector<8x32xf32>
    %437 = arith.mulf %421, %429 : vector<8x32xf32>
    %438 = arith.addf %436, %437 : vector<8x32xf32>
    %439 = math.tanh %438 : vector<8x32xf32>
    %440 = arith.mulf %435, %439 : vector<8x32xf32>
    %441 = vector.extract_strided_slice %440 {offsets = [0, 0], sizes = [4, 32], strides = [1, 1]} : vector<8x32xf32> to vector<4x32xf32>
    %c2 = arith.constant 2 : index
    %c0_104 = arith.constant 0 : index
    %c0_105 = arith.constant 0 : index
    %442 = vector.load %arg23[%c2, %c0_104, %c0_105] : memref<8x4x64xf32, #tpu.memory_space<vmem>>, vector<1x4x32xf32>
    %443 = vector.shape_cast %442 : vector<1x4x32xf32> to vector<4x32xf32>
    %444 = vector.shape_cast %441 : vector<4x32xf32> to vector<1x4x32xf32>
    tpu.vector_store %arg23[%c2, %c0_104, %c0_105], %444 {strides = array<i32>} : memref<8x4x64xf32, #tpu.memory_space<vmem>>, vector<1x4x32xf32>,
    %445 = vector.extract_strided_slice %440 {offsets = [4, 0], sizes = [4, 32], strides = [1, 1]} : vector<8x32xf32> to vector<4x32xf32>
    %c5 = arith.constant 5 : index
    %c0_106 = arith.constant 0 : index
    %c32_107 = arith.constant 32 : index
    %446 = vector.load %arg23[%c5, %c0_106, %c32_107] : memref<8x4x64xf32, #tpu.memory_space<vmem>>, vector<1x4x32xf32>
    %447 = vector.shape_cast %446 : vector<1x4x32xf32> to vector<4x32xf32>
    %448 = vector.shape_cast %445 : vector<4x32xf32> to vector<1x4x32xf32>
    tpu.vector_store %arg23[%c5, %c0_106, %c32_107], %448 {strides = array<i32>} : memref<8x4x64xf32, #tpu.memory_space<vmem>>, vector<1x4x32xf32>,
    %449 = vector.extract_strided_slice %311 {offsets = [12, 0], sizes = [4, 128], strides = [1, 1]} : vector<32x128xf32> to vector<4x128xf32>
    %450 = vector.extract_strided_slice %318 {offsets = [16, 0], sizes = [4, 128], strides = [1, 1]} : vector<32x128xf32> to vector<4x128xf32>
    %451 = tpu.concatenate %449, %450 in 0 : vector<4x128xf32>, vector<4x128xf32> -> vector<8x128xf32>
    %cst_108 = arith.constant dense<0.000000e+00> : vector<8x128xf32>
    %452 = tpu.matmul %440, %320, %cst_108 {dimension_numbers = #tpu.dot_dimension_numbers<[1], [0], [0], [1], [0, 0, 1, 1], [], []>} : vector<8x32xf32>, vector<32x128xf32>, vector<8x128xf32> -> vector<8x128xf32>
    %cst_109 = arith.constant dense<0.000000e+00> : vector<8x128xf32>
    %453 = tpu.matmul %440, %322, %cst_109 {dimension_numbers = #tpu.dot_dimension_numbers<[1], [0], [0], [1], [0, 0, 1, 1], [], []>} : vector<8x32xf32>, vector<32x128xf32>, vector<8x128xf32> -> vector<8x128xf32>
    %454 = vector.shape_cast %2 : vector<8x1xi1> to vector<8x1xi1>
    %455 = vector.broadcast %454 : vector<8x1xi1> to vector<8x128xi1>
    %456 = arith.select %455, %452, %453 : vector<8x128xi1>, vector<8x128xf32>
    %457 = arith.addf %451, %456 : vector<8x128xf32>
    %458 = vector.extract_strided_slice %457 {offsets = [0, 0], sizes = [8, 32], strides = [1, 1]} : vector<8x128xf32> to vector<8x32xf32>
    %459 = arith.negf %458 : vector<8x32xf32>
    %460 = math.exp %459 : vector<8x32xf32>
    %cst_110 = arith.constant 1.000000e+00 : f32
    %461 = vector.broadcast %cst_110 : f32 to vector<8x32xf32>
    %462 = arith.addf %461, %460 : vector<8x32xf32>
    %463 = arith.divf %461, %462 : vector<8x32xf32>
    %464 = vector.extract_strided_slice %457 {offsets = [0, 32], sizes = [8, 32], strides = [1, 1]} : vector<8x128xf32> to vector<8x32xf32>
    %465 = arith.negf %464 : vector<8x32xf32>
    %466 = math.exp %465 : vector<8x32xf32>
    %cst_111 = arith.constant 1.000000e+00 : f32
    %467 = vector.broadcast %cst_111 : f32 to vector<8x32xf32>
    %468 = arith.addf %467, %466 : vector<8x32xf32>
    %469 = arith.divf %467, %468 : vector<8x32xf32>
    %470 = vector.extract_strided_slice %457 {offsets = [0, 64], sizes = [8, 32], strides = [1, 1]} : vector<8x128xf32> to vector<8x32xf32>
    %471 = math.tanh %470 : vector<8x32xf32>
    %472 = vector.extract_strided_slice %457 {offsets = [0, 96], sizes = [8, 32], strides = [1, 1]} : vector<8x128xf32> to vector<8x32xf32>
    %473 = arith.negf %472 : vector<8x32xf32>
    %474 = math.exp %473 : vector<8x32xf32>
    %cst_112 = arith.constant 1.000000e+00 : f32
    %475 = vector.broadcast %cst_112 : f32 to vector<8x32xf32>
    %476 = arith.addf %475, %474 : vector<8x32xf32>
    %477 = arith.divf %475, %476 : vector<8x32xf32>
    %478 = arith.mulf %469, %438 : vector<8x32xf32>
    %479 = arith.mulf %463, %471 : vector<8x32xf32>
    %480 = arith.addf %478, %479 : vector<8x32xf32>
    %481 = math.tanh %480 : vector<8x32xf32>
    %482 = arith.mulf %477, %481 : vector<8x32xf32>
    %483 = vector.extract_strided_slice %482 {offsets = [0, 0], sizes = [4, 32], strides = [1, 1]} : vector<8x32xf32> to vector<4x32xf32>
    %c3 = arith.constant 3 : index
    %c0_113 = arith.constant 0 : index
    %c0_114 = arith.constant 0 : index
    %484 = vector.load %arg23[%c3, %c0_113, %c0_114] : memref<8x4x64xf32, #tpu.memory_space<vmem>>, vector<1x4x32xf32>
    %485 = vector.shape_cast %484 : vector<1x4x32xf32> to vector<4x32xf32>
    %486 = vector.shape_cast %483 : vector<4x32xf32> to vector<1x4x32xf32>
    tpu.vector_store %arg23[%c3, %c0_113, %c0_114], %486 {strides = array<i32>} : memref<8x4x64xf32, #tpu.memory_space<vmem>>, vector<1x4x32xf32>,
    %487 = vector.extract_strided_slice %482 {offsets = [4, 0], sizes = [4, 32], strides = [1, 1]} : vector<8x32xf32> to vector<4x32xf32>
    %c4 = arith.constant 4 : index
    %c0_115 = arith.constant 0 : index
    %c32_116 = arith.constant 32 : index
    %488 = vector.load %arg23[%c4, %c0_115, %c32_116] : memref<8x4x64xf32, #tpu.memory_space<vmem>>, vector<1x4x32xf32>
    %489 = vector.shape_cast %488 : vector<1x4x32xf32> to vector<4x32xf32>
    %490 = vector.shape_cast %487 : vector<4x32xf32> to vector<1x4x32xf32>
    tpu.vector_store %arg23[%c4, %c0_115, %c32_116], %490 {strides = array<i32>} : memref<8x4x64xf32, #tpu.memory_space<vmem>>, vector<1x4x32xf32>,
    %491 = vector.extract_strided_slice %311 {offsets = [16, 0], sizes = [4, 128], strides = [1, 1]} : vector<32x128xf32> to vector<4x128xf32>
    %492 = vector.extract_strided_slice %318 {offsets = [12, 0], sizes = [4, 128], strides = [1, 1]} : vector<32x128xf32> to vector<4x128xf32>
    %493 = tpu.concatenate %491, %492 in 0 : vector<4x128xf32>, vector<4x128xf32> -> vector<8x128xf32>
    %cst_117 = arith.constant dense<0.000000e+00> : vector<8x128xf32>
    %494 = tpu.matmul %482, %320, %cst_117 {dimension_numbers = #tpu.dot_dimension_numbers<[1], [0], [0], [1], [0, 0, 1, 1], [], []>} : vector<8x32xf32>, vector<32x128xf32>, vector<8x128xf32> -> vector<8x128xf32>
    %cst_118 = arith.constant dense<0.000000e+00> : vector<8x128xf32>
    %495 = tpu.matmul %482, %322, %cst_118 {dimension_numbers = #tpu.dot_dimension_numbers<[1], [0], [0], [1], [0, 0, 1, 1], [], []>} : vector<8x32xf32>, vector<32x128xf32>, vector<8x128xf32> -> vector<8x128xf32>
    %496 = vector.shape_cast %2 : vector<8x1xi1> to vector<8x1xi1>
    %497 = vector.broadcast %496 : vector<8x1xi1> to vector<8x128xi1>
    %498 = arith.select %497, %494, %495 : vector<8x128xi1>, vector<8x128xf32>
    %499 = arith.addf %493, %498 : vector<8x128xf32>
    %500 = vector.extract_strided_slice %499 {offsets = [0, 0], sizes = [8, 32], strides = [1, 1]} : vector<8x128xf32> to vector<8x32xf32>
    %501 = arith.negf %500 : vector<8x32xf32>
    %502 = math.exp %501 : vector<8x32xf32>
    %cst_119 = arith.constant 1.000000e+00 : f32
    %503 = vector.broadcast %cst_119 : f32 to vector<8x32xf32>
    %504 = arith.addf %503, %502 : vector<8x32xf32>
    %505 = arith.divf %503, %504 : vector<8x32xf32>
    %506 = vector.extract_strided_slice %499 {offsets = [0, 32], sizes = [8, 32], strides = [1, 1]} : vector<8x128xf32> to vector<8x32xf32>
    %507 = arith.negf %506 : vector<8x32xf32>
    %508 = math.exp %507 : vector<8x32xf32>
    %cst_120 = arith.constant 1.000000e+00 : f32
    %509 = vector.broadcast %cst_120 : f32 to vector<8x32xf32>
    %510 = arith.addf %509, %508 : vector<8x32xf32>
    %511 = arith.divf %509, %510 : vector<8x32xf32>
    %512 = vector.extract_strided_slice %499 {offsets = [0, 64], sizes = [8, 32], strides = [1, 1]} : vector<8x128xf32> to vector<8x32xf32>
    %513 = math.tanh %512 : vector<8x32xf32>
    %514 = vector.extract_strided_slice %499 {offsets = [0, 96], sizes = [8, 32], strides = [1, 1]} : vector<8x128xf32> to vector<8x32xf32>
    %515 = arith.negf %514 : vector<8x32xf32>
    %516 = math.exp %515 : vector<8x32xf32>
    %cst_121 = arith.constant 1.000000e+00 : f32
    %517 = vector.broadcast %cst_121 : f32 to vector<8x32xf32>
    %518 = arith.addf %517, %516 : vector<8x32xf32>
    %519 = arith.divf %517, %518 : vector<8x32xf32>
    %520 = arith.mulf %511, %480 : vector<8x32xf32>
    %521 = arith.mulf %505, %513 : vector<8x32xf32>
    %522 = arith.addf %520, %521 : vector<8x32xf32>
    %523 = math.tanh %522 : vector<8x32xf32>
    %524 = arith.mulf %519, %523 : vector<8x32xf32>
    %525 = vector.extract_strided_slice %524 {offsets = [0, 0], sizes = [4, 32], strides = [1, 1]} : vector<8x32xf32> to vector<4x32xf32>
    %c4_122 = arith.constant 4 : index
    %c0_123 = arith.constant 0 : index
    %c0_124 = arith.constant 0 : index
    %526 = vector.load %arg23[%c4_122, %c0_123, %c0_124] : memref<8x4x64xf32, #tpu.memory_space<vmem>>, vector<1x4x32xf32>
    %527 = vector.shape_cast %526 : vector<1x4x32xf32> to vector<4x32xf32>
    %528 = vector.shape_cast %525 : vector<4x32xf32> to vector<1x4x32xf32>
    tpu.vector_store %arg23[%c4_122, %c0_123, %c0_124], %528 {strides = array<i32>} : memref<8x4x64xf32, #tpu.memory_space<vmem>>, vector<1x4x32xf32>,
    %529 = vector.extract_strided_slice %524 {offsets = [4, 0], sizes = [4, 32], strides = [1, 1]} : vector<8x32xf32> to vector<4x32xf32>
    %c3_125 = arith.constant 3 : index
    %c0_126 = arith.constant 0 : index
    %c32_127 = arith.constant 32 : index
    %530 = vector.load %arg23[%c3_125, %c0_126, %c32_127] : memref<8x4x64xf32, #tpu.memory_space<vmem>>, vector<1x4x32xf32>
    %531 = vector.shape_cast %530 : vector<1x4x32xf32> to vector<4x32xf32>
    %532 = vector.shape_cast %529 : vector<4x32xf32> to vector<1x4x32xf32>
    tpu.vector_store %arg23[%c3_125, %c0_126, %c32_127], %532 {strides = array<i32>} : memref<8x4x64xf32, #tpu.memory_space<vmem>>, vector<1x4x32xf32>,
    %533 = vector.extract_strided_slice %311 {offsets = [20, 0], sizes = [4, 128], strides = [1, 1]} : vector<32x128xf32> to vector<4x128xf32>
    %534 = vector.extract_strided_slice %318 {offsets = [8, 0], sizes = [4, 128], strides = [1, 1]} : vector<32x128xf32> to vector<4x128xf32>
    %535 = tpu.concatenate %533, %534 in 0 : vector<4x128xf32>, vector<4x128xf32> -> vector<8x128xf32>
    %cst_128 = arith.constant dense<0.000000e+00> : vector<8x128xf32>
    %536 = tpu.matmul %524, %320, %cst_128 {dimension_numbers = #tpu.dot_dimension_numbers<[1], [0], [0], [1], [0, 0, 1, 1], [], []>} : vector<8x32xf32>, vector<32x128xf32>, vector<8x128xf32> -> vector<8x128xf32>
    %cst_129 = arith.constant dense<0.000000e+00> : vector<8x128xf32>
    %537 = tpu.matmul %524, %322, %cst_129 {dimension_numbers = #tpu.dot_dimension_numbers<[1], [0], [0], [1], [0, 0, 1, 1], [], []>} : vector<8x32xf32>, vector<32x128xf32>, vector<8x128xf32> -> vector<8x128xf32>
    %538 = vector.shape_cast %2 : vector<8x1xi1> to vector<8x1xi1>
    %539 = vector.broadcast %538 : vector<8x1xi1> to vector<8x128xi1>
    %540 = arith.select %539, %536, %537 : vector<8x128xi1>, vector<8x128xf32>
    %541 = arith.addf %535, %540 : vector<8x128xf32>
    %542 = vector.extract_strided_slice %541 {offsets = [0, 0], sizes = [8, 32], strides = [1, 1]} : vector<8x128xf32> to vector<8x32xf32>
    %543 = arith.negf %542 : vector<8x32xf32>
    %544 = math.exp %543 : vector<8x32xf32>
    %cst_130 = arith.constant 1.000000e+00 : f32
    %545 = vector.broadcast %cst_130 : f32 to vector<8x32xf32>
    %546 = arith.addf %545, %544 : vector<8x32xf32>
    %547 = arith.divf %545, %546 : vector<8x32xf32>
    %548 = vector.extract_strided_slice %541 {offsets = [0, 32], sizes = [8, 32], strides = [1, 1]} : vector<8x128xf32> to vector<8x32xf32>
    %549 = arith.negf %548 : vector<8x32xf32>
    %550 = math.exp %549 : vector<8x32xf32>
    %cst_131 = arith.constant 1.000000e+00 : f32
    %551 = vector.broadcast %cst_131 : f32 to vector<8x32xf32>
    %552 = arith.addf %551, %550 : vector<8x32xf32>
    %553 = arith.divf %551, %552 : vector<8x32xf32>
    %554 = vector.extract_strided_slice %541 {offsets = [0, 64], sizes = [8, 32], strides = [1, 1]} : vector<8x128xf32> to vector<8x32xf32>
    %555 = math.tanh %554 : vector<8x32xf32>
    %556 = vector.extract_strided_slice %541 {offsets = [0, 96], sizes = [8, 32], strides = [1, 1]} : vector<8x128xf32> to vector<8x32xf32>
    %557 = arith.negf %556 : vector<8x32xf32>
    %558 = math.exp %557 : vector<8x32xf32>
    %cst_132 = arith.constant 1.000000e+00 : f32
    %559 = vector.broadcast %cst_132 : f32 to vector<8x32xf32>
    %560 = arith.addf %559, %558 : vector<8x32xf32>
    %561 = arith.divf %559, %560 : vector<8x32xf32>
    %562 = arith.mulf %553, %522 : vector<8x32xf32>
    %563 = arith.mulf %547, %555 : vector<8x32xf32>
    %564 = arith.addf %562, %563 : vector<8x32xf32>
    %565 = math.tanh %564 : vector<8x32xf32>
    %566 = arith.mulf %561, %565 : vector<8x32xf32>
    %567 = vector.extract_strided_slice %566 {offsets = [0, 0], sizes = [4, 32], strides = [1, 1]} : vector<8x32xf32> to vector<4x32xf32>
    %c5_133 = arith.constant 5 : index
    %c0_134 = arith.constant 0 : index
    %c0_135 = arith.constant 0 : index
    %568 = vector.load %arg23[%c5_133, %c0_134, %c0_135] : memref<8x4x64xf32, #tpu.memory_space<vmem>>, vector<1x4x32xf32>
    %569 = vector.shape_cast %568 : vector<1x4x32xf32> to vector<4x32xf32>
    %570 = vector.shape_cast %567 : vector<4x32xf32> to vector<1x4x32xf32>
    tpu.vector_store %arg23[%c5_133, %c0_134, %c0_135], %570 {strides = array<i32>} : memref<8x4x64xf32, #tpu.memory_space<vmem>>, vector<1x4x32xf32>,
    %571 = vector.extract_strided_slice %566 {offsets = [4, 0], sizes = [4, 32], strides = [1, 1]} : vector<8x32xf32> to vector<4x32xf32>
    %c2_136 = arith.constant 2 : index
    %c0_137 = arith.constant 0 : index
    %c32_138 = arith.constant 32 : index
    %572 = vector.load %arg23[%c2_136, %c0_137, %c32_138] : memref<8x4x64xf32, #tpu.memory_space<vmem>>, vector<1x4x32xf32>
    %573 = vector.shape_cast %572 : vector<1x4x32xf32> to vector<4x32xf32>
    %574 = vector.shape_cast %571 : vector<4x32xf32> to vector<1x4x32xf32>
    tpu.vector_store %arg23[%c2_136, %c0_137, %c32_138], %574 {strides = array<i32>} : memref<8x4x64xf32, #tpu.memory_space<vmem>>, vector<1x4x32xf32>,
    %575 = vector.extract_strided_slice %311 {offsets = [24, 0], sizes = [4, 128], strides = [1, 1]} : vector<32x128xf32> to vector<4x128xf32>
    %576 = vector.extract_strided_slice %318 {offsets = [4, 0], sizes = [4, 128], strides = [1, 1]} : vector<32x128xf32> to vector<4x128xf32>
    %577 = tpu.concatenate %575, %576 in 0 : vector<4x128xf32>, vector<4x128xf32> -> vector<8x128xf32>
    %cst_139 = arith.constant dense<0.000000e+00> : vector<8x128xf32>
    %578 = tpu.matmul %566, %320, %cst_139 {dimension_numbers = #tpu.dot_dimension_numbers<[1], [0], [0], [1], [0, 0, 1, 1], [], []>} : vector<8x32xf32>, vector<32x128xf32>, vector<8x128xf32> -> vector<8x128xf32>
    %cst_140 = arith.constant dense<0.000000e+00> : vector<8x128xf32>
    %579 = tpu.matmul %566, %322, %cst_140 {dimension_numbers = #tpu.dot_dimension_numbers<[1], [0], [0], [1], [0, 0, 1, 1], [], []>} : vector<8x32xf32>, vector<32x128xf32>, vector<8x128xf32> -> vector<8x128xf32>
    %580 = vector.shape_cast %2 : vector<8x1xi1> to vector<8x1xi1>
    %581 = vector.broadcast %580 : vector<8x1xi1> to vector<8x128xi1>
    %582 = arith.select %581, %578, %579 : vector<8x128xi1>, vector<8x128xf32>
    %583 = arith.addf %577, %582 : vector<8x128xf32>
    %584 = vector.extract_strided_slice %583 {offsets = [0, 0], sizes = [8, 32], strides = [1, 1]} : vector<8x128xf32> to vector<8x32xf32>
    %585 = arith.negf %584 : vector<8x32xf32>
    %586 = math.exp %585 : vector<8x32xf32>
    %cst_141 = arith.constant 1.000000e+00 : f32
    %587 = vector.broadcast %cst_141 : f32 to vector<8x32xf32>
    %588 = arith.addf %587, %586 : vector<8x32xf32>
    %589 = arith.divf %587, %588 : vector<8x32xf32>
    %590 = vector.extract_strided_slice %583 {offsets = [0, 32], sizes = [8, 32], strides = [1, 1]} : vector<8x128xf32> to vector<8x32xf32>
    %591 = arith.negf %590 : vector<8x32xf32>
    %592 = math.exp %591 : vector<8x32xf32>
    %cst_142 = arith.constant 1.000000e+00 : f32
    %593 = vector.broadcast %cst_142 : f32 to vector<8x32xf32>
    %594 = arith.addf %593, %592 : vector<8x32xf32>
    %595 = arith.divf %593, %594 : vector<8x32xf32>
    %596 = vector.extract_strided_slice %583 {offsets = [0, 64], sizes = [8, 32], strides = [1, 1]} : vector<8x128xf32> to vector<8x32xf32>
    %597 = math.tanh %596 : vector<8x32xf32>
    %598 = vector.extract_strided_slice %583 {offsets = [0, 96], sizes = [8, 32], strides = [1, 1]} : vector<8x128xf32> to vector<8x32xf32>
    %599 = arith.negf %598 : vector<8x32xf32>
    %600 = math.exp %599 : vector<8x32xf32>
    %cst_143 = arith.constant 1.000000e+00 : f32
    %601 = vector.broadcast %cst_143 : f32 to vector<8x32xf32>
    %602 = arith.addf %601, %600 : vector<8x32xf32>
    %603 = arith.divf %601, %602 : vector<8x32xf32>
    %604 = arith.mulf %595, %564 : vector<8x32xf32>
    %605 = arith.mulf %589, %597 : vector<8x32xf32>
    %606 = arith.addf %604, %605 : vector<8x32xf32>
    %607 = math.tanh %606 : vector<8x32xf32>
    %608 = arith.mulf %603, %607 : vector<8x32xf32>
    %609 = vector.extract_strided_slice %608 {offsets = [0, 0], sizes = [4, 32], strides = [1, 1]} : vector<8x32xf32> to vector<4x32xf32>
    %c6_144 = arith.constant 6 : index
    %c0_145 = arith.constant 0 : index
    %c0_146 = arith.constant 0 : index
    %610 = vector.load %arg23[%c6_144, %c0_145, %c0_146] : memref<8x4x64xf32, #tpu.memory_space<vmem>>, vector<1x4x32xf32>
    %611 = vector.shape_cast %610 : vector<1x4x32xf32> to vector<4x32xf32>
    %612 = vector.shape_cast %609 : vector<4x32xf32> to vector<1x4x32xf32>
    tpu.vector_store %arg23[%c6_144, %c0_145, %c0_146], %612 {strides = array<i32>} : memref<8x4x64xf32, #tpu.memory_space<vmem>>, vector<1x4x32xf32>,
    %613 = vector.extract_strided_slice %608 {offsets = [4, 0], sizes = [4, 32], strides = [1, 1]} : vector<8x32xf32> to vector<4x32xf32>
    %c1_147 = arith.constant 1 : index
    %c0_148 = arith.constant 0 : index
    %c32_149 = arith.constant 32 : index
    %614 = vector.load %arg23[%c1_147, %c0_148, %c32_149] : memref<8x4x64xf32, #tpu.memory_space<vmem>>, vector<1x4x32xf32>
    %615 = vector.shape_cast %614 : vector<1x4x32xf32> to vector<4x32xf32>
    %616 = vector.shape_cast %613 : vector<4x32xf32> to vector<1x4x32xf32>
    tpu.vector_store %arg23[%c1_147, %c0_148, %c32_149], %616 {strides = array<i32>} : memref<8x4x64xf32, #tpu.memory_space<vmem>>, vector<1x4x32xf32>,
    %617 = vector.extract_strided_slice %311 {offsets = [28, 0], sizes = [4, 128], strides = [1, 1]} : vector<32x128xf32> to vector<4x128xf32>
    %618 = vector.extract_strided_slice %318 {offsets = [0, 0], sizes = [4, 128], strides = [1, 1]} : vector<32x128xf32> to vector<4x128xf32>
    %619 = tpu.concatenate %617, %618 in 0 : vector<4x128xf32>, vector<4x128xf32> -> vector<8x128xf32>
    %cst_150 = arith.constant dense<0.000000e+00> : vector<8x128xf32>
    %620 = tpu.matmul %608, %320, %cst_150 {dimension_numbers = #tpu.dot_dimension_numbers<[1], [0], [0], [1], [0, 0, 1, 1], [], []>} : vector<8x32xf32>, vector<32x128xf32>, vector<8x128xf32> -> vector<8x128xf32>
    %cst_151 = arith.constant dense<0.000000e+00> : vector<8x128xf32>
    %621 = tpu.matmul %608, %322, %cst_151 {dimension_numbers = #tpu.dot_dimension_numbers<[1], [0], [0], [1], [0, 0, 1, 1], [], []>} : vector<8x32xf32>, vector<32x128xf32>, vector<8x128xf32> -> vector<8x128xf32>
    %622 = vector.shape_cast %2 : vector<8x1xi1> to vector<8x1xi1>
    %623 = vector.broadcast %622 : vector<8x1xi1> to vector<8x128xi1>
    %624 = arith.select %623, %620, %621 : vector<8x128xi1>, vector<8x128xf32>
    %625 = arith.addf %619, %624 : vector<8x128xf32>
    %626 = vector.extract_strided_slice %625 {offsets = [0, 0], sizes = [8, 32], strides = [1, 1]} : vector<8x128xf32> to vector<8x32xf32>
    %627 = arith.negf %626 : vector<8x32xf32>
    %628 = math.exp %627 : vector<8x32xf32>
    %cst_152 = arith.constant 1.000000e+00 : f32
    %629 = vector.broadcast %cst_152 : f32 to vector<8x32xf32>
    %630 = arith.addf %629, %628 : vector<8x32xf32>
    %631 = arith.divf %629, %630 : vector<8x32xf32>
    %632 = vector.extract_strided_slice %625 {offsets = [0, 32], sizes = [8, 32], strides = [1, 1]} : vector<8x128xf32> to vector<8x32xf32>
    %633 = arith.negf %632 : vector<8x32xf32>
    %634 = math.exp %633 : vector<8x32xf32>
    %cst_153 = arith.constant 1.000000e+00 : f32
    %635 = vector.broadcast %cst_153 : f32 to vector<8x32xf32>
    %636 = arith.addf %635, %634 : vector<8x32xf32>
    %637 = arith.divf %635, %636 : vector<8x32xf32>
    %638 = vector.extract_strided_slice %625 {offsets = [0, 64], sizes = [8, 32], strides = [1, 1]} : vector<8x128xf32> to vector<8x32xf32>
    %639 = math.tanh %638 : vector<8x32xf32>
    %640 = vector.extract_strided_slice %625 {offsets = [0, 96], sizes = [8, 32], strides = [1, 1]} : vector<8x128xf32> to vector<8x32xf32>
    %641 = arith.negf %640 : vector<8x32xf32>
    %642 = math.exp %641 : vector<8x32xf32>
    %cst_154 = arith.constant 1.000000e+00 : f32
    %643 = vector.broadcast %cst_154 : f32 to vector<8x32xf32>
    %644 = arith.addf %643, %642 : vector<8x32xf32>
    %645 = arith.divf %643, %644 : vector<8x32xf32>
    %646 = arith.mulf %637, %606 : vector<8x32xf32>
    %647 = arith.mulf %631, %639 : vector<8x32xf32>
    %648 = arith.addf %646, %647 : vector<8x32xf32>
    %649 = math.tanh %648 : vector<8x32xf32>
    %650 = arith.mulf %645, %649 : vector<8x32xf32>
    %651 = vector.extract_strided_slice %650 {offsets = [0, 0], sizes = [4, 32], strides = [1, 1]} : vector<8x32xf32> to vector<4x32xf32>
    %c7_155 = arith.constant 7 : index
    %c0_156 = arith.constant 0 : index
    %c0_157 = arith.constant 0 : index
    %652 = vector.load %arg23[%c7_155, %c0_156, %c0_157] : memref<8x4x64xf32, #tpu.memory_space<vmem>>, vector<1x4x32xf32>
    %653 = vector.shape_cast %652 : vector<1x4x32xf32> to vector<4x32xf32>
    %654 = vector.shape_cast %651 : vector<4x32xf32> to vector<1x4x32xf32>
    tpu.vector_store %arg23[%c7_155, %c0_156, %c0_157], %654 {strides = array<i32>} : memref<8x4x64xf32, #tpu.memory_space<vmem>>, vector<1x4x32xf32>,
    %655 = vector.extract_strided_slice %650 {offsets = [4, 0], sizes = [4, 32], strides = [1, 1]} : vector<8x32xf32> to vector<4x32xf32>
    %c0_158 = arith.constant 0 : index
    %c0_159 = arith.constant 0 : index
    %c32_160 = arith.constant 32 : index
    %656 = vector.load %arg23[%c0_158, %c0_159, %c32_160] : memref<8x4x64xf32, #tpu.memory_space<vmem>>, vector<1x4x32xf32>
    %657 = vector.shape_cast %656 : vector<1x4x32xf32> to vector<4x32xf32>
    %658 = vector.shape_cast %655 : vector<4x32xf32> to vector<1x4x32xf32>
    tpu.vector_store %arg23[%c0_158, %c0_159, %c32_160], %658 {strides = array<i32>} : memref<8x4x64xf32, #tpu.memory_space<vmem>>, vector<1x4x32xf32>,
    %c0_161 = arith.constant 0 : index
    %c0_162 = arith.constant 0 : index
    %c0_163 = arith.constant 0 : index
    %659 = vector.load %arg23[%c0_161, %c0_162, %c0_163] : memref<8x4x64xf32, #tpu.memory_space<vmem>>, vector<8x4x64xf32>
    %c0_164 = arith.constant 0 : index
    %c0_165 = arith.constant 0 : index
    %660 = vector.load %arg1[%c0_164, %c0_165] : memref<4x8xf32, #tpu.memory_space<vmem>>, vector<4x8xf32>
    %c0_166 = arith.constant 0 : index
    %c0_167 = arith.constant 0 : index
    %661 = vector.load %arg2[%c0_166, %c0_167] : memref<8x4xf32, #tpu.memory_space<vmem>>, vector<8x4xf32>
    %662 = vector.extract_strided_slice %659 {offsets = [0, 0, 0], sizes = [8, 1, 64], strides = [1, 1, 1]} : vector<8x4x64xf32> to vector<8x1x64xf32>
    %663 = vector.shape_cast %662 : vector<8x1x64xf32> to vector<8x64xf32>
    %664 = vector.extract_strided_slice %659 {offsets = [0, 2, 0], sizes = [8, 1, 64], strides = [1, 1, 1]} : vector<8x4x64xf32> to vector<8x1x64xf32>
    %665 = vector.shape_cast %664 : vector<8x1x64xf32> to vector<8x64xf32>
    %666 = vector.extract_strided_slice %660 {offsets = [0, 0], sizes = [1, 8], strides = [1, 1]} : vector<4x8xf32> to vector<1x8xf32>
    %667 = vector.extract_strided_slice %660 {offsets = [2, 0], sizes = [1, 8], strides = [1, 1]} : vector<4x8xf32> to vector<1x8xf32>
    %668 = vector.extract_strided_slice %661 {offsets = [0, 0], sizes = [8, 1], strides = [1, 1]} : vector<8x4xf32> to vector<8x1xf32>
    %669 = vector.extract_strided_slice %661 {offsets = [0, 2], sizes = [8, 1], strides = [1, 1]} : vector<8x4xf32> to vector<8x1xf32>
    "tpu.trace_start"() <{level = 10 : i32, message = "pd,qd->pq"}> : () -> ()
    %cst_168 = arith.constant dense<0.000000e+00> : vector<8x8xf32>
    %670 = tpu.matmul %663, %665, %cst_168 {dimension_numbers = #tpu.dot_dimension_numbers<[1], [1], [0], [0], [0, 0, 1, 0], [], []>} : vector<8x64xf32>, vector<8x64xf32>, vector<8x8xf32> -> vector<8x8xf32>
    "tpu.trace_stop"() : () -> ()
    "tpu.trace_start"() <{level = 10 : i32, message = "qd,pd->qp"}> : () -> ()
    %cst_169 = arith.constant dense<0.000000e+00> : vector<8x8xf32>
    %671 = tpu.matmul %665, %663, %cst_169 {dimension_numbers = #tpu.dot_dimension_numbers<[1], [1], [0], [0], [0, 0, 1, 0], [], []>} : vector<8x64xf32>, vector<8x64xf32>, vector<8x8xf32> -> vector<8x8xf32>
    "tpu.trace_stop"() : () -> ()
    %672 = vector.broadcast %667 : vector<1x8xf32> to vector<8x8xf32>
    %673 = arith.mulf %670, %672 : vector<8x8xf32>
    %cst_170 = arith.constant dense<0xFF800000> : vector<8xf32>
    %674 = vector.multi_reduction <maximumf>, %673, %cst_170 [1] : vector<8x8xf32> to vector<8xf32>
    %675 = vector.shape_cast %674 : vector<8xf32> to vector<8x1xf32>
    %676 = vector.broadcast %675 : vector<8x1xf32> to vector<8x8xf32>
    %677 = arith.subf %673, %676 : vector<8x8xf32>
    %678 = math.exp %677 : vector<8x8xf32>
    %679 = vector.broadcast %667 : vector<1x8xf32> to vector<8x8xf32>
    %680 = arith.mulf %678, %679 : vector<8x8xf32>
    %cst_171 = arith.constant dense<0.000000e+00> : vector<8xf32>
    %681 = vector.multi_reduction <add>, %680, %cst_171 [1] : vector<8x8xf32> to vector<8xf32>
    %682 = vector.shape_cast %681 : vector<8xf32> to vector<8x1xf32>
    %cst_172 = arith.constant 9.99999982E-14 : f32
    %683 = vector.broadcast %cst_172 : f32 to vector<8x1xf32>
    %684 = arith.addf %682, %683 : vector<8x1xf32>
    %685 = tpu.reciprocal %684 {approx = true} : vector<8x1xf32> -> vector<8x1xf32>
    %686 = vector.broadcast %685 : vector<8x1xf32> to vector<8x8xf32>
    %687 = arith.mulf %680, %686 : vector<8x8xf32>
    %688 = vector.broadcast %666 : vector<1x8xf32> to vector<8x8xf32>
    %689 = arith.mulf %671, %688 : vector<8x8xf32>
    %cst_173 = arith.constant dense<0xFF800000> : vector<8xf32>
    %690 = vector.multi_reduction <maximumf>, %689, %cst_173 [1] : vector<8x8xf32> to vector<8xf32>
    %691 = vector.shape_cast %690 : vector<8xf32> to vector<8x1xf32>
    %692 = vector.broadcast %691 : vector<8x1xf32> to vector<8x8xf32>
    %693 = arith.subf %689, %692 : vector<8x8xf32>
    %694 = math.exp %693 : vector<8x8xf32>
    %695 = vector.broadcast %666 : vector<1x8xf32> to vector<8x8xf32>
    %696 = arith.mulf %694, %695 : vector<8x8xf32>
    %cst_174 = arith.constant dense<0.000000e+00> : vector<8xf32>
    %697 = vector.multi_reduction <add>, %696, %cst_174 [1] : vector<8x8xf32> to vector<8xf32>
    %698 = vector.shape_cast %697 : vector<8xf32> to vector<8x1xf32>
    %cst_175 = arith.constant 9.99999982E-14 : f32
    %699 = vector.broadcast %cst_175 : f32 to vector<8x1xf32>
    %700 = arith.addf %698, %699 : vector<8x1xf32>
    %701 = tpu.reciprocal %700 {approx = true} : vector<8x1xf32> -> vector<8x1xf32>
    %702 = vector.broadcast %701 : vector<8x1xf32> to vector<8x8xf32>
    %703 = arith.mulf %696, %702 : vector<8x8xf32>
    %cst_176 = arith.constant dense<0.000000e+00> : vector<8x64xf32>
    %704 = tpu.matmul %687, %665, %cst_176 {dimension_numbers = #tpu.dot_dimension_numbers<[1], [0], [0], [1], [0, 0, 1, 1], [], []>} : vector<8x8xf32>, vector<8x64xf32>, vector<8x64xf32> -> vector<8x64xf32>
    %705 = vector.broadcast %668 : vector<8x1xf32> to vector<8x64xf32>
    %706 = arith.mulf %704, %705 : vector<8x64xf32>
    %cst_177 = arith.constant dense<0.000000e+00> : vector<8x64xf32>
    %707 = tpu.matmul %703, %663, %cst_177 {dimension_numbers = #tpu.dot_dimension_numbers<[1], [0], [0], [1], [0, 0, 1, 1], [], []>} : vector<8x8xf32>, vector<8x64xf32>, vector<8x64xf32> -> vector<8x64xf32>
    %708 = vector.broadcast %669 : vector<8x1xf32> to vector<8x64xf32>
    %709 = arith.mulf %707, %708 : vector<8x64xf32>
    %710 = arith.subf %663, %706 : vector<8x64xf32>
    %711 = arith.mulf %663, %706 : vector<8x64xf32>
    %712 = tpu.concatenate %663, %706, %710, %711 in 1 : vector<8x64xf32>, vector<8x64xf32>, vector<8x64xf32>, vector<8x64xf32> -> vector<8x256xf32>
    %713 = arith.subf %665, %709 : vector<8x64xf32>
    %714 = arith.mulf %665, %709 : vector<8x64xf32>
    %715 = tpu.concatenate %665, %709, %713, %714 in 1 : vector<8x64xf32>, vector<8x64xf32>, vector<8x64xf32>, vector<8x64xf32> -> vector<8x256xf32>
    %716 = vector.extract_strided_slice %659 {offsets = [0, 1, 0], sizes = [8, 1, 64], strides = [1, 1, 1]} : vector<8x4x64xf32> to vector<8x1x64xf32>
    %717 = vector.shape_cast %716 : vector<8x1x64xf32> to vector<8x64xf32>
    %718 = vector.extract_strided_slice %659 {offsets = [0, 3, 0], sizes = [8, 1, 64], strides = [1, 1, 1]} : vector<8x4x64xf32> to vector<8x1x64xf32>
    %719 = vector.shape_cast %718 : vector<8x1x64xf32> to vector<8x64xf32>
    %720 = vector.extract_strided_slice %660 {offsets = [1, 0], sizes = [1, 8], strides = [1, 1]} : vector<4x8xf32> to vector<1x8xf32>
    %721 = vector.extract_strided_slice %660 {offsets = [3, 0], sizes = [1, 8], strides = [1, 1]} : vector<4x8xf32> to vector<1x8xf32>
    %722 = vector.extract_strided_slice %661 {offsets = [0, 1], sizes = [8, 1], strides = [1, 1]} : vector<8x4xf32> to vector<8x1xf32>
    %723 = vector.extract_strided_slice %661 {offsets = [0, 3], sizes = [8, 1], strides = [1, 1]} : vector<8x4xf32> to vector<8x1xf32>
    "tpu.trace_start"() <{level = 10 : i32, message = "pd,qd->pq"}> : () -> ()
    %cst_178 = arith.constant dense<0.000000e+00> : vector<8x8xf32>
    %724 = tpu.matmul %717, %719, %cst_178 {dimension_numbers = #tpu.dot_dimension_numbers<[1], [1], [0], [0], [0, 0, 1, 0], [], []>} : vector<8x64xf32>, vector<8x64xf32>, vector<8x8xf32> -> vector<8x8xf32>
    "tpu.trace_stop"() : () -> ()
    "tpu.trace_start"() <{level = 10 : i32, message = "qd,pd->qp"}> : () -> ()
    %cst_179 = arith.constant dense<0.000000e+00> : vector<8x8xf32>
    %725 = tpu.matmul %719, %717, %cst_179 {dimension_numbers = #tpu.dot_dimension_numbers<[1], [1], [0], [0], [0, 0, 1, 0], [], []>} : vector<8x64xf32>, vector<8x64xf32>, vector<8x8xf32> -> vector<8x8xf32>
    "tpu.trace_stop"() : () -> ()
    %726 = vector.broadcast %721 : vector<1x8xf32> to vector<8x8xf32>
    %727 = arith.mulf %724, %726 : vector<8x8xf32>
    %cst_180 = arith.constant dense<0xFF800000> : vector<8xf32>
    %728 = vector.multi_reduction <maximumf>, %727, %cst_180 [1] : vector<8x8xf32> to vector<8xf32>
    %729 = vector.shape_cast %728 : vector<8xf32> to vector<8x1xf32>
    %730 = vector.broadcast %729 : vector<8x1xf32> to vector<8x8xf32>
    %731 = arith.subf %727, %730 : vector<8x8xf32>
    %732 = math.exp %731 : vector<8x8xf32>
    %733 = vector.broadcast %721 : vector<1x8xf32> to vector<8x8xf32>
    %734 = arith.mulf %732, %733 : vector<8x8xf32>
    %cst_181 = arith.constant dense<0.000000e+00> : vector<8xf32>
    %735 = vector.multi_reduction <add>, %734, %cst_181 [1] : vector<8x8xf32> to vector<8xf32>
    %736 = vector.shape_cast %735 : vector<8xf32> to vector<8x1xf32>
    %cst_182 = arith.constant 9.99999982E-14 : f32
    %737 = vector.broadcast %cst_182 : f32 to vector<8x1xf32>
    %738 = arith.addf %736, %737 : vector<8x1xf32>
    %739 = tpu.reciprocal %738 {approx = true} : vector<8x1xf32> -> vector<8x1xf32>
    %740 = vector.broadcast %739 : vector<8x1xf32> to vector<8x8xf32>
    %741 = arith.mulf %734, %740 : vector<8x8xf32>
    %742 = vector.broadcast %720 : vector<1x8xf32> to vector<8x8xf32>
    %743 = arith.mulf %725, %742 : vector<8x8xf32>
    %cst_183 = arith.constant dense<0xFF800000> : vector<8xf32>
    %744 = vector.multi_reduction <maximumf>, %743, %cst_183 [1] : vector<8x8xf32> to vector<8xf32>
    %745 = vector.shape_cast %744 : vector<8xf32> to vector<8x1xf32>
    %746 = vector.broadcast %745 : vector<8x1xf32> to vector<8x8xf32>
    %747 = arith.subf %743, %746 : vector<8x8xf32>
    %748 = math.exp %747 : vector<8x8xf32>
    %749 = vector.broadcast %720 : vector<1x8xf32> to vector<8x8xf32>
    %750 = arith.mulf %748, %749 : vector<8x8xf32>
    %cst_184 = arith.constant dense<0.000000e+00> : vector<8xf32>
    %751 = vector.multi_reduction <add>, %750, %cst_184 [1] : vector<8x8xf32> to vector<8xf32>
    %752 = vector.shape_cast %751 : vector<8xf32> to vector<8x1xf32>
    %cst_185 = arith.constant 9.99999982E-14 : f32
    %753 = vector.broadcast %cst_185 : f32 to vector<8x1xf32>
    %754 = arith.addf %752, %753 : vector<8x1xf32>
    %755 = tpu.reciprocal %754 {approx = true} : vector<8x1xf32> -> vector<8x1xf32>
    %756 = vector.broadcast %755 : vector<8x1xf32> to vector<8x8xf32>
    %757 = arith.mulf %750, %756 : vector<8x8xf32>
    %cst_186 = arith.constant dense<0.000000e+00> : vector<8x64xf32>
    %758 = tpu.matmul %741, %719, %cst_186 {dimension_numbers = #tpu.dot_dimension_numbers<[1], [0], [0], [1], [0, 0, 1, 1], [], []>} : vector<8x8xf32>, vector<8x64xf32>, vector<8x64xf32> -> vector<8x64xf32>
    %759 = vector.broadcast %722 : vector<8x1xf32> to vector<8x64xf32>
    %760 = arith.mulf %758, %759 : vector<8x64xf32>
    %cst_187 = arith.constant dense<0.000000e+00> : vector<8x64xf32>
    %761 = tpu.matmul %757, %717, %cst_187 {dimension_numbers = #tpu.dot_dimension_numbers<[1], [0], [0], [1], [0, 0, 1, 1], [], []>} : vector<8x8xf32>, vector<8x64xf32>, vector<8x64xf32> -> vector<8x64xf32>
    %762 = vector.broadcast %723 : vector<8x1xf32> to vector<8x64xf32>
    %763 = arith.mulf %761, %762 : vector<8x64xf32>
    %764 = arith.subf %717, %760 : vector<8x64xf32>
    %765 = arith.mulf %717, %760 : vector<8x64xf32>
    %766 = tpu.concatenate %717, %760, %764, %765 in 1 : vector<8x64xf32>, vector<8x64xf32>, vector<8x64xf32>, vector<8x64xf32> -> vector<8x256xf32>
    %767 = arith.subf %719, %763 : vector<8x64xf32>
    %768 = arith.mulf %719, %763 : vector<8x64xf32>
    %769 = tpu.concatenate %719, %763, %767, %768 in 1 : vector<8x64xf32>, vector<8x64xf32>, vector<8x64xf32>, vector<8x64xf32> -> vector<8x256xf32>
    %770 = tpu.concatenate %712, %766, %715, %769 in 0 : vector<8x256xf32>, vector<8x256xf32>, vector<8x256xf32>, vector<8x256xf32> -> vector<32x256xf32>
    %c0_188 = arith.constant 0 : index
    %c0_189 = arith.constant 0 : index
    %771 = vector.load %arg16[%c0_188, %c0_189] : memref<256x32xf32, #tpu.memory_space<vmem>>, vector<256x32xf32>
    %cst_190 = arith.constant dense<0.000000e+00> : vector<32x32xf32>
    %772 = tpu.matmul %770, %771, %cst_190 {dimension_numbers = #tpu.dot_dimension_numbers<[1], [0], [0], [1], [0, 0, 1, 1], [], []>} : vector<32x256xf32>, vector<256x32xf32>, vector<32x32xf32> -> vector<32x32xf32>
    %c0_191 = arith.constant 0 : index
    %c0_192 = arith.constant 0 : index
    %773 = vector.load %arg17[%c0_191, %c0_192] : memref<1x32xf32, #tpu.memory_space<vmem>>, vector<1x32xf32>
    %774 = vector.broadcast %773 : vector<1x32xf32> to vector<32x32xf32>
    %775 = arith.addf %772, %774 : vector<32x32xf32>
    %cst_193 = arith.constant 0.000000e+00 : f32
    %776 = vector.broadcast %cst_193 : f32 to vector<32x32xf32>
    %777 = arith.maximumf %775, %776 : vector<32x32xf32>
    %778 = vector.extract_strided_slice %777 {offsets = [0, 0], sizes = [1, 32], strides = [1, 1]} : vector<32x32xf32> to vector<1x32xf32>
    %779 = vector.extract_strided_slice %777 {offsets = [8, 0], sizes = [1, 32], strides = [1, 1]} : vector<32x32xf32> to vector<1x32xf32>
    %780 = vector.extract_strided_slice %777 {offsets = [16, 0], sizes = [1, 32], strides = [1, 1]} : vector<32x32xf32> to vector<1x32xf32>
    %781 = vector.extract_strided_slice %777 {offsets = [24, 0], sizes = [1, 32], strides = [1, 1]} : vector<32x32xf32> to vector<1x32xf32>
    %782 = vector.extract_strided_slice %777 {offsets = [1, 0], sizes = [1, 32], strides = [1, 1]} : vector<32x32xf32> to vector<1x32xf32>
    %783 = vector.extract_strided_slice %777 {offsets = [9, 0], sizes = [1, 32], strides = [1, 1]} : vector<32x32xf32> to vector<1x32xf32>
    %784 = vector.extract_strided_slice %777 {offsets = [17, 0], sizes = [1, 32], strides = [1, 1]} : vector<32x32xf32> to vector<1x32xf32>
    %785 = vector.extract_strided_slice %777 {offsets = [25, 0], sizes = [1, 32], strides = [1, 1]} : vector<32x32xf32> to vector<1x32xf32>
    %786 = vector.extract_strided_slice %777 {offsets = [2, 0], sizes = [1, 32], strides = [1, 1]} : vector<32x32xf32> to vector<1x32xf32>
    %787 = vector.extract_strided_slice %777 {offsets = [10, 0], sizes = [1, 32], strides = [1, 1]} : vector<32x32xf32> to vector<1x32xf32>
    %788 = vector.extract_strided_slice %777 {offsets = [18, 0], sizes = [1, 32], strides = [1, 1]} : vector<32x32xf32> to vector<1x32xf32>
    %789 = vector.extract_strided_slice %777 {offsets = [26, 0], sizes = [1, 32], strides = [1, 1]} : vector<32x32xf32> to vector<1x32xf32>
    %790 = vector.extract_strided_slice %777 {offsets = [3, 0], sizes = [1, 32], strides = [1, 1]} : vector<32x32xf32> to vector<1x32xf32>
    %791 = vector.extract_strided_slice %777 {offsets = [11, 0], sizes = [1, 32], strides = [1, 1]} : vector<32x32xf32> to vector<1x32xf32>
    %792 = vector.extract_strided_slice %777 {offsets = [19, 0], sizes = [1, 32], strides = [1, 1]} : vector<32x32xf32> to vector<1x32xf32>
    %793 = vector.extract_strided_slice %777 {offsets = [27, 0], sizes = [1, 32], strides = [1, 1]} : vector<32x32xf32> to vector<1x32xf32>
    %794 = vector.extract_strided_slice %777 {offsets = [4, 0], sizes = [1, 32], strides = [1, 1]} : vector<32x32xf32> to vector<1x32xf32>
    %795 = vector.extract_strided_slice %777 {offsets = [12, 0], sizes = [1, 32], strides = [1, 1]} : vector<32x32xf32> to vector<1x32xf32>
    %796 = vector.extract_strided_slice %777 {offsets = [20, 0], sizes = [1, 32], strides = [1, 1]} : vector<32x32xf32> to vector<1x32xf32>
    %797 = vector.extract_strided_slice %777 {offsets = [28, 0], sizes = [1, 32], strides = [1, 1]} : vector<32x32xf32> to vector<1x32xf32>
    %798 = vector.extract_strided_slice %777 {offsets = [5, 0], sizes = [1, 32], strides = [1, 1]} : vector<32x32xf32> to vector<1x32xf32>
    %799 = vector.extract_strided_slice %777 {offsets = [13, 0], sizes = [1, 32], strides = [1, 1]} : vector<32x32xf32> to vector<1x32xf32>
    %800 = vector.extract_strided_slice %777 {offsets = [21, 0], sizes = [1, 32], strides = [1, 1]} : vector<32x32xf32> to vector<1x32xf32>
    %801 = vector.extract_strided_slice %777 {offsets = [29, 0], sizes = [1, 32], strides = [1, 1]} : vector<32x32xf32> to vector<1x32xf32>
    %802 = vector.extract_strided_slice %777 {offsets = [6, 0], sizes = [1, 32], strides = [1, 1]} : vector<32x32xf32> to vector<1x32xf32>
    %803 = vector.extract_strided_slice %777 {offsets = [14, 0], sizes = [1, 32], strides = [1, 1]} : vector<32x32xf32> to vector<1x32xf32>
    %804 = vector.extract_strided_slice %777 {offsets = [22, 0], sizes = [1, 32], strides = [1, 1]} : vector<32x32xf32> to vector<1x32xf32>
    %805 = vector.extract_strided_slice %777 {offsets = [30, 0], sizes = [1, 32], strides = [1, 1]} : vector<32x32xf32> to vector<1x32xf32>
    %806 = vector.extract_strided_slice %777 {offsets = [7, 0], sizes = [1, 32], strides = [1, 1]} : vector<32x32xf32> to vector<1x32xf32>
    %807 = vector.extract_strided_slice %777 {offsets = [15, 0], sizes = [1, 32], strides = [1, 1]} : vector<32x32xf32> to vector<1x32xf32>
    %808 = vector.extract_strided_slice %777 {offsets = [23, 0], sizes = [1, 32], strides = [1, 1]} : vector<32x32xf32> to vector<1x32xf32>
    %809 = vector.extract_strided_slice %777 {offsets = [31, 0], sizes = [1, 32], strides = [1, 1]} : vector<32x32xf32> to vector<1x32xf32>
    %810 = tpu.concatenate %778, %779, %780, %781, %782, %783, %784, %785, %786, %787, %788, %789, %790, %791, %792, %793 in 0 : vector<1x32xf32>, vector<1x32xf32>, vector<1x32xf32>, vector<1x32xf32>, vector<1x32xf32>, vector<1x32xf32>, vector<1x32xf32>, vector<1x32xf32>, vector<1x32xf32>, vector<1x32xf32>, vector<1x32xf32>, vector<1x32xf32>, vector<1x32xf32>, vector<1x32xf32>, vector<1x32xf32>, vector<1x32xf32> -> vector<16x32xf32>
    %811 = tpu.concatenate %794, %795, %796, %797, %798, %799, %800, %801, %802, %803, %804, %805, %806, %807, %808, %809 in 0 : vector<1x32xf32>, vector<1x32xf32>, vector<1x32xf32>, vector<1x32xf32>, vector<1x32xf32>, vector<1x32xf32>, vector<1x32xf32>, vector<1x32xf32>, vector<1x32xf32>, vector<1x32xf32>, vector<1x32xf32>, vector<1x32xf32>, vector<1x32xf32>, vector<1x32xf32>, vector<1x32xf32>, vector<1x32xf32> -> vector<16x32xf32>
    %812 = tpu.concatenate %810, %811 in 0 : vector<16x32xf32>, vector<16x32xf32> -> vector<32x32xf32>
    %cst_194 = arith.constant 0.000000e+00 : f32
    %813 = vector.broadcast %cst_194 : f32 to vector<8x32xf32>
    %c0_195 = arith.constant 0 : index
    %c0_196 = arith.constant 0 : index
    %c0_197 = arith.constant 0 : index
    %814 = vector.load %arg10[%c0_195, %c0_196, %c0_197] : memref<2x32x128xf32, #tpu.memory_space<vmem>>, vector<1x32x128xf32>
    %815 = vector.shape_cast %814 : vector<1x32x128xf32> to vector<32x128xf32>
    %cst_198 = arith.constant dense<0.000000e+00> : vector<32x128xf32>
    %816 = tpu.matmul %812, %815, %cst_198 {dimension_numbers = #tpu.dot_dimension_numbers<[1], [0], [0], [1], [0, 0, 1, 1], [], []>} : vector<32x32xf32>, vector<32x128xf32>, vector<32x128xf32> -> vector<32x128xf32>
    %c0_199 = arith.constant 0 : index
    %c0_200 = arith.constant 0 : index
    %c0_201 = arith.constant 0 : index
    %817 = vector.load %arg12[%c0_199, %c0_200, %c0_201] : memref<2x1x128xf32, #tpu.memory_space<vmem>>, vector<1x1x128xf32>
    %818 = vector.shape_cast %817 : vector<1x1x128xf32> to vector<1x128xf32>
    %819 = vector.broadcast %818 : vector<1x128xf32> to vector<32x128xf32>
    %820 = arith.addf %816, %819 : vector<32x128xf32>
    %c1_202 = arith.constant 1 : index
    %c0_203 = arith.constant 0 : index
    %c0_204 = arith.constant 0 : index
    %821 = vector.load %arg10[%c1_202, %c0_203, %c0_204] : memref<2x32x128xf32, #tpu.memory_space<vmem>>, vector<1x32x128xf32>
    %822 = vector.shape_cast %821 : vector<1x32x128xf32> to vector<32x128xf32>
    %cst_205 = arith.constant dense<0.000000e+00> : vector<32x128xf32>
    %823 = tpu.matmul %812, %822, %cst_205 {dimension_numbers = #tpu.dot_dimension_numbers<[1], [0], [0], [1], [0, 0, 1, 1], [], []>} : vector<32x32xf32>, vector<32x128xf32>, vector<32x128xf32> -> vector<32x128xf32>
    %c1_206 = arith.constant 1 : index
    %c0_207 = arith.constant 0 : index
    %c0_208 = arith.constant 0 : index
    %824 = vector.load %arg12[%c1_206, %c0_207, %c0_208] : memref<2x1x128xf32, #tpu.memory_space<vmem>>, vector<1x1x128xf32>
    %825 = vector.shape_cast %824 : vector<1x1x128xf32> to vector<1x128xf32>
    %826 = vector.broadcast %825 : vector<1x128xf32> to vector<32x128xf32>
    %827 = arith.addf %823, %826 : vector<32x128xf32>
    %c0_209 = arith.constant 0 : index
    %c0_210 = arith.constant 0 : index
    %c0_211 = arith.constant 0 : index
    %828 = vector.load %arg11[%c0_209, %c0_210, %c0_211] : memref<2x32x128xf32, #tpu.memory_space<vmem>>, vector<1x32x128xf32>
    %829 = vector.shape_cast %828 : vector<1x32x128xf32> to vector<32x128xf32>
    %c1_212 = arith.constant 1 : index
    %c0_213 = arith.constant 0 : index
    %c0_214 = arith.constant 0 : index
    %830 = vector.load %arg11[%c1_212, %c0_213, %c0_214] : memref<2x32x128xf32, #tpu.memory_space<vmem>>, vector<1x32x128xf32>
    %831 = vector.shape_cast %830 : vector<1x32x128xf32> to vector<32x128xf32>
    %832 = vector.extract_strided_slice %820 {offsets = [0, 0], sizes = [4, 128], strides = [1, 1]} : vector<32x128xf32> to vector<4x128xf32>
    %833 = vector.extract_strided_slice %827 {offsets = [28, 0], sizes = [4, 128], strides = [1, 1]} : vector<32x128xf32> to vector<4x128xf32>
    %834 = tpu.concatenate %832, %833 in 0 : vector<4x128xf32>, vector<4x128xf32> -> vector<8x128xf32>
    %cst_215 = arith.constant dense<0.000000e+00> : vector<8x128xf32>
    %835 = tpu.matmul %813, %829, %cst_215 {dimension_numbers = #tpu.dot_dimension_numbers<[1], [0], [0], [1], [0, 0, 1, 1], [], []>} : vector<8x32xf32>, vector<32x128xf32>, vector<8x128xf32> -> vector<8x128xf32>
    %cst_216 = arith.constant dense<0.000000e+00> : vector<8x128xf32>
    %836 = tpu.matmul %813, %831, %cst_216 {dimension_numbers = #tpu.dot_dimension_numbers<[1], [0], [0], [1], [0, 0, 1, 1], [], []>} : vector<8x32xf32>, vector<32x128xf32>, vector<8x128xf32> -> vector<8x128xf32>
    %837 = vector.shape_cast %2 : vector<8x1xi1> to vector<8x1xi1>
    %838 = vector.broadcast %837 : vector<8x1xi1> to vector<8x128xi1>
    %839 = arith.select %838, %835, %836 : vector<8x128xi1>, vector<8x128xf32>
    %840 = arith.addf %834, %839 : vector<8x128xf32>
    %841 = vector.extract_strided_slice %840 {offsets = [0, 0], sizes = [8, 32], strides = [1, 1]} : vector<8x128xf32> to vector<8x32xf32>
    %842 = arith.negf %841 : vector<8x32xf32>
    %843 = math.exp %842 : vector<8x32xf32>
    %cst_217 = arith.constant 1.000000e+00 : f32
    %844 = vector.broadcast %cst_217 : f32 to vector<8x32xf32>
    %845 = arith.addf %844, %843 : vector<8x32xf32>
    %846 = arith.divf %844, %845 : vector<8x32xf32>
    %847 = vector.extract_strided_slice %840 {offsets = [0, 32], sizes = [8, 32], strides = [1, 1]} : vector<8x128xf32> to vector<8x32xf32>
    %848 = arith.negf %847 : vector<8x32xf32>
    %849 = math.exp %848 : vector<8x32xf32>
    %cst_218 = arith.constant 1.000000e+00 : f32
    %850 = vector.broadcast %cst_218 : f32 to vector<8x32xf32>
    %851 = arith.addf %850, %849 : vector<8x32xf32>
    %852 = arith.divf %850, %851 : vector<8x32xf32>
    %853 = vector.extract_strided_slice %840 {offsets = [0, 64], sizes = [8, 32], strides = [1, 1]} : vector<8x128xf32> to vector<8x32xf32>
    %854 = math.tanh %853 : vector<8x32xf32>
    %855 = vector.extract_strided_slice %840 {offsets = [0, 96], sizes = [8, 32], strides = [1, 1]} : vector<8x128xf32> to vector<8x32xf32>
    %856 = arith.negf %855 : vector<8x32xf32>
    %857 = math.exp %856 : vector<8x32xf32>
    %cst_219 = arith.constant 1.000000e+00 : f32
    %858 = vector.broadcast %cst_219 : f32 to vector<8x32xf32>
    %859 = arith.addf %858, %857 : vector<8x32xf32>
    %860 = arith.divf %858, %859 : vector<8x32xf32>
    %861 = arith.mulf %852, %813 : vector<8x32xf32>
    %862 = arith.mulf %846, %854 : vector<8x32xf32>
    %863 = arith.addf %861, %862 : vector<8x32xf32>
    %864 = math.tanh %863 : vector<8x32xf32>
    %865 = arith.mulf %860, %864 : vector<8x32xf32>
    %866 = vector.extract_strided_slice %820 {offsets = [4, 0], sizes = [4, 128], strides = [1, 1]} : vector<32x128xf32> to vector<4x128xf32>
    %867 = vector.extract_strided_slice %827 {offsets = [24, 0], sizes = [4, 128], strides = [1, 1]} : vector<32x128xf32> to vector<4x128xf32>
    %868 = tpu.concatenate %866, %867 in 0 : vector<4x128xf32>, vector<4x128xf32> -> vector<8x128xf32>
    %cst_220 = arith.constant dense<0.000000e+00> : vector<8x128xf32>
    %869 = tpu.matmul %865, %829, %cst_220 {dimension_numbers = #tpu.dot_dimension_numbers<[1], [0], [0], [1], [0, 0, 1, 1], [], []>} : vector<8x32xf32>, vector<32x128xf32>, vector<8x128xf32> -> vector<8x128xf32>
    %cst_221 = arith.constant dense<0.000000e+00> : vector<8x128xf32>
    %870 = tpu.matmul %865, %831, %cst_221 {dimension_numbers = #tpu.dot_dimension_numbers<[1], [0], [0], [1], [0, 0, 1, 1], [], []>} : vector<8x32xf32>, vector<32x128xf32>, vector<8x128xf32> -> vector<8x128xf32>
    %871 = vector.shape_cast %2 : vector<8x1xi1> to vector<8x1xi1>
    %872 = vector.broadcast %871 : vector<8x1xi1> to vector<8x128xi1>
    %873 = arith.select %872, %869, %870 : vector<8x128xi1>, vector<8x128xf32>
    %874 = arith.addf %868, %873 : vector<8x128xf32>
    %875 = vector.extract_strided_slice %874 {offsets = [0, 0], sizes = [8, 32], strides = [1, 1]} : vector<8x128xf32> to vector<8x32xf32>
    %876 = arith.negf %875 : vector<8x32xf32>
    %877 = math.exp %876 : vector<8x32xf32>
    %cst_222 = arith.constant 1.000000e+00 : f32
    %878 = vector.broadcast %cst_222 : f32 to vector<8x32xf32>
    %879 = arith.addf %878, %877 : vector<8x32xf32>
    %880 = arith.divf %878, %879 : vector<8x32xf32>
    %881 = vector.extract_strided_slice %874 {offsets = [0, 32], sizes = [8, 32], strides = [1, 1]} : vector<8x128xf32> to vector<8x32xf32>
    %882 = arith.negf %881 : vector<8x32xf32>
    %883 = math.exp %882 : vector<8x32xf32>
    %cst_223 = arith.constant 1.000000e+00 : f32
    %884 = vector.broadcast %cst_223 : f32 to vector<8x32xf32>
    %885 = arith.addf %884, %883 : vector<8x32xf32>
    %886 = arith.divf %884, %885 : vector<8x32xf32>
    %887 = vector.extract_strided_slice %874 {offsets = [0, 64], sizes = [8, 32], strides = [1, 1]} : vector<8x128xf32> to vector<8x32xf32>
    %888 = math.tanh %887 : vector<8x32xf32>
    %889 = vector.extract_strided_slice %874 {offsets = [0, 96], sizes = [8, 32], strides = [1, 1]} : vector<8x128xf32> to vector<8x32xf32>
    %890 = arith.negf %889 : vector<8x32xf32>
    %891 = math.exp %890 : vector<8x32xf32>
    %cst_224 = arith.constant 1.000000e+00 : f32
    %892 = vector.broadcast %cst_224 : f32 to vector<8x32xf32>
    %893 = arith.addf %892, %891 : vector<8x32xf32>
    %894 = arith.divf %892, %893 : vector<8x32xf32>
    %895 = arith.mulf %886, %863 : vector<8x32xf32>
    %896 = arith.mulf %880, %888 : vector<8x32xf32>
    %897 = arith.addf %895, %896 : vector<8x32xf32>
    %898 = math.tanh %897 : vector<8x32xf32>
    %899 = arith.mulf %894, %898 : vector<8x32xf32>
    %900 = vector.extract_strided_slice %820 {offsets = [8, 0], sizes = [4, 128], strides = [1, 1]} : vector<32x128xf32> to vector<4x128xf32>
    %901 = vector.extract_strided_slice %827 {offsets = [20, 0], sizes = [4, 128], strides = [1, 1]} : vector<32x128xf32> to vector<4x128xf32>
    %902 = tpu.concatenate %900, %901 in 0 : vector<4x128xf32>, vector<4x128xf32> -> vector<8x128xf32>
    %cst_225 = arith.constant dense<0.000000e+00> : vector<8x128xf32>
    %903 = tpu.matmul %899, %829, %cst_225 {dimension_numbers = #tpu.dot_dimension_numbers<[1], [0], [0], [1], [0, 0, 1, 1], [], []>} : vector<8x32xf32>, vector<32x128xf32>, vector<8x128xf32> -> vector<8x128xf32>
    %cst_226 = arith.constant dense<0.000000e+00> : vector<8x128xf32>
    %904 = tpu.matmul %899, %831, %cst_226 {dimension_numbers = #tpu.dot_dimension_numbers<[1], [0], [0], [1], [0, 0, 1, 1], [], []>} : vector<8x32xf32>, vector<32x128xf32>, vector<8x128xf32> -> vector<8x128xf32>
    %905 = vector.shape_cast %2 : vector<8x1xi1> to vector<8x1xi1>
    %906 = vector.broadcast %905 : vector<8x1xi1> to vector<8x128xi1>
    %907 = arith.select %906, %903, %904 : vector<8x128xi1>, vector<8x128xf32>
    %908 = arith.addf %902, %907 : vector<8x128xf32>
    %909 = vector.extract_strided_slice %908 {offsets = [0, 0], sizes = [8, 32], strides = [1, 1]} : vector<8x128xf32> to vector<8x32xf32>
    %910 = arith.negf %909 : vector<8x32xf32>
    %911 = math.exp %910 : vector<8x32xf32>
    %cst_227 = arith.constant 1.000000e+00 : f32
    %912 = vector.broadcast %cst_227 : f32 to vector<8x32xf32>
    %913 = arith.addf %912, %911 : vector<8x32xf32>
    %914 = arith.divf %912, %913 : vector<8x32xf32>
    %915 = vector.extract_strided_slice %908 {offsets = [0, 32], sizes = [8, 32], strides = [1, 1]} : vector<8x128xf32> to vector<8x32xf32>
    %916 = arith.negf %915 : vector<8x32xf32>
    %917 = math.exp %916 : vector<8x32xf32>
    %cst_228 = arith.constant 1.000000e+00 : f32
    %918 = vector.broadcast %cst_228 : f32 to vector<8x32xf32>
    %919 = arith.addf %918, %917 : vector<8x32xf32>
    %920 = arith.divf %918, %919 : vector<8x32xf32>
    %921 = vector.extract_strided_slice %908 {offsets = [0, 64], sizes = [8, 32], strides = [1, 1]} : vector<8x128xf32> to vector<8x32xf32>
    %922 = math.tanh %921 : vector<8x32xf32>
    %923 = vector.extract_strided_slice %908 {offsets = [0, 96], sizes = [8, 32], strides = [1, 1]} : vector<8x128xf32> to vector<8x32xf32>
    %924 = arith.negf %923 : vector<8x32xf32>
    %925 = math.exp %924 : vector<8x32xf32>
    %cst_229 = arith.constant 1.000000e+00 : f32
    %926 = vector.broadcast %cst_229 : f32 to vector<8x32xf32>
    %927 = arith.addf %926, %925 : vector<8x32xf32>
    %928 = arith.divf %926, %927 : vector<8x32xf32>
    %929 = arith.mulf %920, %897 : vector<8x32xf32>
    %930 = arith.mulf %914, %922 : vector<8x32xf32>
    %931 = arith.addf %929, %930 : vector<8x32xf32>
    %932 = math.tanh %931 : vector<8x32xf32>
    %933 = arith.mulf %928, %932 : vector<8x32xf32>
    %934 = vector.extract_strided_slice %820 {offsets = [12, 0], sizes = [4, 128], strides = [1, 1]} : vector<32x128xf32> to vector<4x128xf32>
    %935 = vector.extract_strided_slice %827 {offsets = [16, 0], sizes = [4, 128], strides = [1, 1]} : vector<32x128xf32> to vector<4x128xf32>
    %936 = tpu.concatenate %934, %935 in 0 : vector<4x128xf32>, vector<4x128xf32> -> vector<8x128xf32>
    %cst_230 = arith.constant dense<0.000000e+00> : vector<8x128xf32>
    %937 = tpu.matmul %933, %829, %cst_230 {dimension_numbers = #tpu.dot_dimension_numbers<[1], [0], [0], [1], [0, 0, 1, 1], [], []>} : vector<8x32xf32>, vector<32x128xf32>, vector<8x128xf32> -> vector<8x128xf32>
    %cst_231 = arith.constant dense<0.000000e+00> : vector<8x128xf32>
    %938 = tpu.matmul %933, %831, %cst_231 {dimension_numbers = #tpu.dot_dimension_numbers<[1], [0], [0], [1], [0, 0, 1, 1], [], []>} : vector<8x32xf32>, vector<32x128xf32>, vector<8x128xf32> -> vector<8x128xf32>
    %939 = vector.shape_cast %2 : vector<8x1xi1> to vector<8x1xi1>
    %940 = vector.broadcast %939 : vector<8x1xi1> to vector<8x128xi1>
    %941 = arith.select %940, %937, %938 : vector<8x128xi1>, vector<8x128xf32>
    %942 = arith.addf %936, %941 : vector<8x128xf32>
    %943 = vector.extract_strided_slice %942 {offsets = [0, 0], sizes = [8, 32], strides = [1, 1]} : vector<8x128xf32> to vector<8x32xf32>
    %944 = arith.negf %943 : vector<8x32xf32>
    %945 = math.exp %944 : vector<8x32xf32>
    %cst_232 = arith.constant 1.000000e+00 : f32
    %946 = vector.broadcast %cst_232 : f32 to vector<8x32xf32>
    %947 = arith.addf %946, %945 : vector<8x32xf32>
    %948 = arith.divf %946, %947 : vector<8x32xf32>
    %949 = vector.extract_strided_slice %942 {offsets = [0, 32], sizes = [8, 32], strides = [1, 1]} : vector<8x128xf32> to vector<8x32xf32>
    %950 = arith.negf %949 : vector<8x32xf32>
    %951 = math.exp %950 : vector<8x32xf32>
    %cst_233 = arith.constant 1.000000e+00 : f32
    %952 = vector.broadcast %cst_233 : f32 to vector<8x32xf32>
    %953 = arith.addf %952, %951 : vector<8x32xf32>
    %954 = arith.divf %952, %953 : vector<8x32xf32>
    %955 = vector.extract_strided_slice %942 {offsets = [0, 64], sizes = [8, 32], strides = [1, 1]} : vector<8x128xf32> to vector<8x32xf32>
    %956 = math.tanh %955 : vector<8x32xf32>
    %957 = vector.extract_strided_slice %942 {offsets = [0, 96], sizes = [8, 32], strides = [1, 1]} : vector<8x128xf32> to vector<8x32xf32>
    %958 = arith.negf %957 : vector<8x32xf32>
    %959 = math.exp %958 : vector<8x32xf32>
    %cst_234 = arith.constant 1.000000e+00 : f32
    %960 = vector.broadcast %cst_234 : f32 to vector<8x32xf32>
    %961 = arith.addf %960, %959 : vector<8x32xf32>
    %962 = arith.divf %960, %961 : vector<8x32xf32>
    %963 = arith.mulf %954, %931 : vector<8x32xf32>
    %964 = arith.mulf %948, %956 : vector<8x32xf32>
    %965 = arith.addf %963, %964 : vector<8x32xf32>
    %966 = math.tanh %965 : vector<8x32xf32>
    %967 = arith.mulf %962, %966 : vector<8x32xf32>
    %968 = vector.extract_strided_slice %820 {offsets = [16, 0], sizes = [4, 128], strides = [1, 1]} : vector<32x128xf32> to vector<4x128xf32>
    %969 = vector.extract_strided_slice %827 {offsets = [12, 0], sizes = [4, 128], strides = [1, 1]} : vector<32x128xf32> to vector<4x128xf32>
    %970 = tpu.concatenate %968, %969 in 0 : vector<4x128xf32>, vector<4x128xf32> -> vector<8x128xf32>
    %cst_235 = arith.constant dense<0.000000e+00> : vector<8x128xf32>
    %971 = tpu.matmul %967, %829, %cst_235 {dimension_numbers = #tpu.dot_dimension_numbers<[1], [0], [0], [1], [0, 0, 1, 1], [], []>} : vector<8x32xf32>, vector<32x128xf32>, vector<8x128xf32> -> vector<8x128xf32>
    %cst_236 = arith.constant dense<0.000000e+00> : vector<8x128xf32>
    %972 = tpu.matmul %967, %831, %cst_236 {dimension_numbers = #tpu.dot_dimension_numbers<[1], [0], [0], [1], [0, 0, 1, 1], [], []>} : vector<8x32xf32>, vector<32x128xf32>, vector<8x128xf32> -> vector<8x128xf32>
    %973 = vector.shape_cast %2 : vector<8x1xi1> to vector<8x1xi1>
    %974 = vector.broadcast %973 : vector<8x1xi1> to vector<8x128xi1>
    %975 = arith.select %974, %971, %972 : vector<8x128xi1>, vector<8x128xf32>
    %976 = arith.addf %970, %975 : vector<8x128xf32>
    %977 = vector.extract_strided_slice %976 {offsets = [0, 0], sizes = [8, 32], strides = [1, 1]} : vector<8x128xf32> to vector<8x32xf32>
    %978 = arith.negf %977 : vector<8x32xf32>
    %979 = math.exp %978 : vector<8x32xf32>
    %cst_237 = arith.constant 1.000000e+00 : f32
    %980 = vector.broadcast %cst_237 : f32 to vector<8x32xf32>
    %981 = arith.addf %980, %979 : vector<8x32xf32>
    %982 = arith.divf %980, %981 : vector<8x32xf32>
    %983 = vector.extract_strided_slice %976 {offsets = [0, 32], sizes = [8, 32], strides = [1, 1]} : vector<8x128xf32> to vector<8x32xf32>
    %984 = arith.negf %983 : vector<8x32xf32>
    %985 = math.exp %984 : vector<8x32xf32>
    %cst_238 = arith.constant 1.000000e+00 : f32
    %986 = vector.broadcast %cst_238 : f32 to vector<8x32xf32>
    %987 = arith.addf %986, %985 : vector<8x32xf32>
    %988 = arith.divf %986, %987 : vector<8x32xf32>
    %989 = vector.extract_strided_slice %976 {offsets = [0, 64], sizes = [8, 32], strides = [1, 1]} : vector<8x128xf32> to vector<8x32xf32>
    %990 = math.tanh %989 : vector<8x32xf32>
    %991 = vector.extract_strided_slice %976 {offsets = [0, 96], sizes = [8, 32], strides = [1, 1]} : vector<8x128xf32> to vector<8x32xf32>
    %992 = arith.negf %991 : vector<8x32xf32>
    %993 = math.exp %992 : vector<8x32xf32>
    %cst_239 = arith.constant 1.000000e+00 : f32
    %994 = vector.broadcast %cst_239 : f32 to vector<8x32xf32>
    %995 = arith.addf %994, %993 : vector<8x32xf32>
    %996 = arith.divf %994, %995 : vector<8x32xf32>
    %997 = arith.mulf %988, %965 : vector<8x32xf32>
    %998 = arith.mulf %982, %990 : vector<8x32xf32>
    %999 = arith.addf %997, %998 : vector<8x32xf32>
    %1000 = math.tanh %999 : vector<8x32xf32>
    %1001 = arith.mulf %996, %1000 : vector<8x32xf32>
    %1002 = vector.extract_strided_slice %820 {offsets = [20, 0], sizes = [4, 128], strides = [1, 1]} : vector<32x128xf32> to vector<4x128xf32>
    %1003 = vector.extract_strided_slice %827 {offsets = [8, 0], sizes = [4, 128], strides = [1, 1]} : vector<32x128xf32> to vector<4x128xf32>
    %1004 = tpu.concatenate %1002, %1003 in 0 : vector<4x128xf32>, vector<4x128xf32> -> vector<8x128xf32>
    %cst_240 = arith.constant dense<0.000000e+00> : vector<8x128xf32>
    %1005 = tpu.matmul %1001, %829, %cst_240 {dimension_numbers = #tpu.dot_dimension_numbers<[1], [0], [0], [1], [0, 0, 1, 1], [], []>} : vector<8x32xf32>, vector<32x128xf32>, vector<8x128xf32> -> vector<8x128xf32>
    %cst_241 = arith.constant dense<0.000000e+00> : vector<8x128xf32>
    %1006 = tpu.matmul %1001, %831, %cst_241 {dimension_numbers = #tpu.dot_dimension_numbers<[1], [0], [0], [1], [0, 0, 1, 1], [], []>} : vector<8x32xf32>, vector<32x128xf32>, vector<8x128xf32> -> vector<8x128xf32>
    %1007 = vector.shape_cast %2 : vector<8x1xi1> to vector<8x1xi1>
    %1008 = vector.broadcast %1007 : vector<8x1xi1> to vector<8x128xi1>
    %1009 = arith.select %1008, %1005, %1006 : vector<8x128xi1>, vector<8x128xf32>
    %1010 = arith.addf %1004, %1009 : vector<8x128xf32>
    %1011 = vector.extract_strided_slice %1010 {offsets = [0, 0], sizes = [8, 32], strides = [1, 1]} : vector<8x128xf32> to vector<8x32xf32>
    %1012 = arith.negf %1011 : vector<8x32xf32>
    %1013 = math.exp %1012 : vector<8x32xf32>
    %cst_242 = arith.constant 1.000000e+00 : f32
    %1014 = vector.broadcast %cst_242 : f32 to vector<8x32xf32>
    %1015 = arith.addf %1014, %1013 : vector<8x32xf32>
    %1016 = arith.divf %1014, %1015 : vector<8x32xf32>
    %1017 = vector.extract_strided_slice %1010 {offsets = [0, 32], sizes = [8, 32], strides = [1, 1]} : vector<8x128xf32> to vector<8x32xf32>
    %1018 = arith.negf %1017 : vector<8x32xf32>
    %1019 = math.exp %1018 : vector<8x32xf32>
    %cst_243 = arith.constant 1.000000e+00 : f32
    %1020 = vector.broadcast %cst_243 : f32 to vector<8x32xf32>
    %1021 = arith.addf %1020, %1019 : vector<8x32xf32>
    %1022 = arith.divf %1020, %1021 : vector<8x32xf32>
    %1023 = vector.extract_strided_slice %1010 {offsets = [0, 64], sizes = [8, 32], strides = [1, 1]} : vector<8x128xf32> to vector<8x32xf32>
    %1024 = math.tanh %1023 : vector<8x32xf32>
    %1025 = vector.extract_strided_slice %1010 {offsets = [0, 96], sizes = [8, 32], strides = [1, 1]} : vector<8x128xf32> to vector<8x32xf32>
    %1026 = arith.negf %1025 : vector<8x32xf32>
    %1027 = math.exp %1026 : vector<8x32xf32>
    %cst_244 = arith.constant 1.000000e+00 : f32
    %1028 = vector.broadcast %cst_244 : f32 to vector<8x32xf32>
    %1029 = arith.addf %1028, %1027 : vector<8x32xf32>
    %1030 = arith.divf %1028, %1029 : vector<8x32xf32>
    %1031 = arith.mulf %1022, %999 : vector<8x32xf32>
    %1032 = arith.mulf %1016, %1024 : vector<8x32xf32>
    %1033 = arith.addf %1031, %1032 : vector<8x32xf32>
    %1034 = math.tanh %1033 : vector<8x32xf32>
    %1035 = arith.mulf %1030, %1034 : vector<8x32xf32>
    %1036 = vector.extract_strided_slice %820 {offsets = [24, 0], sizes = [4, 128], strides = [1, 1]} : vector<32x128xf32> to vector<4x128xf32>
    %1037 = vector.extract_strided_slice %827 {offsets = [4, 0], sizes = [4, 128], strides = [1, 1]} : vector<32x128xf32> to vector<4x128xf32>
    %1038 = tpu.concatenate %1036, %1037 in 0 : vector<4x128xf32>, vector<4x128xf32> -> vector<8x128xf32>
    %cst_245 = arith.constant dense<0.000000e+00> : vector<8x128xf32>
    %1039 = tpu.matmul %1035, %829, %cst_245 {dimension_numbers = #tpu.dot_dimension_numbers<[1], [0], [0], [1], [0, 0, 1, 1], [], []>} : vector<8x32xf32>, vector<32x128xf32>, vector<8x128xf32> -> vector<8x128xf32>
    %cst_246 = arith.constant dense<0.000000e+00> : vector<8x128xf32>
    %1040 = tpu.matmul %1035, %831, %cst_246 {dimension_numbers = #tpu.dot_dimension_numbers<[1], [0], [0], [1], [0, 0, 1, 1], [], []>} : vector<8x32xf32>, vector<32x128xf32>, vector<8x128xf32> -> vector<8x128xf32>
    %1041 = vector.shape_cast %2 : vector<8x1xi1> to vector<8x1xi1>
    %1042 = vector.broadcast %1041 : vector<8x1xi1> to vector<8x128xi1>
    %1043 = arith.select %1042, %1039, %1040 : vector<8x128xi1>, vector<8x128xf32>
    %1044 = arith.addf %1038, %1043 : vector<8x128xf32>
    %1045 = vector.extract_strided_slice %1044 {offsets = [0, 0], sizes = [8, 32], strides = [1, 1]} : vector<8x128xf32> to vector<8x32xf32>
    %1046 = arith.negf %1045 : vector<8x32xf32>
    %1047 = math.exp %1046 : vector<8x32xf32>
    %cst_247 = arith.constant 1.000000e+00 : f32
    %1048 = vector.broadcast %cst_247 : f32 to vector<8x32xf32>
    %1049 = arith.addf %1048, %1047 : vector<8x32xf32>
    %1050 = arith.divf %1048, %1049 : vector<8x32xf32>
    %1051 = vector.extract_strided_slice %1044 {offsets = [0, 32], sizes = [8, 32], strides = [1, 1]} : vector<8x128xf32> to vector<8x32xf32>
    %1052 = arith.negf %1051 : vector<8x32xf32>
    %1053 = math.exp %1052 : vector<8x32xf32>
    %cst_248 = arith.constant 1.000000e+00 : f32
    %1054 = vector.broadcast %cst_248 : f32 to vector<8x32xf32>
    %1055 = arith.addf %1054, %1053 : vector<8x32xf32>
    %1056 = arith.divf %1054, %1055 : vector<8x32xf32>
    %1057 = vector.extract_strided_slice %1044 {offsets = [0, 64], sizes = [8, 32], strides = [1, 1]} : vector<8x128xf32> to vector<8x32xf32>
    %1058 = math.tanh %1057 : vector<8x32xf32>
    %1059 = vector.extract_strided_slice %1044 {offsets = [0, 96], sizes = [8, 32], strides = [1, 1]} : vector<8x128xf32> to vector<8x32xf32>
    %1060 = arith.negf %1059 : vector<8x32xf32>
    %1061 = math.exp %1060 : vector<8x32xf32>
    %cst_249 = arith.constant 1.000000e+00 : f32
    %1062 = vector.broadcast %cst_249 : f32 to vector<8x32xf32>
    %1063 = arith.addf %1062, %1061 : vector<8x32xf32>
    %1064 = arith.divf %1062, %1063 : vector<8x32xf32>
    %1065 = arith.mulf %1056, %1033 : vector<8x32xf32>
    %1066 = arith.mulf %1050, %1058 : vector<8x32xf32>
    %1067 = arith.addf %1065, %1066 : vector<8x32xf32>
    %1068 = math.tanh %1067 : vector<8x32xf32>
    %1069 = arith.mulf %1064, %1068 : vector<8x32xf32>
    %1070 = vector.extract_strided_slice %820 {offsets = [28, 0], sizes = [4, 128], strides = [1, 1]} : vector<32x128xf32> to vector<4x128xf32>
    %1071 = vector.extract_strided_slice %827 {offsets = [0, 0], sizes = [4, 128], strides = [1, 1]} : vector<32x128xf32> to vector<4x128xf32>
    %1072 = tpu.concatenate %1070, %1071 in 0 : vector<4x128xf32>, vector<4x128xf32> -> vector<8x128xf32>
    %cst_250 = arith.constant dense<0.000000e+00> : vector<8x128xf32>
    %1073 = tpu.matmul %1069, %829, %cst_250 {dimension_numbers = #tpu.dot_dimension_numbers<[1], [0], [0], [1], [0, 0, 1, 1], [], []>} : vector<8x32xf32>, vector<32x128xf32>, vector<8x128xf32> -> vector<8x128xf32>
    %cst_251 = arith.constant dense<0.000000e+00> : vector<8x128xf32>
    %1074 = tpu.matmul %1069, %831, %cst_251 {dimension_numbers = #tpu.dot_dimension_numbers<[1], [0], [0], [1], [0, 0, 1, 1], [], []>} : vector<8x32xf32>, vector<32x128xf32>, vector<8x128xf32> -> vector<8x128xf32>
    %1075 = vector.shape_cast %2 : vector<8x1xi1> to vector<8x1xi1>
    %1076 = vector.broadcast %1075 : vector<8x1xi1> to vector<8x128xi1>
    %1077 = arith.select %1076, %1073, %1074 : vector<8x128xi1>, vector<8x128xf32>
    %1078 = arith.addf %1072, %1077 : vector<8x128xf32>
    %1079 = vector.extract_strided_slice %1078 {offsets = [0, 0], sizes = [8, 32], strides = [1, 1]} : vector<8x128xf32> to vector<8x32xf32>
    %1080 = arith.negf %1079 : vector<8x32xf32>
    %1081 = math.exp %1080 : vector<8x32xf32>
    %cst_252 = arith.constant 1.000000e+00 : f32
    %1082 = vector.broadcast %cst_252 : f32 to vector<8x32xf32>
    %1083 = arith.addf %1082, %1081 : vector<8x32xf32>
    %1084 = arith.divf %1082, %1083 : vector<8x32xf32>
    %1085 = vector.extract_strided_slice %1078 {offsets = [0, 32], sizes = [8, 32], strides = [1, 1]} : vector<8x128xf32> to vector<8x32xf32>
    %1086 = arith.negf %1085 : vector<8x32xf32>
    %1087 = math.exp %1086 : vector<8x32xf32>
    %cst_253 = arith.constant 1.000000e+00 : f32
    %1088 = vector.broadcast %cst_253 : f32 to vector<8x32xf32>
    %1089 = arith.addf %1088, %1087 : vector<8x32xf32>
    %1090 = arith.divf %1088, %1089 : vector<8x32xf32>
    %1091 = vector.extract_strided_slice %1078 {offsets = [0, 64], sizes = [8, 32], strides = [1, 1]} : vector<8x128xf32> to vector<8x32xf32>
    %1092 = math.tanh %1091 : vector<8x32xf32>
    %1093 = vector.extract_strided_slice %1078 {offsets = [0, 96], sizes = [8, 32], strides = [1, 1]} : vector<8x128xf32> to vector<8x32xf32>
    %1094 = arith.negf %1093 : vector<8x32xf32>
    %1095 = math.exp %1094 : vector<8x32xf32>
    %cst_254 = arith.constant 1.000000e+00 : f32
    %1096 = vector.broadcast %cst_254 : f32 to vector<8x32xf32>
    %1097 = arith.addf %1096, %1095 : vector<8x32xf32>
    %1098 = arith.divf %1096, %1097 : vector<8x32xf32>
    %1099 = arith.mulf %1090, %1067 : vector<8x32xf32>
    %1100 = arith.mulf %1084, %1092 : vector<8x32xf32>
    %1101 = arith.addf %1099, %1100 : vector<8x32xf32>
    %1102 = math.tanh %1101 : vector<8x32xf32>
    %1103 = arith.mulf %1098, %1102 : vector<8x32xf32>
    %1104 = vector.extract_strided_slice %1103 {offsets = [2, 0], sizes = [2, 32], strides = [1, 1]} : vector<8x32xf32> to vector<2x32xf32>
    %1105 = vector.extract_strided_slice %1103 {offsets = [0, 0], sizes = [2, 32], strides = [1, 1]} : vector<8x32xf32> to vector<2x32xf32>
    %1106 = vector.extract_strided_slice %1103 {offsets = [6, 0], sizes = [2, 32], strides = [1, 1]} : vector<8x32xf32> to vector<2x32xf32>
    %1107 = vector.extract_strided_slice %1103 {offsets = [4, 0], sizes = [2, 32], strides = [1, 1]} : vector<8x32xf32> to vector<2x32xf32>
    %1108 = tpu.concatenate %1104, %1105, %1106, %1107 in 0 : vector<2x32xf32>, vector<2x32xf32>, vector<2x32xf32>, vector<2x32xf32> -> vector<8x32xf32>
    %1109 = vector.extract_strided_slice %1101 {offsets = [2, 0], sizes = [2, 32], strides = [1, 1]} : vector<8x32xf32> to vector<2x32xf32>
    %1110 = vector.extract_strided_slice %1101 {offsets = [0, 0], sizes = [2, 32], strides = [1, 1]} : vector<8x32xf32> to vector<2x32xf32>
    %1111 = vector.extract_strided_slice %1101 {offsets = [6, 0], sizes = [2, 32], strides = [1, 1]} : vector<8x32xf32> to vector<2x32xf32>
    %1112 = vector.extract_strided_slice %1101 {offsets = [4, 0], sizes = [2, 32], strides = [1, 1]} : vector<8x32xf32> to vector<2x32xf32>
    %1113 = tpu.concatenate %1109, %1110, %1111, %1112 in 0 : vector<2x32xf32>, vector<2x32xf32>, vector<2x32xf32>, vector<2x32xf32> -> vector<8x32xf32>
    %c0_255 = arith.constant 0 : index
    %c0_256 = arith.constant 0 : index
    %c0_257 = arith.constant 0 : index
    %1114 = vector.load %arg13[%c0_255, %c0_256, %c0_257] : memref<2x32x128xf32, #tpu.memory_space<vmem>>, vector<1x32x128xf32>
    %1115 = vector.shape_cast %1114 : vector<1x32x128xf32> to vector<32x128xf32>
    %cst_258 = arith.constant dense<0.000000e+00> : vector<32x128xf32>
    %1116 = tpu.matmul %812, %1115, %cst_258 {dimension_numbers = #tpu.dot_dimension_numbers<[1], [0], [0], [1], [0, 0, 1, 1], [], []>} : vector<32x32xf32>, vector<32x128xf32>, vector<32x128xf32> -> vector<32x128xf32>
    %c0_259 = arith.constant 0 : index
    %c0_260 = arith.constant 0 : index
    %c0_261 = arith.constant 0 : index
    %1117 = vector.load %arg15[%c0_259, %c0_260, %c0_261] : memref<2x1x128xf32, #tpu.memory_space<vmem>>, vector<1x1x128xf32>
    %1118 = vector.shape_cast %1117 : vector<1x1x128xf32> to vector<1x128xf32>
    %1119 = vector.broadcast %1118 : vector<1x128xf32> to vector<32x128xf32>
    %1120 = arith.addf %1116, %1119 : vector<32x128xf32>
    %c1_262 = arith.constant 1 : index
    %c0_263 = arith.constant 0 : index
    %c0_264 = arith.constant 0 : index
    %1121 = vector.load %arg13[%c1_262, %c0_263, %c0_264] : memref<2x32x128xf32, #tpu.memory_space<vmem>>, vector<1x32x128xf32>
    %1122 = vector.shape_cast %1121 : vector<1x32x128xf32> to vector<32x128xf32>
    %cst_265 = arith.constant dense<0.000000e+00> : vector<32x128xf32>
    %1123 = tpu.matmul %812, %1122, %cst_265 {dimension_numbers = #tpu.dot_dimension_numbers<[1], [0], [0], [1], [0, 0, 1, 1], [], []>} : vector<32x32xf32>, vector<32x128xf32>, vector<32x128xf32> -> vector<32x128xf32>
    %c1_266 = arith.constant 1 : index
    %c0_267 = arith.constant 0 : index
    %c0_268 = arith.constant 0 : index
    %1124 = vector.load %arg15[%c1_266, %c0_267, %c0_268] : memref<2x1x128xf32, #tpu.memory_space<vmem>>, vector<1x1x128xf32>
    %1125 = vector.shape_cast %1124 : vector<1x1x128xf32> to vector<1x128xf32>
    %1126 = vector.broadcast %1125 : vector<1x128xf32> to vector<32x128xf32>
    %1127 = arith.addf %1123, %1126 : vector<32x128xf32>
    %c0_269 = arith.constant 0 : index
    %c0_270 = arith.constant 0 : index
    %c0_271 = arith.constant 0 : index
    %1128 = vector.load %arg14[%c0_269, %c0_270, %c0_271] : memref<2x32x128xf32, #tpu.memory_space<vmem>>, vector<1x32x128xf32>
    %1129 = vector.shape_cast %1128 : vector<1x32x128xf32> to vector<32x128xf32>
    %c1_272 = arith.constant 1 : index
    %c0_273 = arith.constant 0 : index
    %c0_274 = arith.constant 0 : index
    %1130 = vector.load %arg14[%c1_272, %c0_273, %c0_274] : memref<2x32x128xf32, #tpu.memory_space<vmem>>, vector<1x32x128xf32>
    %1131 = vector.shape_cast %1130 : vector<1x32x128xf32> to vector<32x128xf32>
    %1132 = vector.extract_strided_slice %1120 {offsets = [0, 0], sizes = [4, 128], strides = [1, 1]} : vector<32x128xf32> to vector<4x128xf32>
    %1133 = vector.extract_strided_slice %1127 {offsets = [28, 0], sizes = [4, 128], strides = [1, 1]} : vector<32x128xf32> to vector<4x128xf32>
    %1134 = tpu.concatenate %1132, %1133 in 0 : vector<4x128xf32>, vector<4x128xf32> -> vector<8x128xf32>
    %cst_275 = arith.constant dense<0.000000e+00> : vector<8x128xf32>
    %1135 = tpu.matmul %1108, %1129, %cst_275 {dimension_numbers = #tpu.dot_dimension_numbers<[1], [0], [0], [1], [0, 0, 1, 1], [], []>} : vector<8x32xf32>, vector<32x128xf32>, vector<8x128xf32> -> vector<8x128xf32>
    %cst_276 = arith.constant dense<0.000000e+00> : vector<8x128xf32>
    %1136 = tpu.matmul %1108, %1131, %cst_276 {dimension_numbers = #tpu.dot_dimension_numbers<[1], [0], [0], [1], [0, 0, 1, 1], [], []>} : vector<8x32xf32>, vector<32x128xf32>, vector<8x128xf32> -> vector<8x128xf32>
    %1137 = vector.shape_cast %2 : vector<8x1xi1> to vector<8x1xi1>
    %1138 = vector.broadcast %1137 : vector<8x1xi1> to vector<8x128xi1>
    %1139 = arith.select %1138, %1135, %1136 : vector<8x128xi1>, vector<8x128xf32>
    %1140 = arith.addf %1134, %1139 : vector<8x128xf32>
    %1141 = vector.extract_strided_slice %1140 {offsets = [0, 0], sizes = [8, 32], strides = [1, 1]} : vector<8x128xf32> to vector<8x32xf32>
    %1142 = arith.negf %1141 : vector<8x32xf32>
    %1143 = math.exp %1142 : vector<8x32xf32>
    %cst_277 = arith.constant 1.000000e+00 : f32
    %1144 = vector.broadcast %cst_277 : f32 to vector<8x32xf32>
    %1145 = arith.addf %1144, %1143 : vector<8x32xf32>
    %1146 = arith.divf %1144, %1145 : vector<8x32xf32>
    %1147 = vector.extract_strided_slice %1140 {offsets = [0, 32], sizes = [8, 32], strides = [1, 1]} : vector<8x128xf32> to vector<8x32xf32>
    %1148 = arith.negf %1147 : vector<8x32xf32>
    %1149 = math.exp %1148 : vector<8x32xf32>
    %cst_278 = arith.constant 1.000000e+00 : f32
    %1150 = vector.broadcast %cst_278 : f32 to vector<8x32xf32>
    %1151 = arith.addf %1150, %1149 : vector<8x32xf32>
    %1152 = arith.divf %1150, %1151 : vector<8x32xf32>
    %1153 = vector.extract_strided_slice %1140 {offsets = [0, 64], sizes = [8, 32], strides = [1, 1]} : vector<8x128xf32> to vector<8x32xf32>
    %1154 = math.tanh %1153 : vector<8x32xf32>
    %1155 = vector.extract_strided_slice %1140 {offsets = [0, 96], sizes = [8, 32], strides = [1, 1]} : vector<8x128xf32> to vector<8x32xf32>
    %1156 = arith.negf %1155 : vector<8x32xf32>
    %1157 = math.exp %1156 : vector<8x32xf32>
    %cst_279 = arith.constant 1.000000e+00 : f32
    %1158 = vector.broadcast %cst_279 : f32 to vector<8x32xf32>
    %1159 = arith.addf %1158, %1157 : vector<8x32xf32>
    %1160 = arith.divf %1158, %1159 : vector<8x32xf32>
    %1161 = arith.mulf %1152, %1113 : vector<8x32xf32>
    %1162 = arith.mulf %1146, %1154 : vector<8x32xf32>
    %1163 = arith.addf %1161, %1162 : vector<8x32xf32>
    %1164 = math.tanh %1163 : vector<8x32xf32>
    %1165 = arith.mulf %1160, %1164 : vector<8x32xf32>
    %1166 = vector.extract_strided_slice %1165 {offsets = [0, 0], sizes = [4, 32], strides = [1, 1]} : vector<8x32xf32> to vector<4x32xf32>
    %c0_280 = arith.constant 0 : index
    %c0_281 = arith.constant 0 : index
    %c0_282 = arith.constant 0 : index
    %1167 = vector.load %arg24[%c0_280, %c0_281, %c0_282] : memref<8x4x64xf32, #tpu.memory_space<vmem>>, vector<1x4x32xf32>
    %1168 = vector.shape_cast %1167 : vector<1x4x32xf32> to vector<4x32xf32>
    %1169 = vector.shape_cast %1166 : vector<4x32xf32> to vector<1x4x32xf32>
    tpu.vector_store %arg24[%c0_280, %c0_281, %c0_282], %1169 {strides = array<i32>} : memref<8x4x64xf32, #tpu.memory_space<vmem>>, vector<1x4x32xf32>,
    %1170 = vector.extract_strided_slice %1165 {offsets = [4, 0], sizes = [4, 32], strides = [1, 1]} : vector<8x32xf32> to vector<4x32xf32>
    %c7_283 = arith.constant 7 : index
    %c0_284 = arith.constant 0 : index
    %c32_285 = arith.constant 32 : index
    %1171 = vector.load %arg24[%c7_283, %c0_284, %c32_285] : memref<8x4x64xf32, #tpu.memory_space<vmem>>, vector<1x4x32xf32>
    %1172 = vector.shape_cast %1171 : vector<1x4x32xf32> to vector<4x32xf32>
    %1173 = vector.shape_cast %1170 : vector<4x32xf32> to vector<1x4x32xf32>
    tpu.vector_store %arg24[%c7_283, %c0_284, %c32_285], %1173 {strides = array<i32>} : memref<8x4x64xf32, #tpu.memory_space<vmem>>, vector<1x4x32xf32>,
    %1174 = vector.extract_strided_slice %1120 {offsets = [4, 0], sizes = [4, 128], strides = [1, 1]} : vector<32x128xf32> to vector<4x128xf32>
    %1175 = vector.extract_strided_slice %1127 {offsets = [24, 0], sizes = [4, 128], strides = [1, 1]} : vector<32x128xf32> to vector<4x128xf32>
    %1176 = tpu.concatenate %1174, %1175 in 0 : vector<4x128xf32>, vector<4x128xf32> -> vector<8x128xf32>
    %cst_286 = arith.constant dense<0.000000e+00> : vector<8x128xf32>
    %1177 = tpu.matmul %1165, %1129, %cst_286 {dimension_numbers = #tpu.dot_dimension_numbers<[1], [0], [0], [1], [0, 0, 1, 1], [], []>} : vector<8x32xf32>, vector<32x128xf32>, vector<8x128xf32> -> vector<8x128xf32>
    %cst_287 = arith.constant dense<0.000000e+00> : vector<8x128xf32>
    %1178 = tpu.matmul %1165, %1131, %cst_287 {dimension_numbers = #tpu.dot_dimension_numbers<[1], [0], [0], [1], [0, 0, 1, 1], [], []>} : vector<8x32xf32>, vector<32x128xf32>, vector<8x128xf32> -> vector<8x128xf32>
    %1179 = vector.shape_cast %2 : vector<8x1xi1> to vector<8x1xi1>
    %1180 = vector.broadcast %1179 : vector<8x1xi1> to vector<8x128xi1>
    %1181 = arith.select %1180, %1177, %1178 : vector<8x128xi1>, vector<8x128xf32>
    %1182 = arith.addf %1176, %1181 : vector<8x128xf32>
    %1183 = vector.extract_strided_slice %1182 {offsets = [0, 0], sizes = [8, 32], strides = [1, 1]} : vector<8x128xf32> to vector<8x32xf32>
    %1184 = arith.negf %1183 : vector<8x32xf32>
    %1185 = math.exp %1184 : vector<8x32xf32>
    %cst_288 = arith.constant 1.000000e+00 : f32
    %1186 = vector.broadcast %cst_288 : f32 to vector<8x32xf32>
    %1187 = arith.addf %1186, %1185 : vector<8x32xf32>
    %1188 = arith.divf %1186, %1187 : vector<8x32xf32>
    %1189 = vector.extract_strided_slice %1182 {offsets = [0, 32], sizes = [8, 32], strides = [1, 1]} : vector<8x128xf32> to vector<8x32xf32>
    %1190 = arith.negf %1189 : vector<8x32xf32>
    %1191 = math.exp %1190 : vector<8x32xf32>
    %cst_289 = arith.constant 1.000000e+00 : f32
    %1192 = vector.broadcast %cst_289 : f32 to vector<8x32xf32>
    %1193 = arith.addf %1192, %1191 : vector<8x32xf32>
    %1194 = arith.divf %1192, %1193 : vector<8x32xf32>
    %1195 = vector.extract_strided_slice %1182 {offsets = [0, 64], sizes = [8, 32], strides = [1, 1]} : vector<8x128xf32> to vector<8x32xf32>
    %1196 = math.tanh %1195 : vector<8x32xf32>
    %1197 = vector.extract_strided_slice %1182 {offsets = [0, 96], sizes = [8, 32], strides = [1, 1]} : vector<8x128xf32> to vector<8x32xf32>
    %1198 = arith.negf %1197 : vector<8x32xf32>
    %1199 = math.exp %1198 : vector<8x32xf32>
    %cst_290 = arith.constant 1.000000e+00 : f32
    %1200 = vector.broadcast %cst_290 : f32 to vector<8x32xf32>
    %1201 = arith.addf %1200, %1199 : vector<8x32xf32>
    %1202 = arith.divf %1200, %1201 : vector<8x32xf32>
    %1203 = arith.mulf %1194, %1163 : vector<8x32xf32>
    %1204 = arith.mulf %1188, %1196 : vector<8x32xf32>
    %1205 = arith.addf %1203, %1204 : vector<8x32xf32>
    %1206 = math.tanh %1205 : vector<8x32xf32>
    %1207 = arith.mulf %1202, %1206 : vector<8x32xf32>
    %1208 = vector.extract_strided_slice %1207 {offsets = [0, 0], sizes = [4, 32], strides = [1, 1]} : vector<8x32xf32> to vector<4x32xf32>
    %c1_291 = arith.constant 1 : index
    %c0_292 = arith.constant 0 : index
    %c0_293 = arith.constant 0 : index
    %1209 = vector.load %arg24[%c1_291, %c0_292, %c0_293] : memref<8x4x64xf32, #tpu.memory_space<vmem>>, vector<1x4x32xf32>
    %1210 = vector.shape_cast %1209 : vector<1x4x32xf32> to vector<4x32xf32>
    %1211 = vector.shape_cast %1208 : vector<4x32xf32> to vector<1x4x32xf32>
    tpu.vector_store %arg24[%c1_291, %c0_292, %c0_293], %1211 {strides = array<i32>} : memref<8x4x64xf32, #tpu.memory_space<vmem>>, vector<1x4x32xf32>,
    %1212 = vector.extract_strided_slice %1207 {offsets = [4, 0], sizes = [4, 32], strides = [1, 1]} : vector<8x32xf32> to vector<4x32xf32>
    %c6_294 = arith.constant 6 : index
    %c0_295 = arith.constant 0 : index
    %c32_296 = arith.constant 32 : index
    %1213 = vector.load %arg24[%c6_294, %c0_295, %c32_296] : memref<8x4x64xf32, #tpu.memory_space<vmem>>, vector<1x4x32xf32>
    %1214 = vector.shape_cast %1213 : vector<1x4x32xf32> to vector<4x32xf32>
    %1215 = vector.shape_cast %1212 : vector<4x32xf32> to vector<1x4x32xf32>
    tpu.vector_store %arg24[%c6_294, %c0_295, %c32_296], %1215 {strides = array<i32>} : memref<8x4x64xf32, #tpu.memory_space<vmem>>, vector<1x4x32xf32>,
    %1216 = vector.extract_strided_slice %1120 {offsets = [8, 0], sizes = [4, 128], strides = [1, 1]} : vector<32x128xf32> to vector<4x128xf32>
    %1217 = vector.extract_strided_slice %1127 {offsets = [20, 0], sizes = [4, 128], strides = [1, 1]} : vector<32x128xf32> to vector<4x128xf32>
    %1218 = tpu.concatenate %1216, %1217 in 0 : vector<4x128xf32>, vector<4x128xf32> -> vector<8x128xf32>
    %cst_297 = arith.constant dense<0.000000e+00> : vector<8x128xf32>
    %1219 = tpu.matmul %1207, %1129, %cst_297 {dimension_numbers = #tpu.dot_dimension_numbers<[1], [0], [0], [1], [0, 0, 1, 1], [], []>} : vector<8x32xf32>, vector<32x128xf32>, vector<8x128xf32> -> vector<8x128xf32>
    %cst_298 = arith.constant dense<0.000000e+00> : vector<8x128xf32>
    %1220 = tpu.matmul %1207, %1131, %cst_298 {dimension_numbers = #tpu.dot_dimension_numbers<[1], [0], [0], [1], [0, 0, 1, 1], [], []>} : vector<8x32xf32>, vector<32x128xf32>, vector<8x128xf32> -> vector<8x128xf32>
    %1221 = vector.shape_cast %2 : vector<8x1xi1> to vector<8x1xi1>
    %1222 = vector.broadcast %1221 : vector<8x1xi1> to vector<8x128xi1>
    %1223 = arith.select %1222, %1219, %1220 : vector<8x128xi1>, vector<8x128xf32>
    %1224 = arith.addf %1218, %1223 : vector<8x128xf32>
    %1225 = vector.extract_strided_slice %1224 {offsets = [0, 0], sizes = [8, 32], strides = [1, 1]} : vector<8x128xf32> to vector<8x32xf32>
    %1226 = arith.negf %1225 : vector<8x32xf32>
    %1227 = math.exp %1226 : vector<8x32xf32>
    %cst_299 = arith.constant 1.000000e+00 : f32
    %1228 = vector.broadcast %cst_299 : f32 to vector<8x32xf32>
    %1229 = arith.addf %1228, %1227 : vector<8x32xf32>
    %1230 = arith.divf %1228, %1229 : vector<8x32xf32>
    %1231 = vector.extract_strided_slice %1224 {offsets = [0, 32], sizes = [8, 32], strides = [1, 1]} : vector<8x128xf32> to vector<8x32xf32>
    %1232 = arith.negf %1231 : vector<8x32xf32>
    %1233 = math.exp %1232 : vector<8x32xf32>
    %cst_300 = arith.constant 1.000000e+00 : f32
    %1234 = vector.broadcast %cst_300 : f32 to vector<8x32xf32>
    %1235 = arith.addf %1234, %1233 : vector<8x32xf32>
    %1236 = arith.divf %1234, %1235 : vector<8x32xf32>
    %1237 = vector.extract_strided_slice %1224 {offsets = [0, 64], sizes = [8, 32], strides = [1, 1]} : vector<8x128xf32> to vector<8x32xf32>
    %1238 = math.tanh %1237 : vector<8x32xf32>
    %1239 = vector.extract_strided_slice %1224 {offsets = [0, 96], sizes = [8, 32], strides = [1, 1]} : vector<8x128xf32> to vector<8x32xf32>
    %1240 = arith.negf %1239 : vector<8x32xf32>
    %1241 = math.exp %1240 : vector<8x32xf32>
    %cst_301 = arith.constant 1.000000e+00 : f32
    %1242 = vector.broadcast %cst_301 : f32 to vector<8x32xf32>
    %1243 = arith.addf %1242, %1241 : vector<8x32xf32>
    %1244 = arith.divf %1242, %1243 : vector<8x32xf32>
    %1245 = arith.mulf %1236, %1205 : vector<8x32xf32>
    %1246 = arith.mulf %1230, %1238 : vector<8x32xf32>
    %1247 = arith.addf %1245, %1246 : vector<8x32xf32>
    %1248 = math.tanh %1247 : vector<8x32xf32>
    %1249 = arith.mulf %1244, %1248 : vector<8x32xf32>
    %1250 = vector.extract_strided_slice %1249 {offsets = [0, 0], sizes = [4, 32], strides = [1, 1]} : vector<8x32xf32> to vector<4x32xf32>
    %c2_302 = arith.constant 2 : index
    %c0_303 = arith.constant 0 : index
    %c0_304 = arith.constant 0 : index
    %1251 = vector.load %arg24[%c2_302, %c0_303, %c0_304] : memref<8x4x64xf32, #tpu.memory_space<vmem>>, vector<1x4x32xf32>
    %1252 = vector.shape_cast %1251 : vector<1x4x32xf32> to vector<4x32xf32>
    %1253 = vector.shape_cast %1250 : vector<4x32xf32> to vector<1x4x32xf32>
    tpu.vector_store %arg24[%c2_302, %c0_303, %c0_304], %1253 {strides = array<i32>} : memref<8x4x64xf32, #tpu.memory_space<vmem>>, vector<1x4x32xf32>,
    %1254 = vector.extract_strided_slice %1249 {offsets = [4, 0], sizes = [4, 32], strides = [1, 1]} : vector<8x32xf32> to vector<4x32xf32>
    %c5_305 = arith.constant 5 : index
    %c0_306 = arith.constant 0 : index
    %c32_307 = arith.constant 32 : index
    %1255 = vector.load %arg24[%c5_305, %c0_306, %c32_307] : memref<8x4x64xf32, #tpu.memory_space<vmem>>, vector<1x4x32xf32>
    %1256 = vector.shape_cast %1255 : vector<1x4x32xf32> to vector<4x32xf32>
    %1257 = vector.shape_cast %1254 : vector<4x32xf32> to vector<1x4x32xf32>
    tpu.vector_store %arg24[%c5_305, %c0_306, %c32_307], %1257 {strides = array<i32>} : memref<8x4x64xf32, #tpu.memory_space<vmem>>, vector<1x4x32xf32>,
    %1258 = vector.extract_strided_slice %1120 {offsets = [12, 0], sizes = [4, 128], strides = [1, 1]} : vector<32x128xf32> to vector<4x128xf32>
    %1259 = vector.extract_strided_slice %1127 {offsets = [16, 0], sizes = [4, 128], strides = [1, 1]} : vector<32x128xf32> to vector<4x128xf32>
    %1260 = tpu.concatenate %1258, %1259 in 0 : vector<4x128xf32>, vector<4x128xf32> -> vector<8x128xf32>
    %cst_308 = arith.constant dense<0.000000e+00> : vector<8x128xf32>
    %1261 = tpu.matmul %1249, %1129, %cst_308 {dimension_numbers = #tpu.dot_dimension_numbers<[1], [0], [0], [1], [0, 0, 1, 1], [], []>} : vector<8x32xf32>, vector<32x128xf32>, vector<8x128xf32> -> vector<8x128xf32>
    %cst_309 = arith.constant dense<0.000000e+00> : vector<8x128xf32>
    %1262 = tpu.matmul %1249, %1131, %cst_309 {dimension_numbers = #tpu.dot_dimension_numbers<[1], [0], [0], [1], [0, 0, 1, 1], [], []>} : vector<8x32xf32>, vector<32x128xf32>, vector<8x128xf32> -> vector<8x128xf32>
    %1263 = vector.shape_cast %2 : vector<8x1xi1> to vector<8x1xi1>
    %1264 = vector.broadcast %1263 : vector<8x1xi1> to vector<8x128xi1>
    %1265 = arith.select %1264, %1261, %1262 : vector<8x128xi1>, vector<8x128xf32>
    %1266 = arith.addf %1260, %1265 : vector<8x128xf32>
    %1267 = vector.extract_strided_slice %1266 {offsets = [0, 0], sizes = [8, 32], strides = [1, 1]} : vector<8x128xf32> to vector<8x32xf32>
    %1268 = arith.negf %1267 : vector<8x32xf32>
    %1269 = math.exp %1268 : vector<8x32xf32>
    %cst_310 = arith.constant 1.000000e+00 : f32
    %1270 = vector.broadcast %cst_310 : f32 to vector<8x32xf32>
    %1271 = arith.addf %1270, %1269 : vector<8x32xf32>
    %1272 = arith.divf %1270, %1271 : vector<8x32xf32>
    %1273 = vector.extract_strided_slice %1266 {offsets = [0, 32], sizes = [8, 32], strides = [1, 1]} : vector<8x128xf32> to vector<8x32xf32>
    %1274 = arith.negf %1273 : vector<8x32xf32>
    %1275 = math.exp %1274 : vector<8x32xf32>
    %cst_311 = arith.constant 1.000000e+00 : f32
    %1276 = vector.broadcast %cst_311 : f32 to vector<8x32xf32>
    %1277 = arith.addf %1276, %1275 : vector<8x32xf32>
    %1278 = arith.divf %1276, %1277 : vector<8x32xf32>
    %1279 = vector.extract_strided_slice %1266 {offsets = [0, 64], sizes = [8, 32], strides = [1, 1]} : vector<8x128xf32> to vector<8x32xf32>
    %1280 = math.tanh %1279 : vector<8x32xf32>
    %1281 = vector.extract_strided_slice %1266 {offsets = [0, 96], sizes = [8, 32], strides = [1, 1]} : vector<8x128xf32> to vector<8x32xf32>
    %1282 = arith.negf %1281 : vector<8x32xf32>
    %1283 = math.exp %1282 : vector<8x32xf32>
    %cst_312 = arith.constant 1.000000e+00 : f32
    %1284 = vector.broadcast %cst_312 : f32 to vector<8x32xf32>
    %1285 = arith.addf %1284, %1283 : vector<8x32xf32>
    %1286 = arith.divf %1284, %1285 : vector<8x32xf32>
    %1287 = arith.mulf %1278, %1247 : vector<8x32xf32>
    %1288 = arith.mulf %1272, %1280 : vector<8x32xf32>
    %1289 = arith.addf %1287, %1288 : vector<8x32xf32>
    %1290 = math.tanh %1289 : vector<8x32xf32>
    %1291 = arith.mulf %1286, %1290 : vector<8x32xf32>
    %1292 = vector.extract_strided_slice %1291 {offsets = [0, 0], sizes = [4, 32], strides = [1, 1]} : vector<8x32xf32> to vector<4x32xf32>
    %c3_313 = arith.constant 3 : index
    %c0_314 = arith.constant 0 : index
    %c0_315 = arith.constant 0 : index
    %1293 = vector.load %arg24[%c3_313, %c0_314, %c0_315] : memref<8x4x64xf32, #tpu.memory_space<vmem>>, vector<1x4x32xf32>
    %1294 = vector.shape_cast %1293 : vector<1x4x32xf32> to vector<4x32xf32>
    %1295 = vector.shape_cast %1292 : vector<4x32xf32> to vector<1x4x32xf32>
    tpu.vector_store %arg24[%c3_313, %c0_314, %c0_315], %1295 {strides = array<i32>} : memref<8x4x64xf32, #tpu.memory_space<vmem>>, vector<1x4x32xf32>,
    %1296 = vector.extract_strided_slice %1291 {offsets = [4, 0], sizes = [4, 32], strides = [1, 1]} : vector<8x32xf32> to vector<4x32xf32>
    %c4_316 = arith.constant 4 : index
    %c0_317 = arith.constant 0 : index
    %c32_318 = arith.constant 32 : index
    %1297 = vector.load %arg24[%c4_316, %c0_317, %c32_318] : memref<8x4x64xf32, #tpu.memory_space<vmem>>, vector<1x4x32xf32>
    %1298 = vector.shape_cast %1297 : vector<1x4x32xf32> to vector<4x32xf32>
    %1299 = vector.shape_cast %1296 : vector<4x32xf32> to vector<1x4x32xf32>
    tpu.vector_store %arg24[%c4_316, %c0_317, %c32_318], %1299 {strides = array<i32>} : memref<8x4x64xf32, #tpu.memory_space<vmem>>, vector<1x4x32xf32>,
    %1300 = vector.extract_strided_slice %1120 {offsets = [16, 0], sizes = [4, 128], strides = [1, 1]} : vector<32x128xf32> to vector<4x128xf32>
    %1301 = vector.extract_strided_slice %1127 {offsets = [12, 0], sizes = [4, 128], strides = [1, 1]} : vector<32x128xf32> to vector<4x128xf32>
    %1302 = tpu.concatenate %1300, %1301 in 0 : vector<4x128xf32>, vector<4x128xf32> -> vector<8x128xf32>
    %cst_319 = arith.constant dense<0.000000e+00> : vector<8x128xf32>
    %1303 = tpu.matmul %1291, %1129, %cst_319 {dimension_numbers = #tpu.dot_dimension_numbers<[1], [0], [0], [1], [0, 0, 1, 1], [], []>} : vector<8x32xf32>, vector<32x128xf32>, vector<8x128xf32> -> vector<8x128xf32>
    %cst_320 = arith.constant dense<0.000000e+00> : vector<8x128xf32>
    %1304 = tpu.matmul %1291, %1131, %cst_320 {dimension_numbers = #tpu.dot_dimension_numbers<[1], [0], [0], [1], [0, 0, 1, 1], [], []>} : vector<8x32xf32>, vector<32x128xf32>, vector<8x128xf32> -> vector<8x128xf32>
    %1305 = vector.shape_cast %2 : vector<8x1xi1> to vector<8x1xi1>
    %1306 = vector.broadcast %1305 : vector<8x1xi1> to vector<8x128xi1>
    %1307 = arith.select %1306, %1303, %1304 : vector<8x128xi1>, vector<8x128xf32>
    %1308 = arith.addf %1302, %1307 : vector<8x128xf32>
    %1309 = vector.extract_strided_slice %1308 {offsets = [0, 0], sizes = [8, 32], strides = [1, 1]} : vector<8x128xf32> to vector<8x32xf32>
    %1310 = arith.negf %1309 : vector<8x32xf32>
    %1311 = math.exp %1310 : vector<8x32xf32>
    %cst_321 = arith.constant 1.000000e+00 : f32
    %1312 = vector.broadcast %cst_321 : f32 to vector<8x32xf32>
    %1313 = arith.addf %1312, %1311 : vector<8x32xf32>
    %1314 = arith.divf %1312, %1313 : vector<8x32xf32>
    %1315 = vector.extract_strided_slice %1308 {offsets = [0, 32], sizes = [8, 32], strides = [1, 1]} : vector<8x128xf32> to vector<8x32xf32>
    %1316 = arith.negf %1315 : vector<8x32xf32>
    %1317 = math.exp %1316 : vector<8x32xf32>
    %cst_322 = arith.constant 1.000000e+00 : f32
    %1318 = vector.broadcast %cst_322 : f32 to vector<8x32xf32>
    %1319 = arith.addf %1318, %1317 : vector<8x32xf32>
    %1320 = arith.divf %1318, %1319 : vector<8x32xf32>
    %1321 = vector.extract_strided_slice %1308 {offsets = [0, 64], sizes = [8, 32], strides = [1, 1]} : vector<8x128xf32> to vector<8x32xf32>
    %1322 = math.tanh %1321 : vector<8x32xf32>
    %1323 = vector.extract_strided_slice %1308 {offsets = [0, 96], sizes = [8, 32], strides = [1, 1]} : vector<8x128xf32> to vector<8x32xf32>
    %1324 = arith.negf %1323 : vector<8x32xf32>
    %1325 = math.exp %1324 : vector<8x32xf32>
    %cst_323 = arith.constant 1.000000e+00 : f32
    %1326 = vector.broadcast %cst_323 : f32 to vector<8x32xf32>
    %1327 = arith.addf %1326, %1325 : vector<8x32xf32>
    %1328 = arith.divf %1326, %1327 : vector<8x32xf32>
    %1329 = arith.mulf %1320, %1289 : vector<8x32xf32>
    %1330 = arith.mulf %1314, %1322 : vector<8x32xf32>
    %1331 = arith.addf %1329, %1330 : vector<8x32xf32>
    %1332 = math.tanh %1331 : vector<8x32xf32>
    %1333 = arith.mulf %1328, %1332 : vector<8x32xf32>
    %1334 = vector.extract_strided_slice %1333 {offsets = [0, 0], sizes = [4, 32], strides = [1, 1]} : vector<8x32xf32> to vector<4x32xf32>
    %c4_324 = arith.constant 4 : index
    %c0_325 = arith.constant 0 : index
    %c0_326 = arith.constant 0 : index
    %1335 = vector.load %arg24[%c4_324, %c0_325, %c0_326] : memref<8x4x64xf32, #tpu.memory_space<vmem>>, vector<1x4x32xf32>
    %1336 = vector.shape_cast %1335 : vector<1x4x32xf32> to vector<4x32xf32>
    %1337 = vector.shape_cast %1334 : vector<4x32xf32> to vector<1x4x32xf32>
    tpu.vector_store %arg24[%c4_324, %c0_325, %c0_326], %1337 {strides = array<i32>} : memref<8x4x64xf32, #tpu.memory_space<vmem>>, vector<1x4x32xf32>,
    %1338 = vector.extract_strided_slice %1333 {offsets = [4, 0], sizes = [4, 32], strides = [1, 1]} : vector<8x32xf32> to vector<4x32xf32>
    %c3_327 = arith.constant 3 : index
    %c0_328 = arith.constant 0 : index
    %c32_329 = arith.constant 32 : index
    %1339 = vector.load %arg24[%c3_327, %c0_328, %c32_329] : memref<8x4x64xf32, #tpu.memory_space<vmem>>, vector<1x4x32xf32>
    %1340 = vector.shape_cast %1339 : vector<1x4x32xf32> to vector<4x32xf32>
    %1341 = vector.shape_cast %1338 : vector<4x32xf32> to vector<1x4x32xf32>
    tpu.vector_store %arg24[%c3_327, %c0_328, %c32_329], %1341 {strides = array<i32>} : memref<8x4x64xf32, #tpu.memory_space<vmem>>, vector<1x4x32xf32>,
    %1342 = vector.extract_strided_slice %1120 {offsets = [20, 0], sizes = [4, 128], strides = [1, 1]} : vector<32x128xf32> to vector<4x128xf32>
    %1343 = vector.extract_strided_slice %1127 {offsets = [8, 0], sizes = [4, 128], strides = [1, 1]} : vector<32x128xf32> to vector<4x128xf32>
    %1344 = tpu.concatenate %1342, %1343 in 0 : vector<4x128xf32>, vector<4x128xf32> -> vector<8x128xf32>
    %cst_330 = arith.constant dense<0.000000e+00> : vector<8x128xf32>
    %1345 = tpu.matmul %1333, %1129, %cst_330 {dimension_numbers = #tpu.dot_dimension_numbers<[1], [0], [0], [1], [0, 0, 1, 1], [], []>} : vector<8x32xf32>, vector<32x128xf32>, vector<8x128xf32> -> vector<8x128xf32>
    %cst_331 = arith.constant dense<0.000000e+00> : vector<8x128xf32>
    %1346 = tpu.matmul %1333, %1131, %cst_331 {dimension_numbers = #tpu.dot_dimension_numbers<[1], [0], [0], [1], [0, 0, 1, 1], [], []>} : vector<8x32xf32>, vector<32x128xf32>, vector<8x128xf32> -> vector<8x128xf32>
    %1347 = vector.shape_cast %2 : vector<8x1xi1> to vector<8x1xi1>
    %1348 = vector.broadcast %1347 : vector<8x1xi1> to vector<8x128xi1>
    %1349 = arith.select %1348, %1345, %1346 : vector<8x128xi1>, vector<8x128xf32>
    %1350 = arith.addf %1344, %1349 : vector<8x128xf32>
    %1351 = vector.extract_strided_slice %1350 {offsets = [0, 0], sizes = [8, 32], strides = [1, 1]} : vector<8x128xf32> to vector<8x32xf32>
    %1352 = arith.negf %1351 : vector<8x32xf32>
    %1353 = math.exp %1352 : vector<8x32xf32>
    %cst_332 = arith.constant 1.000000e+00 : f32
    %1354 = vector.broadcast %cst_332 : f32 to vector<8x32xf32>
    %1355 = arith.addf %1354, %1353 : vector<8x32xf32>
    %1356 = arith.divf %1354, %1355 : vector<8x32xf32>
    %1357 = vector.extract_strided_slice %1350 {offsets = [0, 32], sizes = [8, 32], strides = [1, 1]} : vector<8x128xf32> to vector<8x32xf32>
    %1358 = arith.negf %1357 : vector<8x32xf32>
    %1359 = math.exp %1358 : vector<8x32xf32>
    %cst_333 = arith.constant 1.000000e+00 : f32
    %1360 = vector.broadcast %cst_333 : f32 to vector<8x32xf32>
    %1361 = arith.addf %1360, %1359 : vector<8x32xf32>
    %1362 = arith.divf %1360, %1361 : vector<8x32xf32>
    %1363 = vector.extract_strided_slice %1350 {offsets = [0, 64], sizes = [8, 32], strides = [1, 1]} : vector<8x128xf32> to vector<8x32xf32>
    %1364 = math.tanh %1363 : vector<8x32xf32>
    %1365 = vector.extract_strided_slice %1350 {offsets = [0, 96], sizes = [8, 32], strides = [1, 1]} : vector<8x128xf32> to vector<8x32xf32>
    %1366 = arith.negf %1365 : vector<8x32xf32>
    %1367 = math.exp %1366 : vector<8x32xf32>
    %cst_334 = arith.constant 1.000000e+00 : f32
    %1368 = vector.broadcast %cst_334 : f32 to vector<8x32xf32>
    %1369 = arith.addf %1368, %1367 : vector<8x32xf32>
    %1370 = arith.divf %1368, %1369 : vector<8x32xf32>
    %1371 = arith.mulf %1362, %1331 : vector<8x32xf32>
    %1372 = arith.mulf %1356, %1364 : vector<8x32xf32>
    %1373 = arith.addf %1371, %1372 : vector<8x32xf32>
    %1374 = math.tanh %1373 : vector<8x32xf32>
    %1375 = arith.mulf %1370, %1374 : vector<8x32xf32>
    %1376 = vector.extract_strided_slice %1375 {offsets = [0, 0], sizes = [4, 32], strides = [1, 1]} : vector<8x32xf32> to vector<4x32xf32>
    %c5_335 = arith.constant 5 : index
    %c0_336 = arith.constant 0 : index
    %c0_337 = arith.constant 0 : index
    %1377 = vector.load %arg24[%c5_335, %c0_336, %c0_337] : memref<8x4x64xf32, #tpu.memory_space<vmem>>, vector<1x4x32xf32>
    %1378 = vector.shape_cast %1377 : vector<1x4x32xf32> to vector<4x32xf32>
    %1379 = vector.shape_cast %1376 : vector<4x32xf32> to vector<1x4x32xf32>
    tpu.vector_store %arg24[%c5_335, %c0_336, %c0_337], %1379 {strides = array<i32>} : memref<8x4x64xf32, #tpu.memory_space<vmem>>, vector<1x4x32xf32>,
    %1380 = vector.extract_strided_slice %1375 {offsets = [4, 0], sizes = [4, 32], strides = [1, 1]} : vector<8x32xf32> to vector<4x32xf32>
    %c2_338 = arith.constant 2 : index
    %c0_339 = arith.constant 0 : index
    %c32_340 = arith.constant 32 : index
    %1381 = vector.load %arg24[%c2_338, %c0_339, %c32_340] : memref<8x4x64xf32, #tpu.memory_space<vmem>>, vector<1x4x32xf32>
    %1382 = vector.shape_cast %1381 : vector<1x4x32xf32> to vector<4x32xf32>
    %1383 = vector.shape_cast %1380 : vector<4x32xf32> to vector<1x4x32xf32>
    tpu.vector_store %arg24[%c2_338, %c0_339, %c32_340], %1383 {strides = array<i32>} : memref<8x4x64xf32, #tpu.memory_space<vmem>>, vector<1x4x32xf32>,
    %1384 = vector.extract_strided_slice %1120 {offsets = [24, 0], sizes = [4, 128], strides = [1, 1]} : vector<32x128xf32> to vector<4x128xf32>
    %1385 = vector.extract_strided_slice %1127 {offsets = [4, 0], sizes = [4, 128], strides = [1, 1]} : vector<32x128xf32> to vector<4x128xf32>
    %1386 = tpu.concatenate %1384, %1385 in 0 : vector<4x128xf32>, vector<4x128xf32> -> vector<8x128xf32>
    %cst_341 = arith.constant dense<0.000000e+00> : vector<8x128xf32>
    %1387 = tpu.matmul %1375, %1129, %cst_341 {dimension_numbers = #tpu.dot_dimension_numbers<[1], [0], [0], [1], [0, 0, 1, 1], [], []>} : vector<8x32xf32>, vector<32x128xf32>, vector<8x128xf32> -> vector<8x128xf32>
    %cst_342 = arith.constant dense<0.000000e+00> : vector<8x128xf32>
    %1388 = tpu.matmul %1375, %1131, %cst_342 {dimension_numbers = #tpu.dot_dimension_numbers<[1], [0], [0], [1], [0, 0, 1, 1], [], []>} : vector<8x32xf32>, vector<32x128xf32>, vector<8x128xf32> -> vector<8x128xf32>
    %1389 = vector.shape_cast %2 : vector<8x1xi1> to vector<8x1xi1>
    %1390 = vector.broadcast %1389 : vector<8x1xi1> to vector<8x128xi1>
    %1391 = arith.select %1390, %1387, %1388 : vector<8x128xi1>, vector<8x128xf32>
    %1392 = arith.addf %1386, %1391 : vector<8x128xf32>
    %1393 = vector.extract_strided_slice %1392 {offsets = [0, 0], sizes = [8, 32], strides = [1, 1]} : vector<8x128xf32> to vector<8x32xf32>
    %1394 = arith.negf %1393 : vector<8x32xf32>
    %1395 = math.exp %1394 : vector<8x32xf32>
    %cst_343 = arith.constant 1.000000e+00 : f32
    %1396 = vector.broadcast %cst_343 : f32 to vector<8x32xf32>
    %1397 = arith.addf %1396, %1395 : vector<8x32xf32>
    %1398 = arith.divf %1396, %1397 : vector<8x32xf32>
    %1399 = vector.extract_strided_slice %1392 {offsets = [0, 32], sizes = [8, 32], strides = [1, 1]} : vector<8x128xf32> to vector<8x32xf32>
    %1400 = arith.negf %1399 : vector<8x32xf32>
    %1401 = math.exp %1400 : vector<8x32xf32>
    %cst_344 = arith.constant 1.000000e+00 : f32
    %1402 = vector.broadcast %cst_344 : f32 to vector<8x32xf32>
    %1403 = arith.addf %1402, %1401 : vector<8x32xf32>
    %1404 = arith.divf %1402, %1403 : vector<8x32xf32>
    %1405 = vector.extract_strided_slice %1392 {offsets = [0, 64], sizes = [8, 32], strides = [1, 1]} : vector<8x128xf32> to vector<8x32xf32>
    %1406 = math.tanh %1405 : vector<8x32xf32>
    %1407 = vector.extract_strided_slice %1392 {offsets = [0, 96], sizes = [8, 32], strides = [1, 1]} : vector<8x128xf32> to vector<8x32xf32>
    %1408 = arith.negf %1407 : vector<8x32xf32>
    %1409 = math.exp %1408 : vector<8x32xf32>
    %cst_345 = arith.constant 1.000000e+00 : f32
    %1410 = vector.broadcast %cst_345 : f32 to vector<8x32xf32>
    %1411 = arith.addf %1410, %1409 : vector<8x32xf32>
    %1412 = arith.divf %1410, %1411 : vector<8x32xf32>
    %1413 = arith.mulf %1404, %1373 : vector<8x32xf32>
    %1414 = arith.mulf %1398, %1406 : vector<8x32xf32>
    %1415 = arith.addf %1413, %1414 : vector<8x32xf32>
    %1416 = math.tanh %1415 : vector<8x32xf32>
    %1417 = arith.mulf %1412, %1416 : vector<8x32xf32>
    %1418 = vector.extract_strided_slice %1417 {offsets = [0, 0], sizes = [4, 32], strides = [1, 1]} : vector<8x32xf32> to vector<4x32xf32>
    %c6_346 = arith.constant 6 : index
    %c0_347 = arith.constant 0 : index
    %c0_348 = arith.constant 0 : index
    %1419 = vector.load %arg24[%c6_346, %c0_347, %c0_348] : memref<8x4x64xf32, #tpu.memory_space<vmem>>, vector<1x4x32xf32>
    %1420 = vector.shape_cast %1419 : vector<1x4x32xf32> to vector<4x32xf32>
    %1421 = vector.shape_cast %1418 : vector<4x32xf32> to vector<1x4x32xf32>
    tpu.vector_store %arg24[%c6_346, %c0_347, %c0_348], %1421 {strides = array<i32>} : memref<8x4x64xf32, #tpu.memory_space<vmem>>, vector<1x4x32xf32>,
    %1422 = vector.extract_strided_slice %1417 {offsets = [4, 0], sizes = [4, 32], strides = [1, 1]} : vector<8x32xf32> to vector<4x32xf32>
    %c1_349 = arith.constant 1 : index
    %c0_350 = arith.constant 0 : index
    %c32_351 = arith.constant 32 : index
    %1423 = vector.load %arg24[%c1_349, %c0_350, %c32_351] : memref<8x4x64xf32, #tpu.memory_space<vmem>>, vector<1x4x32xf32>
    %1424 = vector.shape_cast %1423 : vector<1x4x32xf32> to vector<4x32xf32>
    %1425 = vector.shape_cast %1422 : vector<4x32xf32> to vector<1x4x32xf32>
    tpu.vector_store %arg24[%c1_349, %c0_350, %c32_351], %1425 {strides = array<i32>} : memref<8x4x64xf32, #tpu.memory_space<vmem>>, vector<1x4x32xf32>,
    %1426 = vector.extract_strided_slice %1120 {offsets = [28, 0], sizes = [4, 128], strides = [1, 1]} : vector<32x128xf32> to vector<4x128xf32>
    %1427 = vector.extract_strided_slice %1127 {offsets = [0, 0], sizes = [4, 128], strides = [1, 1]} : vector<32x128xf32> to vector<4x128xf32>
    %1428 = tpu.concatenate %1426, %1427 in 0 : vector<4x128xf32>, vector<4x128xf32> -> vector<8x128xf32>
    %cst_352 = arith.constant dense<0.000000e+00> : vector<8x128xf32>
    %1429 = tpu.matmul %1417, %1129, %cst_352 {dimension_numbers = #tpu.dot_dimension_numbers<[1], [0], [0], [1], [0, 0, 1, 1], [], []>} : vector<8x32xf32>, vector<32x128xf32>, vector<8x128xf32> -> vector<8x128xf32>
    %cst_353 = arith.constant dense<0.000000e+00> : vector<8x128xf32>
    %1430 = tpu.matmul %1417, %1131, %cst_353 {dimension_numbers = #tpu.dot_dimension_numbers<[1], [0], [0], [1], [0, 0, 1, 1], [], []>} : vector<8x32xf32>, vector<32x128xf32>, vector<8x128xf32> -> vector<8x128xf32>
    %1431 = vector.shape_cast %2 : vector<8x1xi1> to vector<8x1xi1>
    %1432 = vector.broadcast %1431 : vector<8x1xi1> to vector<8x128xi1>
    %1433 = arith.select %1432, %1429, %1430 : vector<8x128xi1>, vector<8x128xf32>
    %1434 = arith.addf %1428, %1433 : vector<8x128xf32>
    %1435 = vector.extract_strided_slice %1434 {offsets = [0, 0], sizes = [8, 32], strides = [1, 1]} : vector<8x128xf32> to vector<8x32xf32>
    %1436 = arith.negf %1435 : vector<8x32xf32>
    %1437 = math.exp %1436 : vector<8x32xf32>
    %cst_354 = arith.constant 1.000000e+00 : f32
    %1438 = vector.broadcast %cst_354 : f32 to vector<8x32xf32>
    %1439 = arith.addf %1438, %1437 : vector<8x32xf32>
    %1440 = arith.divf %1438, %1439 : vector<8x32xf32>
    %1441 = vector.extract_strided_slice %1434 {offsets = [0, 32], sizes = [8, 32], strides = [1, 1]} : vector<8x128xf32> to vector<8x32xf32>
    %1442 = arith.negf %1441 : vector<8x32xf32>
    %1443 = math.exp %1442 : vector<8x32xf32>
    %cst_355 = arith.constant 1.000000e+00 : f32
    %1444 = vector.broadcast %cst_355 : f32 to vector<8x32xf32>
    %1445 = arith.addf %1444, %1443 : vector<8x32xf32>
    %1446 = arith.divf %1444, %1445 : vector<8x32xf32>
    %1447 = vector.extract_strided_slice %1434 {offsets = [0, 64], sizes = [8, 32], strides = [1, 1]} : vector<8x128xf32> to vector<8x32xf32>
    %1448 = math.tanh %1447 : vector<8x32xf32>
    %1449 = vector.extract_strided_slice %1434 {offsets = [0, 96], sizes = [8, 32], strides = [1, 1]} : vector<8x128xf32> to vector<8x32xf32>
    %1450 = arith.negf %1449 : vector<8x32xf32>
    %1451 = math.exp %1450 : vector<8x32xf32>
    %cst_356 = arith.constant 1.000000e+00 : f32
    %1452 = vector.broadcast %cst_356 : f32 to vector<8x32xf32>
    %1453 = arith.addf %1452, %1451 : vector<8x32xf32>
    %1454 = arith.divf %1452, %1453 : vector<8x32xf32>
    %1455 = arith.mulf %1446, %1415 : vector<8x32xf32>
    %1456 = arith.mulf %1440, %1448 : vector<8x32xf32>
    %1457 = arith.addf %1455, %1456 : vector<8x32xf32>
    %1458 = math.tanh %1457 : vector<8x32xf32>
    %1459 = arith.mulf %1454, %1458 : vector<8x32xf32>
    %1460 = vector.extract_strided_slice %1459 {offsets = [0, 0], sizes = [4, 32], strides = [1, 1]} : vector<8x32xf32> to vector<4x32xf32>
    %c7_357 = arith.constant 7 : index
    %c0_358 = arith.constant 0 : index
    %c0_359 = arith.constant 0 : index
    %1461 = vector.load %arg24[%c7_357, %c0_358, %c0_359] : memref<8x4x64xf32, #tpu.memory_space<vmem>>, vector<1x4x32xf32>
    %1462 = vector.shape_cast %1461 : vector<1x4x32xf32> to vector<4x32xf32>
    %1463 = vector.shape_cast %1460 : vector<4x32xf32> to vector<1x4x32xf32>
    tpu.vector_store %arg24[%c7_357, %c0_358, %c0_359], %1463 {strides = array<i32>} : memref<8x4x64xf32, #tpu.memory_space<vmem>>, vector<1x4x32xf32>,
    %1464 = vector.extract_strided_slice %1459 {offsets = [4, 0], sizes = [4, 32], strides = [1, 1]} : vector<8x32xf32> to vector<4x32xf32>
    %c0_360 = arith.constant 0 : index
    %c0_361 = arith.constant 0 : index
    %c32_362 = arith.constant 32 : index
    %1465 = vector.load %arg24[%c0_360, %c0_361, %c32_362] : memref<8x4x64xf32, #tpu.memory_space<vmem>>, vector<1x4x32xf32>
    %1466 = vector.shape_cast %1465 : vector<1x4x32xf32> to vector<4x32xf32>
    %1467 = vector.shape_cast %1464 : vector<4x32xf32> to vector<1x4x32xf32>
    tpu.vector_store %arg24[%c0_360, %c0_361, %c32_362], %1467 {strides = array<i32>} : memref<8x4x64xf32, #tpu.memory_space<vmem>>, vector<1x4x32xf32>,
    %c0_363 = arith.constant 0 : index
    %c0_364 = arith.constant 0 : index
    %c0_365 = arith.constant 0 : index
    %1468 = vector.load %arg3[%c0_363, %c0_364, %c0_365] : memref<8x4x1xf32, #tpu.memory_space<vmem>>, vector<8x4x1xf32>
    %cst_366 = arith.constant 0.000000e+00 : f32
    %1469 = vector.broadcast %cst_366 : f32 to vector<8x4x1xf32>
    %1470 = arith.cmpf ogt, %1468, %1469 : vector<8x4x1xf32>
    %c0_367 = arith.constant 0 : index
    %c0_368 = arith.constant 0 : index
    %c0_369 = arith.constant 0 : index
    %1471 = vector.load %arg23[%c0_367, %c0_368, %c0_369] : memref<8x4x64xf32, #tpu.memory_space<vmem>>, vector<8x4x64xf32>
    %cst_370 = arith.constant -1.000000e+30 : f32
    %1472 = vector.shape_cast %1470 : vector<8x4x1xi1> to vector<8x4x1xi1>
    %1473 = vector.broadcast %1472 : vector<8x4x1xi1> to vector<8x4x64xi1>
    %1474 = vector.broadcast %cst_370 : f32 to vector<8x4x64xf32>
    %1475 = arith.select %1473, %1471, %1474 : vector<8x4x64xi1>, vector<8x4x64xf32>
    %cst_371 = arith.constant dense<0xFF800000> : vector<4x64xf32>
    %1476 = vector.multi_reduction <maximumf>, %1475, %cst_371 [0] : vector<8x4x64xf32> to vector<4x64xf32>
    %c0_372 = arith.constant 0 : index
    %c0_373 = arith.constant 0 : index
    %c0_374 = arith.constant 0 : index
    %1477 = vector.load %arg24[%c0_372, %c0_373, %c0_374] : memref<8x4x64xf32, #tpu.memory_space<vmem>>, vector<8x4x64xf32>
    %1478 = vector.broadcast %1468 : vector<8x4x1xf32> to vector<8x4x64xf32>
    %1479 = arith.mulf %1477, %1478 : vector<8x4x64xf32>
    %cst_375 = arith.constant dense<0.000000e+00> : vector<4x64xf32>
    %1480 = vector.multi_reduction <add>, %1479, %cst_375 [0] : vector<8x4x64xf32> to vector<4x64xf32>
    %cst_376 = arith.constant dense<0.000000e+00> : vector<4x1xf32>
    %1481 = vector.multi_reduction <add>, %1468, %cst_376 [0] : vector<8x4x1xf32> to vector<4x1xf32>
    %1482 = tpu.reciprocal %1481 {approx = true} : vector<4x1xf32> -> vector<4x1xf32>
    %1483 = vector.broadcast %1482 : vector<4x1xf32> to vector<4x64xf32>
    %1484 = arith.mulf %1480, %1483 : vector<4x64xf32>
    %1485 = vector.extract_strided_slice %1476 {offsets = [0, 0], sizes = [2, 64], strides = [1, 1]} : vector<4x64xf32> to vector<2x64xf32>
    %1486 = vector.extract_strided_slice %1484 {offsets = [0, 0], sizes = [2, 64], strides = [1, 1]} : vector<4x64xf32> to vector<2x64xf32>
    %1487 = vector.extract_strided_slice %1476 {offsets = [2, 0], sizes = [2, 64], strides = [1, 1]} : vector<4x64xf32> to vector<2x64xf32>
    %1488 = vector.extract_strided_slice %1484 {offsets = [2, 0], sizes = [2, 64], strides = [1, 1]} : vector<4x64xf32> to vector<2x64xf32>
    %1489 = tpu.concatenate %1485, %1486, %1487, %1488 in 1 : vector<2x64xf32>, vector<2x64xf32>, vector<2x64xf32>, vector<2x64xf32> -> vector<2x256xf32>
    %c0_377 = arith.constant 0 : index
    %c0_378 = arith.constant 0 : index
    %1490 = vector.load %arg18[%c0_377, %c0_378] : memref<256x32xf32, #tpu.memory_space<vmem>>, vector<256x32xf32>
    %cst_379 = arith.constant dense<0.000000e+00> : vector<2x32xf32>
    %1491 = tpu.matmul %1489, %1490, %cst_379 {dimension_numbers = #tpu.dot_dimension_numbers<[1], [0], [0], [1], [0, 0, 1, 1], [], []>} : vector<2x256xf32>, vector<256x32xf32>, vector<2x32xf32> -> vector<2x32xf32>
    %c0_380 = arith.constant 0 : index
    %c0_381 = arith.constant 0 : index
    %1492 = vector.load %arg19[%c0_380, %c0_381] : memref<1x32xf32, #tpu.memory_space<vmem>>, vector<1x32xf32>
    %1493 = vector.broadcast %1492 : vector<1x32xf32> to vector<2x32xf32>
    %1494 = arith.addf %1491, %1493 : vector<2x32xf32>
    %1495 = math.tanh %1494 : vector<2x32xf32>
    %c0_382 = arith.constant 0 : index
    %c0_383 = arith.constant 0 : index
    %1496 = vector.load %arg20[%c0_382, %c0_383] : memref<32x3xf32, #tpu.memory_space<vmem>>, vector<32x3xf32>
    %cst_384 = arith.constant dense<0.000000e+00> : vector<2x3xf32>
    %1497 = tpu.matmul %1495, %1496, %cst_384 {dimension_numbers = #tpu.dot_dimension_numbers<[1], [0], [0], [1], [0, 0, 1, 1], [], []>} : vector<2x32xf32>, vector<32x3xf32>, vector<2x3xf32> -> vector<2x3xf32>
    %c0_385 = arith.constant 0 : index
    %c0_386 = arith.constant 0 : index
    %1498 = vector.load %arg21[%c0_385, %c0_386] : memref<1x3xf32, #tpu.memory_space<vmem>>, vector<1x3xf32>
    %1499 = vector.broadcast %1498 : vector<1x3xf32> to vector<2x3xf32>
    %1500 = arith.addf %1497, %1499 : vector<2x3xf32>
    %c0_387 = arith.constant 0 : index
    %c0_388 = arith.constant 0 : index
    %1501 = vector.load %arg22[%c0_387, %c0_388] : memref<2x3xf32, #tpu.memory_space<vmem>>, vector<2x3xf32>
    tpu.vector_store %arg22[%c0_387, %c0_388], %1500 {strides = array<i32>} : memref<2x3xf32, #tpu.memory_space<vmem>>, vector<2x3xf32>,
    return
  }
}

</mosaic_0001>

<llo_original>
// kernel: drlstm_forward.1
$region0: #{drlstm_forward.1}
  #allocation0 [shape = 'u32[]', space=smem, size = 0x4, offset = 0x4, fixed_abs, tag = 'smem constant byte address 0x4 - core index']
  #allocation1 [shape = 'u32[144,128]{1,0:T(1,128)}', space=vmem, size = 0x12000, scoped, tag = 'internal scratch']
  #allocation2 [shape = 'f32[8,4,64]{2,1,0:T(4,128)}', space=vmem, size = 0x4000, scoped, tag = 'scratch operand']
  #allocation3 [shape = 'f32[8,4,64]{2,1,0:T(4,128)}', space=vmem, size = 0x4000, scoped, tag = 'scratch operand']
  %s0 = inlined_call_operand.vmem [shape: f32[32,32], index: 0, kind: input, shape index: {}]
  %s1 = inlined_call_operand.vmem [shape: f32[4,8], index: 1, kind: input, shape index: {}]
  %s2 = inlined_call_operand.vmem [shape: f32[8,4], index: 2, kind: input, shape index: {}]
  %s3 = inlined_call_operand.vmem [shape: f32[8,4,1], index: 3, kind: input, shape index: {}]
  %s4 = inlined_call_operand.vmem [shape: f32[2,32,128], index: 4, kind: input, shape index: {}]
  %s5 = inlined_call_operand.vmem [shape: f32[2,32,128], index: 5, kind: input, shape index: {}]
  %s6 = inlined_call_operand.vmem [shape: f32[2,1,128], index: 6, kind: input, shape index: {}]
  %s7 = inlined_call_operand.vmem [shape: f32[2,32,128], index: 7, kind: input, shape index: {}]
  %s8 = inlined_call_operand.vmem [shape: f32[2,32,128], index: 8, kind: input, shape index: {}]
  %s9 = inlined_call_operand.vmem [shape: f32[2,1,128], index: 9, kind: input, shape index: {}]
  %s10 = inlined_call_operand.vmem [shape: f32[2,32,128], index: 10, kind: input, shape index: {}]
  %s11 = inlined_call_operand.vmem [shape: f32[2,32,128], index: 11, kind: input, shape index: {}]
  %s12 = inlined_call_operand.vmem [shape: f32[2,1,128], index: 12, kind: input, shape index: {}]
  %s13 = inlined_call_operand.vmem [shape: f32[2,32,128], index: 13, kind: input, shape index: {}]
  %s14 = inlined_call_operand.vmem [shape: f32[2,32,128], index: 14, kind: input, shape index: {}]
  %s15 = inlined_call_operand.vmem [shape: f32[2,1,128], index: 15, kind: input, shape index: {}]
  %s16 = inlined_call_operand.vmem [shape: f32[256,32], index: 16, kind: input, shape index: {}]
  %s17 = inlined_call_operand.vmem [shape: f32[1,32], index: 17, kind: input, shape index: {}]
  %s18 = inlined_call_operand.vmem [shape: f32[256,32], index: 18, kind: input, shape index: {}]
  %s19 = inlined_call_operand.vmem [shape: f32[1,32], index: 19, kind: input, shape index: {}]
  %s20 = inlined_call_operand.vmem [shape: f32[32,3], index: 20, kind: input, shape index: {}]
  %s21 = inlined_call_operand.vmem [shape: f32[1,3], index: 21, kind: input, shape index: {}]
  %s22 = inlined_call_operand.hbm [shape: f32[2,3], index: 22, kind: output, shape index: {}]
  %s23 = sld [smem:[#allocation0]]
  $region98: #{drlstm_forward.1} parent=0
    _
  %s25 = ssub.s32 1, %s23
  %s26 = scalar_select 0, %s25, %s23
  $region1: #{drlstm_forward.1} parent=0
    #allocation4 [shape = 'u8[1024]{0}', space=vmem, size = 0x400, scoped, tag = 'output window, operand 0, single buffered']
    #allocation5 [shape = 's32[1]{0}', space=sflag, size = 0x4, scoped, tag = 'scoped memory for drlstm_forward.1']
    %27 = vsyncpa [#allocation5], 0
    // Predicated region
    $region2: #{drlstm_forward.1} parent=1 // pred_check
      _
    $region3: #{drlstm_forward.1} parent=1 // pred_check_branch
      %29 = sbr.rel (0) target = $region5
    $region4: #{drlstm_forward.1} parent=1 // pred_region
      _
    $region5: #{drlstm_forward.1} parent=1 // pred_fallthru
      _
    // Predicated region
    $region6: #{drlstm_forward.1} parent=1 // pred_check
      _
    $region7: #{drlstm_forward.1} parent=1 // pred_check_branch
      %31 = sbr.rel (0) target = $region9
    $region8: #{drlstm_forward.1} parent=1 // pred_region
      _
    $region9: #{drlstm_forward.1} parent=1 // pred_fallthru
      _
    // Predicated region
    $region10: #{drlstm_forward.1} parent=1 // pred_check
      _
    $region11: #{drlstm_forward.1} parent=1 // pred_check_branch
      %33 = sbr.rel (0) target = $region13
    $region12: #{drlstm_forward.1} parent=1 // pred_region
      _
    $region13: #{drlstm_forward.1} parent=1 // pred_fallthru
      _
    // Predicated region
    $region14: #{drlstm_forward.1} parent=1 // pred_check
      _
    $region15: #{drlstm_forward.1} parent=1 // pred_check_branch
      %35 = sbr.rel (0) target = $region17
    $region16: #{drlstm_forward.1} parent=1 // pred_region
      _
    $region17: #{drlstm_forward.1} parent=1 // pred_fallthru
      _
    // Predicated region
    $region18: #{drlstm_forward.1} parent=1 // pred_check
      _
    $region19: #{drlstm_forward.1} parent=1 // pred_check_branch
      %37 = sbr.rel (0) target = $region21
    $region20: #{drlstm_forward.1} parent=1 // pred_region
      _
    $region21: #{drlstm_forward.1} parent=1 // pred_fallthru
      _
    // Predicated region
    $region22: #{drlstm_forward.1} parent=1 // pred_check
      _
    $region23: #{drlstm_forward.1} parent=1 // pred_check_branch
      %39 = sbr.rel (0) target = $region25
    $region24: #{drlstm_forward.1} parent=1 // pred_region
      _
    $region25: #{drlstm_forward.1} parent=1 // pred_fallthru
      _
    // Predicated region
    $region26: #{drlstm_forward.1} parent=1 // pred_check
      _
    $region27: #{drlstm_forward.1} parent=1 // pred_check_branch
      %41 = sbr.rel (0) target = $region29
    $region28: #{drlstm_forward.1} parent=1 // pred_region
      _
    $region29: #{drlstm_forward.1} parent=1 // pred_fallthru
      _
    // Predicated region
    $region30: #{drlstm_forward.1} parent=1 // pred_check
      _
    $region31: #{drlstm_forward.1} parent=1 // pred_check_branch
      %43 = sbr.rel (0) target = $region33
    $region32: #{drlstm_forward.1} parent=1 // pred_region
      _
    $region33: #{drlstm_forward.1} parent=1 // pred_fallthru
      _
    // Predicated region
    $region34: #{drlstm_forward.1} parent=1 // pred_check
      _
    $region35: #{drlstm_forward.1} parent=1 // pred_check_branch
      %45 = sbr.rel (0) target = $region37
    $region36: #{drlstm_forward.1} parent=1 // pred_region
      _
    $region37: #{drlstm_forward.1} parent=1 // pred_fallthru
      _
    // Predicated region
    $region38: #{drlstm_forward.1} parent=1 // pred_check
      _
    $region39: #{drlstm_forward.1} parent=1 // pred_check_branch
      %47 = sbr.rel (0) target = $region41
    $region40: #{drlstm_forward.1} parent=1 // pred_region
      _
    $region41: #{drlstm_forward.1} parent=1 // pred_fallthru
      _
    // Predicated region
    $region42: #{drlstm_forward.1} parent=1 // pred_check
      _
    $region43: #{drlstm_forward.1} parent=1 // pred_check_branch
      %49 = sbr.rel (0) target = $region45
    $region44: #{drlstm_forward.1} parent=1 // pred_region
      _
    $region45: #{drlstm_forward.1} parent=1 // pred_fallthru
      _
    // Predicated region
    $region46: #{drlstm_forward.1} parent=1 // pred_check
      _
    $region47: #{drlstm_forward.1} parent=1 // pred_check_branch
      %51 = sbr.rel (0) target = $region49
    $region48: #{drlstm_forward.1} parent=1 // pred_region
      _
    $region49: #{drlstm_forward.1} parent=1 // pred_fallthru
      _
    // Predicated region
    $region50: #{drlstm_forward.1} parent=1 // pred_check
      _
    $region51: #{drlstm_forward.1} parent=1 // pred_check_branch
      %53 = sbr.rel (0) target = $region53
    $region52: #{drlstm_forward.1} parent=1 // pred_region
      _
    $region53: #{drlstm_forward.1} parent=1 // pred_fallthru
      _
    // Predicated region
    $region54: #{drlstm_forward.1} parent=1 // pred_check
      _
    $region55: #{drlstm_forward.1} parent=1 // pred_check_branch
      %55 = sbr.rel (0) target = $region57
    $region56: #{drlstm_forward.1} parent=1 // pred_region
      _
    $region57: #{drlstm_forward.1} parent=1 // pred_fallthru
      _
    // Predicated region
    $region58: #{drlstm_forward.1} parent=1 // pred_check
      _
    $region59: #{drlstm_forward.1} parent=1 // pred_check_branch
      %57 = sbr.rel (0) target = $region61
    $region60: #{drlstm_forward.1} parent=1 // pred_region
      _
    $region61: #{drlstm_forward.1} parent=1 // pred_fallthru
      _
    // Predicated region
    $region62: #{drlstm_forward.1} parent=1 // pred_check
      _
    $region63: #{drlstm_forward.1} parent=1 // pred_check_branch
      %59 = sbr.rel (0) target = $region65
    $region64: #{drlstm_forward.1} parent=1 // pred_region
      _
    $region65: #{drlstm_forward.1} parent=1 // pred_fallthru
      _
    // Predicated region
    $region66: #{drlstm_forward.1} parent=1 // pred_check
      _
    $region67: #{drlstm_forward.1} parent=1 // pred_check_branch
      %61 = sbr.rel (0) target = $region69
    $region68: #{drlstm_forward.1} parent=1 // pred_region
      _
    $region69: #{drlstm_forward.1} parent=1 // pred_fallthru
      _
    // Predicated region
    $region70: #{drlstm_forward.1} parent=1 // pred_check
      _
    $region71: #{drlstm_forward.1} parent=1 // pred_check_branch
      %63 = sbr.rel (0) target = $region73
    $region72: #{drlstm_forward.1} parent=1 // pred_region
      _
    $region73: #{drlstm_forward.1} parent=1 // pred_fallthru
      _
    // Predicated region
    $region74: #{drlstm_forward.1} parent=1 // pred_check
      _
    $region75: #{drlstm_forward.1} parent=1 // pred_check_branch
      %65 = sbr.rel (0) target = $region77
    $region76: #{drlstm_forward.1} parent=1 // pred_region
      _
    $region77: #{drlstm_forward.1} parent=1 // pred_fallthru
      _
    // Predicated region
    $region78: #{drlstm_forward.1} parent=1 // pred_check
      _
    $region79: #{drlstm_forward.1} parent=1 // pred_check_branch
      %67 = sbr.rel (0) target = $region81
    $region80: #{drlstm_forward.1} parent=1 // pred_region
      _
    $region81: #{drlstm_forward.1} parent=1 // pred_fallthru
      _
    // Predicated region
    $region82: #{drlstm_forward.1} parent=1 // pred_check
      _
    $region83: #{drlstm_forward.1} parent=1 // pred_check_branch
      %69 = sbr.rel (0) target = $region85
    $region84: #{drlstm_forward.1} parent=1 // pred_region
      _
    $region85: #{drlstm_forward.1} parent=1 // pred_fallthru
      _
    // Predicated region
    $region86: #{drlstm_forward.1} parent=1 // pred_check
      _
    $region87: #{drlstm_forward.1} parent=1 // pred_check_branch
      %71 = sbr.rel (0) target = $region89
    $region88: #{drlstm_forward.1} parent=1 // pred_region
      _
    $region89: #{drlstm_forward.1} parent=1 // pred_fallthru
      _
    %v72 = vlaneseq
    %v73 = vshrl.u32 %v72, 7
    %vm74 = vcmp.lt.s32.totalorder %v73, 4
    %v75 = vld [vmem:[%s0] sm:$0xff]
    %v76 = vld [vmem:[%s0 + $0x8] sm:$0xff]
    %v77 = vld [vmem:[%s0 + $0x10] sm:$0xff]
    %v78 = vld [vmem:[%s0 + $0x18] sm:$0xff]
    %v79 = vld [vmem:[%s4] sm:$0xff]
    %v80 = vld [vmem:[%s4 + $0x8] sm:$0xff]
    %v81 = vld [vmem:[%s4 + $0x10] sm:$0xff]
    %v82 = vld [vmem:[%s4 + $0x18] sm:$0xff]
    %v83 = vld [vmem:[%s6] sm:$0x1]
    %v85 = vlaneseq
    %v86 = vshrl.u32 %v85, 7
    %v87 = vsub.s32 0, %v86
    %v88 = vrot.slane %v83, %v87
    %vm90 = vcmask 261120
    %v92 = vsel %vm90, %v75, 0
    %v95 = vsel %vm90, %v76, 0
    %v98 = vsel %vm90, %v77, 0
    %v101 = vsel %vm90, %v78, 0
    %103 = vmatprep.subr.mxu0 0.0
    %104 = vmatpush1.msra.mxu0 %v79
    %105 = vmatprep.subr.mxu0 0.0
    %106 = vmatpush1.msra.mxu0 %v80
    %107 = vmatprep.subr.mxu0 0.0
    %108 = vmatpush1.msra.mxu0 %v81
    %109 = vmatprep.subr.mxu0 0.0
    %110 = vmatpush1.msra.mxu0 %v82
    %111 = vmatprep.subr.mxu0 0.0
    %112 = vmatpush1.msra.mxu0 0.0
    %113 = vmatprep.subr.mxu0 0.0
    %114 = vmatpush1.msra.mxu0 0.0
    %115 = vmatprep.subr.mxu0 0.0
    %116 = vmatpush1.msra.mxu0 0.0
    %117 = vmatprep.subr.mxu0 0.0
    %118 = vmatpush1.msra.mxu0 0.0
    %119 = vmatprep.subr.mxu0 0.0
    %120 = vmatpush1.msra.mxu0 0.0
    %121 = vmatprep.subr.mxu0 0.0
    %122 = vmatpush1.msra.mxu0 0.0
    %123 = vmatprep.subr.mxu0 0.0
    %124 = vmatpush1.msra.mxu0 0.0
    %125 = vmatprep.subr.mxu0 0.0
    %126 = vmatpush1.msra.mxu0 0.0
    %127 = vmatprep.subr.mxu0 0.0
    %128 = vmatpush1.msra.mxu0 0.0
    %129 = vmatprep.subr.mxu0 0.0
    %130 = vmatpush1.msra.mxu0 0.0
    %131 = vmatprep.subr.mxu0 0.0
    %132 = vmatpush1.msra.mxu0 0.0
    %133 = vmatprep.subr.mxu0 0.0
    %134 = vmatpush1.msra.mxu0 0.0
    %135 = vmatprep.subr.mxu0 0.0
    %136 = vmatpush1.msra.mxu0 0.0
    %137 = vmatprep.subr.mxu0 0.0
    %138 = vmatpush1.msra.mxu0 0.0
    %139 = vmatprep.subr.mxu0 0.0
    %140 = vmatpush1.msra.mxu0 0.0
    %141 = vmatprep.subr.mxu0 0.0
    %142 = vmatpush1.msra.mxu0 0.0
    %143 = vmatprep.subr.mxu0 0.0
    %144 = vmatpush1.msra.mxu0 0.0
    %145 = vmatprep.subr.mxu0 0.0
    %146 = vmatpush1.msra.mxu0 0.0
    %147 = vmatprep.subr.mxu0 0.0
    %148 = vmatpush1.msra.mxu0 0.0
    %149 = vmatprep.subr.mxu0 0.0
    %150 = vmatpush1.msra.mxu0 0.0
    %151 = vmatprep.subr.mxu0 0.0
    %152 = vmatpush1.msra.mxu0 0.0
    %153 = vmatprep.subr.mxu0 0.0
    %154 = vmatpush1.msra.mxu0 0.0
    %155 = vmatprep.subr.mxu0 0.0
    %156 = vmatpush1.msra.mxu0 0.0
    %157 = vmatprep.subr.mxu0 0.0
    %158 = vmatpush1.msra.mxu0 0.0
    %159 = vmatprep.subr.mxu0 0.0
    %160 = vmatpush1.msra.mxu0 0.0
    %161 = vmatprep.subr.mxu0 0.0
    %162 = vmatpush1.msra.mxu0 0.0
    %163 = vmatprep.subr.mxu0 0.0
    %164 = vmatpush1.msra.mxu0 0.0
    %165 = vmatprep.subr.mxu0 0.0
    %166 = vmatpush1.msra.mxu0 0.0
    %167 = vmatprep.mubr.f32.mxu0 0.0
    %168 = vmatmul.mubr.f32.gmra.mrb[0].mxu0 %v92
    %v169 = vpop.f32.mrb[0].mxu0
    %v170 = vadd.f32 %v88, %v169
    %v171 = vpop.f32.mrb[0].mxu0
    %172 = vmatprep.mubr.f32.mxu0 0.0
    %173 = vmatmul.mubr.f32.gmra.mrb[0].mxu0 %v95
    %v174 = vpop.f32.mrb[0].mxu0
    %v175 = vadd.f32 %v88, %v174
    %v176 = vpop.f32.mrb[0].mxu0
    %177 = vmatprep.mubr.f32.mxu0 0.0
    %178 = vmatmul.mubr.f32.gmra.mrb[0].mxu0 %v98
    %v179 = vpop.f32.mrb[0].mxu0
    %v180 = vadd.f32 %v88, %v179
    %v181 = vpop.f32.mrb[0].mxu0
    %182 = vmatprep.mubr.f32.mxu0 0.0
    %183 = vmatmul.mubr.f32.gmra.mrb[0].mxu0 %v101
    %v184 = vpop.f32.mrb[0].mxu0
    %v185 = vadd.f32 %v88, %v184
    %v186 = vpop.f32.mrb[0].mxu0
    %187 = vdwg.mxu0
    %s188 = scalar_lea.vmem %s4, 32
    %v189 = vld [vmem:[%s188] sm:$0xff]
    %v190 = vld [vmem:[%s188 + $0x8] sm:$0xff]
    %v191 = vld [vmem:[%s188 + $0x10] sm:$0xff]
    %v192 = vld [vmem:[%s188 + $0x18] sm:$0xff]
    %s193 = scalar_lea.vmem %s6, 1
    %v194 = vld [vmem:[%s193] sm:$0x1]
    %v196 = vlaneseq
    %v197 = vshrl.u32 %v196, 7
    %v198 = vsub.s32 0, %v197
    %v199 = vrot.slane %v194, %v198
    %201 = vmatprep.subr.mxu0 0.0
    %202 = vmatpush1.msra.mxu0 %v189
    %203 = vmatprep.subr.mxu0 0.0
    %204 = vmatpush1.msra.mxu0 %v190
    %205 = vmatprep.subr.mxu0 0.0
    %206 = vmatpush1.msra.mxu0 %v191
    %207 = vmatprep.subr.mxu0 0.0
    %208 = vmatpush1.msra.mxu0 %v192
    %209 = vmatprep.subr.mxu0 0.0
    %210 = vmatpush1.msra.mxu0 0.0
    %211 = vmatprep.subr.mxu0 0.0
    %212 = vmatpush1.msra.mxu0 0.0
    %213 = vmatprep.subr.mxu0 0.0
    %214 = vmatpush1.msra.mxu0 0.0
    %215 = vmatprep.subr.mxu0 0.0
    %216 = vmatpush1.msra.mxu0 0.0
    %217 = vmatprep.subr.mxu0 0.0
    %218 = vmatpush1.msra.mxu0 0.0
    %219 = vmatprep.subr.mxu0 0.0
    %220 = vmatpush1.msra.mxu0 0.0
    %221 = vmatprep.subr.mxu0 0.0
    %222 = vmatpush1.msra.mxu0 0.0
    %223 = vmatprep.subr.mxu0 0.0
    %224 = vmatpush1.msra.mxu0 0.0
    %225 = vmatprep.subr.mxu0 0.0
    %226 = vmatpush1.msra.mxu0 0.0
    %227 = vmatprep.subr.mxu0 0.0
    %228 = vmatpush1.msra.mxu0 0.0
    %229 = vmatprep.subr.mxu0 0.0
    %230 = vmatpush1.msra.mxu0 0.0
    %231 = vmatprep.subr.mxu0 0.0
    %232 = vmatpush1.msra.mxu0 0.0
    %233 = vmatprep.subr.mxu0 0.0
    %234 = vmatpush1.msra.mxu0 0.0
    %235 = vmatprep.subr.mxu0 0.0
    %236 = vmatpush1.msra.mxu0 0.0
    %237 = vmatprep.subr.mxu0 0.0
    %238 = vmatpush1.msra.mxu0 0.0
    %239 = vmatprep.subr.mxu0 0.0
    %240 = vmatpush1.msra.mxu0 0.0
    %241 = vmatprep.subr.mxu0 0.0
    %242 = vmatpush1.msra.mxu0 0.0
    %243 = vmatprep.subr.mxu0 0.0
    %244 = vmatpush1.msra.mxu0 0.0
    %245 = vmatprep.subr.mxu0 0.0
    %246 = vmatpush1.msra.mxu0 0.0
    %247 = vmatprep.subr.mxu0 0.0
    %248 = vmatpush1.msra.mxu0 0.0
    %249 = vmatprep.subr.mxu0 0.0
    %250 = vmatpush1.msra.mxu0 0.0
    %251 = vmatprep.subr.mxu0 0.0
    %252 = vmatpush1.msra.mxu0 0.0
    %253 = vmatprep.subr.mxu0 0.0
    %254 = vmatpush1.msra.mxu0 0.0
    %255 = vmatprep.subr.mxu0 0.0
    %256 = vmatpush1.msra.mxu0 0.0
    %257 = vmatprep.subr.mxu0 0.0
    %258 = vmatpush1.msra.mxu0 0.0
    %259 = vmatprep.subr.mxu0 0.0
    %260 = vmatpush1.msra.mxu0 0.0
    %261 = vmatprep.subr.mxu0 0.0
    %262 = vmatpush1.msra.mxu0 0.0
    %263 = vmatprep.subr.mxu0 0.0
    %264 = vmatpush1.msra.mxu0 0.0
    %265 = vmatprep.mubr.f32.mxu0 0.0
    %266 = vmatmul.mubr.f32.gmra.mrb[0].mxu0 %v92
    %v267 = vpop.f32.mrb[0].mxu0
    %v268 = vadd.f32 %v199, %v267
    %v269 = vpop.f32.mrb[0].mxu0
    %270 = vmatprep.mubr.f32.mxu0 0.0
    %271 = vmatmul.mubr.f32.gmra.mrb[0].mxu0 %v95
    %v272 = vpop.f32.mrb[0].mxu0
    %v273 = vadd.f32 %v199, %v272
    %v274 = vpop.f32.mrb[0].mxu0
    %275 = vmatprep.mubr.f32.mxu0 0.0
    %276 = vmatmul.mubr.f32.gmra.mrb[0].mxu0 %v98
    %v277 = vpop.f32.mrb[0].mxu0
    %v278 = vadd.f32 %v199, %v277
    %v279 = vpop.f32.mrb[0].mxu0
    %280 = vmatprep.mubr.f32.mxu0 0.0
    %281 = vmatmul.mubr.f32.gmra.mrb[0].mxu0 %v101
    %v282 = vpop.f32.mrb[0].mxu0
    %v283 = vadd.f32 %v199, %v282
    %v284 = vpop.f32.mrb[0].mxu0
    %285 = vdwg.mxu0
    %v286 = vld [vmem:[%s5] sm:$0xff]
    %v287 = vld [vmem:[%s5 + $0x8] sm:$0xff]
    %v288 = vld [vmem:[%s5 + $0x10] sm:$0xff]
    %v289 = vld [vmem:[%s5 + $0x18] sm:$0xff]
    %s290 = scalar_lea.vmem %s5, 32
    %v291 = vld [vmem:[%s290] sm:$0xff]
    %v292 = vld [vmem:[%s290 + $0x8] sm:$0xff]
    %v293 = vld [vmem:[%s290 + $0x10] sm:$0xff]
    %v294 = vld [vmem:[%s290 + $0x18] sm:$0xff]
    %vm295 = vcmask 1043456
    %v296 = vsel %vm295, %v170, %v283
    %v298 = vsel %vm90, 0.0, 0
    %300 = vmatprep.subr.mxu0 0.0
    %301 = vmatpush1.msra.mxu0 %v286
    %302 = vmatprep.subr.mxu0 0.0
    %303 = vmatpush1.msra.mxu0 %v287
    %304 = vmatprep.subr.mxu0 0.0
    %305 = vmatpush1.msra.mxu0 %v288
    %306 = vmatprep.subr.mxu0 0.0
    %307 = vmatpush1.msra.mxu0 %v289
    %308 = vmatprep.subr.mxu0 0.0
    %309 = vmatpush1.msra.mxu0 0.0
    %310 = vmatprep.subr.mxu0 0.0
    %311 = vmatpush1.msra.mxu0 0.0
    %312 = vmatprep.subr.mxu0 0.0
    %313 = vmatpush1.msra.mxu0 0.0
    %314 = vmatprep.subr.mxu0 0.0
    %315 = vmatpush1.msra.mxu0 0.0
    %316 = vmatprep.subr.mxu0 0.0
    %317 = vmatpush1.msra.mxu0 0.0
    %318 = vmatprep.subr.mxu0 0.0
    %319 = vmatpush1.msra.mxu0 0.0
    %320 = vmatprep.subr.mxu0 0.0
    %321 = vmatpush1.msra.mxu0 0.0
    %322 = vmatprep.subr.mxu0 0.0
    %323 = vmatpush1.msra.mxu0 0.0
    %324 = vmatprep.subr.mxu0 0.0
    %325 = vmatpush1.msra.mxu0 0.0
    %326 = vmatprep.subr.mxu0 0.0
    %327 = vmatpush1.msra.mxu0 0.0
    %328 = vmatprep.subr.mxu0 0.0
    %329 = vmatpush1.msra.mxu0 0.0
    %330 = vmatprep.subr.mxu0 0.0
    %331 = vmatpush1.msra.mxu0 0.0
    %332 = vmatprep.subr.mxu0 0.0
    %333 = vmatpush1.msra.mxu0 0.0
    %334 = vmatprep.subr.mxu0 0.0
    %335 = vmatpush1.msra.mxu0 0.0
    %336 = vmatprep.subr.mxu0 0.0
    %337 = vmatpush1.msra.mxu0 0.0
    %338 = vmatprep.subr.mxu0 0.0
    %339 = vmatpush1.msra.mxu0 0.0
    %340 = vmatprep.subr.mxu0 0.0
    %341 = vmatpush1.msra.mxu0 0.0
    %342 = vmatprep.subr.mxu0 0.0
    %343 = vmatpush1.msra.mxu0 0.0
    %344 = vmatprep.subr.mxu0 0.0
    %345 = vmatpush1.msra.mxu0 0.0
    %346 = vmatprep.subr.mxu0 0.0
    %347 = vmatpush1.msra.mxu0 0.0
    %348 = vmatprep.subr.mxu0 0.0
    %349 = vmatpush1.msra.mxu0 0.0
    %350 = vmatprep.subr.mxu0 0.0
    %351 = vmatpush1.msra.mxu0 0.0
    %352 = vmatprep.subr.mxu0 0.0
    %353 = vmatpush1.msra.mxu0 0.0
    %354 = vmatprep.subr.mxu0 0.0
    %355 = vmatpush1.msra.mxu0 0.0
    %356 = vmatprep.subr.mxu0 0.0
    %357 = vmatpush1.msra.mxu0 0.0
    %358 = vmatprep.subr.mxu0 0.0
    %359 = vmatpush1.msra.mxu0 0.0
    %360 = vmatprep.subr.mxu0 0.0
    %361 = vmatpush1.msra.mxu0 0.0
    %362 = vmatprep.subr.mxu0 0.0
    %363 = vmatpush1.msra.mxu0 0.0
    %364 = vmatprep.mubr.f32.mxu0 0.0
    %365 = vmatmul.mubr.f32.gmra.mrb[0].mxu0 %v298
    %v366 = vpop.f32.mrb[0].mxu0
    %v367 = vadd.f32 0.0, %v366
    %v368 = vpop.f32.mrb[0].mxu0
    %369 = vdwg.mxu0
    %370 = vmatprep.subr.mxu0 0.0
    %371 = vmatpush1.msra.mxu0 %v291
    %372 = vmatprep.subr.mxu0 0.0
    %373 = vmatpush1.msra.mxu0 %v292
    %374 = vmatprep.subr.mxu0 0.0
    %375 = vmatpush1.msra.mxu0 %v293
    %376 = vmatprep.subr.mxu0 0.0
    %377 = vmatpush1.msra.mxu0 %v294
    %378 = vmatprep.subr.mxu0 0.0
    %379 = vmatpush1.msra.mxu0 0.0
    %380 = vmatprep.subr.mxu0 0.0
    %381 = vmatpush1.msra.mxu0 0.0
    %382 = vmatprep.subr.mxu0 0.0
    %383 = vmatpush1.msra.mxu0 0.0
    %384 = vmatprep.subr.mxu0 0.0
    %385 = vmatpush1.msra.mxu0 0.0
    %386 = vmatprep.subr.mxu0 0.0
    %387 = vmatpush1.msra.mxu0 0.0
    %388 = vmatprep.subr.mxu0 0.0
    %389 = vmatpush1.msra.mxu0 0.0
    %390 = vmatprep.subr.mxu0 0.0
    %391 = vmatpush1.msra.mxu0 0.0
    %392 = vmatprep.subr.mxu0 0.0
    %393 = vmatpush1.msra.mxu0 0.0
    %394 = vmatprep.subr.mxu0 0.0
    %395 = vmatpush1.msra.mxu0 0.0
    %396 = vmatprep.subr.mxu0 0.0
    %397 = vmatpush1.msra.mxu0 0.0
    %398 = vmatprep.subr.mxu0 0.0
    %399 = vmatpush1.msra.mxu0 0.0
    %400 = vmatprep.subr.mxu0 0.0
    %401 = vmatpush1.msra.mxu0 0.0
    %402 = vmatprep.subr.mxu0 0.0
    %403 = vmatpush1.msra.mxu0 0.0
    %404 = vmatprep.subr.mxu0 0.0
    %405 = vmatpush1.msra.mxu0 0.0
    %406 = vmatprep.subr.mxu0 0.0
    %407 = vmatpush1.msra.mxu0 0.0
    %408 = vmatprep.subr.mxu0 0.0
    %409 = vmatpush1.msra.mxu0 0.0
    %410 = vmatprep.subr.mxu0 0.0
    %411 = vmatpush1.msra.mxu0 0.0
    %412 = vmatprep.subr.mxu0 0.0
    %413 = vmatpush1.msra.mxu0 0.0
    %414 = vmatprep.subr.mxu0 0.0
    %415 = vmatpush1.msra.mxu0 0.0
    %416 = vmatprep.subr.mxu0 0.0
    %417 = vmatpush1.msra.mxu0 0.0
    %418 = vmatprep.subr.mxu0 0.0
    %419 = vmatpush1.msra.mxu0 0.0
    %420 = vmatprep.subr.mxu0 0.0
    %421 = vmatpush1.msra.mxu0 0.0
    %422 = vmatprep.subr.mxu0 0.0
    %423 = vmatpush1.msra.mxu0 0.0
    %424 = vmatprep.subr.mxu0 0.0
    %425 = vmatpush1.msra.mxu0 0.0
    %426 = vmatprep.subr.mxu0 0.0
    %427 = vmatpush1.msra.mxu0 0.0
    %428 = vmatprep.subr.mxu0 0.0
    %429 = vmatpush1.msra.mxu0 0.0
    %430 = vmatprep.subr.mxu0 0.0
    %431 = vmatpush1.msra.mxu0 0.0
    %432 = vmatprep.subr.mxu0 0.0
    %433 = vmatpush1.msra.mxu0 0.0
    %434 = vmatprep.mubr.f32.mxu0 0.0
    %435 = vmatmul.mubr.f32.gmra.mrb[0].mxu0 %v298
    %v436 = vpop.f32.mrb[0].mxu0
    %v437 = vadd.f32 0.0, %v436
    %v438 = vpop.f32.mrb[0].mxu0
    %439 = vdwg.mxu0
    %v440 = vsel %vm74, 1, 0
    %vm441 = vcmp.eq.s32.totalorder %v440, 1
    %v442 = vsel %vm441, %v367, %v437
    %v443 = vadd.f32 %v296, %v442
    %v444 = vxor.u32 %v443, 2147483648
    %v445 = vmul.f32 %v444, 1.442695
    %v446 = vpow.pop %v445
    %v447 = vadd.f32 %v446, 1.0
    %v448 = vrcp.pop %v447
    %v449 = vmul.f32 1.0, %v448
    %v450 = vtanh.pop %v443
    %v451 = vmul.f32 %v449, 0.0
    %453 = vrot.lane.b32.xlu0 %v450, 64
    %v454 = vpop.permute.xlu0 %453
    %v456 = vmul.f32 %v449, %v454
    %458 = vrot.lane.b32.xlu0 %v456, 32
    %v459 = vpop.permute.xlu0 %458
    %v461 = vadd.f32 %v451, %v459
    %v462 = vtanh.pop %v461
    %464 = vrot.lane.b32.xlu0 %v462, 64
    %v465 = vpop.permute.xlu0 %464
    %v467 = vmul.f32 %v449, %v465
    %v469 = vrot.slane %v170, 4
    %v472 = vrot.slane %v283, 4
    %v474 = vsel %vm295, %v469, %v472
    %476 = vrot.lane.b32.xlu0 %v467, 32
    %v477 = vpop.permute.xlu0 %476
    %v478 = vsel %vm90, %v477, 0
    %480 = vmatprep.subr.mxu0 0.0
    %481 = vmatpush1.msra.mxu0 %v286
    %482 = vmatprep.subr.mxu0 0.0
    %483 = vmatpush1.msra.mxu0 %v287
    %484 = vmatprep.subr.mxu0 0.0
    %485 = vmatpush1.msra.mxu0 %v288
    %486 = vmatprep.subr.mxu0 0.0
    %487 = vmatpush1.msra.mxu0 %v289
    %488 = vmatprep.subr.mxu0 0.0
    %489 = vmatpush1.msra.mxu0 0.0
    %490 = vmatprep.subr.mxu0 0.0
    %491 = vmatpush1.msra.mxu0 0.0
    %492 = vmatprep.subr.mxu0 0.0
    %493 = vmatpush1.msra.mxu0 0.0
    %494 = vmatprep.subr.mxu0 0.0
    %495 = vmatpush1.msra.mxu0 0.0
    %496 = vmatprep.subr.mxu0 0.0
    %497 = vmatpush1.msra.mxu0 0.0
    %498 = vmatprep.subr.mxu0 0.0
    %499 = vmatpush1.msra.mxu0 0.0
    %500 = vmatprep.subr.mxu0 0.0
    %501 = vmatpush1.msra.mxu0 0.0
    %502 = vmatprep.subr.mxu0 0.0
    %503 = vmatpush1.msra.mxu0 0.0
    %504 = vmatprep.subr.mxu0 0.0
    %505 = vmatpush1.msra.mxu0 0.0
    %506 = vmatprep.subr.mxu0 0.0
    %507 = vmatpush1.msra.mxu0 0.0
    %508 = vmatprep.subr.mxu0 0.0
    %509 = vmatpush1.msra.mxu0 0.0
    %510 = vmatprep.subr.mxu0 0.0
    %511 = vmatpush1.msra.mxu0 0.0
    %512 = vmatprep.subr.mxu0 0.0
    %513 = vmatpush1.msra.mxu0 0.0
    %514 = vmatprep.subr.mxu0 0.0
    %515 = vmatpush1.msra.mxu0 0.0
    %516 = vmatprep.subr.mxu0 0.0
    %517 = vmatpush1.msra.mxu0 0.0
    %518 = vmatprep.subr.mxu0 0.0
    %519 = vmatpush1.msra.mxu0 0.0
    %520 = vmatprep.subr.mxu0 0.0
    %521 = vmatpush1.msra.mxu0 0.0
    %522 = vmatprep.subr.mxu0 0.0
    %523 = vmatpush1.msra.mxu0 0.0
    %524 = vmatprep.subr.mxu0 0.0
    %525 = vmatpush1.msra.mxu0 0.0
    %526 = vmatprep.subr.mxu0 0.0
    %527 = vmatpush1.msra.mxu0 0.0
    %528 = vmatprep.subr.mxu0 0.0
    %529 = vmatpush1.msra.mxu0 0.0
    %530 = vmatprep.subr.mxu0 0.0
    %531 = vmatpush1.msra.mxu0 0.0
    %532 = vmatprep.subr.mxu0 0.0
    %533 = vmatpush1.msra.mxu0 0.0
    %534 = vmatprep.subr.mxu0 0.0
    %535 = vmatpush1.msra.mxu0 0.0
    %536 = vmatprep.subr.mxu0 0.0
    %537 = vmatpush1.msra.mxu0 0.0
    %538 = vmatprep.subr.mxu0 0.0
    %539 = vmatpush1.msra.mxu0 0.0
    %540 = vmatprep.subr.mxu0 0.0
    %541 = vmatpush1.msra.mxu0 0.0
    %542 = vmatprep.subr.mxu0 0.0
    %543 = vmatpush1.msra.mxu0 0.0
    %544 = vmatprep.mubr.f32.mxu0 0.0
    %545 = vmatmul.mubr.f32.gmra.mrb[0].mxu0 %v478
    %v546 = vpop.f32.mrb[0].mxu0
    %v547 = vadd.f32 0.0, %v546
    %v548 = vpop.f32.mrb[0].mxu0
    %549 = vdwg.mxu0
    %550 = vmatprep.subr.mxu0 0.0
    %551 = vmatpush1.msra.mxu0 %v291
    %552 = vmatprep.subr.mxu0 0.0
    %553 = vmatpush1.msra.mxu0 %v292
    %554 = vmatprep.subr.mxu0 0.0
    %555 = vmatpush1.msra.mxu0 %v293
    %556 = vmatprep.subr.mxu0 0.0
    %557 = vmatpush1.msra.mxu0 %v294
    %558 = vmatprep.subr.mxu0 0.0
    %559 = vmatpush1.msra.mxu0 0.0
    %560 = vmatprep.subr.mxu0 0.0
    %561 = vmatpush1.msra.mxu0 0.0
    %562 = vmatprep.subr.mxu0 0.0
    %563 = vmatpush1.msra.mxu0 0.0
    %564 = vmatprep.subr.mxu0 0.0
    %565 = vmatpush1.msra.mxu0 0.0
    %566 = vmatprep.subr.mxu0 0.0
    %567 = vmatpush1.msra.mxu0 0.0
    %568 = vmatprep.subr.mxu0 0.0
    %569 = vmatpush1.msra.mxu0 0.0
    %570 = vmatprep.subr.mxu0 0.0
    %571 = vmatpush1.msra.mxu0 0.0
    %572 = vmatprep.subr.mxu0 0.0
    %573 = vmatpush1.msra.mxu0 0.0
    %574 = vmatprep.subr.mxu0 0.0
    %575 = vmatpush1.msra.mxu0 0.0
    %576 = vmatprep.subr.mxu0 0.0
    %577 = vmatpush1.msra.mxu0 0.0
    %578 = vmatprep.subr.mxu0 0.0
    %579 = vmatpush1.msra.mxu0 0.0
    %580 = vmatprep.subr.mxu0 0.0
    %581 = vmatpush1.msra.mxu0 0.0
    %582 = vmatprep.subr.mxu0 0.0
    %583 = vmatpush1.msra.mxu0 0.0
    %584 = vmatprep.subr.mxu0 0.0
    %585 = vmatpush1.msra.mxu0 0.0
    %586 = vmatprep.subr.mxu0 0.0
    %587 = vmatpush1.msra.mxu0 0.0
    %588 = vmatprep.subr.mxu0 0.0
    %589 = vmatpush1.msra.mxu0 0.0
    %590 = vmatprep.subr.mxu0 0.0
    %591 = vmatpush1.msra.mxu0 0.0
    %592 = vmatprep.subr.mxu0 0.0
    %593 = vmatpush1.msra.mxu0 0.0
    %594 = vmatprep.subr.mxu0 0.0
    %595 = vmatpush1.msra.mxu0 0.0
    %596 = vmatprep.subr.mxu0 0.0
    %597 = vmatpush1.msra.mxu0 0.0
    %598 = vmatprep.subr.mxu0 0.0
    %599 = vmatpush1.msra.mxu0 0.0
    %600 = vmatprep.subr.mxu0 0.0
    %601 = vmatpush1.msra.mxu0 0.0
    %602 = vmatprep.subr.mxu0 0.0
    %603 = vmatpush1.msra.mxu0 0.0
    %604 = vmatprep.subr.mxu0 0.0
    %605 = vmatpush1.msra.mxu0 0.0
    %606 = vmatprep.subr.mxu0 0.0
    %607 = vmatpush1.msra.mxu0 0.0
    %608 = vmatprep.subr.mxu0 0.0
    %609 = vmatpush1.msra.mxu0 0.0
    %610 = vmatprep.subr.mxu0 0.0
    %611 = vmatpush1.msra.mxu0 0.0
    %612 = vmatprep.subr.mxu0 0.0
    %613 = vmatpush1.msra.mxu0 0.0
    %614 = vmatprep.mubr.f32.mxu0 0.0
    %615 = vmatmul.mubr.f32.gmra.mrb[0].mxu0 %v478
    %v616 = vpop.f32.mrb[0].mxu0
    %v617 = vadd.f32 0.0, %v616
    %v618 = vpop.f32.mrb[0].mxu0
    %619 = vdwg.mxu0
    %v620 = vsel %vm441, %v547, %v617
    %v621 = vadd.f32 %v474, %v620
    %v622 = vxor.u32 %v621, 2147483648
    %v623 = vmul.f32 %v622, 1.442695
    %v624 = vpow.pop %v623
    %v625 = vadd.f32 %v624, 1.0
    %v626 = vrcp.pop %v625
    %v627 = vmul.f32 1.0, %v626
    %v628 = vtanh.pop %v621
    %v629 = vmul.f32 %v627, %v461
    %631 = vrot.lane.b32.xlu0 %v628, 64
    %v632 = vpop.permute.xlu0 %631
    %v634 = vmul.f32 %v627, %v632
    %636 = vrot.lane.b32.xlu0 %v634, 32
    %v637 = vpop.permute.xlu0 %636
    %v639 = vadd.f32 %v629, %v637
    %v640 = vtanh.pop %v639
    %642 = vrot.lane.b32.xlu0 %v640, 64
    %v643 = vpop.permute.xlu0 %642
    %v645 = vmul.f32 %v627, %v643
    %v646 = vsel %vm295, %v175, %v278
    %648 = vrot.lane.b32.xlu0 %v645, 32
    %v649 = vpop.permute.xlu0 %648
    %v650 = vsel %vm90, %v649, 0
    %652 = vmatprep.subr.mxu0 0.0
    %653 = vmatpush1.msra.mxu0 %v286
    %654 = vmatprep.subr.mxu0 0.0
    %655 = vmatpush1.msra.mxu0 %v287
    %656 = vmatprep.subr.mxu0 0.0
    %657 = vmatpush1.msra.mxu0 %v288
    %658 = vmatprep.subr.mxu0 0.0
    %659 = vmatpush1.msra.mxu0 %v289
    %660 = vmatprep.subr.mxu0 0.0
    %661 = vmatpush1.msra.mxu0 0.0
    %662 = vmatprep.subr.mxu0 0.0
    %663 = vmatpush1.msra.mxu0 0.0
    %664 = vmatprep.subr.mxu0 0.0
    %665 = vmatpush1.msra.mxu0 0.0
    %666 = vmatprep.subr.mxu0 0.0
    %667 = vmatpush1.msra.mxu0 0.0
    %668 = vmatprep.subr.mxu0 0.0
    %669 = vmatpush1.msra.mxu0 0.0
    %670 = vmatprep.subr.mxu0 0.0
    %671 = vmatpush1.msra.mxu0 0.0
    %672 = vmatprep.subr.mxu0 0.0
    %673 = vmatpush1.msra.mxu0 0.0
    %674 = vmatprep.subr.mxu0 0.0
    %675 = vmatpush1.msra.mxu0 0.0
    %676 = vmatprep.subr.mxu0 0.0
    %677 = vmatpush1.msra.mxu0 0.0
    %678 = vmatprep.subr.mxu0 0.0
    %679 = vmatpush1.msra.mxu0 0.0
    %680 = vmatprep.subr.mxu0 0.0
    %681 = vmatpush1.msra.mxu0 0.0
    %682 = vmatprep.subr.mxu0 0.0
    %683 = vmatpush1.msra.mxu0 0.0
    %684 = vmatprep.subr.mxu0 0.0
    %685 = vmatpush1.msra.mxu0 0.0
    %686 = vmatprep.subr.mxu0 0.0
    %687 = vmatpush1.msra.mxu0 0.0
    %688 = vmatprep.subr.mxu0 0.0
    %689 = vmatpush1.msra.mxu0 0.0
    %690 = vmatprep.subr.mxu0 0.0
    %691 = vmatpush1.msra.mxu0 0.0
    %692 = vmatprep.subr.mxu0 0.0
    %693 = vmatpush1.msra.mxu0 0.0
    %694 = vmatprep.subr.mxu0 0.0
    %695 = vmatpush1.msra.mxu0 0.0
    %696 = vmatprep.subr.mxu0 0.0
    %697 = vmatpush1.msra.mxu0 0.0
    %698 = vmatprep.subr.mxu0 0.0
    %699 = vmatpush1.msra.mxu0 0.0
    %700 = vmatprep.subr.mxu0 0.0
    %701 = vmatpush1.msra.mxu0 0.0
    %702 = vmatprep.subr.mxu0 0.0
    %703 = vmatpush1.msra.mxu0 0.0
    %704 = vmatprep.subr.mxu0 0.0
    %705 = vmatpush1.msra.mxu0 0.0
    %706 = vmatprep.subr.mxu0 0.0
    %707 = vmatpush1.msra.mxu0 0.0
    %708 = vmatprep.subr.mxu0 0.0
    %709 = vmatpush1.msra.mxu0 0.0
    %710 = vmatprep.subr.mxu0 0.0
    %711 = vmatpush1.msra.mxu0 0.0
    %712 = vmatprep.subr.mxu0 0.0
    %713 = vmatpush1.msra.mxu0 0.0
    %714 = vmatprep.subr.mxu0 0.0
    %715 = vmatpush1.msra.mxu0 0.0
    %716 = vmatprep.mubr.f32.mxu0 0.0
    %717 = vmatmul.mubr.f32.gmra.mrb[0].mxu0 %v650
    %v718 = vpop.f32.mrb[0].mxu0
    %v719 = vadd.f32 0.0, %v718
    %v720 = vpop.f32.mrb[0].mxu0
    %721 = vdwg.mxu0
    %722 = vmatprep.subr.mxu0 0.0
    %723 = vmatpush1.msra.mxu0 %v291
    %724 = vmatprep.subr.mxu0 0.0
    %725 = vmatpush1.msra.mxu0 %v292
    %726 = vmatprep.subr.mxu0 0.0
    %727 = vmatpush1.msra.mxu0 %v293
    %728 = vmatprep.subr.mxu0 0.0
    %729 = vmatpush1.msra.mxu0 %v294
    %730 = vmatprep.subr.mxu0 0.0
    %731 = vmatpush1.msra.mxu0 0.0
    %732 = vmatprep.subr.mxu0 0.0
    %733 = vmatpush1.msra.mxu0 0.0
    %734 = vmatprep.subr.mxu0 0.0
    %735 = vmatpush1.msra.mxu0 0.0
    %736 = vmatprep.subr.mxu0 0.0
    %737 = vmatpush1.msra.mxu0 0.0
    %738 = vmatprep.subr.mxu0 0.0
    %739 = vmatpush1.msra.mxu0 0.0
    %740 = vmatprep.subr.mxu0 0.0
    %741 = vmatpush1.msra.mxu0 0.0
    %742 = vmatprep.subr.mxu0 0.0
    %743 = vmatpush1.msra.mxu0 0.0
    %744 = vmatprep.subr.mxu0 0.0
    %745 = vmatpush1.msra.mxu0 0.0
    %746 = vmatprep.subr.mxu0 0.0
    %747 = vmatpush1.msra.mxu0 0.0
    %748 = vmatprep.subr.mxu0 0.0
    %749 = vmatpush1.msra.mxu0 0.0
    %750 = vmatprep.subr.mxu0 0.0
    %751 = vmatpush1.msra.mxu0 0.0
    %752 = vmatprep.subr.mxu0 0.0
    %753 = vmatpush1.msra.mxu0 0.0
    %754 = vmatprep.subr.mxu0 0.0
    %755 = vmatpush1.msra.mxu0 0.0
    %756 = vmatprep.subr.mxu0 0.0
    %757 = vmatpush1.msra.mxu0 0.0
    %758 = vmatprep.subr.mxu0 0.0
    %759 = vmatpush1.msra.mxu0 0.0
    %760 = vmatprep.subr.mxu0 0.0
    %761 = vmatpush1.msra.mxu0 0.0
    %762 = vmatprep.subr.mxu0 0.0
    %763 = vmatpush1.msra.mxu0 0.0
    %764 = vmatprep.subr.mxu0 0.0
    %765 = vmatpush1.msra.mxu0 0.0
    %766 = vmatprep.subr.mxu0 0.0
    %767 = vmatpush1.msra.mxu0 0.0
    %768 = vmatprep.subr.mxu0 0.0
    %769 = vmatpush1.msra.mxu0 0.0
    %770 = vmatprep.subr.mxu0 0.0
    %771 = vmatpush1.msra.mxu0 0.0
    %772 = vmatprep.subr.mxu0 0.0
    %773 = vmatpush1.msra.mxu0 0.0
    %774 = vmatprep.subr.mxu0 0.0
    %775 = vmatpush1.msra.mxu0 0.0
    %776 = vmatprep.subr.mxu0 0.0
    %777 = vmatpush1.msra.mxu0 0.0
    %778 = vmatprep.subr.mxu0 0.0
    %779 = vmatpush1.msra.mxu0 0.0
    %780 = vmatprep.subr.mxu0 0.0
    %781 = vmatpush1.msra.mxu0 0.0
    %782 = vmatprep.subr.mxu0 0.0
    %783 = vmatpush1.msra.mxu0 0.0
    %784 = vmatprep.subr.mxu0 0.0
    %785 = vmatpush1.msra.mxu0 0.0
    %786 = vmatprep.mubr.f32.mxu0 0.0
    %787 = vmatmul.mubr.f32.gmra.mrb[0].mxu0 %v650
    %v788 = vpop.f32.mrb[0].mxu0
    %v789 = vadd.f32 0.0, %v788
    %v790 = vpop.f32.mrb[0].mxu0
    %791 = vdwg.mxu0
    %v792 = vsel %vm441, %v719, %v789
    %v793 = vadd.f32 %v646, %v792
    %v794 = vxor.u32 %v793, 2147483648
    %v795 = vmul.f32 %v794, 1.442695
    %v796 = vpow.pop %v795
    %v797 = vadd.f32 %v796, 1.0
    %v798 = vrcp.pop %v797
    %v799 = vmul.f32 1.0, %v798
    %v800 = vtanh.pop %v793
    %v801 = vmul.f32 %v799, %v639
    %803 = vrot.lane.b32.xlu0 %v800, 64
    %v804 = vpop.permute.xlu0 %803
    %v806 = vmul.f32 %v799, %v804
    %808 = vrot.lane.b32.xlu0 %v806, 32
    %v809 = vpop.permute.xlu0 %808
    %v811 = vadd.f32 %v801, %v809
    %v812 = vtanh.pop %v811
    %814 = vrot.lane.b32.xlu0 %v812, 64
    %v815 = vpop.permute.xlu0 %814
    %v817 = vmul.f32 %v799, %v815
    %v819 = vrot.slane %v175, 4
    %v822 = vrot.slane %v278, 4
    %v824 = vsel %vm295, %v819, %v822
    %826 = vrot.lane.b32.xlu0 %v817, 32
    %v827 = vpop.permute.xlu0 %826
    %v828 = vsel %vm90, %v827, 0
    %830 = vmatprep.subr.mxu0 0.0
    %831 = vmatpush1.msra.mxu0 %v286
    %832 = vmatprep.subr.mxu0 0.0
    %833 = vmatpush1.msra.mxu0 %v287
    %834 = vmatprep.subr.mxu0 0.0
    %835 = vmatpush1.msra.mxu0 %v288
    %836 = vmatprep.subr.mxu0 0.0
    %837 = vmatpush1.msra.mxu0 %v289
    %838 = vmatprep.subr.mxu0 0.0
    %839 = vmatpush1.msra.mxu0 0.0
    %840 = vmatprep.subr.mxu0 0.0
    %841 = vmatpush1.msra.mxu0 0.0
    %842 = vmatprep.subr.mxu0 0.0
    %843 = vmatpush1.msra.mxu0 0.0
    %844 = vmatprep.subr.mxu0 0.0
    %845 = vmatpush1.msra.mxu0 0.0
    %846 = vmatprep.subr.mxu0 0.0
    %847 = vmatpush1.msra.mxu0 0.0
    %848 = vmatprep.subr.mxu0 0.0
    %849 = vmatpush1.msra.mxu0 0.0
    %850 = vmatprep.subr.mxu0 0.0
    %851 = vmatpush1.msra.mxu0 0.0
    %852 = vmatprep.subr.mxu0 0.0
    %853 = vmatpush1.msra.mxu0 0.0
    %854 = vmatprep.subr.mxu0 0.0
    %855 = vmatpush1.msra.mxu0 0.0
    %856 = vmatprep.subr.mxu0 0.0
    %857 = vmatpush1.msra.mxu0 0.0
    %858 = vmatprep.subr.mxu0 0.0
    %859 = vmatpush1.msra.mxu0 0.0
    %860 = vmatprep.subr.mxu0 0.0
    %861 = vmatpush1.msra.mxu0 0.0
    %862 = vmatprep.subr.mxu0 0.0
    %863 = vmatpush1.msra.mxu0 0.0
    %864 = vmatprep.subr.mxu0 0.0
    %865 = vmatpush1.msra.mxu0 0.0
    %866 = vmatprep.subr.mxu0 0.0
    %867 = vmatpush1.msra.mxu0 0.0
    %868 = vmatprep.subr.mxu0 0.0
    %869 = vmatpush1.msra.mxu0 0.0
    %870 = vmatprep.subr.mxu0 0.0
    %871 = vmatpush1.msra.mxu0 0.0
    %872 = vmatprep.subr.mxu0 0.0
    %873 = vmatpush1.msra.mxu0 0.0
    %874 = vmatprep.subr.mxu0 0.0
    %875 = vmatpush1.msra.mxu0 0.0
    %876 = vmatprep.subr.mxu0 0.0
    %877 = vmatpush1.msra.mxu0 0.0
    %878 = vmatprep.subr.mxu0 0.0
    %879 = vmatpush1.msra.mxu0 0.0
    %880 = vmatprep.subr.mxu0 0.0
    %881 = vmatpush1.msra.mxu0 0.0
    %882 = vmatprep.subr.mxu0 0.0
    %883 = vmatpush1.msra.mxu0 0.0
    %884 = vmatprep.subr.mxu0 0.0
    %885 = vmatpush1.msra.mxu0 0.0
    %886 = vmatprep.subr.mxu0 0.0
    %887 = vmatpush1.msra.mxu0 0.0
    %888 = vmatprep.subr.mxu0 0.0
    %889 = vmatpush1.msra.mxu0 0.0
    %890 = vmatprep.subr.mxu0 0.0
    %891 = vmatpush1.msra.mxu0 0.0
    %892 = vmatprep.subr.mxu0 0.0
    %893 = vmatpush1.msra.mxu0 0.0
    %894 = vmatprep.mubr.f32.mxu0 0.0
    %895 = vmatmul.mubr.f32.gmra.mrb[0].mxu0 %v828
    %v896 = vpop.f32.mrb[0].mxu0
    %v897 = vadd.f32 0.0, %v896
    %v898 = vpop.f32.mrb[0].mxu0
    %899 = vdwg.mxu0
    %900 = vmatprep.subr.mxu0 0.0
    %901 = vmatpush1.msra.mxu0 %v291
    %902 = vmatprep.subr.mxu0 0.0
    %903 = vmatpush1.msra.mxu0 %v292
    %904 = vmatprep.subr.mxu0 0.0
    %905 = vmatpush1.msra.mxu0 %v293
    %906 = vmatprep.subr.mxu0 0.0
    %907 = vmatpush1.msra.mxu0 %v294
    %908 = vmatprep.subr.mxu0 0.0
    %909 = vmatpush1.msra.mxu0 0.0
    %910 = vmatprep.subr.mxu0 0.0
    %911 = vmatpush1.msra.mxu0 0.0
    %912 = vmatprep.subr.mxu0 0.0
    %913 = vmatpush1.msra.mxu0 0.0
    %914 = vmatprep.subr.mxu0 0.0
    %915 = vmatpush1.msra.mxu0 0.0
    %916 = vmatprep.subr.mxu0 0.0
    %917 = vmatpush1.msra.mxu0 0.0
    %918 = vmatprep.subr.mxu0 0.0
    %919 = vmatpush1.msra.mxu0 0.0
    %920 = vmatprep.subr.mxu0 0.0
    %921 = vmatpush1.msra.mxu0 0.0
    %922 = vmatprep.subr.mxu0 0.0
    %923 = vmatpush1.msra.mxu0 0.0
    %924 = vmatprep.subr.mxu0 0.0
    %925 = vmatpush1.msra.mxu0 0.0
    %926 = vmatprep.subr.mxu0 0.0
    %927 = vmatpush1.msra.mxu0 0.0
    %928 = vmatprep.subr.mxu0 0.0
    %929 = vmatpush1.msra.mxu0 0.0
    %930 = vmatprep.subr.mxu0 0.0
    %931 = vmatpush1.msra.mxu0 0.0
    %932 = vmatprep.subr.mxu0 0.0
    %933 = vmatpush1.msra.mxu0 0.0
    %934 = vmatprep.subr.mxu0 0.0
    %935 = vmatpush1.msra.mxu0 0.0
    %936 = vmatprep.subr.mxu0 0.0
    %937 = vmatpush1.msra.mxu0 0.0
    %938 = vmatprep.subr.mxu0 0.0
    %939 = vmatpush1.msra.mxu0 0.0
    %940 = vmatprep.subr.mxu0 0.0
    %941 = vmatpush1.msra.mxu0 0.0
    %942 = vmatprep.subr.mxu0 0.0
    %943 = vmatpush1.msra.mxu0 0.0
    %944 = vmatprep.subr.mxu0 0.0
    %945 = vmatpush1.msra.mxu0 0.0
    %946 = vmatprep.subr.mxu0 0.0
    %947 = vmatpush1.msra.mxu0 0.0
    %948 = vmatprep.subr.mxu0 0.0
    %949 = vmatpush1.msra.mxu0 0.0
    %950 = vmatprep.subr.mxu0 0.0
    %951 = vmatpush1.msra.mxu0 0.0
    %952 = vmatprep.subr.mxu0 0.0
    %953 = vmatpush1.msra.mxu0 0.0
    %954 = vmatprep.subr.mxu0 0.0
    %955 = vmatpush1.msra.mxu0 0.0
    %956 = vmatprep.subr.mxu0 0.0
    %957 = vmatpush1.msra.mxu0 0.0
    %958 = vmatprep.subr.mxu0 0.0
    %959 = vmatpush1.msra.mxu0 0.0
    %960 = vmatprep.subr.mxu0 0.0
    %961 = vmatpush1.msra.mxu0 0.0
    %962 = vmatprep.subr.mxu0 0.0
    %963 = vmatpush1.msra.mxu0 0.0
    %964 = vmatprep.mubr.f32.mxu0 0.0
    %965 = vmatmul.mubr.f32.gmra.mrb[0].mxu0 %v828
    %v966 = vpop.f32.mrb[0].mxu0
    %v967 = vadd.f32 0.0, %v966
    %v968 = vpop.f32.mrb[0].mxu0
    %969 = vdwg.mxu0
    %v970 = vsel %vm441, %v897, %v967
    %v971 = vadd.f32 %v824, %v970
    %v972 = vxor.u32 %v971, 2147483648
    %v973 = vmul.f32 %v972, 1.442695
    %v974 = vpow.pop %v973
    %v975 = vadd.f32 %v974, 1.0
    %v976 = vrcp.pop %v975
    %v977 = vmul.f32 1.0, %v976
    %v978 = vtanh.pop %v971
    %v979 = vmul.f32 %v977, %v811
    %981 = vrot.lane.b32.xlu0 %v978, 64
    %v982 = vpop.permute.xlu0 %981
    %v984 = vmul.f32 %v977, %v982
    %986 = vrot.lane.b32.xlu0 %v984, 32
    %v987 = vpop.permute.xlu0 %986
    %v989 = vadd.f32 %v979, %v987
    %v990 = vtanh.pop %v989
    %992 = vrot.lane.b32.xlu0 %v990, 64
    %v993 = vpop.permute.xlu0 %992
    %v995 = vmul.f32 %v977, %v993
    %v996 = vsel %vm295, %v180, %v273
    %998 = vrot.lane.b32.xlu0 %v995, 32
    %v999 = vpop.permute.xlu0 %998
    %v1000 = vsel %vm90, %v999, 0
    %1002 = vmatprep.subr.mxu0 0.0
    %1003 = vmatpush1.msra.mxu0 %v286
    %1004 = vmatprep.subr.mxu0 0.0
    %1005 = vmatpush1.msra.mxu0 %v287
    %1006 = vmatprep.subr.mxu0 0.0
    %1007 = vmatpush1.msra.mxu0 %v288
    %1008 = vmatprep.subr.mxu0 0.0
    %1009 = vmatpush1.msra.mxu0 %v289
    %1010 = vmatprep.subr.mxu0 0.0
    %1011 = vmatpush1.msra.mxu0 0.0
    %1012 = vmatprep.subr.mxu0 0.0
    %1013 = vmatpush1.msra.mxu0 0.0
    %1014 = vmatprep.subr.mxu0 0.0
    %1015 = vmatpush1.msra.mxu0 0.0
    %1016 = vmatprep.subr.mxu0 0.0
    %1017 = vmatpush1.msra.mxu0 0.0
    %1018 = vmatprep.subr.mxu0 0.0
    %1019 = vmatpush1.msra.mxu0 0.0
    %1020 = vmatprep.subr.mxu0 0.0
    %1021 = vmatpush1.msra.mxu0 0.0
    %1022 = vmatprep.subr.mxu0 0.0
    %1023 = vmatpush1.msra.mxu0 0.0
    %1024 = vmatprep.subr.mxu0 0.0
    %1025 = vmatpush1.msra.mxu0 0.0
    %1026 = vmatprep.subr.mxu0 0.0
    %1027 = vmatpush1.msra.mxu0 0.0
    %1028 = vmatprep.subr.mxu0 0.0
    %1029 = vmatpush1.msra.mxu0 0.0
    %1030 = vmatprep.subr.mxu0 0.0
    %1031 = vmatpush1.msra.mxu0 0.0
    %1032 = vmatprep.subr.mxu0 0.0
    %1033 = vmatpush1.msra.mxu0 0.0
    %1034 = vmatprep.subr.mxu0 0.0
    %1035 = vmatpush1.msra.mxu0 0.0
    %1036 = vmatprep.subr.mxu0 0.0
    %1037 = vmatpush1.msra.mxu0 0.0
    %1038 = vmatprep.subr.mxu0 0.0
    %1039 = vmatpush1.msra.mxu0 0.0
    %1040 = vmatprep.subr.mxu0 0.0
    %1041 = vmatpush1.msra.mxu0 0.0
    %1042 = vmatprep.subr.mxu0 0.0
    %1043 = vmatpush1.msra.mxu0 0.0
    %1044 = vmatprep.subr.mxu0 0.0
    %1045 = vmatpush1.msra.mxu0 0.0
    %1046 = vmatprep.subr.mxu0 0.0
    %1047 = vmatpush1.msra.mxu0 0.0
    %1048 = vmatprep.subr.mxu0 0.0
    %1049 = vmatpush1.msra.mxu0 0.0
    %1050 = vmatprep.subr.mxu0 0.0
    %1051 = vmatpush1.msra.mxu0 0.0
    %1052 = vmatprep.subr.mxu0 0.0
    %1053 = vmatpush1.msra.mxu0 0.0
    %1054 = vmatprep.subr.mxu0 0.0
    %1055 = vmatpush1.msra.mxu0 0.0
    %1056 = vmatprep.subr.mxu0 0.0
    %1057 = vmatpush1.msra.mxu0 0.0
    %1058 = vmatprep.subr.mxu0 0.0
    %1059 = vmatpush1.msra.mxu0 0.0
    %1060 = vmatprep.subr.mxu0 0.0
    %1061 = vmatpush1.msra.mxu0 0.0
    %1062 = vmatprep.subr.mxu0 0.0
    %1063 = vmatpush1.msra.mxu0 0.0
    %1064 = vmatprep.subr.mxu0 0.0
    %1065 = vmatpush1.msra.mxu0 0.0
    %1066 = vmatprep.mubr.f32.mxu0 0.0
    %1067 = vmatmul.mubr.f32.gmra.mrb[0].mxu0 %v1000
    %v1068 = vpop.f32.mrb[0].mxu0
    %v1069 = vadd.f32 0.0, %v1068
    %v1070 = vpop.f32.mrb[0].mxu0
    %1071 = vdwg.mxu0
    %1072 = vmatprep.subr.mxu0 0.0
    %1073 = vmatpush1.msra.mxu0 %v291
    %1074 = vmatprep.subr.mxu0 0.0
    %1075 = vmatpush1.msra.mxu0 %v292
    %1076 = vmatprep.subr.mxu0 0.0
    %1077 = vmatpush1.msra.mxu0 %v293
    %1078 = vmatprep.subr.mxu0 0.0
    %1079 = vmatpush1.msra.mxu0 %v294
    %1080 = vmatprep.subr.mxu0 0.0
    %1081 = vmatpush1.msra.mxu0 0.0
    %1082 = vmatprep.subr.mxu0 0.0
    %1083 = vmatpush1.msra.mxu0 0.0
    %1084 = vmatprep.subr.mxu0 0.0
    %1085 = vmatpush1.msra.mxu0 0.0
    %1086 = vmatprep.subr.mxu0 0.0
    %1087 = vmatpush1.msra.mxu0 0.0
    %1088 = vmatprep.subr.mxu0 0.0
    %1089 = vmatpush1.msra.mxu0 0.0
    %1090 = vmatprep.subr.mxu0 0.0
    %1091 = vmatpush1.msra.mxu0 0.0
    %1092 = vmatprep.subr.mxu0 0.0
    %1093 = vmatpush1.msra.mxu0 0.0
    %1094 = vmatprep.subr.mxu0 0.0
    %1095 = vmatpush1.msra.mxu0 0.0
    %1096 = vmatprep.subr.mxu0 0.0
    %1097 = vmatpush1.msra.mxu0 0.0
    %1098 = vmatprep.subr.mxu0 0.0
    %1099 = vmatpush1.msra.mxu0 0.0
    %1100 = vmatprep.subr.mxu0 0.0
    %1101 = vmatpush1.msra.mxu0 0.0
    %1102 = vmatprep.subr.mxu0 0.0
    %1103 = vmatpush1.msra.mxu0 0.0
    %1104 = vmatprep.subr.mxu0 0.0
    %1105 = vmatpush1.msra.mxu0 0.0
    %1106 = vmatprep.subr.mxu0 0.0
    %1107 = vmatpush1.msra.mxu0 0.0
    %1108 = vmatprep.subr.mxu0 0.0
    %1109 = vmatpush1.msra.mxu0 0.0
    %1110 = vmatprep.subr.mxu0 0.0
    %1111 = vmatpush1.msra.mxu0 0.0
    %1112 = vmatprep.subr.mxu0 0.0
    %1113 = vmatpush1.msra.mxu0 0.0
    %1114 = vmatprep.subr.mxu0 0.0
    %1115 = vmatpush1.msra.mxu0 0.0
    %1116 = vmatprep.subr.mxu0 0.0
    %1117 = vmatpush1.msra.mxu0 0.0
    %1118 = vmatprep.subr.mxu0 0.0
    %1119 = vmatpush1.msra.mxu0 0.0
    %1120 = vmatprep.subr.mxu0 0.0
    %1121 = vmatpush1.msra.mxu0 0.0
    %1122 = vmatprep.subr.mxu0 0.0
    %1123 = vmatpush1.msra.mxu0 0.0
    %1124 = vmatprep.subr.mxu0 0.0
    %1125 = vmatpush1.msra.mxu0 0.0
    %1126 = vmatprep.subr.mxu0 0.0
    %1127 = vmatpush1.msra.mxu0 0.0
    %1128 = vmatprep.subr.mxu0 0.0
    %1129 = vmatpush1.msra.mxu0 0.0
    %1130 = vmatprep.subr.mxu0 0.0
    %1131 = vmatpush1.msra.mxu0 0.0
    %1132 = vmatprep.subr.mxu0 0.0
    %1133 = vmatpush1.msra.mxu0 0.0
    %1134 = vmatprep.subr.mxu0 0.0
    %1135 = vmatpush1.msra.mxu0 0.0
    %1136 = vmatprep.mubr.f32.mxu0 0.0
    %1137 = vmatmul.mubr.f32.gmra.mrb[0].mxu0 %v1000
    %v1138 = vpop.f32.mrb[0].mxu0
    %v1139 = vadd.f32 0.0, %v1138
    %v1140 = vpop.f32.mrb[0].mxu0
    %1141 = vdwg.mxu0
    %v1142 = vsel %vm441, %v1069, %v1139
    %v1143 = vadd.f32 %v996, %v1142
    %v1144 = vxor.u32 %v1143, 2147483648
    %v1145 = vmul.f32 %v1144, 1.442695
    %v1146 = vpow.pop %v1145
    %v1147 = vadd.f32 %v1146, 1.0
    %v1148 = vrcp.pop %v1147
    %v1149 = vmul.f32 1.0, %v1148
    %v1150 = vtanh.pop %v1143
    %v1151 = vmul.f32 %v1149, %v989
    %1153 = vrot.lane.b32.xlu0 %v1150, 64
    %v1154 = vpop.permute.xlu0 %1153
    %v1156 = vmul.f32 %v1149, %v1154
    %1158 = vrot.lane.b32.xlu0 %v1156, 32
    %v1159 = vpop.permute.xlu0 %1158
    %v1161 = vadd.f32 %v1151, %v1159
    %v1162 = vtanh.pop %v1161
    %1164 = vrot.lane.b32.xlu0 %v1162, 64
    %v1165 = vpop.permute.xlu0 %1164
    %v1167 = vmul.f32 %v1149, %v1165
    %v1169 = vrot.slane %v180, 4
    %v1172 = vrot.slane %v273, 4
    %v1174 = vsel %vm295, %v1169, %v1172
    %1176 = vrot.lane.b32.xlu0 %v1167, 32
    %v1177 = vpop.permute.xlu0 %1176
    %v1178 = vsel %vm90, %v1177, 0
    %1180 = vmatprep.subr.mxu0 0.0
    %1181 = vmatpush1.msra.mxu0 %v286
    %1182 = vmatprep.subr.mxu0 0.0
    %1183 = vmatpush1.msra.mxu0 %v287
    %1184 = vmatprep.subr.mxu0 0.0
    %1185 = vmatpush1.msra.mxu0 %v288
    %1186 = vmatprep.subr.mxu0 0.0
    %1187 = vmatpush1.msra.mxu0 %v289
    %1188 = vmatprep.subr.mxu0 0.0
    %1189 = vmatpush1.msra.mxu0 0.0
    %1190 = vmatprep.subr.mxu0 0.0
    %1191 = vmatpush1.msra.mxu0 0.0
    %1192 = vmatprep.subr.mxu0 0.0
    %1193 = vmatpush1.msra.mxu0 0.0
    %1194 = vmatprep.subr.mxu0 0.0
    %1195 = vmatpush1.msra.mxu0 0.0
    %1196 = vmatprep.subr.mxu0 0.0
    %1197 = vmatpush1.msra.mxu0 0.0
    %1198 = vmatprep.subr.mxu0 0.0
    %1199 = vmatpush1.msra.mxu0 0.0
    %1200 = vmatprep.subr.mxu0 0.0
    %1201 = vmatpush1.msra.mxu0 0.0
    %1202 = vmatprep.subr.mxu0 0.0
    %1203 = vmatpush1.msra.mxu0 0.0
    %1204 = vmatprep.subr.mxu0 0.0
    %1205 = vmatpush1.msra.mxu0 0.0
    %1206 = vmatprep.subr.mxu0 0.0
    %1207 = vmatpush1.msra.mxu0 0.0
    %1208 = vmatprep.subr.mxu0 0.0
    %1209 = vmatpush1.msra.mxu0 0.0
    %1210 = vmatprep.subr.mxu0 0.0
    %1211 = vmatpush1.msra.mxu0 0.0
    %1212 = vmatprep.subr.mxu0 0.0
    %1213 = vmatpush1.msra.mxu0 0.0
    %1214 = vmatprep.subr.mxu0 0.0
    %1215 = vmatpush1.msra.mxu0 0.0
    %1216 = vmatprep.subr.mxu0 0.0
    %1217 = vmatpush1.msra.mxu0 0.0
    %1218 = vmatprep.subr.mxu0 0.0
    %1219 = vmatpush1.msra.mxu0 0.0
    %1220 = vmatprep.subr.mxu0 0.0
    %1221 = vmatpush1.msra.mxu0 0.0
    %1222 = vmatprep.subr.mxu0 0.0
    %1223 = vmatpush1.msra.mxu0 0.0
    %1224 = vmatprep.subr.mxu0 0.0
    %1225 = vmatpush1.msra.mxu0 0.0
    %1226 = vmatprep.subr.mxu0 0.0
    %1227 = vmatpush1.msra.mxu0 0.0
    %1228 = vmatprep.subr.mxu0 0.0
    %1229 = vmatpush1.msra.mxu0 0.0
    %1230 = vmatprep.subr.mxu0 0.0
    %1231 = vmatpush1.msra.mxu0 0.0
    %1232 = vmatprep.subr.mxu0 0.0
    %1233 = vmatpush1.msra.mxu0 0.0
    %1234 = vmatprep.subr.mxu0 0.0
    %1235 = vmatpush1.msra.mxu0 0.0
    %1236 = vmatprep.subr.mxu0 0.0
    %1237 = vmatpush1.msra.mxu0 0.0
    %1238 = vmatprep.subr.mxu0 0.0
    %1239 = vmatpush1.msra.mxu0 0.0
    %1240 = vmatprep.subr.mxu0 0.0
    %1241 = vmatpush1.msra.mxu0 0.0
    %1242 = vmatprep.subr.mxu0 0.0
    %1243 = vmatpush1.msra.mxu0 0.0
    %1244 = vmatprep.mubr.f32.mxu0 0.0
    %1245 = vmatmul.mubr.f32.gmra.mrb[0].mxu0 %v1178
    %v1246 = vpop.f32.mrb[0].mxu0
    %v1247 = vadd.f32 0.0, %v1246
    %v1248 = vpop.f32.mrb[0].mxu0
    %1249 = vdwg.mxu0
    %1250 = vmatprep.subr.mxu0 0.0
    %1251 = vmatpush1.msra.mxu0 %v291
    %1252 = vmatprep.subr.mxu0 0.0
    %1253 = vmatpush1.msra.mxu0 %v292
    %1254 = vmatprep.subr.mxu0 0.0
    %1255 = vmatpush1.msra.mxu0 %v293
    %1256 = vmatprep.subr.mxu0 0.0
    %1257 = vmatpush1.msra.mxu0 %v294
    %1258 = vmatprep.subr.mxu0 0.0
    %1259 = vmatpush1.msra.mxu0 0.0
    %1260 = vmatprep.subr.mxu0 0.0
    %1261 = vmatpush1.msra.mxu0 0.0
    %1262 = vmatprep.subr.mxu0 0.0
    %1263 = vmatpush1.msra.mxu0 0.0
    %1264 = vmatprep.subr.mxu0 0.0
    %1265 = vmatpush1.msra.mxu0 0.0
    %1266 = vmatprep.subr.mxu0 0.0
    %1267 = vmatpush1.msra.mxu0 0.0
    %1268 = vmatprep.subr.mxu0 0.0
    %1269 = vmatpush1.msra.mxu0 0.0
    %1270 = vmatprep.subr.mxu0 0.0
    %1271 = vmatpush1.msra.mxu0 0.0
    %1272 = vmatprep.subr.mxu0 0.0
    %1273 = vmatpush1.msra.mxu0 0.0
    %1274 = vmatprep.subr.mxu0 0.0
    %1275 = vmatpush1.msra.mxu0 0.0
    %1276 = vmatprep.subr.mxu0 0.0
    %1277 = vmatpush1.msra.mxu0 0.0
    %1278 = vmatprep.subr.mxu0 0.0
    %1279 = vmatpush1.msra.mxu0 0.0
    %1280 = vmatprep.subr.mxu0 0.0
    %1281 = vmatpush1.msra.mxu0 0.0
    %1282 = vmatprep.subr.mxu0 0.0
    %1283 = vmatpush1.msra.mxu0 0.0
    %1284 = vmatprep.subr.mxu0 0.0
    %1285 = vmatpush1.msra.mxu0 0.0
    %1286 = vmatprep.subr.mxu0 0.0
    %1287 = vmatpush1.msra.mxu0 0.0
    %1288 = vmatprep.subr.mxu0 0.0
    %1289 = vmatpush1.msra.mxu0 0.0
    %1290 = vmatprep.subr.mxu0 0.0
    %1291 = vmatpush1.msra.mxu0 0.0
    %1292 = vmatprep.subr.mxu0 0.0
    %1293 = vmatpush1.msra.mxu0 0.0
    %1294 = vmatprep.subr.mxu0 0.0
    %1295 = vmatpush1.msra.mxu0 0.0
    %1296 = vmatprep.subr.mxu0 0.0
    %1297 = vmatpush1.msra.mxu0 0.0
    %1298 = vmatprep.subr.mxu0 0.0
    %1299 = vmatpush1.msra.mxu0 0.0
    %1300 = vmatprep.subr.mxu0 0.0
    %1301 = vmatpush1.msra.mxu0 0.0
    %1302 = vmatprep.subr.mxu0 0.0
    %1303 = vmatpush1.msra.mxu0 0.0
    %1304 = vmatprep.subr.mxu0 0.0
    %1305 = vmatpush1.msra.mxu0 0.0
    %1306 = vmatprep.subr.mxu0 0.0
    %1307 = vmatpush1.msra.mxu0 0.0
    %1308 = vmatprep.subr.mxu0 0.0
    %1309 = vmatpush1.msra.mxu0 0.0
    %1310 = vmatprep.subr.mxu0 0.0
    %1311 = vmatpush1.msra.mxu0 0.0
    %1312 = vmatprep.subr.mxu0 0.0
    %1313 = vmatpush1.msra.mxu0 0.0
    %1314 = vmatprep.mubr.f32.mxu0 0.0
    %1315 = vmatmul.mubr.f32.gmra.mrb[0].mxu0 %v1178
    %v1316 = vpop.f32.mrb[0].mxu0
    %v1317 = vadd.f32 0.0, %v1316
    %v1318 = vpop.f32.mrb[0].mxu0
    %1319 = vdwg.mxu0
    %v1320 = vsel %vm441, %v1247, %v1317
    %v1321 = vadd.f32 %v1174, %v1320
    %v1322 = vxor.u32 %v1321, 2147483648
    %v1323 = vmul.f32 %v1322, 1.442695
    %v1324 = vpow.pop %v1323
    %v1325 = vadd.f32 %v1324, 1.0
    %v1326 = vrcp.pop %v1325
    %v1327 = vmul.f32 1.0, %v1326
    %v1328 = vtanh.pop %v1321
    %v1329 = vmul.f32 %v1327, %v1161
    %1331 = vrot.lane.b32.xlu0 %v1328, 64
    %v1332 = vpop.permute.xlu0 %1331
    %v1334 = vmul.f32 %v1327, %v1332
    %1336 = vrot.lane.b32.xlu0 %v1334, 32
    %v1337 = vpop.permute.xlu0 %1336
    %v1339 = vadd.f32 %v1329, %v1337
    %v1340 = vtanh.pop %v1339
    %1342 = vrot.lane.b32.xlu0 %v1340, 64
    %v1343 = vpop.permute.xlu0 %1342
    %v1345 = vmul.f32 %v1327, %v1343
    %v1346 = vsel %vm295, %v185, %v268
    %1348 = vrot.lane.b32.xlu0 %v1345, 32
    %v1349 = vpop.permute.xlu0 %1348
    %v1350 = vsel %vm90, %v1349, 0
    %1352 = vmatprep.subr.mxu0 0.0
    %1353 = vmatpush1.msra.mxu0 %v286
    %1354 = vmatprep.subr.mxu0 0.0
    %1355 = vmatpush1.msra.mxu0 %v287
    %1356 = vmatprep.subr.mxu0 0.0
    %1357 = vmatpush1.msra.mxu0 %v288
    %1358 = vmatprep.subr.mxu0 0.0
    %1359 = vmatpush1.msra.mxu0 %v289
    %1360 = vmatprep.subr.mxu0 0.0
    %1361 = vmatpush1.msra.mxu0 0.0
    %1362 = vmatprep.subr.mxu0 0.0
    %1363 = vmatpush1.msra.mxu0 0.0
    %1364 = vmatprep.subr.mxu0 0.0
    %1365 = vmatpush1.msra.mxu0 0.0
    %1366 = vmatprep.subr.mxu0 0.0
    %1367 = vmatpush1.msra.mxu0 0.0
    %1368 = vmatprep.subr.mxu0 0.0
    %1369 = vmatpush1.msra.mxu0 0.0
    %1370 = vmatprep.subr.mxu0 0.0
    %1371 = vmatpush1.msra.mxu0 0.0
    %1372 = vmatprep.subr.mxu0 0.0
    %1373 = vmatpush1.msra.mxu0 0.0
    %1374 = vmatprep.subr.mxu0 0.0
    %1375 = vmatpush1.msra.mxu0 0.0
    %1376 = vmatprep.subr.mxu0 0.0
    %1377 = vmatpush1.msra.mxu0 0.0
    %1378 = vmatprep.subr.mxu0 0.0
    %1379 = vmatpush1.msra.mxu0 0.0
    %1380 = vmatprep.subr.mxu0 0.0
    %1381 = vmatpush1.msra.mxu0 0.0
    %1382 = vmatprep.subr.mxu0 0.0
    %1383 = vmatpush1.msra.mxu0 0.0
    %1384 = vmatprep.subr.mxu0 0.0
    %1385 = vmatpush1.msra.mxu0 0.0
    %1386 = vmatprep.subr.mxu0 0.0
    %1387 = vmatpush1.msra.mxu0 0.0
    %1388 = vmatprep.subr.mxu0 0.0
    %1389 = vmatpush1.msra.mxu0 0.0
    %1390 = vmatprep.subr.mxu0 0.0
    %1391 = vmatpush1.msra.mxu0 0.0
    %1392 = vmatprep.subr.mxu0 0.0
    %1393 = vmatpush1.msra.mxu0 0.0
    %1394 = vmatprep.subr.mxu0 0.0
    %1395 = vmatpush1.msra.mxu0 0.0
    %1396 = vmatprep.subr.mxu0 0.0
    %1397 = vmatpush1.msra.mxu0 0.0
    %1398 = vmatprep.subr.mxu0 0.0
    %1399 = vmatpush1.msra.mxu0 0.0
    %1400 = vmatprep.subr.mxu0 0.0
    %1401 = vmatpush1.msra.mxu0 0.0
    %1402 = vmatprep.subr.mxu0 0.0
    %1403 = vmatpush1.msra.mxu0 0.0
    %1404 = vmatprep.subr.mxu0 0.0
    %1405 = vmatpush1.msra.mxu0 0.0
    %1406 = vmatprep.subr.mxu0 0.0
    %1407 = vmatpush1.msra.mxu0 0.0
    %1408 = vmatprep.subr.mxu0 0.0
    %1409 = vmatpush1.msra.mxu0 0.0
    %1410 = vmatprep.subr.mxu0 0.0
    %1411 = vmatpush1.msra.mxu0 0.0
    %1412 = vmatprep.subr.mxu0 0.0
    %1413 = vmatpush1.msra.mxu0 0.0
    %1414 = vmatprep.subr.mxu0 0.0
    %1415 = vmatpush1.msra.mxu0 0.0
    %1416 = vmatprep.mubr.f32.mxu0 0.0
    %1417 = vmatmul.mubr.f32.gmra.mrb[0].mxu0 %v1350
    %v1418 = vpop.f32.mrb[0].mxu0
    %v1419 = vadd.f32 0.0, %v1418
    %v1420 = vpop.f32.mrb[0].mxu0
    %1421 = vdwg.mxu0
    %1422 = vmatprep.subr.mxu0 0.0
    %1423 = vmatpush1.msra.mxu0 %v291
    %1424 = vmatprep.subr.mxu0 0.0
    %1425 = vmatpush1.msra.mxu0 %v292
    %1426 = vmatprep.subr.mxu0 0.0
    %1427 = vmatpush1.msra.mxu0 %v293
    %1428 = vmatprep.subr.mxu0 0.0
    %1429 = vmatpush1.msra.mxu0 %v294
    %1430 = vmatprep.subr.mxu0 0.0
    %1431 = vmatpush1.msra.mxu0 0.0
    %1432 = vmatprep.subr.mxu0 0.0
    %1433 = vmatpush1.msra.mxu0 0.0
    %1434 = vmatprep.subr.mxu0 0.0
    %1435 = vmatpush1.msra.mxu0 0.0
    %1436 = vmatprep.subr.mxu0 0.0
    %1437 = vmatpush1.msra.mxu0 0.0
    %1438 = vmatprep.subr.mxu0 0.0
    %1439 = vmatpush1.msra.mxu0 0.0
    %1440 = vmatprep.subr.mxu0 0.0
    %1441 = vmatpush1.msra.mxu0 0.0
    %1442 = vmatprep.subr.mxu0 0.0
    %1443 = vmatpush1.msra.mxu0 0.0
    %1444 = vmatprep.subr.mxu0 0.0
    %1445 = vmatpush1.msra.mxu0 0.0
    %1446 = vmatprep.subr.mxu0 0.0
    %1447 = vmatpush1.msra.mxu0 0.0
    %1448 = vmatprep.subr.mxu0 0.0
    %1449 = vmatpush1.msra.mxu0 0.0
    %1450 = vmatprep.subr.mxu0 0.0
    %1451 = vmatpush1.msra.mxu0 0.0
    %1452 = vmatprep.subr.mxu0 0.0
    %1453 = vmatpush1.msra.mxu0 0.0
    %1454 = vmatprep.subr.mxu0 0.0
    %1455 = vmatpush1.msra.mxu0 0.0
    %1456 = vmatprep.subr.mxu0 0.0
    %1457 = vmatpush1.msra.mxu0 0.0
    %1458 = vmatprep.subr.mxu0 0.0
    %1459 = vmatpush1.msra.mxu0 0.0
    %1460 = vmatprep.subr.mxu0 0.0
    %1461 = vmatpush1.msra.mxu0 0.0
    %1462 = vmatprep.subr.mxu0 0.0
    %1463 = vmatpush1.msra.mxu0 0.0
    %1464 = vmatprep.subr.mxu0 0.0
    %1465 = vmatpush1.msra.mxu0 0.0
    %1466 = vmatprep.subr.mxu0 0.0
    %1467 = vmatpush1.msra.mxu0 0.0
    %1468 = vmatprep.subr.mxu0 0.0
    %1469 = vmatpush1.msra.mxu0 0.0
    %1470 = vmatprep.subr.mxu0 0.0
    %1471 = vmatpush1.msra.mxu0 0.0
    %1472 = vmatprep.subr.mxu0 0.0
    %1473 = vmatpush1.msra.mxu0 0.0
    %1474 = vmatprep.subr.mxu0 0.0
    %1475 = vmatpush1.msra.mxu0 0.0
    %1476 = vmatprep.subr.mxu0 0.0
    %1477 = vmatpush1.msra.mxu0 0.0
    %1478 = vmatprep.subr.mxu0 0.0
    %1479 = vmatpush1.msra.mxu0 0.0
    %1480 = vmatprep.subr.mxu0 0.0
    %1481 = vmatpush1.msra.mxu0 0.0
    %1482 = vmatprep.subr.mxu0 0.0
    %1483 = vmatpush1.msra.mxu0 0.0
    %1484 = vmatprep.subr.mxu0 0.0
    %1485 = vmatpush1.msra.mxu0 0.0
    %1486 = vmatprep.mubr.f32.mxu0 0.0
    %1487 = vmatmul.mubr.f32.gmra.mrb[0].mxu0 %v1350
    %v1488 = vpop.f32.mrb[0].mxu0
    %v1489 = vadd.f32 0.0, %v1488
    %v1490 = vpop.f32.mrb[0].mxu0
    %1491 = vdwg.mxu0
    %v1492 = vsel %vm441, %v1419, %v1489
    %v1493 = vadd.f32 %v1346, %v1492
    %v1494 = vxor.u32 %v1493, 2147483648
    %v1495 = vmul.f32 %v1494, 1.442695
    %v1496 = vpow.pop %v1495
    %v1497 = vadd.f32 %v1496, 1.0
    %v1498 = vrcp.pop %v1497
    %v1499 = vmul.f32 1.0, %v1498
    %v1500 = vtanh.pop %v1493
    %v1501 = vmul.f32 %v1499, %v1339
    %1503 = vrot.lane.b32.xlu0 %v1500, 64
    %v1504 = vpop.permute.xlu0 %1503
    %v1506 = vmul.f32 %v1499, %v1504
    %1508 = vrot.lane.b32.xlu0 %v1506, 32
    %v1509 = vpop.permute.xlu0 %1508
    %v1511 = vadd.f32 %v1501, %v1509
    %v1512 = vtanh.pop %v1511
    %1514 = vrot.lane.b32.xlu0 %v1512, 64
    %v1515 = vpop.permute.xlu0 %1514
    %v1517 = vmul.f32 %v1499, %v1515
    %v1519 = vrot.slane %v185, 4
    %v1522 = vrot.slane %v268, 4
    %v1524 = vsel %vm295, %v1519, %v1522
    %1526 = vrot.lane.b32.xlu0 %v1517, 32
    %v1527 = vpop.permute.xlu0 %1526
    %v1528 = vsel %vm90, %v1527, 0
    %1530 = vmatprep.subr.mxu0 0.0
    %1531 = vmatpush1.msra.mxu0 %v286
    %1532 = vmatprep.subr.mxu0 0.0
    %1533 = vmatpush1.msra.mxu0 %v287
    %1534 = vmatprep.subr.mxu0 0.0
    %1535 = vmatpush1.msra.mxu0 %v288
    %1536 = vmatprep.subr.mxu0 0.0
    %1537 = vmatpush1.msra.mxu0 %v289
    %1538 = vmatprep.subr.mxu0 0.0
    %1539 = vmatpush1.msra.mxu0 0.0
    %1540 = vmatprep.subr.mxu0 0.0
    %1541 = vmatpush1.msra.mxu0 0.0
    %1542 = vmatprep.subr.mxu0 0.0
    %1543 = vmatpush1.msra.mxu0 0.0
    %1544 = vmatprep.subr.mxu0 0.0
    %1545 = vmatpush1.msra.mxu0 0.0
    %1546 = vmatprep.subr.mxu0 0.0
    %1547 = vmatpush1.msra.mxu0 0.0
    %1548 = vmatprep.subr.mxu0 0.0
    %1549 = vmatpush1.msra.mxu0 0.0
    %1550 = vmatprep.subr.mxu0 0.0
    %1551 = vmatpush1.msra.mxu0 0.0
    %1552 = vmatprep.subr.mxu0 0.0
    %1553 = vmatpush1.msra.mxu0 0.0
    %1554 = vmatprep.subr.mxu0 0.0
    %1555 = vmatpush1.msra.mxu0 0.0
    %1556 = vmatprep.subr.mxu0 0.0
    %1557 = vmatpush1.msra.mxu0 0.0
    %1558 = vmatprep.subr.mxu0 0.0
    %1559 = vmatpush1.msra.mxu0 0.0
    %1560 = vmatprep.subr.mxu0 0.0
    %1561 = vmatpush1.msra.mxu0 0.0
    %1562 = vmatprep.subr.mxu0 0.0
    %1563 = vmatpush1.msra.mxu0 0.0
    %1564 = vmatprep.subr.mxu0 0.0
    %1565 = vmatpush1.msra.mxu0 0.0
    %1566 = vmatprep.subr.mxu0 0.0
    %1567 = vmatpush1.msra.mxu0 0.0
    %1568 = vmatprep.subr.mxu0 0.0
    %1569 = vmatpush1.msra.mxu0 0.0
    %1570 = vmatprep.subr.mxu0 0.0
    %1571 = vmatpush1.msra.mxu0 0.0
    %1572 = vmatprep.subr.mxu0 0.0
    %1573 = vmatpush1.msra.mxu0 0.0
    %1574 = vmatprep.subr.mxu0 0.0
    %1575 = vmatpush1.msra.mxu0 0.0
    %1576 = vmatprep.subr.mxu0 0.0
    %1577 = vmatpush1.msra.mxu0 0.0
    %1578 = vmatprep.subr.mxu0 0.0
    %1579 = vmatpush1.msra.mxu0 0.0
    %1580 = vmatprep.subr.mxu0 0.0
    %1581 = vmatpush1.msra.mxu0 0.0
    %1582 = vmatprep.subr.mxu0 0.0
    %1583 = vmatpush1.msra.mxu0 0.0
    %1584 = vmatprep.subr.mxu0 0.0
    %1585 = vmatpush1.msra.mxu0 0.0
    %1586 = vmatprep.subr.mxu0 0.0
    %1587 = vmatpush1.msra.mxu0 0.0
    %1588 = vmatprep.subr.mxu0 0.0
    %1589 = vmatpush1.msra.mxu0 0.0
    %1590 = vmatprep.subr.mxu0 0.0
    %1591 = vmatpush1.msra.mxu0 0.0
    %1592 = vmatprep.subr.mxu0 0.0
    %1593 = vmatpush1.msra.mxu0 0.0
    %1594 = vmatprep.mubr.f32.mxu0 0.0
    %1595 = vmatmul.mubr.f32.gmra.mrb[0].mxu0 %v1528
    %v1596 = vpop.f32.mrb[0].mxu0
    %v1597 = vadd.f32 0.0, %v1596
    %v1598 = vpop.f32.mrb[0].mxu0
    %1599 = vdwg.mxu0
    %1600 = vmatprep.subr.mxu0 0.0
    %1601 = vmatpush1.msra.mxu0 %v291
    %1602 = vmatprep.subr.mxu0 0.0
    %1603 = vmatpush1.msra.mxu0 %v292
    %1604 = vmatprep.subr.mxu0 0.0
    %1605 = vmatpush1.msra.mxu0 %v293
    %1606 = vmatprep.subr.mxu0 0.0
    %1607 = vmatpush1.msra.mxu0 %v294
    %1608 = vmatprep.subr.mxu0 0.0
    %1609 = vmatpush1.msra.mxu0 0.0
    %1610 = vmatprep.subr.mxu0 0.0
    %1611 = vmatpush1.msra.mxu0 0.0
    %1612 = vmatprep.subr.mxu0 0.0
    %1613 = vmatpush1.msra.mxu0 0.0
    %1614 = vmatprep.subr.mxu0 0.0
    %1615 = vmatpush1.msra.mxu0 0.0
    %1616 = vmatprep.subr.mxu0 0.0
    %1617 = vmatpush1.msra.mxu0 0.0
    %1618 = vmatprep.subr.mxu0 0.0
    %1619 = vmatpush1.msra.mxu0 0.0
    %1620 = vmatprep.subr.mxu0 0.0
    %1621 = vmatpush1.msra.mxu0 0.0
    %1622 = vmatprep.subr.mxu0 0.0
    %1623 = vmatpush1.msra.mxu0 0.0
    %1624 = vmatprep.subr.mxu0 0.0
    %1625 = vmatpush1.msra.mxu0 0.0
    %1626 = vmatprep.subr.mxu0 0.0
    %1627 = vmatpush1.msra.mxu0 0.0
    %1628 = vmatprep.subr.mxu0 0.0
    %1629 = vmatpush1.msra.mxu0 0.0
    %1630 = vmatprep.subr.mxu0 0.0
    %1631 = vmatpush1.msra.mxu0 0.0
    %1632 = vmatprep.subr.mxu0 0.0
    %1633 = vmatpush1.msra.mxu0 0.0
    %1634 = vmatprep.subr.mxu0 0.0
    %1635 = vmatpush1.msra.mxu0 0.0
    %1636 = vmatprep.subr.mxu0 0.0
    %1637 = vmatpush1.msra.mxu0 0.0
    %1638 = vmatprep.subr.mxu0 0.0
    %1639 = vmatpush1.msra.mxu0 0.0
    %1640 = vmatprep.subr.mxu0 0.0
    %1641 = vmatpush1.msra.mxu0 0.0
    %1642 = vmatprep.subr.mxu0 0.0
    %1643 = vmatpush1.msra.mxu0 0.0
    %1644 = vmatprep.subr.mxu0 0.0
    %1645 = vmatpush1.msra.mxu0 0.0
    %1646 = vmatprep.subr.mxu0 0.0
    %1647 = vmatpush1.msra.mxu0 0.0
    %1648 = vmatprep.subr.mxu0 0.0
    %1649 = vmatpush1.msra.mxu0 0.0
    %1650 = vmatprep.subr.mxu0 0.0
    %1651 = vmatpush1.msra.mxu0 0.0
    %1652 = vmatprep.subr.mxu0 0.0
    %1653 = vmatpush1.msra.mxu0 0.0
    %1654 = vmatprep.subr.mxu0 0.0
    %1655 = vmatpush1.msra.mxu0 0.0
    %1656 = vmatprep.subr.mxu0 0.0
    %1657 = vmatpush1.msra.mxu0 0.0
    %1658 = vmatprep.subr.mxu0 0.0
    %1659 = vmatpush1.msra.mxu0 0.0
    %1660 = vmatprep.subr.mxu0 0.0
    %1661 = vmatpush1.msra.mxu0 0.0
    %1662 = vmatprep.subr.mxu0 0.0
    %1663 = vmatpush1.msra.mxu0 0.0
    %1664 = vmatprep.mubr.f32.mxu0 0.0
    %1665 = vmatmul.mubr.f32.gmra.mrb[0].mxu0 %v1528
    %v1666 = vpop.f32.mrb[0].mxu0
    %v1667 = vadd.f32 0.0, %v1666
    %v1668 = vpop.f32.mrb[0].mxu0
    %1669 = vdwg.mxu0
    %v1670 = vsel %vm441, %v1597, %v1667
    %v1671 = vadd.f32 %v1524, %v1670
    %v1672 = vxor.u32 %v1671, 2147483648
    %v1673 = vmul.f32 %v1672, 1.442695
    %v1674 = vpow.pop %v1673
    %v1675 = vadd.f32 %v1674, 1.0
    %v1676 = vrcp.pop %v1675
    %v1677 = vmul.f32 1.0, %v1676
    %v1678 = vtanh.pop %v1671
    %v1679 = vmul.f32 %v1677, %v1511
    %1681 = vrot.lane.b32.xlu0 %v1678, 64
    %v1682 = vpop.permute.xlu0 %1681
    %v1684 = vmul.f32 %v1677, %v1682
    %1686 = vrot.lane.b32.xlu0 %v1684, 32
    %v1687 = vpop.permute.xlu0 %1686
    %v1689 = vadd.f32 %v1679, %v1687
    %v1690 = vtanh.pop %v1689
    %1692 = vrot.lane.b32.xlu0 %v1690, 64
    %v1693 = vpop.permute.xlu0 %1692
    %v1695 = vmul.f32 %v1677, %v1693
    %v1697 = vrot.slane %v1695, 2
    %v1699 = vrot.slane %v1695, 6
    %vm1701 = vcmask 1041408
    %v1702 = vsel %vm1701, %v1697, %v1699
    %v1703 = vsel %vm295, %v1702, %v1697
    %vm1704 = vcmask 1045504
    %v1705 = vsel %vm1704, %v1703, %v1699
    %v1707 = vrot.slane %v1689, 2
    %v1709 = vrot.slane %v1689, 6
    %v1711 = vsel %vm1701, %v1707, %v1709
    %v1712 = vsel %vm295, %v1711, %v1707
    %v1713 = vsel %vm1704, %v1712, %v1709
    %v1714 = vld [vmem:[%s7] sm:$0xff]
    %v1715 = vld [vmem:[%s7 + $0x8] sm:$0xff]
    %v1716 = vld [vmem:[%s7 + $0x10] sm:$0xff]
    %v1717 = vld [vmem:[%s7 + $0x18] sm:$0xff]
    %v1718 = vld [vmem:[%s9] sm:$0x1]
    %v1720 = vlaneseq
    %v1721 = vshrl.u32 %v1720, 7
    %v1722 = vsub.s32 0, %v1721
    %v1723 = vrot.slane %v1718, %v1722
    %1725 = vmatprep.subr.mxu0 0.0
    %1726 = vmatpush1.msra.mxu0 %v1714
    %1727 = vmatprep.subr.mxu0 0.0
    %1728 = vmatpush1.msra.mxu0 %v1715
    %1729 = vmatprep.subr.mxu0 0.0
    %1730 = vmatpush1.msra.mxu0 %v1716
    %1731 = vmatprep.subr.mxu0 0.0
    %1732 = vmatpush1.msra.mxu0 %v1717
    %1733 = vmatprep.subr.mxu0 0.0
    %1734 = vmatpush1.msra.mxu0 0.0
    %1735 = vmatprep.subr.mxu0 0.0
    %1736 = vmatpush1.msra.mxu0 0.0
    %1737 = vmatprep.subr.mxu0 0.0
    %1738 = vmatpush1.msra.mxu0 0.0
    %1739 = vmatprep.subr.mxu0 0.0
    %1740 = vmatpush1.msra.mxu0 0.0
    %1741 = vmatprep.subr.mxu0 0.0
    %1742 = vmatpush1.msra.mxu0 0.0
    %1743 = vmatprep.subr.mxu0 0.0
    %1744 = vmatpush1.msra.mxu0 0.0
    %1745 = vmatprep.subr.mxu0 0.0
    %1746 = vmatpush1.msra.mxu0 0.0
    %1747 = vmatprep.subr.mxu0 0.0
    %1748 = vmatpush1.msra.mxu0 0.0
    %1749 = vmatprep.subr.mxu0 0.0
    %1750 = vmatpush1.msra.mxu0 0.0
    %1751 = vmatprep.subr.mxu0 0.0
    %1752 = vmatpush1.msra.mxu0 0.0
    %1753 = vmatprep.subr.mxu0 0.0
    %1754 = vmatpush1.msra.mxu0 0.0
    %1755 = vmatprep.subr.mxu0 0.0
    %1756 = vmatpush1.msra.mxu0 0.0
    %1757 = vmatprep.subr.mxu0 0.0
    %1758 = vmatpush1.msra.mxu0 0.0
    %1759 = vmatprep.subr.mxu0 0.0
    %1760 = vmatpush1.msra.mxu0 0.0
    %1761 = vmatprep.subr.mxu0 0.0
    %1762 = vmatpush1.msra.mxu0 0.0
    %1763 = vmatprep.subr.mxu0 0.0
    %1764 = vmatpush1.msra.mxu0 0.0
    %1765 = vmatprep.subr.mxu0 0.0
    %1766 = vmatpush1.msra.mxu0 0.0
    %1767 = vmatprep.subr.mxu0 0.0
    %1768 = vmatpush1.msra.mxu0 0.0
    %1769 = vmatprep.subr.mxu0 0.0
    %1770 = vmatpush1.msra.mxu0 0.0
    %1771 = vmatprep.subr.mxu0 0.0
    %1772 = vmatpush1.msra.mxu0 0.0
    %1773 = vmatprep.subr.mxu0 0.0
    %1774 = vmatpush1.msra.mxu0 0.0
    %1775 = vmatprep.subr.mxu0 0.0
    %1776 = vmatpush1.msra.mxu0 0.0
    %1777 = vmatprep.subr.mxu0 0.0
    %1778 = vmatpush1.msra.mxu0 0.0
    %1779 = vmatprep.subr.mxu0 0.0
    %1780 = vmatpush1.msra.mxu0 0.0
    %1781 = vmatprep.subr.mxu0 0.0
    %1782 = vmatpush1.msra.mxu0 0.0
    %1783 = vmatprep.subr.mxu0 0.0
    %1784 = vmatpush1.msra.mxu0 0.0
    %1785 = vmatprep.subr.mxu0 0.0
    %1786 = vmatpush1.msra.mxu0 0.0
    %1787 = vmatprep.subr.mxu0 0.0
    %1788 = vmatpush1.msra.mxu0 0.0
    %1789 = vmatprep.mubr.f32.mxu0 0.0
    %1790 = vmatmul.mubr.f32.gmra.mrb[0].mxu0 %v92
    %v1791 = vpop.f32.mrb[0].mxu0
    %v1792 = vadd.f32 %v1723, %v1791
    %v1793 = vpop.f32.mrb[0].mxu0
    %1794 = vmatprep.mubr.f32.mxu0 0.0
    %1795 = vmatmul.mubr.f32.gmra.mrb[0].mxu0 %v95
    %v1796 = vpop.f32.mrb[0].mxu0
    %v1797 = vadd.f32 %v1723, %v1796
    %v1798 = vpop.f32.mrb[0].mxu0
    %1799 = vmatprep.mubr.f32.mxu0 0.0
    %1800 = vmatmul.mubr.f32.gmra.mrb[0].mxu0 %v98
    %v1801 = vpop.f32.mrb[0].mxu0
    %v1802 = vadd.f32 %v1723, %v1801
    %v1803 = vpop.f32.mrb[0].mxu0
    %1804 = vmatprep.mubr.f32.mxu0 0.0
    %1805 = vmatmul.mubr.f32.gmra.mrb[0].mxu0 %v101
    %v1806 = vpop.f32.mrb[0].mxu0
    %v1807 = vadd.f32 %v1723, %v1806
    %v1808 = vpop.f32.mrb[0].mxu0
    %1809 = vdwg.mxu0
    %s1810 = scalar_lea.vmem %s7, 32
    %v1811 = vld [vmem:[%s1810] sm:$0xff]
    %v1812 = vld [vmem:[%s1810 + $0x8] sm:$0xff]
    %v1813 = vld [vmem:[%s1810 + $0x10] sm:$0xff]
    %v1814 = vld [vmem:[%s1810 + $0x18] sm:$0xff]
    %s1815 = scalar_lea.vmem %s9, 1
    %v1816 = vld [vmem:[%s1815] sm:$0x1]
    %v1818 = vlaneseq
    %v1819 = vshrl.u32 %v1818, 7
    %v1820 = vsub.s32 0, %v1819
    %v1821 = vrot.slane %v1816, %v1820
    %1823 = vmatprep.subr.mxu0 0.0
    %1824 = vmatpush1.msra.mxu0 %v1811
    %1825 = vmatprep.subr.mxu0 0.0
    %1826 = vmatpush1.msra.mxu0 %v1812
    %1827 = vmatprep.subr.mxu0 0.0
    %1828 = vmatpush1.msra.mxu0 %v1813
    %1829 = vmatprep.subr.mxu0 0.0
    %1830 = vmatpush1.msra.mxu0 %v1814
    %1831 = vmatprep.subr.mxu0 0.0
    %1832 = vmatpush1.msra.mxu0 0.0
    %1833 = vmatprep.subr.mxu0 0.0
    %1834 = vmatpush1.msra.mxu0 0.0
    %1835 = vmatprep.subr.mxu0 0.0
    %1836 = vmatpush1.msra.mxu0 0.0
    %1837 = vmatprep.subr.mxu0 0.0
    %1838 = vmatpush1.msra.mxu0 0.0
    %1839 = vmatprep.subr.mxu0 0.0
    %1840 = vmatpush1.msra.mxu0 0.0
    %1841 = vmatprep.subr.mxu0 0.0
    %1842 = vmatpush1.msra.mxu0 0.0
    %1843 = vmatprep.subr.mxu0 0.0
    %1844 = vmatpush1.msra.mxu0 0.0
    %1845 = vmatprep.subr.mxu0 0.0
    %1846 = vmatpush1.msra.mxu0 0.0
    %1847 = vmatprep.subr.mxu0 0.0
    %1848 = vmatpush1.msra.mxu0 0.0
    %1849 = vmatprep.subr.mxu0 0.0
    %1850 = vmatpush1.msra.mxu0 0.0
    %1851 = vmatprep.subr.mxu0 0.0
    %1852 = vmatpush1.msra.mxu0 0.0
    %1853 = vmatprep.subr.mxu0 0.0
    %1854 = vmatpush1.msra.mxu0 0.0
    %1855 = vmatprep.subr.mxu0 0.0
    %1856 = vmatpush1.msra.mxu0 0.0
    %1857 = vmatprep.subr.mxu0 0.0
    %1858 = vmatpush1.msra.mxu0 0.0
    %1859 = vmatprep.subr.mxu0 0.0
    %1860 = vmatpush1.msra.mxu0 0.0
    %1861 = vmatprep.subr.mxu0 0.0
    %1862 = vmatpush1.msra.mxu0 0.0
    %1863 = vmatprep.subr.mxu0 0.0
    %1864 = vmatpush1.msra.mxu0 0.0
    %1865 = vmatprep.subr.mxu0 0.0
    %1866 = vmatpush1.msra.mxu0 0.0
    %1867 = vmatprep.subr.mxu0 0.0
    %1868 = vmatpush1.msra.mxu0 0.0
    %1869 = vmatprep.subr.mxu0 0.0
    %1870 = vmatpush1.msra.mxu0 0.0
    %1871 = vmatprep.subr.mxu0 0.0
    %1872 = vmatpush1.msra.mxu0 0.0
    %1873 = vmatprep.subr.mxu0 0.0
    %1874 = vmatpush1.msra.mxu0 0.0
    %1875 = vmatprep.subr.mxu0 0.0
    %1876 = vmatpush1.msra.mxu0 0.0
    %1877 = vmatprep.subr.mxu0 0.0
    %1878 = vmatpush1.msra.mxu0 0.0
    %1879 = vmatprep.subr.mxu0 0.0
    %1880 = vmatpush1.msra.mxu0 0.0
    %1881 = vmatprep.subr.mxu0 0.0
    %1882 = vmatpush1.msra.mxu0 0.0
    %1883 = vmatprep.subr.mxu0 0.0
    %1884 = vmatpush1.msra.mxu0 0.0
    %1885 = vmatprep.subr.mxu0 0.0
    %1886 = vmatpush1.msra.mxu0 0.0
    %1887 = vmatprep.mubr.f32.mxu0 0.0
    %1888 = vmatmul.mubr.f32.gmra.mrb[0].mxu0 %v92
    %v1889 = vpop.f32.mrb[0].mxu0
    %v1890 = vadd.f32 %v1821, %v1889
    %v1891 = vpop.f32.mrb[0].mxu0
    %1892 = vmatprep.mubr.f32.mxu0 0.0
    %1893 = vmatmul.mubr.f32.gmra.mrb[0].mxu0 %v95
    %v1894 = vpop.f32.mrb[0].mxu0
    %v1895 = vadd.f32 %v1821, %v1894
    %v1896 = vpop.f32.mrb[0].mxu0
    %1897 = vmatprep.mubr.f32.mxu0 0.0
    %1898 = vmatmul.mubr.f32.gmra.mrb[0].mxu0 %v98
    %v1899 = vpop.f32.mrb[0].mxu0
    %v1900 = vadd.f32 %v1821, %v1899
    %v1901 = vpop.f32.mrb[0].mxu0
    %1902 = vmatprep.mubr.f32.mxu0 0.0
    %1903 = vmatmul.mubr.f32.gmra.mrb[0].mxu0 %v101
    %v1904 = vpop.f32.mrb[0].mxu0
    %v1905 = vadd.f32 %v1821, %v1904
    %v1906 = vpop.f32.mrb[0].mxu0
    %1907 = vdwg.mxu0
    %v1908 = vld [vmem:[%s8] sm:$0xff]
    %v1909 = vld [vmem:[%s8 + $0x8] sm:$0xff]
    %v1910 = vld [vmem:[%s8 + $0x10] sm:$0xff]
    %v1911 = vld [vmem:[%s8 + $0x18] sm:$0xff]
    %s1912 = scalar_lea.vmem %s8, 32
    %v1913 = vld [vmem:[%s1912] sm:$0xff]
    %v1914 = vld [vmem:[%s1912 + $0x8] sm:$0xff]
    %v1915 = vld [vmem:[%s1912 + $0x10] sm:$0xff]
    %v1916 = vld [vmem:[%s1912 + $0x18] sm:$0xff]
    %v1917 = vsel %vm295, %v1792, %v1905
    %1919 = vrot.lane.b32.xlu0 %v1705, 32
    %v1920 = vpop.permute.xlu0 %1919
    %v1921 = vsel %vm90, %v1920, 0
    %1923 = vmatprep.subr.mxu0 0.0
    %1924 = vmatpush1.msra.mxu0 %v1908
    %1925 = vmatprep.subr.mxu0 0.0
    %1926 = vmatpush1.msra.mxu0 %v1909
    %1927 = vmatprep.subr.mxu0 0.0
    %1928 = vmatpush1.msra.mxu0 %v1910
    %1929 = vmatprep.subr.mxu0 0.0
    %1930 = vmatpush1.msra.mxu0 %v1911
    %1931 = vmatprep.subr.mxu0 0.0
    %1932 = vmatpush1.msra.mxu0 0.0
    %1933 = vmatprep.subr.mxu0 0.0
    %1934 = vmatpush1.msra.mxu0 0.0
    %1935 = vmatprep.subr.mxu0 0.0
    %1936 = vmatpush1.msra.mxu0 0.0
    %1937 = vmatprep.subr.mxu0 0.0
    %1938 = vmatpush1.msra.mxu0 0.0
    %1939 = vmatprep.subr.mxu0 0.0
    %1940 = vmatpush1.msra.mxu0 0.0
    %1941 = vmatprep.subr.mxu0 0.0
    %1942 = vmatpush1.msra.mxu0 0.0
    %1943 = vmatprep.subr.mxu0 0.0
    %1944 = vmatpush1.msra.mxu0 0.0
    %1945 = vmatprep.subr.mxu0 0.0
    %1946 = vmatpush1.msra.mxu0 0.0
    %1947 = vmatprep.subr.mxu0 0.0
    %1948 = vmatpush1.msra.mxu0 0.0
    %1949 = vmatprep.subr.mxu0 0.0
    %1950 = vmatpush1.msra.mxu0 0.0
    %1951 = vmatprep.subr.mxu0 0.0
    %1952 = vmatpush1.msra.mxu0 0.0
    %1953 = vmatprep.subr.mxu0 0.0
    %1954 = vmatpush1.msra.mxu0 0.0
    %1955 = vmatprep.subr.mxu0 0.0
    %1956 = vmatpush1.msra.mxu0 0.0
    %1957 = vmatprep.subr.mxu0 0.0
    %1958 = vmatpush1.msra.mxu0 0.0
    %1959 = vmatprep.subr.mxu0 0.0
    %1960 = vmatpush1.msra.mxu0 0.0
    %1961 = vmatprep.subr.mxu0 0.0
    %1962 = vmatpush1.msra.mxu0 0.0
    %1963 = vmatprep.subr.mxu0 0.0
    %1964 = vmatpush1.msra.mxu0 0.0
    %1965 = vmatprep.subr.mxu0 0.0
    %1966 = vmatpush1.msra.mxu0 0.0
    %1967 = vmatprep.subr.mxu0 0.0
    %1968 = vmatpush1.msra.mxu0 0.0
    %1969 = vmatprep.subr.mxu0 0.0
    %1970 = vmatpush1.msra.mxu0 0.0
    %1971 = vmatprep.subr.mxu0 0.0
    %1972 = vmatpush1.msra.mxu0 0.0
    %1973 = vmatprep.subr.mxu0 0.0
    %1974 = vmatpush1.msra.mxu0 0.0
    %1975 = vmatprep.subr.mxu0 0.0
    %1976 = vmatpush1.msra.mxu0 0.0
    %1977 = vmatprep.subr.mxu0 0.0
    %1978 = vmatpush1.msra.mxu0 0.0
    %1979 = vmatprep.subr.mxu0 0.0
    %1980 = vmatpush1.msra.mxu0 0.0
    %1981 = vmatprep.subr.mxu0 0.0
    %1982 = vmatpush1.msra.mxu0 0.0
    %1983 = vmatprep.subr.mxu0 0.0
    %1984 = vmatpush1.msra.mxu0 0.0
    %1985 = vmatprep.subr.mxu0 0.0
    %1986 = vmatpush1.msra.mxu0 0.0
    %1987 = vmatprep.mubr.f32.mxu0 0.0
    %1988 = vmatmul.mubr.f32.gmra.mrb[0].mxu0 %v1921
    %v1989 = vpop.f32.mrb[0].mxu0
    %v1990 = vadd.f32 0.0, %v1989
    %v1991 = vpop.f32.mrb[0].mxu0
    %1992 = vdwg.mxu0
    %1993 = vmatprep.subr.mxu0 0.0
    %1994 = vmatpush1.msra.mxu0 %v1913
    %1995 = vmatprep.subr.mxu0 0.0
    %1996 = vmatpush1.msra.mxu0 %v1914
    %1997 = vmatprep.subr.mxu0 0.0
    %1998 = vmatpush1.msra.mxu0 %v1915
    %1999 = vmatprep.subr.mxu0 0.0
    %2000 = vmatpush1.msra.mxu0 %v1916
    %2001 = vmatprep.subr.mxu0 0.0
    %2002 = vmatpush1.msra.mxu0 0.0
    %2003 = vmatprep.subr.mxu0 0.0
    %2004 = vmatpush1.msra.mxu0 0.0
    %2005 = vmatprep.subr.mxu0 0.0
    %2006 = vmatpush1.msra.mxu0 0.0
    %2007 = vmatprep.subr.mxu0 0.0
    %2008 = vmatpush1.msra.mxu0 0.0
    %2009 = vmatprep.subr.mxu0 0.0
    %2010 = vmatpush1.msra.mxu0 0.0
    %2011 = vmatprep.subr.mxu0 0.0
    %2012 = vmatpush1.msra.mxu0 0.0
    %2013 = vmatprep.subr.mxu0 0.0
    %2014 = vmatpush1.msra.mxu0 0.0
    %2015 = vmatprep.subr.mxu0 0.0
    %2016 = vmatpush1.msra.mxu0 0.0
    %2017 = vmatprep.subr.mxu0 0.0
    %2018 = vmatpush1.msra.mxu0 0.0
    %2019 = vmatprep.subr.mxu0 0.0
    %2020 = vmatpush1.msra.mxu0 0.0
    %2021 = vmatprep.subr.mxu0 0.0
    %2022 = vmatpush1.msra.mxu0 0.0
    %2023 = vmatprep.subr.mxu0 0.0
    %2024 = vmatpush1.msra.mxu0 0.0
    %2025 = vmatprep.subr.mxu0 0.0
    %2026 = vmatpush1.msra.mxu0 0.0
    %2027 = vmatprep.subr.mxu0 0.0
    %2028 = vmatpush1.msra.mxu0 0.0
    %2029 = vmatprep.subr.mxu0 0.0
    %2030 = vmatpush1.msra.mxu0 0.0
    %2031 = vmatprep.subr.mxu0 0.0
    %2032 = vmatpush1.msra.mxu0 0.0
    %2033 = vmatprep.subr.mxu0 0.0
    %2034 = vmatpush1.msra.mxu0 0.0
    %2035 = vmatprep.subr.mxu0 0.0
    %2036 = vmatpush1.msra.mxu0 0.0
    %2037 = vmatprep.subr.mxu0 0.0
    %2038 = vmatpush1.msra.mxu0 0.0
    %2039 = vmatprep.subr.mxu0 0.0
    %2040 = vmatpush1.msra.mxu0 0.0
    %2041 = vmatprep.subr.mxu0 0.0
    %2042 = vmatpush1.msra.mxu0 0.0
    %2043 = vmatprep.subr.mxu0 0.0
    %2044 = vmatpush1.msra.mxu0 0.0
    %2045 = vmatprep.subr.mxu0 0.0
    %2046 = vmatpush1.msra.mxu0 0.0
    %2047 = vmatprep.subr.mxu0 0.0
    %2048 = vmatpush1.msra.mxu0 0.0
    %2049 = vmatprep.subr.mxu0 0.0
    %2050 = vmatpush1.msra.mxu0 0.0
    %2051 = vmatprep.subr.mxu0 0.0
    %2052 = vmatpush1.msra.mxu0 0.0
    %2053 = vmatprep.subr.mxu0 0.0
    %2054 = vmatpush1.msra.mxu0 0.0
    %2055 = vmatprep.subr.mxu0 0.0
    %2056 = vmatpush1.msra.mxu0 0.0
    %2057 = vmatprep.mubr.f32.mxu0 0.0
    %2058 = vmatmul.mubr.f32.gmra.mrb[0].mxu0 %v1921
    %v2059 = vpop.f32.mrb[0].mxu0
    %v2060 = vadd.f32 0.0, %v2059
    %v2061 = vpop.f32.mrb[0].mxu0
    %2062 = vdwg.mxu0
    %v2063 = vsel %vm441, %v1990, %v2060
    %v2064 = vadd.f32 %v1917, %v2063
    %v2065 = vxor.u32 %v2064, 2147483648
    %v2066 = vmul.f32 %v2065, 1.442695
    %v2067 = vpow.pop %v2066
    %v2068 = vadd.f32 %v2067, 1.0
    %v2069 = vrcp.pop %v2068
    %v2070 = vmul.f32 1.0, %v2069
    %v2071 = vtanh.pop %v2064
    %v2072 = vmul.f32 %v2070, %v1713
    %2074 = vrot.lane.b32.xlu0 %v2071, 64
    %v2075 = vpop.permute.xlu0 %2074
    %v2077 = vmul.f32 %v2070, %v2075
    %2079 = vrot.lane.b32.xlu0 %v2077, 32
    %v2080 = vpop.permute.xlu0 %2079
    %v2082 = vadd.f32 %v2072, %v2080
    %v2083 = vtanh.pop %v2082
    %2085 = vrot.lane.b32.xlu0 %v2083, 64
    %v2086 = vpop.permute.xlu0 %2085
    %v2088 = vmul.f32 %v2070, %v2086
    %2090 = vrot.lane.b32.xlu0 %v2088, 32
    %v2091 = vpop.permute.xlu0 %2090
    %vm2093 = vcmask 257024
    %2094 = vst.msk [vmem:[#allocation2] sm:$0xf] %vm2093, %v2091
    %2095 = vrot.lane.b32.xlu0 %v2088, 64
    %v2096 = vpop.permute.xlu0 %2095
    %s2098 = scalar_lea.vmem [#allocation2], 28
    %vm2099 = vcmask 523524
    %2100 = vst.msk [vmem:[%s2098 - $0x4] sm:$0xf0] %vm2099, %v2096
    %v2102 = vrot.slane %v1792, 4
    %v2105 = vrot.slane %v1905, 4
    %v2107 = vsel %vm295, %v2102, %v2105
    %v2108 = vsel %vm90, %v2091, 0
    %2110 = vmatprep.subr.mxu0 0.0
    %2111 = vmatpush1.msra.mxu0 %v1908
    %2112 = vmatprep.subr.mxu0 0.0
    %2113 = vmatpush1.msra.mxu0 %v1909
    %2114 = vmatprep.subr.mxu0 0.0
    %2115 = vmatpush1.msra.mxu0 %v1910
    %2116 = vmatprep.subr.mxu0 0.0
    %2117 = vmatpush1.msra.mxu0 %v1911
    %2118 = vmatprep.subr.mxu0 0.0
    %2119 = vmatpush1.msra.mxu0 0.0
    %2120 = vmatprep.subr.mxu0 0.0
    %2121 = vmatpush1.msra.mxu0 0.0
    %2122 = vmatprep.subr.mxu0 0.0
    %2123 = vmatpush1.msra.mxu0 0.0
    %2124 = vmatprep.subr.mxu0 0.0
    %2125 = vmatpush1.msra.mxu0 0.0
    %2126 = vmatprep.subr.mxu0 0.0
    %2127 = vmatpush1.msra.mxu0 0.0
    %2128 = vmatprep.subr.mxu0 0.0
    %2129 = vmatpush1.msra.mxu0 0.0
    %2130 = vmatprep.subr.mxu0 0.0
    %2131 = vmatpush1.msra.mxu0 0.0
    %2132 = vmatprep.subr.mxu0 0.0
    %2133 = vmatpush1.msra.mxu0 0.0
    %2134 = vmatprep.subr.mxu0 0.0
    %2135 = vmatpush1.msra.mxu0 0.0
    %2136 = vmatprep.subr.mxu0 0.0
    %2137 = vmatpush1.msra.mxu0 0.0
    %2138 = vmatprep.subr.mxu0 0.0
    %2139 = vmatpush1.msra.mxu0 0.0
    %2140 = vmatprep.subr.mxu0 0.0
    %2141 = vmatpush1.msra.mxu0 0.0
    %2142 = vmatprep.subr.mxu0 0.0
    %2143 = vmatpush1.msra.mxu0 0.0
    %2144 = vmatprep.subr.mxu0 0.0
    %2145 = vmatpush1.msra.mxu0 0.0
    %2146 = vmatprep.subr.mxu0 0.0
    %2147 = vmatpush1.msra.mxu0 0.0
    %2148 = vmatprep.subr.mxu0 0.0
    %2149 = vmatpush1.msra.mxu0 0.0
    %2150 = vmatprep.subr.mxu0 0.0
    %2151 = vmatpush1.msra.mxu0 0.0
    %2152 = vmatprep.subr.mxu0 0.0
    %2153 = vmatpush1.msra.mxu0 0.0
    %2154 = vmatprep.subr.mxu0 0.0
    %2155 = vmatpush1.msra.mxu0 0.0
    %2156 = vmatprep.subr.mxu0 0.0
    %2157 = vmatpush1.msra.mxu0 0.0
    %2158 = vmatprep.subr.mxu0 0.0
    %2159 = vmatpush1.msra.mxu0 0.0
    %2160 = vmatprep.subr.mxu0 0.0
    %2161 = vmatpush1.msra.mxu0 0.0
    %2162 = vmatprep.subr.mxu0 0.0
    %2163 = vmatpush1.msra.mxu0 0.0
    %2164 = vmatprep.subr.mxu0 0.0
    %2165 = vmatpush1.msra.mxu0 0.0
    %2166 = vmatprep.subr.mxu0 0.0
    %2167 = vmatpush1.msra.mxu0 0.0
    %2168 = vmatprep.subr.mxu0 0.0
    %2169 = vmatpush1.msra.mxu0 0.0
    %2170 = vmatprep.subr.mxu0 0.0
    %2171 = vmatpush1.msra.mxu0 0.0
    %2172 = vmatprep.subr.mxu0 0.0
    %2173 = vmatpush1.msra.mxu0 0.0
    %2174 = vmatprep.mubr.f32.mxu0 0.0
    %2175 = vmatmul.mubr.f32.gmra.mrb[0].mxu0 %v2108
    %v2176 = vpop.f32.mrb[0].mxu0
    %v2177 = vadd.f32 0.0, %v2176
    %v2178 = vpop.f32.mrb[0].mxu0
    %2179 = vdwg.mxu0
    %2180 = vmatprep.subr.mxu0 0.0
    %2181 = vmatpush1.msra.mxu0 %v1913
    %2182 = vmatprep.subr.mxu0 0.0
    %2183 = vmatpush1.msra.mxu0 %v1914
    %2184 = vmatprep.subr.mxu0 0.0
    %2185 = vmatpush1.msra.mxu0 %v1915
    %2186 = vmatprep.subr.mxu0 0.0
    %2187 = vmatpush1.msra.mxu0 %v1916
    %2188 = vmatprep.subr.mxu0 0.0
    %2189 = vmatpush1.msra.mxu0 0.0
    %2190 = vmatprep.subr.mxu0 0.0
    %2191 = vmatpush1.msra.mxu0 0.0
    %2192 = vmatprep.subr.mxu0 0.0
    %2193 = vmatpush1.msra.mxu0 0.0
    %2194 = vmatprep.subr.mxu0 0.0
    %2195 = vmatpush1.msra.mxu0 0.0
    %2196 = vmatprep.subr.mxu0 0.0
    %2197 = vmatpush1.msra.mxu0 0.0
    %2198 = vmatprep.subr.mxu0 0.0
    %2199 = vmatpush1.msra.mxu0 0.0
    %2200 = vmatprep.subr.mxu0 0.0
    %2201 = vmatpush1.msra.mxu0 0.0
    %2202 = vmatprep.subr.mxu0 0.0
    %2203 = vmatpush1.msra.mxu0 0.0
    %2204 = vmatprep.subr.mxu0 0.0
    %2205 = vmatpush1.msra.mxu0 0.0
    %2206 = vmatprep.subr.mxu0 0.0
    %2207 = vmatpush1.msra.mxu0 0.0
    %2208 = vmatprep.subr.mxu0 0.0
    %2209 = vmatpush1.msra.mxu0 0.0
    %2210 = vmatprep.subr.mxu0 0.0
    %2211 = vmatpush1.msra.mxu0 0.0
    %2212 = vmatprep.subr.mxu0 0.0
    %2213 = vmatpush1.msra.mxu0 0.0
    %2214 = vmatprep.subr.mxu0 0.0
    %2215 = vmatpush1.msra.mxu0 0.0
    %2216 = vmatprep.subr.mxu0 0.0
    %2217 = vmatpush1.msra.mxu0 0.0
    %2218 = vmatprep.subr.mxu0 0.0
    %2219 = vmatpush1.msra.mxu0 0.0
    %2220 = vmatprep.subr.mxu0 0.0
    %2221 = vmatpush1.msra.mxu0 0.0
    %2222 = vmatprep.subr.mxu0 0.0
    %2223 = vmatpush1.msra.mxu0 0.0
    %2224 = vmatprep.subr.mxu0 0.0
    %2225 = vmatpush1.msra.mxu0 0.0
    %2226 = vmatprep.subr.mxu0 0.0
    %2227 = vmatpush1.msra.mxu0 0.0
    %2228 = vmatprep.subr.mxu0 0.0
    %2229 = vmatpush1.msra.mxu0 0.0
    %2230 = vmatprep.subr.mxu0 0.0
    %2231 = vmatpush1.msra.mxu0 0.0
    %2232 = vmatprep.subr.mxu0 0.0
    %2233 = vmatpush1.msra.mxu0 0.0
    %2234 = vmatprep.subr.mxu0 0.0
    %2235 = vmatpush1.msra.mxu0 0.0
    %2236 = vmatprep.subr.mxu0 0.0
    %2237 = vmatpush1.msra.mxu0 0.0
    %2238 = vmatprep.subr.mxu0 0.0
    %2239 = vmatpush1.msra.mxu0 0.0
    %2240 = vmatprep.subr.mxu0 0.0
    %2241 = vmatpush1.msra.mxu0 0.0
    %2242 = vmatprep.subr.mxu0 0.0
    %2243 = vmatpush1.msra.mxu0 0.0
    %2244 = vmatprep.mubr.f32.mxu0 0.0
    %2245 = vmatmul.mubr.f32.gmra.mrb[0].mxu0 %v2108
    %v2246 = vpop.f32.mrb[0].mxu0
    %v2247 = vadd.f32 0.0, %v2246
    %v2248 = vpop.f32.mrb[0].mxu0
    %2249 = vdwg.mxu0
    %v2250 = vsel %vm441, %v2177, %v2247
    %v2251 = vadd.f32 %v2107, %v2250
    %v2252 = vxor.u32 %v2251, 2147483648
    %v2253 = vmul.f32 %v2252, 1.442695
    %v2254 = vpow.pop %v2253
    %v2255 = vadd.f32 %v2254, 1.0
    %v2256 = vrcp.pop %v2255
    %v2257 = vmul.f32 1.0, %v2256
    %v2258 = vtanh.pop %v2251
    %v2259 = vmul.f32 %v2257, %v2082
    %2261 = vrot.lane.b32.xlu0 %v2258, 64
    %v2262 = vpop.permute.xlu0 %2261
    %v2264 = vmul.f32 %v2257, %v2262
    %2266 = vrot.lane.b32.xlu0 %v2264, 32
    %v2267 = vpop.permute.xlu0 %2266
    %v2269 = vadd.f32 %v2259, %v2267
    %v2270 = vtanh.pop %v2269
    %2272 = vrot.lane.b32.xlu0 %v2270, 64
    %v2273 = vpop.permute.xlu0 %2272
    %v2275 = vmul.f32 %v2257, %v2273
    %2277 = vrot.lane.b32.xlu0 %v2275, 32
    %v2278 = vpop.permute.xlu0 %2277
    %s2280 = scalar_lea.vmem [#allocation2], 4
    %2281 = vst.msk [vmem:[%s2280] sm:$0xf] %vm2093, %v2278
    %2282 = vrot.lane.b32.xlu0 %v2275, 64
    %v2283 = vpop.permute.xlu0 %2282
    %s2285 = scalar_lea.vmem [#allocation2], 24
    %2286 = vst.msk [vmem:[%s2285 - $0x4] sm:$0xf0] %vm2099, %v2283
    %v2287 = vsel %vm295, %v1797, %v1900
    %v2288 = vsel %vm90, %v2278, 0
    %2290 = vmatprep.subr.mxu0 0.0
    %2291 = vmatpush1.msra.mxu0 %v1908
    %2292 = vmatprep.subr.mxu0 0.0
    %2293 = vmatpush1.msra.mxu0 %v1909
    %2294 = vmatprep.subr.mxu0 0.0
    %2295 = vmatpush1.msra.mxu0 %v1910
    %2296 = vmatprep.subr.mxu0 0.0
    %2297 = vmatpush1.msra.mxu0 %v1911
    %2298 = vmatprep.subr.mxu0 0.0
    %2299 = vmatpush1.msra.mxu0 0.0
    %2300 = vmatprep.subr.mxu0 0.0
    %2301 = vmatpush1.msra.mxu0 0.0
    %2302 = vmatprep.subr.mxu0 0.0
    %2303 = vmatpush1.msra.mxu0 0.0
    %2304 = vmatprep.subr.mxu0 0.0
    %2305 = vmatpush1.msra.mxu0 0.0
    %2306 = vmatprep.subr.mxu0 0.0
    %2307 = vmatpush1.msra.mxu0 0.0
    %2308 = vmatprep.subr.mxu0 0.0
    %2309 = vmatpush1.msra.mxu0 0.0
    %2310 = vmatprep.subr.mxu0 0.0
    %2311 = vmatpush1.msra.mxu0 0.0
    %2312 = vmatprep.subr.mxu0 0.0
    %2313 = vmatpush1.msra.mxu0 0.0
    %2314 = vmatprep.subr.mxu0 0.0
    %2315 = vmatpush1.msra.mxu0 0.0
    %2316 = vmatprep.subr.mxu0 0.0
    %2317 = vmatpush1.msra.mxu0 0.0
    %2318 = vmatprep.subr.mxu0 0.0
    %2319 = vmatpush1.msra.mxu0 0.0
    %2320 = vmatprep.subr.mxu0 0.0
    %2321 = vmatpush1.msra.mxu0 0.0
    %2322 = vmatprep.subr.mxu0 0.0
    %2323 = vmatpush1.msra.mxu0 0.0
    %2324 = vmatprep.subr.mxu0 0.0
    %2325 = vmatpush1.msra.mxu0 0.0
    %2326 = vmatprep.subr.mxu0 0.0
    %2327 = vmatpush1.msra.mxu0 0.0
    %2328 = vmatprep.subr.mxu0 0.0
    %2329 = vmatpush1.msra.mxu0 0.0
    %2330 = vmatprep.subr.mxu0 0.0
    %2331 = vmatpush1.msra.mxu0 0.0
    %2332 = vmatprep.subr.mxu0 0.0
    %2333 = vmatpush1.msra.mxu0 0.0
    %2334 = vmatprep.subr.mxu0 0.0
    %2335 = vmatpush1.msra.mxu0 0.0
    %2336 = vmatprep.subr.mxu0 0.0
    %2337 = vmatpush1.msra.mxu0 0.0
    %2338 = vmatprep.subr.mxu0 0.0
    %2339 = vmatpush1.msra.mxu0 0.0
    %2340 = vmatprep.subr.mxu0 0.0
    %2341 = vmatpush1.msra.mxu0 0.0
    %2342 = vmatprep.subr.mxu0 0.0
    %2343 = vmatpush1.msra.mxu0 0.0
    %2344 = vmatprep.subr.mxu0 0.0
    %2345 = vmatpush1.msra.mxu0 0.0
    %2346 = vmatprep.subr.mxu0 0.0
    %2347 = vmatpush1.msra.mxu0 0.0
    %2348 = vmatprep.subr.mxu0 0.0
    %2349 = vmatpush1.msra.mxu0 0.0
    %2350 = vmatprep.subr.mxu0 0.0
    %2351 = vmatpush1.msra.mxu0 0.0
    %2352 = vmatprep.subr.mxu0 0.0
    %2353 = vmatpush1.msra.mxu0 0.0
    %2354 = vmatprep.mubr.f32.mxu0 0.0
    %2355 = vmatmul.mubr.f32.gmra.mrb[0].mxu0 %v2288
    %v2356 = vpop.f32.mrb[0].mxu0
    %v2357 = vadd.f32 0.0, %v2356
    %v2358 = vpop.f32.mrb[0].mxu0
    %2359 = vdwg.mxu0
    %2360 = vmatprep.subr.mxu0 0.0
    %2361 = vmatpush1.msra.mxu0 %v1913
    %2362 = vmatprep.subr.mxu0 0.0
    %2363 = vmatpush1.msra.mxu0 %v1914
    %2364 = vmatprep.subr.mxu0 0.0
    %2365 = vmatpush1.msra.mxu0 %v1915
    %2366 = vmatprep.subr.mxu0 0.0
    %2367 = vmatpush1.msra.mxu0 %v1916
    %2368 = vmatprep.subr.mxu0 0.0
    %2369 = vmatpush1.msra.mxu0 0.0
    %2370 = vmatprep.subr.mxu0 0.0
    %2371 = vmatpush1.msra.mxu0 0.0
    %2372 = vmatprep.subr.mxu0 0.0
    %2373 = vmatpush1.msra.mxu0 0.0
    %2374 = vmatprep.subr.mxu0 0.0
    %2375 = vmatpush1.msra.mxu0 0.0
    %2376 = vmatprep.subr.mxu0 0.0
    %2377 = vmatpush1.msra.mxu0 0.0
    %2378 = vmatprep.subr.mxu0 0.0
    %2379 = vmatpush1.msra.mxu0 0.0
    %2380 = vmatprep.subr.mxu0 0.0
    %2381 = vmatpush1.msra.mxu0 0.0
    %2382 = vmatprep.subr.mxu0 0.0
    %2383 = vmatpush1.msra.mxu0 0.0
    %2384 = vmatprep.subr.mxu0 0.0
    %2385 = vmatpush1.msra.mxu0 0.0
    %2386 = vmatprep.subr.mxu0 0.0
    %2387 = vmatpush1.msra.mxu0 0.0
    %2388 = vmatprep.subr.mxu0 0.0
    %2389 = vmatpush1.msra.mxu0 0.0
    %2390 = vmatprep.subr.mxu0 0.0
    %2391 = vmatpush1.msra.mxu0 0.0
    %2392 = vmatprep.subr.mxu0 0.0
    %2393 = vmatpush1.msra.mxu0 0.0
    %2394 = vmatprep.subr.mxu0 0.0
    %2395 = vmatpush1.msra.mxu0 0.0
    %2396 = vmatprep.subr.mxu0 0.0
    %2397 = vmatpush1.msra.mxu0 0.0
    %2398 = vmatprep.subr.mxu0 0.0
    %2399 = vmatpush1.msra.mxu0 0.0
    %2400 = vmatprep.subr.mxu0 0.0
    %2401 = vmatpush1.msra.mxu0 0.0
    %2402 = vmatprep.subr.mxu0 0.0
    %2403 = vmatpush1.msra.mxu0 0.0
    %2404 = vmatprep.subr.mxu0 0.0
    %2405 = vmatpush1.msra.mxu0 0.0
    %2406 = vmatprep.subr.mxu0 0.0
    %2407 = vmatpush1.msra.mxu0 0.0
    %2408 = vmatprep.subr.mxu0 0.0
    %2409 = vmatpush1.msra.mxu0 0.0
    %2410 = vmatprep.subr.mxu0 0.0
    %2411 = vmatpush1.msra.mxu0 0.0
    %2412 = vmatprep.subr.mxu0 0.0
    %2413 = vmatpush1.msra.mxu0 0.0
    %2414 = vmatprep.subr.mxu0 0.0
    %2415 = vmatpush1.msra.mxu0 0.0
    %2416 = vmatprep.subr.mxu0 0.0
    %2417 = vmatpush1.msra.mxu0 0.0
    %2418 = vmatprep.subr.mxu0 0.0
    %2419 = vmatpush1.msra.mxu0 0.0
    %2420 = vmatprep.subr.mxu0 0.0
    %2421 = vmatpush1.msra.mxu0 0.0
    %2422 = vmatprep.subr.mxu0 0.0
    %2423 = vmatpush1.msra.mxu0 0.0
    %2424 = vmatprep.mubr.f32.mxu0 0.0
    %2425 = vmatmul.mubr.f32.gmra.mrb[0].mxu0 %v2288
    %v2426 = vpop.f32.mrb[0].mxu0
    %v2427 = vadd.f32 0.0, %v2426
    %v2428 = vpop.f32.mrb[0].mxu0
    %2429 = vdwg.mxu0
    %v2430 = vsel %vm441, %v2357, %v2427
    %v2431 = vadd.f32 %v2287, %v2430
    %v2432 = vxor.u32 %v2431, 2147483648
    %v2433 = vmul.f32 %v2432, 1.442695
    %v2434 = vpow.pop %v2433
    %v2435 = vadd.f32 %v2434, 1.0
    %v2436 = vrcp.pop %v2435
    %v2437 = vmul.f32 1.0, %v2436
    %v2438 = vtanh.pop %v2431
    %v2439 = vmul.f32 %v2437, %v2269
    %2441 = vrot.lane.b32.xlu0 %v2438, 64
    %v2442 = vpop.permute.xlu0 %2441
    %v2444 = vmul.f32 %v2437, %v2442
    %2446 = vrot.lane.b32.xlu0 %v2444, 32
    %v2447 = vpop.permute.xlu0 %2446
    %v2449 = vadd.f32 %v2439, %v2447
    %v2450 = vtanh.pop %v2449
    %2452 = vrot.lane.b32.xlu0 %v2450, 64
    %v2453 = vpop.permute.xlu0 %2452
    %v2455 = vmul.f32 %v2437, %v2453
    %2457 = vrot.lane.b32.xlu0 %v2455, 32
    %v2458 = vpop.permute.xlu0 %2457
    %s2460 = scalar_lea.vmem [#allocation2], 8
    %2461 = vst.msk [vmem:[%s2460] sm:$0xf] %vm2093, %v2458
    %2462 = vrot.lane.b32.xlu0 %v2455, 64
    %v2463 = vpop.permute.xlu0 %2462
    %s2465 = scalar_lea.vmem [#allocation2], 20
    %2466 = vst.msk [vmem:[%s2465 - $0x4] sm:$0xf0] %vm2099, %v2463
    %v2468 = vrot.slane %v1797, 4
    %v2471 = vrot.slane %v1900, 4
    %v2473 = vsel %vm295, %v2468, %v2471
    %v2474 = vsel %vm90, %v2458, 0
    %2476 = vmatprep.subr.mxu0 0.0
    %2477 = vmatpush1.msra.mxu0 %v1908
    %2478 = vmatprep.subr.mxu0 0.0
    %2479 = vmatpush1.msra.mxu0 %v1909
    %2480 = vmatprep.subr.mxu0 0.0
    %2481 = vmatpush1.msra.mxu0 %v1910
    %2482 = vmatprep.subr.mxu0 0.0
    %2483 = vmatpush1.msra.mxu0 %v1911
    %2484 = vmatprep.subr.mxu0 0.0
    %2485 = vmatpush1.msra.mxu0 0.0
    %2486 = vmatprep.subr.mxu0 0.0
    %2487 = vmatpush1.msra.mxu0 0.0
    %2488 = vmatprep.subr.mxu0 0.0
    %2489 = vmatpush1.msra.mxu0 0.0
    %2490 = vmatprep.subr.mxu0 0.0
    %2491 = vmatpush1.msra.mxu0 0.0
    %2492 = vmatprep.subr.mxu0 0.0
    %2493 = vmatpush1.msra.mxu0 0.0
    %2494 = vmatprep.subr.mxu0 0.0
    %2495 = vmatpush1.msra.mxu0 0.0
    %2496 = vmatprep.subr.mxu0 0.0
    %2497 = vmatpush1.msra.mxu0 0.0
    %2498 = vmatprep.subr.mxu0 0.0
    %2499 = vmatpush1.msra.mxu0 0.0
    %2500 = vmatprep.subr.mxu0 0.0
    %2501 = vmatpush1.msra.mxu0 0.0
    %2502 = vmatprep.subr.mxu0 0.0
    %2503 = vmatpush1.msra.mxu0 0.0
    %2504 = vmatprep.subr.mxu0 0.0
    %2505 = vmatpush1.msra.mxu0 0.0
    %2506 = vmatprep.subr.mxu0 0.0
    %2507 = vmatpush1.msra.mxu0 0.0
    %2508 = vmatprep.subr.mxu0 0.0
    %2509 = vmatpush1.msra.mxu0 0.0
    %2510 = vmatprep.subr.mxu0 0.0
    %2511 = vmatpush1.msra.mxu0 0.0
    %2512 = vmatprep.subr.mxu0 0.0
    %2513 = vmatpush1.msra.mxu0 0.0
    %2514 = vmatprep.subr.mxu0 0.0
    %2515 = vmatpush1.msra.mxu0 0.0
    %2516 = vmatprep.subr.mxu0 0.0
    %2517 = vmatpush1.msra.mxu0 0.0
    %2518 = vmatprep.subr.mxu0 0.0
    %2519 = vmatpush1.msra.mxu0 0.0
    %2520 = vmatprep.subr.mxu0 0.0
    %2521 = vmatpush1.msra.mxu0 0.0
    %2522 = vmatprep.subr.mxu0 0.0
    %2523 = vmatpush1.msra.mxu0 0.0
    %2524 = vmatprep.subr.mxu0 0.0
    %2525 = vmatpush1.msra.mxu0 0.0
    %2526 = vmatprep.subr.mxu0 0.0
    %2527 = vmatpush1.msra.mxu0 0.0
    %2528 = vmatprep.subr.mxu0 0.0
    %2529 = vmatpush1.msra.mxu0 0.0
    %2530 = vmatprep.subr.mxu0 0.0
    %2531 = vmatpush1.msra.mxu0 0.0
    %2532 = vmatprep.subr.mxu0 0.0
    %2533 = vmatpush1.msra.mxu0 0.0
    %2534 = vmatprep.subr.mxu0 0.0
    %2535 = vmatpush1.msra.mxu0 0.0
    %2536 = vmatprep.subr.mxu0 0.0
    %2537 = vmatpush1.msra.mxu0 0.0
    %2538 = vmatprep.subr.mxu0 0.0
    %2539 = vmatpush1.msra.mxu0 0.0
    %2540 = vmatprep.mubr.f32.mxu0 0.0
    %2541 = vmatmul.mubr.f32.gmra.mrb[0].mxu0 %v2474
    %v2542 = vpop.f32.mrb[0].mxu0
    %v2543 = vadd.f32 0.0, %v2542
    %v2544 = vpop.f32.mrb[0].mxu0
    %2545 = vdwg.mxu0
    %2546 = vmatprep.subr.mxu0 0.0
    %2547 = vmatpush1.msra.mxu0 %v1913
    %2548 = vmatprep.subr.mxu0 0.0
    %2549 = vmatpush1.msra.mxu0 %v1914
    %2550 = vmatprep.subr.mxu0 0.0
    %2551 = vmatpush1.msra.mxu0 %v1915
    %2552 = vmatprep.subr.mxu0 0.0
    %2553 = vmatpush1.msra.mxu0 %v1916
    %2554 = vmatprep.subr.mxu0 0.0
    %2555 = vmatpush1.msra.mxu0 0.0
    %2556 = vmatprep.subr.mxu0 0.0
    %2557 = vmatpush1.msra.mxu0 0.0
    %2558 = vmatprep.subr.mxu0 0.0
    %2559 = vmatpush1.msra.mxu0 0.0
    %2560 = vmatprep.subr.mxu0 0.0
    %2561 = vmatpush1.msra.mxu0 0.0
    %2562 = vmatprep.subr.mxu0 0.0
    %2563 = vmatpush1.msra.mxu0 0.0
    %2564 = vmatprep.subr.mxu0 0.0
    %2565 = vmatpush1.msra.mxu0 0.0
    %2566 = vmatprep.subr.mxu0 0.0
    %2567 = vmatpush1.msra.mxu0 0.0
    %2568 = vmatprep.subr.mxu0 0.0
    %2569 = vmatpush1.msra.mxu0 0.0
    %2570 = vmatprep.subr.mxu0 0.0
    %2571 = vmatpush1.msra.mxu0 0.0
    %2572 = vmatprep.subr.mxu0 0.0
    %2573 = vmatpush1.msra.mxu0 0.0
    %2574 = vmatprep.subr.mxu0 0.0
    %2575 = vmatpush1.msra.mxu0 0.0
    %2576 = vmatprep.subr.mxu0 0.0
    %2577 = vmatpush1.msra.mxu0 0.0
    %2578 = vmatprep.subr.mxu0 0.0
    %2579 = vmatpush1.msra.mxu0 0.0
    %2580 = vmatprep.subr.mxu0 0.0
    %2581 = vmatpush1.msra.mxu0 0.0
    %2582 = vmatprep.subr.mxu0 0.0
    %2583 = vmatpush1.msra.mxu0 0.0
    %2584 = vmatprep.subr.mxu0 0.0
    %2585 = vmatpush1.msra.mxu0 0.0
    %2586 = vmatprep.subr.mxu0 0.0
    %2587 = vmatpush1.msra.mxu0 0.0
    %2588 = vmatprep.subr.mxu0 0.0
    %2589 = vmatpush1.msra.mxu0 0.0
    %2590 = vmatprep.subr.mxu0 0.0
    %2591 = vmatpush1.msra.mxu0 0.0
    %2592 = vmatprep.subr.mxu0 0.0
    %2593 = vmatpush1.msra.mxu0 0.0
    %2594 = vmatprep.subr.mxu0 0.0
    %2595 = vmatpush1.msra.mxu0 0.0
    %2596 = vmatprep.subr.mxu0 0.0
    %2597 = vmatpush1.msra.mxu0 0.0
    %2598 = vmatprep.subr.mxu0 0.0
    %2599 = vmatpush1.msra.mxu0 0.0
    %2600 = vmatprep.subr.mxu0 0.0
    %2601 = vmatpush1.msra.mxu0 0.0
    %2602 = vmatprep.subr.mxu0 0.0
    %2603 = vmatpush1.msra.mxu0 0.0
    %2604 = vmatprep.subr.mxu0 0.0
    %2605 = vmatpush1.msra.mxu0 0.0
    %2606 = vmatprep.subr.mxu0 0.0
    %2607 = vmatpush1.msra.mxu0 0.0
    %2608 = vmatprep.subr.mxu0 0.0
    %2609 = vmatpush1.msra.mxu0 0.0
    %2610 = vmatprep.mubr.f32.mxu0 0.0
    %2611 = vmatmul.mubr.f32.gmra.mrb[0].mxu0 %v2474
    %v2612 = vpop.f32.mrb[0].mxu0
    %v2613 = vadd.f32 0.0, %v2612
    %v2614 = vpop.f32.mrb[0].mxu0
    %2615 = vdwg.mxu0
    %v2616 = vsel %vm441, %v2543, %v2613
    %v2617 = vadd.f32 %v2473, %v2616
    %v2618 = vxor.u32 %v2617, 2147483648
    %v2619 = vmul.f32 %v2618, 1.442695
    %v2620 = vpow.pop %v2619
    %v2621 = vadd.f32 %v2620, 1.0
    %v2622 = vrcp.pop %v2621
    %v2623 = vmul.f32 1.0, %v2622
    %v2624 = vtanh.pop %v2617
    %v2625 = vmul.f32 %v2623, %v2449
    %2627 = vrot.lane.b32.xlu0 %v2624, 64
    %v2628 = vpop.permute.xlu0 %2627
    %v2630 = vmul.f32 %v2623, %v2628
    %2632 = vrot.lane.b32.xlu0 %v2630, 32
    %v2633 = vpop.permute.xlu0 %2632
    %v2635 = vadd.f32 %v2625, %v2633
    %v2636 = vtanh.pop %v2635
    %2638 = vrot.lane.b32.xlu0 %v2636, 64
    %v2639 = vpop.permute.xlu0 %2638
    %v2641 = vmul.f32 %v2623, %v2639
    %2643 = vrot.lane.b32.xlu0 %v2641, 32
    %v2644 = vpop.permute.xlu0 %2643
    %s2646 = scalar_lea.vmem [#allocation2], 12
    %2647 = vst.msk [vmem:[%s2646] sm:$0xf] %vm2093, %v2644
    %2648 = vrot.lane.b32.xlu0 %v2641, 64
    %v2649 = vpop.permute.xlu0 %2648
    %s2651 = scalar_lea.vmem [#allocation2], 16
    %2652 = vst.msk [vmem:[%s2651 - $0x4] sm:$0xf0] %vm2099, %v2649
    %v2653 = vsel %vm295, %v1802, %v1895
    %v2654 = vsel %vm90, %v2644, 0
    %2656 = vmatprep.subr.mxu0 0.0
    %2657 = vmatpush1.msra.mxu0 %v1908
    %2658 = vmatprep.subr.mxu0 0.0
    %2659 = vmatpush1.msra.mxu0 %v1909
    %2660 = vmatprep.subr.mxu0 0.0
    %2661 = vmatpush1.msra.mxu0 %v1910
    %2662 = vmatprep.subr.mxu0 0.0
    %2663 = vmatpush1.msra.mxu0 %v1911
    %2664 = vmatprep.subr.mxu0 0.0
    %2665 = vmatpush1.msra.mxu0 0.0
    %2666 = vmatprep.subr.mxu0 0.0
    %2667 = vmatpush1.msra.mxu0 0.0
    %2668 = vmatprep.subr.mxu0 0.0
    %2669 = vmatpush1.msra.mxu0 0.0
    %2670 = vmatprep.subr.mxu0 0.0
    %2671 = vmatpush1.msra.mxu0 0.0
    %2672 = vmatprep.subr.mxu0 0.0
    %2673 = vmatpush1.msra.mxu0 0.0
    %2674 = vmatprep.subr.mxu0 0.0
    %2675 = vmatpush1.msra.mxu0 0.0
    %2676 = vmatprep.subr.mxu0 0.0
    %2677 = vmatpush1.msra.mxu0 0.0
    %2678 = vmatprep.subr.mxu0 0.0
    %2679 = vmatpush1.msra.mxu0 0.0
    %2680 = vmatprep.subr.mxu0 0.0
    %2681 = vmatpush1.msra.mxu0 0.0
    %2682 = vmatprep.subr.mxu0 0.0
    %2683 = vmatpush1.msra.mxu0 0.0
    %2684 = vmatprep.subr.mxu0 0.0
    %2685 = vmatpush1.msra.mxu0 0.0
    %2686 = vmatprep.subr.mxu0 0.0
    %2687 = vmatpush1.msra.mxu0 0.0
    %2688 = vmatprep.subr.mxu0 0.0
    %2689 = vmatpush1.msra.mxu0 0.0
    %2690 = vmatprep.subr.mxu0 0.0
    %2691 = vmatpush1.msra.mxu0 0.0
    %2692 = vmatprep.subr.mxu0 0.0
    %2693 = vmatpush1.msra.mxu0 0.0
    %2694 = vmatprep.subr.mxu0 0.0
    %2695 = vmatpush1.msra.mxu0 0.0
    %2696 = vmatprep.subr.mxu0 0.0
    %2697 = vmatpush1.msra.mxu0 0.0
    %2698 = vmatprep.subr.mxu0 0.0
    %2699 = vmatpush1.msra.mxu0 0.0
    %2700 = vmatprep.subr.mxu0 0.0
    %2701 = vmatpush1.msra.mxu0 0.0
    %2702 = vmatprep.subr.mxu0 0.0
    %2703 = vmatpush1.msra.mxu0 0.0
    %2704 = vmatprep.subr.mxu0 0.0
    %2705 = vmatpush1.msra.mxu0 0.0
    %2706 = vmatprep.subr.mxu0 0.0
    %2707 = vmatpush1.msra.mxu0 0.0
    %2708 = vmatprep.subr.mxu0 0.0
    %2709 = vmatpush1.msra.mxu0 0.0
    %2710 = vmatprep.subr.mxu0 0.0
    %2711 = vmatpush1.msra.mxu0 0.0
    %2712 = vmatprep.subr.mxu0 0.0
    %2713 = vmatpush1.msra.mxu0 0.0
    %2714 = vmatprep.subr.mxu0 0.0
    %2715 = vmatpush1.msra.mxu0 0.0
    %2716 = vmatprep.subr.mxu0 0.0
    %2717 = vmatpush1.msra.mxu0 0.0
    %2718 = vmatprep.subr.mxu0 0.0
    %2719 = vmatpush1.msra.mxu0 0.0
    %2720 = vmatprep.mubr.f32.mxu0 0.0
    %2721 = vmatmul.mubr.f32.gmra.mrb[0].mxu0 %v2654
    %v2722 = vpop.f32.mrb[0].mxu0
    %v2723 = vadd.f32 0.0, %v2722
    %v2724 = vpop.f32.mrb[0].mxu0
    %2725 = vdwg.mxu0
    %2726 = vmatprep.subr.mxu0 0.0
    %2727 = vmatpush1.msra.mxu0 %v1913
    %2728 = vmatprep.subr.mxu0 0.0
    %2729 = vmatpush1.msra.mxu0 %v1914
    %2730 = vmatprep.subr.mxu0 0.0
    %2731 = vmatpush1.msra.mxu0 %v1915
    %2732 = vmatprep.subr.mxu0 0.0
    %2733 = vmatpush1.msra.mxu0 %v1916
    %2734 = vmatprep.subr.mxu0 0.0
    %2735 = vmatpush1.msra.mxu0 0.0
    %2736 = vmatprep.subr.mxu0 0.0
    %2737 = vmatpush1.msra.mxu0 0.0
    %2738 = vmatprep.subr.mxu0 0.0
    %2739 = vmatpush1.msra.mxu0 0.0
    %2740 = vmatprep.subr.mxu0 0.0
    %2741 = vmatpush1.msra.mxu0 0.0
    %2742 = vmatprep.subr.mxu0 0.0
    %2743 = vmatpush1.msra.mxu0 0.0
    %2744 = vmatprep.subr.mxu0 0.0
    %2745 = vmatpush1.msra.mxu0 0.0
    %2746 = vmatprep.subr.mxu0 0.0
    %2747 = vmatpush1.msra.mxu0 0.0
    %2748 = vmatprep.subr.mxu0 0.0
    %2749 = vmatpush1.msra.mxu0 0.0
    %2750 = vmatprep.subr.mxu0 0.0
    %2751 = vmatpush1.msra.mxu0 0.0
    %2752 = vmatprep.subr.mxu0 0.0
    %2753 = vmatpush1.msra.mxu0 0.0
    %2754 = vmatprep.subr.mxu0 0.0
    %2755 = vmatpush1.msra.mxu0 0.0
    %2756 = vmatprep.subr.mxu0 0.0
    %2757 = vmatpush1.msra.mxu0 0.0
    %2758 = vmatprep.subr.mxu0 0.0
    %2759 = vmatpush1.msra.mxu0 0.0
    %2760 = vmatprep.subr.mxu0 0.0
    %2761 = vmatpush1.msra.mxu0 0.0
    %2762 = vmatprep.subr.mxu0 0.0
    %2763 = vmatpush1.msra.mxu0 0.0
    %2764 = vmatprep.subr.mxu0 0.0
    %2765 = vmatpush1.msra.mxu0 0.0
    %2766 = vmatprep.subr.mxu0 0.0
    %2767 = vmatpush1.msra.mxu0 0.0
    %2768 = vmatprep.subr.mxu0 0.0
    %2769 = vmatpush1.msra.mxu0 0.0
    %2770 = vmatprep.subr.mxu0 0.0
    %2771 = vmatpush1.msra.mxu0 0.0
    %2772 = vmatprep.subr.mxu0 0.0
    %2773 = vmatpush1.msra.mxu0 0.0
    %2774 = vmatprep.subr.mxu0 0.0
    %2775 = vmatpush1.msra.mxu0 0.0
    %2776 = vmatprep.subr.mxu0 0.0
    %2777 = vmatpush1.msra.mxu0 0.0
    %2778 = vmatprep.subr.mxu0 0.0
    %2779 = vmatpush1.msra.mxu0 0.0
    %2780 = vmatprep.subr.mxu0 0.0
    %2781 = vmatpush1.msra.mxu0 0.0
    %2782 = vmatprep.subr.mxu0 0.0
    %2783 = vmatpush1.msra.mxu0 0.0
    %2784 = vmatprep.subr.mxu0 0.0
    %2785 = vmatpush1.msra.mxu0 0.0
    %2786 = vmatprep.subr.mxu0 0.0
    %2787 = vmatpush1.msra.mxu0 0.0
    %2788 = vmatprep.subr.mxu0 0.0
    %2789 = vmatpush1.msra.mxu0 0.0
    %2790 = vmatprep.mubr.f32.mxu0 0.0
    %2791 = vmatmul.mubr.f32.gmra.mrb[0].mxu0 %v2654
    %v2792 = vpop.f32.mrb[0].mxu0
    %v2793 = vadd.f32 0.0, %v2792
    %v2794 = vpop.f32.mrb[0].mxu0
    %2795 = vdwg.mxu0
    %v2796 = vsel %vm441, %v2723, %v2793
    %v2797 = vadd.f32 %v2653, %v2796
    %v2798 = vxor.u32 %v2797, 2147483648
    %v2799 = vmul.f32 %v2798, 1.442695
    %v2800 = vpow.pop %v2799
    %v2801 = vadd.f32 %v2800, 1.0
    %v2802 = vrcp.pop %v2801
    %v2803 = vmul.f32 1.0, %v2802
    %v2804 = vtanh.pop %v2797
    %v2805 = vmul.f32 %v2803, %v2635
    %2807 = vrot.lane.b32.xlu0 %v2804, 64
    %v2808 = vpop.permute.xlu0 %2807
    %v2810 = vmul.f32 %v2803, %v2808
    %2812 = vrot.lane.b32.xlu0 %v2810, 32
    %v2813 = vpop.permute.xlu0 %2812
    %v2815 = vadd.f32 %v2805, %v2813
    %v2816 = vtanh.pop %v2815
    %2818 = vrot.lane.b32.xlu0 %v2816, 64
    %v2819 = vpop.permute.xlu0 %2818
    %v2821 = vmul.f32 %v2803, %v2819
    %2823 = vrot.lane.b32.xlu0 %v2821, 32
    %v2824 = vpop.permute.xlu0 %2823
    %2826 = vst.msk [vmem:[%s2651] sm:$0xf] %vm2093, %v2824
    %2827 = vrot.lane.b32.xlu0 %v2821, 64
    %v2828 = vpop.permute.xlu0 %2827
    %2830 = vst.msk [vmem:[%s2646 - $0x4] sm:$0xf0] %vm2099, %v2828
    %v2832 = vrot.slane %v1802, 4
    %v2835 = vrot.slane %v1895, 4
    %v2837 = vsel %vm295, %v2832, %v2835
    %v2838 = vsel %vm90, %v2824, 0
    %2840 = vmatprep.subr.mxu0 0.0
    %2841 = vmatpush1.msra.mxu0 %v1908
    %2842 = vmatprep.subr.mxu0 0.0
    %2843 = vmatpush1.msra.mxu0 %v1909
    %2844 = vmatprep.subr.mxu0 0.0
    %2845 = vmatpush1.msra.mxu0 %v1910
    %2846 = vmatprep.subr.mxu0 0.0
    %2847 = vmatpush1.msra.mxu0 %v1911
    %2848 = vmatprep.subr.mxu0 0.0
    %2849 = vmatpush1.msra.mxu0 0.0
    %2850 = vmatprep.subr.mxu0 0.0
    %2851 = vmatpush1.msra.mxu0 0.0
    %2852 = vmatprep.subr.mxu0 0.0
    %2853 = vmatpush1.msra.mxu0 0.0
    %2854 = vmatprep.subr.mxu0 0.0
    %2855 = vmatpush1.msra.mxu0 0.0
    %2856 = vmatprep.subr.mxu0 0.0
    %2857 = vmatpush1.msra.mxu0 0.0
    %2858 = vmatprep.subr.mxu0 0.0
    %2859 = vmatpush1.msra.mxu0 0.0
    %2860 = vmatprep.subr.mxu0 0.0
    %2861 = vmatpush1.msra.mxu0 0.0
    %2862 = vmatprep.subr.mxu0 0.0
    %2863 = vmatpush1.msra.mxu0 0.0
    %2864 = vmatprep.subr.mxu0 0.0
    %2865 = vmatpush1.msra.mxu0 0.0
    %2866 = vmatprep.subr.mxu0 0.0
    %2867 = vmatpush1.msra.mxu0 0.0
    %2868 = vmatprep.subr.mxu0 0.0
    %2869 = vmatpush1.msra.mxu0 0.0
    %2870 = vmatprep.subr.mxu0 0.0
    %2871 = vmatpush1.msra.mxu0 0.0
    %2872 = vmatprep.subr.mxu0 0.0
    %2873 = vmatpush1.msra.mxu0 0.0
    %2874 = vmatprep.subr.mxu0 0.0
    %2875 = vmatpush1.msra.mxu0 0.0
    %2876 = vmatprep.subr.mxu0 0.0
    %2877 = vmatpush1.msra.mxu0 0.0
    %2878 = vmatprep.subr.mxu0 0.0
    %2879 = vmatpush1.msra.mxu0 0.0
    %2880 = vmatprep.subr.mxu0 0.0
    %2881 = vmatpush1.msra.mxu0 0.0
    %2882 = vmatprep.subr.mxu0 0.0
    %2883 = vmatpush1.msra.mxu0 0.0
    %2884 = vmatprep.subr.mxu0 0.0
    %2885 = vmatpush1.msra.mxu0 0.0
    %2886 = vmatprep.subr.mxu0 0.0
    %2887 = vmatpush1.msra.mxu0 0.0
    %2888 = vmatprep.subr.mxu0 0.0
    %2889 = vmatpush1.msra.mxu0 0.0
    %2890 = vmatprep.subr.mxu0 0.0
    %2891 = vmatpush1.msra.mxu0 0.0
    %2892 = vmatprep.subr.mxu0 0.0
    %2893 = vmatpush1.msra.mxu0 0.0
    %2894 = vmatprep.subr.mxu0 0.0
    %2895 = vmatpush1.msra.mxu0 0.0
    %2896 = vmatprep.subr.mxu0 0.0
    %2897 = vmatpush1.msra.mxu0 0.0
    %2898 = vmatprep.subr.mxu0 0.0
    %2899 = vmatpush1.msra.mxu0 0.0
    %2900 = vmatprep.subr.mxu0 0.0
    %2901 = vmatpush1.msra.mxu0 0.0
    %2902 = vmatprep.subr.mxu0 0.0
    %2903 = vmatpush1.msra.mxu0 0.0
    %2904 = vmatprep.mubr.f32.mxu0 0.0
    %2905 = vmatmul.mubr.f32.gmra.mrb[0].mxu0 %v2838
    %v2906 = vpop.f32.mrb[0].mxu0
    %v2907 = vadd.f32 0.0, %v2906
    %v2908 = vpop.f32.mrb[0].mxu0
    %2909 = vdwg.mxu0
    %2910 = vmatprep.subr.mxu0 0.0
    %2911 = vmatpush1.msra.mxu0 %v1913
    %2912 = vmatprep.subr.mxu0 0.0
    %2913 = vmatpush1.msra.mxu0 %v1914
    %2914 = vmatprep.subr.mxu0 0.0
    %2915 = vmatpush1.msra.mxu0 %v1915
    %2916 = vmatprep.subr.mxu0 0.0
    %2917 = vmatpush1.msra.mxu0 %v1916
    %2918 = vmatprep.subr.mxu0 0.0
    %2919 = vmatpush1.msra.mxu0 0.0
    %2920 = vmatprep.subr.mxu0 0.0
    %2921 = vmatpush1.msra.mxu0 0.0
    %2922 = vmatprep.subr.mxu0 0.0
    %2923 = vmatpush1.msra.mxu0 0.0
    %2924 = vmatprep.subr.mxu0 0.0
    %2925 = vmatpush1.msra.mxu0 0.0
    %2926 = vmatprep.subr.mxu0 0.0
    %2927 = vmatpush1.msra.mxu0 0.0
    %2928 = vmatprep.subr.mxu0 0.0
    %2929 = vmatpush1.msra.mxu0 0.0
    %2930 = vmatprep.subr.mxu0 0.0
    %2931 = vmatpush1.msra.mxu0 0.0
    %2932 = vmatprep.subr.mxu0 0.0
    %2933 = vmatpush1.msra.mxu0 0.0
    %2934 = vmatprep.subr.mxu0 0.0
    %2935 = vmatpush1.msra.mxu0 0.0
    %2936 = vmatprep.subr.mxu0 0.0
    %2937 = vmatpush1.msra.mxu0 0.0
    %2938 = vmatprep.subr.mxu0 0.0
    %2939 = vmatpush1.msra.mxu0 0.0
    %2940 = vmatprep.subr.mxu0 0.0
    %2941 = vmatpush1.msra.mxu0 0.0
    %2942 = vmatprep.subr.mxu0 0.0
    %2943 = vmatpush1.msra.mxu0 0.0
    %2944 = vmatprep.subr.mxu0 0.0
    %2945 = vmatpush1.msra.mxu0 0.0
    %2946 = vmatprep.subr.mxu0 0.0
    %2947 = vmatpush1.msra.mxu0 0.0
    %2948 = vmatprep.subr.mxu0 0.0
    %2949 = vmatpush1.msra.mxu0 0.0
    %2950 = vmatprep.subr.mxu0 0.0
    %2951 = vmatpush1.msra.mxu0 0.0
    %2952 = vmatprep.subr.mxu0 0.0
    %2953 = vmatpush1.msra.mxu0 0.0
    %2954 = vmatprep.subr.mxu0 0.0
    %2955 = vmatpush1.msra.mxu0 0.0
    %2956 = vmatprep.subr.mxu0 0.0
    %2957 = vmatpush1.msra.mxu0 0.0
    %2958 = vmatprep.subr.mxu0 0.0
    %2959 = vmatpush1.msra.mxu0 0.0
    %2960 = vmatprep.subr.mxu0 0.0
    %2961 = vmatpush1.msra.mxu0 0.0
    %2962 = vmatprep.subr.mxu0 0.0
    %2963 = vmatpush1.msra.mxu0 0.0
    %2964 = vmatprep.subr.mxu0 0.0
    %2965 = vmatpush1.msra.mxu0 0.0
    %2966 = vmatprep.subr.mxu0 0.0
    %2967 = vmatpush1.msra.mxu0 0.0
    %2968 = vmatprep.subr.mxu0 0.0
    %2969 = vmatpush1.msra.mxu0 0.0
    %2970 = vmatprep.subr.mxu0 0.0
    %2971 = vmatpush1.msra.mxu0 0.0
    %2972 = vmatprep.subr.mxu0 0.0
    %2973 = vmatpush1.msra.mxu0 0.0
    %2974 = vmatprep.mubr.f32.mxu0 0.0
    %2975 = vmatmul.mubr.f32.gmra.mrb[0].mxu0 %v2838
    %v2976 = vpop.f32.mrb[0].mxu0
    %v2977 = vadd.f32 0.0, %v2976
    %v2978 = vpop.f32.mrb[0].mxu0
    %2979 = vdwg.mxu0
    %v2980 = vsel %vm441, %v2907, %v2977
    %v2981 = vadd.f32 %v2837, %v2980
    %v2982 = vxor.u32 %v2981, 2147483648
    %v2983 = vmul.f32 %v2982, 1.442695
    %v2984 = vpow.pop %v2983
    %v2985 = vadd.f32 %v2984, 1.0
    %v2986 = vrcp.pop %v2985
    %v2987 = vmul.f32 1.0, %v2986
    %v2988 = vtanh.pop %v2981
    %v2989 = vmul.f32 %v2987, %v2815
    %2991 = vrot.lane.b32.xlu0 %v2988, 64
    %v2992 = vpop.permute.xlu0 %2991
    %v2994 = vmul.f32 %v2987, %v2992
    %2996 = vrot.lane.b32.xlu0 %v2994, 32
    %v2997 = vpop.permute.xlu0 %2996
    %v2999 = vadd.f32 %v2989, %v2997
    %v3000 = vtanh.pop %v2999
    %3002 = vrot.lane.b32.xlu0 %v3000, 64
    %v3003 = vpop.permute.xlu0 %3002
    %v3005 = vmul.f32 %v2987, %v3003
    %3007 = vrot.lane.b32.xlu0 %v3005, 32
    %v3008 = vpop.permute.xlu0 %3007
    %3010 = vst.msk [vmem:[%s2465] sm:$0xf] %vm2093, %v3008
    %3011 = vrot.lane.b32.xlu0 %v3005, 64
    %v3012 = vpop.permute.xlu0 %3011
    %3014 = vst.msk [vmem:[%s2460 - $0x4] sm:$0xf0] %vm2099, %v3012
    %v3015 = vsel %vm295, %v1807, %v1890
    %v3016 = vsel %vm90, %v3008, 0
    %3018 = vmatprep.subr.mxu0 0.0
    %3019 = vmatpush1.msra.mxu0 %v1908
    %3020 = vmatprep.subr.mxu0 0.0
    %3021 = vmatpush1.msra.mxu0 %v1909
    %3022 = vmatprep.subr.mxu0 0.0
    %3023 = vmatpush1.msra.mxu0 %v1910
    %3024 = vmatprep.subr.mxu0 0.0
    %3025 = vmatpush1.msra.mxu0 %v1911
    %3026 = vmatprep.subr.mxu0 0.0
    %3027 = vmatpush1.msra.mxu0 0.0
    %3028 = vmatprep.subr.mxu0 0.0
    %3029 = vmatpush1.msra.mxu0 0.0
    %3030 = vmatprep.subr.mxu0 0.0
    %3031 = vmatpush1.msra.mxu0 0.0
    %3032 = vmatprep.subr.mxu0 0.0
    %3033 = vmatpush1.msra.mxu0 0.0
    %3034 = vmatprep.subr.mxu0 0.0
    %3035 = vmatpush1.msra.mxu0 0.0
    %3036 = vmatprep.subr.mxu0 0.0
    %3037 = vmatpush1.msra.mxu0 0.0
    %3038 = vmatprep.subr.mxu0 0.0
    %3039 = vmatpush1.msra.mxu0 0.0
    %3040 = vmatprep.subr.mxu0 0.0
    %3041 = vmatpush1.msra.mxu0 0.0
    %3042 = vmatprep.subr.mxu0 0.0
    %3043 = vmatpush1.msra.mxu0 0.0
    %3044 = vmatprep.subr.mxu0 0.0
    %3045 = vmatpush1.msra.mxu0 0.0
    %3046 = vmatprep.subr.mxu0 0.0
    %3047 = vmatpush1.msra.mxu0 0.0
    %3048 = vmatprep.subr.mxu0 0.0
    %3049 = vmatpush1.msra.mxu0 0.0
    %3050 = vmatprep.subr.mxu0 0.0
    %3051 = vmatpush1.msra.mxu0 0.0
    %3052 = vmatprep.subr.mxu0 0.0
    %3053 = vmatpush1.msra.mxu0 0.0
    %3054 = vmatprep.subr.mxu0 0.0
    %3055 = vmatpush1.msra.mxu0 0.0
    %3056 = vmatprep.subr.mxu0 0.0
    %3057 = vmatpush1.msra.mxu0 0.0
    %3058 = vmatprep.subr.mxu0 0.0
    %3059 = vmatpush1.msra.mxu0 0.0
    %3060 = vmatprep.subr.mxu0 0.0
    %3061 = vmatpush1.msra.mxu0 0.0
    %3062 = vmatprep.subr.mxu0 0.0
    %3063 = vmatpush1.msra.mxu0 0.0
    %3064 = vmatprep.subr.mxu0 0.0
    %3065 = vmatpush1.msra.mxu0 0.0
    %3066 = vmatprep.subr.mxu0 0.0
    %3067 = vmatpush1.msra.mxu0 0.0
    %3068 = vmatprep.subr.mxu0 0.0
    %3069 = vmatpush1.msra.mxu0 0.0
    %3070 = vmatprep.subr.mxu0 0.0
    %3071 = vmatpush1.msra.mxu0 0.0
    %3072 = vmatprep.subr.mxu0 0.0
    %3073 = vmatpush1.msra.mxu0 0.0
    %3074 = vmatprep.subr.mxu0 0.0
    %3075 = vmatpush1.msra.mxu0 0.0
    %3076 = vmatprep.subr.mxu0 0.0
    %3077 = vmatpush1.msra.mxu0 0.0
    %3078 = vmatprep.subr.mxu0 0.0
    %3079 = vmatpush1.msra.mxu0 0.0
    %3080 = vmatprep.subr.mxu0 0.0
    %3081 = vmatpush1.msra.mxu0 0.0
    %3082 = vmatprep.mubr.f32.mxu0 0.0
    %3083 = vmatmul.mubr.f32.gmra.mrb[0].mxu0 %v3016
    %v3084 = vpop.f32.mrb[0].mxu0
    %v3085 = vadd.f32 0.0, %v3084
    %v3086 = vpop.f32.mrb[0].mxu0
    %3087 = vdwg.mxu0
    %3088 = vmatprep.subr.mxu0 0.0
    %3089 = vmatpush1.msra.mxu0 %v1913
    %3090 = vmatprep.subr.mxu0 0.0
    %3091 = vmatpush1.msra.mxu0 %v1914
    %3092 = vmatprep.subr.mxu0 0.0
    %3093 = vmatpush1.msra.mxu0 %v1915
    %3094 = vmatprep.subr.mxu0 0.0
    %3095 = vmatpush1.msra.mxu0 %v1916
    %3096 = vmatprep.subr.mxu0 0.0
    %3097 = vmatpush1.msra.mxu0 0.0
    %3098 = vmatprep.subr.mxu0 0.0
    %3099 = vmatpush1.msra.mxu0 0.0
    %3100 = vmatprep.subr.mxu0 0.0
    %3101 = vmatpush1.msra.mxu0 0.0
    %3102 = vmatprep.subr.mxu0 0.0
    %3103 = vmatpush1.msra.mxu0 0.0
    %3104 = vmatprep.subr.mxu0 0.0
    %3105 = vmatpush1.msra.mxu0 0.0
    %3106 = vmatprep.subr.mxu0 0.0
    %3107 = vmatpush1.msra.mxu0 0.0
    %3108 = vmatprep.subr.mxu0 0.0
    %3109 = vmatpush1.msra.mxu0 0.0
    %3110 = vmatprep.subr.mxu0 0.0
    %3111 = vmatpush1.msra.mxu0 0.0
    %3112 = vmatprep.subr.mxu0 0.0
    %3113 = vmatpush1.msra.mxu0 0.0
    %3114 = vmatprep.subr.mxu0 0.0
    %3115 = vmatpush1.msra.mxu0 0.0
    %3116 = vmatprep.subr.mxu0 0.0
    %3117 = vmatpush1.msra.mxu0 0.0
    %3118 = vmatprep.subr.mxu0 0.0
    %3119 = vmatpush1.msra.mxu0 0.0
    %3120 = vmatprep.subr.mxu0 0.0
    %3121 = vmatpush1.msra.mxu0 0.0
    %3122 = vmatprep.subr.mxu0 0.0
    %3123 = vmatpush1.msra.mxu0 0.0
    %3124 = vmatprep.subr.mxu0 0.0
    %3125 = vmatpush1.msra.mxu0 0.0
    %3126 = vmatprep.subr.mxu0 0.0
    %3127 = vmatpush1.msra.mxu0 0.0
    %3128 = vmatprep.subr.mxu0 0.0
    %3129 = vmatpush1.msra.mxu0 0.0
    %3130 = vmatprep.subr.mxu0 0.0
    %3131 = vmatpush1.msra.mxu0 0.0
    %3132 = vmatprep.subr.mxu0 0.0
    %3133 = vmatpush1.msra.mxu0 0.0
    %3134 = vmatprep.subr.mxu0 0.0
    %3135 = vmatpush1.msra.mxu0 0.0
    %3136 = vmatprep.subr.mxu0 0.0
    %3137 = vmatpush1.msra.mxu0 0.0
    %3138 = vmatprep.subr.mxu0 0.0
    %3139 = vmatpush1.msra.mxu0 0.0
    %3140 = vmatprep.subr.mxu0 0.0
    %3141 = vmatpush1.msra.mxu0 0.0
    %3142 = vmatprep.subr.mxu0 0.0
    %3143 = vmatpush1.msra.mxu0 0.0
    %3144 = vmatprep.subr.mxu0 0.0
    %3145 = vmatpush1.msra.mxu0 0.0
    %3146 = vmatprep.subr.mxu0 0.0
    %3147 = vmatpush1.msra.mxu0 0.0
    %3148 = vmatprep.subr.mxu0 0.0
    %3149 = vmatpush1.msra.mxu0 0.0
    %3150 = vmatprep.subr.mxu0 0.0
    %3151 = vmatpush1.msra.mxu0 0.0
    %3152 = vmatprep.mubr.f32.mxu0 0.0
    %3153 = vmatmul.mubr.f32.gmra.mrb[0].mxu0 %v3016
    %v3154 = vpop.f32.mrb[0].mxu0
    %v3155 = vadd.f32 0.0, %v3154
    %v3156 = vpop.f32.mrb[0].mxu0
    %3157 = vdwg.mxu0
    %v3158 = vsel %vm441, %v3085, %v3155
    %v3159 = vadd.f32 %v3015, %v3158
    %v3160 = vxor.u32 %v3159, 2147483648
    %v3161 = vmul.f32 %v3160, 1.442695
    %v3162 = vpow.pop %v3161
    %v3163 = vadd.f32 %v3162, 1.0
    %v3164 = vrcp.pop %v3163
    %v3165 = vmul.f32 1.0, %v3164
    %v3166 = vtanh.pop %v3159
    %v3167 = vmul.f32 %v3165, %v2999
    %3169 = vrot.lane.b32.xlu0 %v3166, 64
    %v3170 = vpop.permute.xlu0 %3169
    %v3172 = vmul.f32 %v3165, %v3170
    %3174 = vrot.lane.b32.xlu0 %v3172, 32
    %v3175 = vpop.permute.xlu0 %3174
    %v3177 = vadd.f32 %v3167, %v3175
    %v3178 = vtanh.pop %v3177
    %3180 = vrot.lane.b32.xlu0 %v3178, 64
    %v3181 = vpop.permute.xlu0 %3180
    %v3183 = vmul.f32 %v3165, %v3181
    %3185 = vrot.lane.b32.xlu0 %v3183, 32
    %v3186 = vpop.permute.xlu0 %3185
    %3188 = vst.msk [vmem:[%s2285] sm:$0xf] %vm2093, %v3186
    %3189 = vrot.lane.b32.xlu0 %v3183, 64
    %v3190 = vpop.permute.xlu0 %3189
    %3192 = vst.msk [vmem:[%s2280 - $0x4] sm:$0xf0] %vm2099, %v3190
    %v3194 = vrot.slane %v1807, 4
    %v3197 = vrot.slane %v1890, 4
    %v3199 = vsel %vm295, %v3194, %v3197
    %v3200 = vsel %vm90, %v3186, 0
    %3202 = vmatprep.subr.mxu0 0.0
    %3203 = vmatpush1.msra.mxu0 %v1908
    %3204 = vmatprep.subr.mxu0 0.0
    %3205 = vmatpush1.msra.mxu0 %v1909
    %3206 = vmatprep.subr.mxu0 0.0
    %3207 = vmatpush1.msra.mxu0 %v1910
    %3208 = vmatprep.subr.mxu0 0.0
    %3209 = vmatpush1.msra.mxu0 %v1911
    %3210 = vmatprep.subr.mxu0 0.0
    %3211 = vmatpush1.msra.mxu0 0.0
    %3212 = vmatprep.subr.mxu0 0.0
    %3213 = vmatpush1.msra.mxu0 0.0
    %3214 = vmatprep.subr.mxu0 0.0
    %3215 = vmatpush1.msra.mxu0 0.0
    %3216 = vmatprep.subr.mxu0 0.0
    %3217 = vmatpush1.msra.mxu0 0.0
    %3218 = vmatprep.subr.mxu0 0.0
    %3219 = vmatpush1.msra.mxu0 0.0
    %3220 = vmatprep.subr.mxu0 0.0
    %3221 = vmatpush1.msra.mxu0 0.0
    %3222 = vmatprep.subr.mxu0 0.0
    %3223 = vmatpush1.msra.mxu0 0.0
    %3224 = vmatprep.subr.mxu0 0.0
    %3225 = vmatpush1.msra.mxu0 0.0
    %3226 = vmatprep.subr.mxu0 0.0
    %3227 = vmatpush1.msra.mxu0 0.0
    %3228 = vmatprep.subr.mxu0 0.0
    %3229 = vmatpush1.msra.mxu0 0.0
    %3230 = vmatprep.subr.mxu0 0.0
    %3231 = vmatpush1.msra.mxu0 0.0
    %3232 = vmatprep.subr.mxu0 0.0
    %3233 = vmatpush1.msra.mxu0 0.0
    %3234 = vmatprep.subr.mxu0 0.0
    %3235 = vmatpush1.msra.mxu0 0.0
    %3236 = vmatprep.subr.mxu0 0.0
    %3237 = vmatpush1.msra.mxu0 0.0
    %3238 = vmatprep.subr.mxu0 0.0
    %3239 = vmatpush1.msra.mxu0 0.0
    %3240 = vmatprep.subr.mxu0 0.0
    %3241 = vmatpush1.msra.mxu0 0.0
    %3242 = vmatprep.subr.mxu0 0.0
    %3243 = vmatpush1.msra.mxu0 0.0
    %3244 = vmatprep.subr.mxu0 0.0
    %3245 = vmatpush1.msra.mxu0 0.0
    %3246 = vmatprep.subr.mxu0 0.0
    %3247 = vmatpush1.msra.mxu0 0.0
    %3248 = vmatprep.subr.mxu0 0.0
    %3249 = vmatpush1.msra.mxu0 0.0
    %3250 = vmatprep.subr.mxu0 0.0
    %3251 = vmatpush1.msra.mxu0 0.0
    %3252 = vmatprep.subr.mxu0 0.0
    %3253 = vmatpush1.msra.mxu0 0.0
    %3254 = vmatprep.subr.mxu0 0.0
    %3255 = vmatpush1.msra.mxu0 0.0
    %3256 = vmatprep.subr.mxu0 0.0
    %3257 = vmatpush1.msra.mxu0 0.0
    %3258 = vmatprep.subr.mxu0 0.0
    %3259 = vmatpush1.msra.mxu0 0.0
    %3260 = vmatprep.subr.mxu0 0.0
    %3261 = vmatpush1.msra.mxu0 0.0
    %3262 = vmatprep.subr.mxu0 0.0
    %3263 = vmatpush1.msra.mxu0 0.0
    %3264 = vmatprep.subr.mxu0 0.0
    %3265 = vmatpush1.msra.mxu0 0.0
    %3266 = vmatprep.mubr.f32.mxu0 0.0
    %3267 = vmatmul.mubr.f32.gmra.mrb[0].mxu0 %v3200
    %v3268 = vpop.f32.mrb[0].mxu0
    %v3269 = vadd.f32 0.0, %v3268
    %v3270 = vpop.f32.mrb[0].mxu0
    %3271 = vdwg.mxu0
    %3272 = vmatprep.subr.mxu0 0.0
    %3273 = vmatpush1.msra.mxu0 %v1913
    %3274 = vmatprep.subr.mxu0 0.0
    %3275 = vmatpush1.msra.mxu0 %v1914
    %3276 = vmatprep.subr.mxu0 0.0
    %3277 = vmatpush1.msra.mxu0 %v1915
    %3278 = vmatprep.subr.mxu0 0.0
    %3279 = vmatpush1.msra.mxu0 %v1916
    %3280 = vmatprep.subr.mxu0 0.0
    %3281 = vmatpush1.msra.mxu0 0.0
    %3282 = vmatprep.subr.mxu0 0.0
    %3283 = vmatpush1.msra.mxu0 0.0
    %3284 = vmatprep.subr.mxu0 0.0
    %3285 = vmatpush1.msra.mxu0 0.0
    %3286 = vmatprep.subr.mxu0 0.0
    %3287 = vmatpush1.msra.mxu0 0.0
    %3288 = vmatprep.subr.mxu0 0.0
    %3289 = vmatpush1.msra.mxu0 0.0
    %3290 = vmatprep.subr.mxu0 0.0
    %3291 = vmatpush1.msra.mxu0 0.0
    %3292 = vmatprep.subr.mxu0 0.0
    %3293 = vmatpush1.msra.mxu0 0.0
    %3294 = vmatprep.subr.mxu0 0.0
    %3295 = vmatpush1.msra.mxu0 0.0
    %3296 = vmatprep.subr.mxu0 0.0
    %3297 = vmatpush1.msra.mxu0 0.0
    %3298 = vmatprep.subr.mxu0 0.0
    %3299 = vmatpush1.msra.mxu0 0.0
    %3300 = vmatprep.subr.mxu0 0.0
    %3301 = vmatpush1.msra.mxu0 0.0
    %3302 = vmatprep.subr.mxu0 0.0
    %3303 = vmatpush1.msra.mxu0 0.0
    %3304 = vmatprep.subr.mxu0 0.0
    %3305 = vmatpush1.msra.mxu0 0.0
    %3306 = vmatprep.subr.mxu0 0.0
    %3307 = vmatpush1.msra.mxu0 0.0
    %3308 = vmatprep.subr.mxu0 0.0
    %3309 = vmatpush1.msra.mxu0 0.0
    %3310 = vmatprep.subr.mxu0 0.0
    %3311 = vmatpush1.msra.mxu0 0.0
    %3312 = vmatprep.subr.mxu0 0.0
    %3313 = vmatpush1.msra.mxu0 0.0
    %3314 = vmatprep.subr.mxu0 0.0
    %3315 = vmatpush1.msra.mxu0 0.0
    %3316 = vmatprep.subr.mxu0 0.0
    %3317 = vmatpush1.msra.mxu0 0.0
    %3318 = vmatprep.subr.mxu0 0.0
    %3319 = vmatpush1.msra.mxu0 0.0
    %3320 = vmatprep.subr.mxu0 0.0
    %3321 = vmatpush1.msra.mxu0 0.0
    %3322 = vmatprep.subr.mxu0 0.0
    %3323 = vmatpush1.msra.mxu0 0.0
    %3324 = vmatprep.subr.mxu0 0.0
    %3325 = vmatpush1.msra.mxu0 0.0
    %3326 = vmatprep.subr.mxu0 0.0
    %3327 = vmatpush1.msra.mxu0 0.0
    %3328 = vmatprep.subr.mxu0 0.0
    %3329 = vmatpush1.msra.mxu0 0.0
    %3330 = vmatprep.subr.mxu0 0.0
    %3331 = vmatpush1.msra.mxu0 0.0
    %3332 = vmatprep.subr.mxu0 0.0
    %3333 = vmatpush1.msra.mxu0 0.0
    %3334 = vmatprep.subr.mxu0 0.0
    %3335 = vmatpush1.msra.mxu0 0.0
    %3336 = vmatprep.mubr.f32.mxu0 0.0
    %3337 = vmatmul.mubr.f32.gmra.mrb[0].mxu0 %v3200
    %v3338 = vpop.f32.mrb[0].mxu0
    %v3339 = vadd.f32 0.0, %v3338
    %v3340 = vpop.f32.mrb[0].mxu0
    %3341 = vdwg.mxu0
    %v3342 = vsel %vm441, %v3269, %v3339
    %v3343 = vadd.f32 %v3199, %v3342
    %v3344 = vxor.u32 %v3343, 2147483648
    %v3345 = vmul.f32 %v3344, 1.442695
    %v3346 = vpow.pop %v3345
    %v3347 = vadd.f32 %v3346, 1.0
    %v3348 = vrcp.pop %v3347
    %v3349 = vmul.f32 1.0, %v3348
    %v3350 = vtanh.pop %v3343
    %v3351 = vmul.f32 %v3349, %v3177
    %3353 = vrot.lane.b32.xlu0 %v3350, 64
    %v3354 = vpop.permute.xlu0 %3353
    %v3356 = vmul.f32 %v3349, %v3354
    %3358 = vrot.lane.b32.xlu0 %v3356, 32
    %v3359 = vpop.permute.xlu0 %3358
    %v3361 = vadd.f32 %v3351, %v3359
    %v3362 = vtanh.pop %v3361
    %3364 = vrot.lane.b32.xlu0 %v3362, 64
    %v3365 = vpop.permute.xlu0 %3364
    %v3367 = vmul.f32 %v3349, %v3365
    %3369 = vrot.lane.b32.xlu0 %v3367, 32
    %v3370 = vpop.permute.xlu0 %3369
    %3372 = vst.msk [vmem:[%s2098] sm:$0xf] %vm2093, %v3370
    %3373 = vrot.lane.b32.xlu0 %v3367, 64
    %v3374 = vpop.permute.xlu0 %3373
    %3376 = vst.msk [vmem:[#allocation2 - $0x4] sm:$0xf0] %vm2099, %v3374
    %v3377 = vld [vmem:[#allocation2] sm:$0xf]
    %v3378 = vld [vmem:[#allocation2 + $0x4] sm:$0xf]
    %v3379 = vld [vmem:[#allocation2 + $0x8] sm:$0xf]
    %v3380 = vld [vmem:[#allocation2 + $0xc] sm:$0xf]
    %v3381 = vld [vmem:[#allocation2 + $0x10] sm:$0xf]
    %v3382 = vld [vmem:[#allocation2 + $0x14] sm:$0xf]
    %v3383 = vld [vmem:[#allocation2 + $0x18] sm:$0xf]
    %v3384 = vld [vmem:[#allocation2 + $0x1c] sm:$0xf]
    %v3385 = vld [vmem:[%s1] sm:$0xf]
    %v3386 = vld [vmem:[%s2] sm:$0xff]
    %v3395 = vrot.slane %v3378, 7
    %vm3396 = vcmask 1041409
    %v3397 = vsel %vm3396, %v3395, %v3377
    %v3398 = vrot.slane %v3379, 6
    %vm3399 = vcmask 1042434
    %v3400 = vsel %vm3399, %v3398, %v3397
    %v3401 = vrot.slane %v3380, 5
    %vm3402 = vcmask 1043459
    %v3403 = vsel %vm3402, %v3401, %v3400
    %v3404 = vrot.slane %v3381, 4
    %vm3405 = vcmask 1044484
    %v3406 = vsel %vm3405, %v3404, %v3403
    %v3407 = vrot.slane %v3382, 3
    %vm3408 = vcmask 1045509
    %v3409 = vsel %vm3408, %v3407, %v3406
    %v3410 = vrot.slane %v3383, 2
    %vm3411 = vcmask 1046534
    %v3412 = vsel %vm3411, %v3410, %v3409
    %v3413 = vrot.slane %v3384, 1
    %vm3414 = vcmask 1047559
    %v3415 = vsel %vm3414, %v3413, %v3412
    %v3416 = vrot.slane %v3377, 2
    %v3417 = vrot.slane %v3378, 1
    %v3418 = vsel %vm3396, %v3417, %v3416
    %v3419 = vsel %vm3399, %v3379, %v3418
    %v3420 = vrot.slane %v3380, 7
    %v3421 = vsel %vm3402, %v3420, %v3419
    %v3422 = vrot.slane %v3381, 6
    %v3423 = vsel %vm3405, %v3422, %v3421
    %v3424 = vrot.slane %v3382, 5
    %v3425 = vsel %vm3408, %v3424, %v3423
    %v3426 = vrot.slane %v3383, 4
    %v3427 = vsel %vm3411, %v3426, %v3425
    %v3428 = vrot.slane %v3384, 3
    %v3429 = vsel %vm3414, %v3428, %v3427
    %vm3430 = vcmask 523264
    %v3431 = vsel %vm3430, %v3415, 0
    %v3433 = vsel %vm3430, %v3429, 0
    %3435 = vmatprep.subr.mxu0 0.0
    %3436 = vmatpush1.xpose.msra.mxu0 %v3433
    %3437 = vmatprep.subr.mxu0 0.0
    %3438 = vmatpush1.xpose.msra.mxu0 0.0
    %3439 = vmatprep.subr.mxu0 0.0
    %3440 = vmatpush1.xpose.msra.mxu0 0.0
    %3441 = vmatprep.subr.mxu0 0.0
    %3442 = vmatpush1.xpose.msra.mxu0 0.0
    %3443 = vmatprep.subr.mxu0 0.0
    %3444 = vmatpush1.xpose.msra.mxu0 0.0
    %3445 = vmatprep.subr.mxu0 0.0
    %3446 = vmatpush1.xpose.msra.mxu0 0.0
    %3447 = vmatprep.subr.mxu0 0.0
    %3448 = vmatpush1.xpose.msra.mxu0 0.0
    %3449 = vmatprep.subr.mxu0 0.0
    %3450 = vmatpush1.xpose.msra.mxu0 0.0
    %3451 = vmatprep.subr.mxu0 0.0
    %3452 = vmatpush1.xpose.msra.mxu0 0.0
    %3453 = vmatprep.subr.mxu0 0.0
    %3454 = vmatpush1.xpose.msra.mxu0 0.0
    %3455 = vmatprep.subr.mxu0 0.0
    %3456 = vmatpush1.xpose.msra.mxu0 0.0
    %3457 = vmatprep.subr.mxu0 0.0
    %3458 = vmatpush1.xpose.msra.mxu0 0.0
    %3459 = vmatprep.subr.mxu0 0.0
    %3460 = vmatpush1.xpose.msra.mxu0 0.0
    %3461 = vmatprep.subr.mxu0 0.0
    %3462 = vmatpush1.xpose.msra.mxu0 0.0
    %3463 = vmatprep.subr.mxu0 0.0
    %3464 = vmatpush1.xpose.msra.mxu0 0.0
    %3465 = vmatprep.subr.mxu0 0.0
    %3466 = vmatpush1.xpose.msra.mxu0 0.0
    %3467 = vmatprep.subr.mxu0 0.0
    %3468 = vmatpush1.xpose.msra.mxu0 0.0
    %3469 = vmatprep.subr.mxu0 0.0
    %3470 = vmatpush1.xpose.msra.mxu0 0.0
    %3471 = vmatprep.subr.mxu0 0.0
    %3472 = vmatpush1.xpose.msra.mxu0 0.0
    %3473 = vmatprep.subr.mxu0 0.0
    %3474 = vmatpush1.xpose.msra.mxu0 0.0
    %3475 = vmatprep.subr.mxu0 0.0
    %3476 = vmatpush1.xpose.msra.mxu0 0.0
    %3477 = vmatprep.subr.mxu0 0.0
    %3478 = vmatpush1.xpose.msra.mxu0 0.0
    %3479 = vmatprep.subr.mxu0 0.0
    %3480 = vmatpush1.xpose.msra.mxu0 0.0
    %3481 = vmatprep.subr.mxu0 0.0
    %3482 = vmatpush1.xpose.msra.mxu0 0.0
    %3483 = vmatprep.subr.mxu0 0.0
    %3484 = vmatpush1.xpose.msra.mxu0 0.0
    %3485 = vmatprep.subr.mxu0 0.0
    %3486 = vmatpush1.xpose.msra.mxu0 0.0
    %3487 = vmatprep.subr.mxu0 0.0
    %3488 = vmatpush1.xpose.msra.mxu0 0.0
    %3489 = vmatprep.subr.mxu0 0.0
    %3490 = vmatpush1.xpose.msra.mxu0 0.0
    %3491 = vmatprep.subr.mxu0 0.0
    %3492 = vmatpush1.xpose.msra.mxu0 0.0
    %3493 = vmatprep.subr.mxu0 0.0
    %3494 = vmatpush1.xpose.msra.mxu0 0.0
    %3495 = vmatprep.subr.mxu0 0.0
    %3496 = vmatpush1.xpose.msra.mxu0 0.0
    %3497 = vmatprep.subr.mxu0 0.0
    %3498 = vmatpush1.xpose.msra.mxu0 0.0
    %3499 = vmatprep.mubr.f32.mxu0 0.0
    %3500 = vmatmul.mubr.f32.gmra.mrb[0].mxu0 %v3431
    %v3501 = vpop.f32.mrb[0].mxu0
    %v3502 = vadd.f32 0.0, %v3501
    %v3503 = vpop.f32.mrb[0].mxu0
    %3504 = vdwg.mxu0
    %3505 = vmatprep.subr.mxu0 0.0
    %3506 = vmatpush1.xpose.msra.mxu0 %v3431
    %3507 = vmatprep.subr.mxu0 0.0
    %3508 = vmatpush1.xpose.msra.mxu0 0.0
    %3509 = vmatprep.subr.mxu0 0.0
    %3510 = vmatpush1.xpose.msra.mxu0 0.0
    %3511 = vmatprep.subr.mxu0 0.0
    %3512 = vmatpush1.xpose.msra.mxu0 0.0
    %3513 = vmatprep.subr.mxu0 0.0
    %3514 = vmatpush1.xpose.msra.mxu0 0.0
    %3515 = vmatprep.subr.mxu0 0.0
    %3516 = vmatpush1.xpose.msra.mxu0 0.0
    %3517 = vmatprep.subr.mxu0 0.0
    %3518 = vmatpush1.xpose.msra.mxu0 0.0
    %3519 = vmatprep.subr.mxu0 0.0
    %3520 = vmatpush1.xpose.msra.mxu0 0.0
    %3521 = vmatprep.subr.mxu0 0.0
    %3522 = vmatpush1.xpose.msra.mxu0 0.0
    %3523 = vmatprep.subr.mxu0 0.0
    %3524 = vmatpush1.xpose.msra.mxu0 0.0
    %3525 = vmatprep.subr.mxu0 0.0
    %3526 = vmatpush1.xpose.msra.mxu0 0.0
    %3527 = vmatprep.subr.mxu0 0.0
    %3528 = vmatpush1.xpose.msra.mxu0 0.0
    %3529 = vmatprep.subr.mxu0 0.0
    %3530 = vmatpush1.xpose.msra.mxu0 0.0
    %3531 = vmatprep.subr.mxu0 0.0
    %3532 = vmatpush1.xpose.msra.mxu0 0.0
    %3533 = vmatprep.subr.mxu0 0.0
    %3534 = vmatpush1.xpose.msra.mxu0 0.0
    %3535 = vmatprep.subr.mxu0 0.0
    %3536 = vmatpush1.xpose.msra.mxu0 0.0
    %3537 = vmatprep.subr.mxu0 0.0
    %3538 = vmatpush1.xpose.msra.mxu0 0.0
    %3539 = vmatprep.subr.mxu0 0.0
    %3540 = vmatpush1.xpose.msra.mxu0 0.0
    %3541 = vmatprep.subr.mxu0 0.0
    %3542 = vmatpush1.xpose.msra.mxu0 0.0
    %3543 = vmatprep.subr.mxu0 0.0
    %3544 = vmatpush1.xpose.msra.mxu0 0.0
    %3545 = vmatprep.subr.mxu0 0.0
    %3546 = vmatpush1.xpose.msra.mxu0 0.0
    %3547 = vmatprep.subr.mxu0 0.0
    %3548 = vmatpush1.xpose.msra.mxu0 0.0
    %3549 = vmatprep.subr.mxu0 0.0
    %3550 = vmatpush1.xpose.msra.mxu0 0.0
    %3551 = vmatprep.subr.mxu0 0.0
    %3552 = vmatpush1.xpose.msra.mxu0 0.0
    %3553 = vmatprep.subr.mxu0 0.0
    %3554 = vmatpush1.xpose.msra.mxu0 0.0
    %3555 = vmatprep.subr.mxu0 0.0
    %3556 = vmatpush1.xpose.msra.mxu0 0.0
    %3557 = vmatprep.subr.mxu0 0.0
    %3558 = vmatpush1.xpose.msra.mxu0 0.0
    %3559 = vmatprep.subr.mxu0 0.0
    %3560 = vmatpush1.xpose.msra.mxu0 0.0
    %3561 = vmatprep.subr.mxu0 0.0
    %3562 = vmatpush1.xpose.msra.mxu0 0.0
    %3563 = vmatprep.subr.mxu0 0.0
    %3564 = vmatpush1.xpose.msra.mxu0 0.0
    %3565 = vmatprep.subr.mxu0 0.0
    %3566 = vmatpush1.xpose.msra.mxu0 0.0
    %3567 = vmatprep.subr.mxu0 0.0
    %3568 = vmatpush1.xpose.msra.mxu0 0.0
    %3569 = vmatprep.mubr.f32.mxu0 0.0
    %3570 = vmatmul.mubr.f32.gmra.mrb[0].mxu0 %v3433
    %v3571 = vpop.f32.mrb[0].mxu0
    %v3572 = vadd.f32 0.0, %v3571
    %v3573 = vpop.f32.mrb[0].mxu0
    %3574 = vdwg.mxu0
    %v3575 = vlaneseq
    %v3576 = vshrl.u32 %v3575, 7
    %v3577 = vsub.s32 2, %v3576
    %v3578 = vrot.slane %v3385, %v3577
    %v3579 = vmul.f32 %v3502, %v3578
    %vm3580 = vcmask 64512
    %v3581 = vsel %vm3580, %v3579, -inf
    %3582 = vmax.xlane.f32.xlu0 %v3581
    %v3583 = vpop.xlane.xlu0 %3582
    %v3584 = vsub.f32 %v3579, %v3583
    %v3585 = vmul.f32 %v3584, 1.442695
    %v3586 = vpow.pop %v3585
    %v3587 = vmul.f32 %v3586, %v3578
    %v3588 = vsel %vm3580, %v3587, 0.0
    %3589 = vadd.xlane.f32.xlu0 %v3588
    %v3590 = vpop.xlane.xlu0 %3589
    %v3591 = vadd.f32 %v3590, 1e-13
    %v3592 = vrcp.pop %v3591
    %v3593 = vmul.f32 %v3587, %v3592
    %v3594 = vlaneseq
    %v3595 = vshrl.u32 %v3594, 7
    %v3596 = vsub.s32 0, %v3595
    %v3597 = vrot.slane %v3385, %v3596
    %v3598 = vmul.f32 %v3572, %v3597
    %v3599 = vsel %vm3580, %v3598, -inf
    %3600 = vmax.xlane.f32.xlu0 %v3599
    %v3601 = vpop.xlane.xlu0 %3600
    %v3602 = vsub.f32 %v3598, %v3601
    %v3603 = vmul.f32 %v3602, 1.442695
    %v3604 = vpow.pop %v3603
    %v3605 = vmul.f32 %v3604, %v3597
    %v3606 = vsel %vm3580, %v3605, 0.0
    %3607 = vadd.xlane.f32.xlu0 %v3606
    %v3608 = vpop.xlane.xlu0 %3607
    %v3609 = vadd.f32 %v3608, 1e-13
    %v3610 = vrcp.pop %v3609
    %v3611 = vmul.f32 %v3605, %v3610
    %v3614 = vsel %vm3580, %v3593, 0
    %3616 = vmatprep.subr.mxu0 0.0
    %3617 = vmatpush1.msra.mxu0 %v3429
    %3618 = vmatprep.subr.mxu0 0.0
    %3619 = vmatpush1.msra.mxu0 0.0
    %3620 = vmatprep.subr.mxu0 0.0
    %3621 = vmatpush1.msra.mxu0 0.0
    %3622 = vmatprep.subr.mxu0 0.0
    %3623 = vmatpush1.msra.mxu0 0.0
    %3624 = vmatprep.subr.mxu0 0.0
    %3625 = vmatpush1.msra.mxu0 0.0
    %3626 = vmatprep.subr.mxu0 0.0
    %3627 = vmatpush1.msra.mxu0 0.0
    %3628 = vmatprep.subr.mxu0 0.0
    %3629 = vmatpush1.msra.mxu0 0.0
    %3630 = vmatprep.subr.mxu0 0.0
    %3631 = vmatpush1.msra.mxu0 0.0
    %3632 = vmatprep.subr.mxu0 0.0
    %3633 = vmatpush1.msra.mxu0 0.0
    %3634 = vmatprep.subr.mxu0 0.0
    %3635 = vmatpush1.msra.mxu0 0.0
    %3636 = vmatprep.subr.mxu0 0.0
    %3637 = vmatpush1.msra.mxu0 0.0
    %3638 = vmatprep.subr.mxu0 0.0
    %3639 = vmatpush1.msra.mxu0 0.0
    %3640 = vmatprep.subr.mxu0 0.0
    %3641 = vmatpush1.msra.mxu0 0.0
    %3642 = vmatprep.subr.mxu0 0.0
    %3643 = vmatpush1.msra.mxu0 0.0
    %3644 = vmatprep.subr.mxu0 0.0
    %3645 = vmatpush1.msra.mxu0 0.0
    %3646 = vmatprep.subr.mxu0 0.0
    %3647 = vmatpush1.msra.mxu0 0.0
    %3648 = vmatprep.subr.mxu0 0.0
    %3649 = vmatpush1.msra.mxu0 0.0
    %3650 = vmatprep.subr.mxu0 0.0
    %3651 = vmatpush1.msra.mxu0 0.0
    %3652 = vmatprep.subr.mxu0 0.0
    %3653 = vmatpush1.msra.mxu0 0.0
    %3654 = vmatprep.subr.mxu0 0.0
    %3655 = vmatpush1.msra.mxu0 0.0
    %3656 = vmatprep.subr.mxu0 0.0
    %3657 = vmatpush1.msra.mxu0 0.0
    %3658 = vmatprep.subr.mxu0 0.0
    %3659 = vmatpush1.msra.mxu0 0.0
    %3660 = vmatprep.subr.mxu0 0.0
    %3661 = vmatpush1.msra.mxu0 0.0
    %3662 = vmatprep.subr.mxu0 0.0
    %3663 = vmatpush1.msra.mxu0 0.0
    %3664 = vmatprep.subr.mxu0 0.0
    %3665 = vmatpush1.msra.mxu0 0.0
    %3666 = vmatprep.subr.mxu0 0.0
    %3667 = vmatpush1.msra.mxu0 0.0
    %3668 = vmatprep.subr.mxu0 0.0
    %3669 = vmatpush1.msra.mxu0 0.0
    %3670 = vmatprep.subr.mxu0 0.0
    %3671 = vmatpush1.msra.mxu0 0.0
    %3672 = vmatprep.subr.mxu0 0.0
    %3673 = vmatpush1.msra.mxu0 0.0
    %3674 = vmatprep.subr.mxu0 0.0
    %3675 = vmatpush1.msra.mxu0 0.0
    %3676 = vmatprep.subr.mxu0 0.0
    %3677 = vmatpush1.msra.mxu0 0.0
    %3678 = vmatprep.subr.mxu0 0.0
    %3679 = vmatpush1.msra.mxu0 0.0
    %3680 = vmatprep.mubr.f32.mxu0 0.0
    %3681 = vmatmul.mubr.f32.gmra.mrb[0].mxu0 %v3614
    %v3682 = vpop.f32.mrb[0].mxu0
    %v3683 = vadd.f32 0.0, %v3682
    %v3684 = vpop.f32.mrb[0].mxu0
    %3685 = vdwg.mxu0
    %3687 = vset.pattern.permute.xlu0 0
    %3688 = vperm.xlu0 %3687, %v3386
    %v3689 = vpop.permute.xlu0 %3688
    %v3691 = vmul.f32 %v3683, %v3689
    %v3694 = vsel %vm3580, %v3611, 0
    %3696 = vmatprep.subr.mxu0 0.0
    %3697 = vmatpush1.msra.mxu0 %v3415
    %3698 = vmatprep.subr.mxu0 0.0
    %3699 = vmatpush1.msra.mxu0 0.0
    %3700 = vmatprep.subr.mxu0 0.0
    %3701 = vmatpush1.msra.mxu0 0.0
    %3702 = vmatprep.subr.mxu0 0.0
    %3703 = vmatpush1.msra.mxu0 0.0
    %3704 = vmatprep.subr.mxu0 0.0
    %3705 = vmatpush1.msra.mxu0 0.0
    %3706 = vmatprep.subr.mxu0 0.0
    %3707 = vmatpush1.msra.mxu0 0.0
    %3708 = vmatprep.subr.mxu0 0.0
    %3709 = vmatpush1.msra.mxu0 0.0
    %3710 = vmatprep.subr.mxu0 0.0
    %3711 = vmatpush1.msra.mxu0 0.0
    %3712 = vmatprep.subr.mxu0 0.0
    %3713 = vmatpush1.msra.mxu0 0.0
    %3714 = vmatprep.subr.mxu0 0.0
    %3715 = vmatpush1.msra.mxu0 0.0
    %3716 = vmatprep.subr.mxu0 0.0
    %3717 = vmatpush1.msra.mxu0 0.0
    %3718 = vmatprep.subr.mxu0 0.0
    %3719 = vmatpush1.msra.mxu0 0.0
    %3720 = vmatprep.subr.mxu0 0.0
    %3721 = vmatpush1.msra.mxu0 0.0
    %3722 = vmatprep.subr.mxu0 0.0
    %3723 = vmatpush1.msra.mxu0 0.0
    %3724 = vmatprep.subr.mxu0 0.0
    %3725 = vmatpush1.msra.mxu0 0.0
    %3726 = vmatprep.subr.mxu0 0.0
    %3727 = vmatpush1.msra.mxu0 0.0
    %3728 = vmatprep.subr.mxu0 0.0
    %3729 = vmatpush1.msra.mxu0 0.0
    %3730 = vmatprep.subr.mxu0 0.0
    %3731 = vmatpush1.msra.mxu0 0.0
    %3732 = vmatprep.subr.mxu0 0.0
    %3733 = vmatpush1.msra.mxu0 0.0
    %3734 = vmatprep.subr.mxu0 0.0
    %3735 = vmatpush1.msra.mxu0 0.0
    %3736 = vmatprep.subr.mxu0 0.0
    %3737 = vmatpush1.msra.mxu0 0.0
    %3738 = vmatprep.subr.mxu0 0.0
    %3739 = vmatpush1.msra.mxu0 0.0
    %3740 = vmatprep.subr.mxu0 0.0
    %3741 = vmatpush1.msra.mxu0 0.0
    %3742 = vmatprep.subr.mxu0 0.0
    %3743 = vmatpush1.msra.mxu0 0.0
    %3744 = vmatprep.subr.mxu0 0.0
    %3745 = vmatpush1.msra.mxu0 0.0
    %3746 = vmatprep.subr.mxu0 0.0
    %3747 = vmatpush1.msra.mxu0 0.0
    %3748 = vmatprep.subr.mxu0 0.0
    %3749 = vmatpush1.msra.mxu0 0.0
    %3750 = vmatprep.subr.mxu0 0.0
    %3751 = vmatpush1.msra.mxu0 0.0
    %3752 = vmatprep.subr.mxu0 0.0
    %3753 = vmatpush1.msra.mxu0 0.0
    %3754 = vmatprep.subr.mxu0 0.0
    %3755 = vmatpush1.msra.mxu0 0.0
    %3756 = vmatprep.subr.mxu0 0.0
    %3757 = vmatpush1.msra.mxu0 0.0
    %3758 = vmatprep.subr.mxu0 0.0
    %3759 = vmatpush1.msra.mxu0 0.0
    %3760 = vmatprep.mubr.f32.mxu0 0.0
    %3761 = vmatmul.mubr.f32.gmra.mrb[0].mxu0 %v3694
    %v3762 = vpop.f32.mrb[0].mxu0
    %v3763 = vadd.f32 0.0, %v3762
    %v3764 = vpop.f32.mrb[0].mxu0
    %3765 = vdwg.mxu0
    %3766 = vset.pattern.permute.xlu0 2
    %3767 = vperm.xlu0 %3766, %v3386
    %v3768 = vpop.permute.xlu0 %3767
    %v3770 = vmul.f32 %v3763, %v3768
    %v3772 = vrot.slane %v3691, 1
    %v3773 = vrot.slane %v3691, 2
    %v3774 = vrot.slane %v3691, 3
    %v3775 = vrot.slane %v3691, 4
    %v3776 = vrot.slane %v3691, 5
    %v3777 = vrot.slane %v3691, 6
    %v3778 = vrot.slane %v3691, 7
    %v3787 = vsub.f32 %v3377, %v3691
    %v3788 = vsub.f32 %v3378, %v3772
    %v3789 = vsub.f32 %v3379, %v3773
    %v3790 = vsub.f32 %v3380, %v3774
    %v3791 = vsub.f32 %v3381, %v3775
    %v3792 = vsub.f32 %v3382, %v3776
    %v3793 = vsub.f32 %v3383, %v3777
    %v3794 = vsub.f32 %v3384, %v3778
    %v3795 = vmul.f32 %v3377, %v3691
    %v3796 = vmul.f32 %v3378, %v3772
    %v3797 = vmul.f32 %v3379, %v3773
    %v3798 = vmul.f32 %v3380, %v3774
    %v3799 = vmul.f32 %v3381, %v3775
    %v3800 = vmul.f32 %v3382, %v3776
    %v3801 = vmul.f32 %v3383, %v3777
    %v3802 = vmul.f32 %v3384, %v3778
    %3803 = vrot.lane.b32.xlu0 %v3691, 64
    %v3804 = vpop.permute.xlu0 %3803
    %v3814 = vrot.slane %v3788, 7
    %v3815 = vsel %vm3396, %v3814, %v3787
    %v3816 = vrot.slane %v3789, 6
    %v3817 = vsel %vm3399, %v3816, %v3815
    %v3818 = vrot.slane %v3790, 5
    %v3819 = vsel %vm3402, %v3818, %v3817
    %v3820 = vrot.slane %v3791, 4
    %v3821 = vsel %vm3405, %v3820, %v3819
    %v3822 = vrot.slane %v3792, 3
    %v3823 = vsel %vm3408, %v3822, %v3821
    %v3824 = vrot.slane %v3793, 2
    %v3825 = vsel %vm3411, %v3824, %v3823
    %v3826 = vrot.slane %v3794, 1
    %v3827 = vsel %vm3414, %v3826, %v3825
    %v3837 = vrot.slane %v3796, 7
    %v3838 = vsel %vm3396, %v3837, %v3795
    %v3839 = vrot.slane %v3797, 6
    %v3840 = vsel %vm3399, %v3839, %v3838
    %v3841 = vrot.slane %v3798, 5
    %v3842 = vsel %vm3402, %v3841, %v3840
    %v3843 = vrot.slane %v3799, 4
    %v3844 = vsel %vm3405, %v3843, %v3842
    %v3845 = vrot.slane %v3800, 3
    %v3846 = vsel %vm3408, %v3845, %v3844
    %v3847 = vrot.slane %v3801, 2
    %v3848 = vsel %vm3411, %v3847, %v3846
    %v3849 = vrot.slane %v3802, 1
    %v3850 = vsel %vm3414, %v3849, %v3848
    %3851 = vrot.lane.b32.xlu0 %v3850, 64
    %v3852 = vpop.permute.xlu0 %3851
    %v3854 = vsel %vm3430, %v3415, %v3804
    %v3855 = vsel %vm3430, %v3827, %v3852
    %v3857 = vrot.slane %v3770, 6
    %v3858 = vrot.slane %v3770, 7
    %v3859 = vrot.slane %v3770, 1
    %v3860 = vrot.slane %v3770, 2
    %v3861 = vrot.slane %v3770, 3
    %v3862 = vrot.slane %v3770, 4
    %v3863 = vrot.slane %v3770, 5
    %v3872 = vsub.f32 %v3377, %v3857
    %v3873 = vsub.f32 %v3378, %v3858
    %v3874 = vsub.f32 %v3379, %v3770
    %v3875 = vsub.f32 %v3380, %v3859
    %v3876 = vsub.f32 %v3381, %v3860
    %v3877 = vsub.f32 %v3382, %v3861
    %v3878 = vsub.f32 %v3383, %v3862
    %v3879 = vsub.f32 %v3384, %v3863
    %v3880 = vmul.f32 %v3377, %v3857
    %v3881 = vmul.f32 %v3378, %v3858
    %v3882 = vmul.f32 %v3379, %v3770
    %v3883 = vmul.f32 %v3380, %v3859
    %v3884 = vmul.f32 %v3381, %v3860
    %v3885 = vmul.f32 %v3382, %v3861
    %v3886 = vmul.f32 %v3383, %v3862
    %v3887 = vmul.f32 %v3384, %v3863
    %v3888 = vsel %vm3402, %v3395, %v3377
    %v3889 = vsel %vm3405, %v3398, %v3888
    %v3890 = vsel %vm3408, %v3401, %v3889
    %v3891 = vsel %vm3411, %v3404, %v3890
    %v3892 = vsel %vm3414, %v3407, %v3891
    %v3893 = vsel %vm3396, %v3413, %v3410
    %3896 = vrot.lane.b32.xlu0 %v3857, 64
    %v3897 = vpop.permute.xlu0 %3896
    %v3907 = vrot.slane %v3873, 7
    %v3908 = vsel %vm3402, %v3907, %v3872
    %v3909 = vrot.slane %v3874, 6
    %v3910 = vsel %vm3405, %v3909, %v3908
    %v3911 = vrot.slane %v3875, 5
    %v3912 = vsel %vm3408, %v3911, %v3910
    %v3913 = vrot.slane %v3876, 4
    %v3914 = vsel %vm3411, %v3913, %v3912
    %v3915 = vrot.slane %v3877, 3
    %v3916 = vsel %vm3414, %v3915, %v3914
    %v3917 = vrot.slane %v3878, 2
    %v3918 = vrot.slane %v3879, 1
    %v3919 = vsel %vm3396, %v3918, %v3917
    %v3930 = vrot.slane %v3881, 7
    %v3931 = vsel %vm3402, %v3930, %v3880
    %v3932 = vrot.slane %v3882, 6
    %v3933 = vsel %vm3405, %v3932, %v3931
    %v3934 = vrot.slane %v3883, 5
    %v3935 = vsel %vm3408, %v3934, %v3933
    %v3936 = vrot.slane %v3884, 4
    %v3937 = vsel %vm3411, %v3936, %v3935
    %v3938 = vrot.slane %v3885, 3
    %v3939 = vsel %vm3414, %v3938, %v3937
    %v3940 = vrot.slane %v3886, 2
    %v3941 = vrot.slane %v3887, 1
    %v3942 = vsel %vm3396, %v3941, %v3940
    %3943 = vrot.lane.b32.xlu0 %v3939, 64
    %v3944 = vpop.permute.xlu0 %3943
    %3945 = vrot.lane.b32.xlu0 %v3942, 64
    %v3946 = vpop.permute.xlu0 %3945
    %v3949 = vsel %vm3430, %v3892, %v3897
    %v3950 = vsel %vm3430, %v3893, %v3897
    %v3951 = vsel %vm3430, %v3916, %v3944
    %v3952 = vsel %vm3430, %v3919, %v3946
    %v3953 = vrot.slane %v3377, 1
    %v3954 = vsel %vm3396, %v3378, %v3953
    %v3955 = vrot.slane %v3379, 7
    %v3956 = vsel %vm3399, %v3955, %v3954
    %v3957 = vrot.slane %v3380, 6
    %v3958 = vsel %vm3402, %v3957, %v3956
    %v3959 = vrot.slane %v3381, 5
    %v3960 = vsel %vm3405, %v3959, %v3958
    %v3961 = vrot.slane %v3382, 4
    %v3962 = vsel %vm3408, %v3961, %v3960
    %v3963 = vrot.slane %v3383, 3
    %v3964 = vsel %vm3411, %v3963, %v3962
    %v3965 = vrot.slane %v3384, 2
    %v3966 = vsel %vm3414, %v3965, %v3964
    %v3967 = vrot.slane %v3377, 3
    %v3968 = vrot.slane %v3378, 2
    %v3969 = vsel %vm3396, %v3968, %v3967
    %v3970 = vrot.slane %v3379, 1
    %v3971 = vsel %vm3399, %v3970, %v3969
    %v3972 = vsel %vm3402, %v3380, %v3971
    %v3973 = vrot.slane %v3381, 7
    %v3974 = vsel %vm3405, %v3973, %v3972
    %v3975 = vrot.slane %v3382, 6
    %v3976 = vsel %vm3408, %v3975, %v3974
    %v3977 = vrot.slane %v3383, 5
    %v3978 = vsel %vm3411, %v3977, %v3976
    %v3979 = vrot.slane %v3384, 4
    %v3980 = vsel %vm3414, %v3979, %v3978
    %v3981 = vsel %vm3430, %v3966, 0
    %v3983 = vsel %vm3430, %v3980, 0
    %3985 = vmatprep.subr.mxu0 0.0
    %3986 = vmatpush1.xpose.msra.mxu0 %v3983
    %3987 = vmatprep.subr.mxu0 0.0
    %3988 = vmatpush1.xpose.msra.mxu0 0.0
    %3989 = vmatprep.subr.mxu0 0.0
    %3990 = vmatpush1.xpose.msra.mxu0 0.0
    %3991 = vmatprep.subr.mxu0 0.0
    %3992 = vmatpush1.xpose.msra.mxu0 0.0
    %3993 = vmatprep.subr.mxu0 0.0
    %3994 = vmatpush1.xpose.msra.mxu0 0.0
    %3995 = vmatprep.subr.mxu0 0.0
    %3996 = vmatpush1.xpose.msra.mxu0 0.0
    %3997 = vmatprep.subr.mxu0 0.0
    %3998 = vmatpush1.xpose.msra.mxu0 0.0
    %3999 = vmatprep.subr.mxu0 0.0
    %4000 = vmatpush1.xpose.msra.mxu0 0.0
    %4001 = vmatprep.subr.mxu0 0.0
    %4002 = vmatpush1.xpose.msra.mxu0 0.0
    %4003 = vmatprep.subr.mxu0 0.0
    %4004 = vmatpush1.xpose.msra.mxu0 0.0
    %4005 = vmatprep.subr.mxu0 0.0
    %4006 = vmatpush1.xpose.msra.mxu0 0.0
    %4007 = vmatprep.subr.mxu0 0.0
    %4008 = vmatpush1.xpose.msra.mxu0 0.0
    %4009 = vmatprep.subr.mxu0 0.0
    %4010 = vmatpush1.xpose.msra.mxu0 0.0
    %4011 = vmatprep.subr.mxu0 0.0
    %4012 = vmatpush1.xpose.msra.mxu0 0.0
    %4013 = vmatprep.subr.mxu0 0.0
    %4014 = vmatpush1.xpose.msra.mxu0 0.0
    %4015 = vmatprep.subr.mxu0 0.0
    %4016 = vmatpush1.xpose.msra.mxu0 0.0
    %4017 = vmatprep.subr.mxu0 0.0
    %4018 = vmatpush1.xpose.msra.mxu0 0.0
    %4019 = vmatprep.subr.mxu0 0.0
    %4020 = vmatpush1.xpose.msra.mxu0 0.0
    %4021 = vmatprep.subr.mxu0 0.0
    %4022 = vmatpush1.xpose.msra.mxu0 0.0
    %4023 = vmatprep.subr.mxu0 0.0
    %4024 = vmatpush1.xpose.msra.mxu0 0.0
    %4025 = vmatprep.subr.mxu0 0.0
    %4026 = vmatpush1.xpose.msra.mxu0 0.0
    %4027 = vmatprep.subr.mxu0 0.0
    %4028 = vmatpush1.xpose.msra.mxu0 0.0
    %4029 = vmatprep.subr.mxu0 0.0
    %4030 = vmatpush1.xpose.msra.mxu0 0.0
    %4031 = vmatprep.subr.mxu0 0.0
    %4032 = vmatpush1.xpose.msra.mxu0 0.0
    %4033 = vmatprep.subr.mxu0 0.0
    %4034 = vmatpush1.xpose.msra.mxu0 0.0
    %4035 = vmatprep.subr.mxu0 0.0
    %4036 = vmatpush1.xpose.msra.mxu0 0.0
    %4037 = vmatprep.subr.mxu0 0.0
    %4038 = vmatpush1.xpose.msra.mxu0 0.0
    %4039 = vmatprep.subr.mxu0 0.0
    %4040 = vmatpush1.xpose.msra.mxu0 0.0
    %4041 = vmatprep.subr.mxu0 0.0
    %4042 = vmatpush1.xpose.msra.mxu0 0.0
    %4043 = vmatprep.subr.mxu0 0.0
    %4044 = vmatpush1.xpose.msra.mxu0 0.0
    %4045 = vmatprep.subr.mxu0 0.0
    %4046 = vmatpush1.xpose.msra.mxu0 0.0
    %4047 = vmatprep.subr.mxu0 0.0
    %4048 = vmatpush1.xpose.msra.mxu0 0.0
    %4049 = vmatprep.mubr.f32.mxu0 0.0
    %4050 = vmatmul.mubr.f32.gmra.mrb[0].mxu0 %v3981
    %v4051 = vpop.f32.mrb[0].mxu0
    %v4052 = vadd.f32 0.0, %v4051
    %v4053 = vpop.f32.mrb[0].mxu0
    %4054 = vdwg.mxu0
    %4055 = vmatprep.subr.mxu0 0.0
    %4056 = vmatpush1.xpose.msra.mxu0 %v3981
    %4057 = vmatprep.subr.mxu0 0.0
    %4058 = vmatpush1.xpose.msra.mxu0 0.0
    %4059 = vmatprep.subr.mxu0 0.0
    %4060 = vmatpush1.xpose.msra.mxu0 0.0
    %4061 = vmatprep.subr.mxu0 0.0
    %4062 = vmatpush1.xpose.msra.mxu0 0.0
    %4063 = vmatprep.subr.mxu0 0.0
    %4064 = vmatpush1.xpose.msra.mxu0 0.0
    %4065 = vmatprep.subr.mxu0 0.0
    %4066 = vmatpush1.xpose.msra.mxu0 0.0
    %4067 = vmatprep.subr.mxu0 0.0
    %4068 = vmatpush1.xpose.msra.mxu0 0.0
    %4069 = vmatprep.subr.mxu0 0.0
    %4070 = vmatpush1.xpose.msra.mxu0 0.0
    %4071 = vmatprep.subr.mxu0 0.0
    %4072 = vmatpush1.xpose.msra.mxu0 0.0
    %4073 = vmatprep.subr.mxu0 0.0
    %4074 = vmatpush1.xpose.msra.mxu0 0.0
    %4075 = vmatprep.subr.mxu0 0.0
    %4076 = vmatpush1.xpose.msra.mxu0 0.0
    %4077 = vmatprep.subr.mxu0 0.0
    %4078 = vmatpush1.xpose.msra.mxu0 0.0
    %4079 = vmatprep.subr.mxu0 0.0
    %4080 = vmatpush1.xpose.msra.mxu0 0.0
    %4081 = vmatprep.subr.mxu0 0.0
    %4082 = vmatpush1.xpose.msra.mxu0 0.0
    %4083 = vmatprep.subr.mxu0 0.0
    %4084 = vmatpush1.xpose.msra.mxu0 0.0
    %4085 = vmatprep.subr.mxu0 0.0
    %4086 = vmatpush1.xpose.msra.mxu0 0.0
    %4087 = vmatprep.subr.mxu0 0.0
    %4088 = vmatpush1.xpose.msra.mxu0 0.0
    %4089 = vmatprep.subr.mxu0 0.0
    %4090 = vmatpush1.xpose.msra.mxu0 0.0
    %4091 = vmatprep.subr.mxu0 0.0
    %4092 = vmatpush1.xpose.msra.mxu0 0.0
    %4093 = vmatprep.subr.mxu0 0.0
    %4094 = vmatpush1.xpose.msra.mxu0 0.0
    %4095 = vmatprep.subr.mxu0 0.0
    %4096 = vmatpush1.xpose.msra.mxu0 0.0
    %4097 = vmatprep.subr.mxu0 0.0
    %4098 = vmatpush1.xpose.msra.mxu0 0.0
    %4099 = vmatprep.subr.mxu0 0.0
    %4100 = vmatpush1.xpose.msra.mxu0 0.0
    %4101 = vmatprep.subr.mxu0 0.0
    %4102 = vmatpush1.xpose.msra.mxu0 0.0
    %4103 = vmatprep.subr.mxu0 0.0
    %4104 = vmatpush1.xpose.msra.mxu0 0.0
    %4105 = vmatprep.subr.mxu0 0.0
    %4106 = vmatpush1.xpose.msra.mxu0 0.0
    %4107 = vmatprep.subr.mxu0 0.0
    %4108 = vmatpush1.xpose.msra.mxu0 0.0
    %4109 = vmatprep.subr.mxu0 0.0
    %4110 = vmatpush1.xpose.msra.mxu0 0.0
    %4111 = vmatprep.subr.mxu0 0.0
    %4112 = vmatpush1.xpose.msra.mxu0 0.0
    %4113 = vmatprep.subr.mxu0 0.0
    %4114 = vmatpush1.xpose.msra.mxu0 0.0
    %4115 = vmatprep.subr.mxu0 0.0
    %4116 = vmatpush1.xpose.msra.mxu0 0.0
    %4117 = vmatprep.subr.mxu0 0.0
    %4118 = vmatpush1.xpose.msra.mxu0 0.0
    %4119 = vmatprep.mubr.f32.mxu0 0.0
    %4120 = vmatmul.mubr.f32.gmra.mrb[0].mxu0 %v3983
    %v4121 = vpop.f32.mrb[0].mxu0
    %v4122 = vadd.f32 0.0, %v4121
    %v4123 = vpop.f32.mrb[0].mxu0
    %4124 = vdwg.mxu0
    %v4125 = vlaneseq
    %v4126 = vshrl.u32 %v4125, 7
    %v4127 = vsub.s32 3, %v4126
    %v4128 = vrot.slane %v3385, %v4127
    %v4129 = vmul.f32 %v4052, %v4128
    %v4130 = vsel %vm3580, %v4129, -inf
    %4131 = vmax.xlane.f32.xlu0 %v4130
    %v4132 = vpop.xlane.xlu0 %4131
    %v4133 = vsub.f32 %v4129, %v4132
    %v4134 = vmul.f32 %v4133, 1.442695
    %v4135 = vpow.pop %v4134
    %v4136 = vmul.f32 %v4135, %v4128
    %v4137 = vsel %vm3580, %v4136, 0.0
    %4138 = vadd.xlane.f32.xlu0 %v4137
    %v4139 = vpop.xlane.xlu0 %4138
    %v4140 = vadd.f32 %v4139, 1e-13
    %v4141 = vrcp.pop %v4140
    %v4142 = vmul.f32 %v4136, %v4141
    %v4143 = vlaneseq
    %v4144 = vshrl.u32 %v4143, 7
    %v4145 = vsub.s32 1, %v4144
    %v4146 = vrot.slane %v3385, %v4145
    %v4147 = vmul.f32 %v4122, %v4146
    %v4148 = vsel %vm3580, %v4147, -inf
    %4149 = vmax.xlane.f32.xlu0 %v4148
    %v4150 = vpop.xlane.xlu0 %4149
    %v4151 = vsub.f32 %v4147, %v4150
    %v4152 = vmul.f32 %v4151, 1.442695
    %v4153 = vpow.pop %v4152
    %v4154 = vmul.f32 %v4153, %v4146
    %v4155 = vsel %vm3580, %v4154, 0.0
    %4156 = vadd.xlane.f32.xlu0 %v4155
    %v4157 = vpop.xlane.xlu0 %4156
    %v4158 = vadd.f32 %v4157, 1e-13
    %v4159 = vrcp.pop %v4158
    %v4160 = vmul.f32 %v4154, %v4159
    %v4163 = vsel %vm3580, %v4142, 0
    %4165 = vmatprep.subr.mxu0 0.0
    %4166 = vmatpush1.msra.mxu0 %v3980
    %4167 = vmatprep.subr.mxu0 0.0
    %4168 = vmatpush1.msra.mxu0 0.0
    %4169 = vmatprep.subr.mxu0 0.0
    %4170 = vmatpush1.msra.mxu0 0.0
    %4171 = vmatprep.subr.mxu0 0.0
    %4172 = vmatpush1.msra.mxu0 0.0
    %4173 = vmatprep.subr.mxu0 0.0
    %4174 = vmatpush1.msra.mxu0 0.0
    %4175 = vmatprep.subr.mxu0 0.0
    %4176 = vmatpush1.msra.mxu0 0.0
    %4177 = vmatprep.subr.mxu0 0.0
    %4178 = vmatpush1.msra.mxu0 0.0
    %4179 = vmatprep.subr.mxu0 0.0
    %4180 = vmatpush1.msra.mxu0 0.0
    %4181 = vmatprep.subr.mxu0 0.0
    %4182 = vmatpush1.msra.mxu0 0.0
    %4183 = vmatprep.subr.mxu0 0.0
    %4184 = vmatpush1.msra.mxu0 0.0
    %4185 = vmatprep.subr.mxu0 0.0
    %4186 = vmatpush1.msra.mxu0 0.0
    %4187 = vmatprep.subr.mxu0 0.0
    %4188 = vmatpush1.msra.mxu0 0.0
    %4189 = vmatprep.subr.mxu0 0.0
    %4190 = vmatpush1.msra.mxu0 0.0
    %4191 = vmatprep.subr.mxu0 0.0
    %4192 = vmatpush1.msra.mxu0 0.0
    %4193 = vmatprep.subr.mxu0 0.0
    %4194 = vmatpush1.msra.mxu0 0.0
    %4195 = vmatprep.subr.mxu0 0.0
    %4196 = vmatpush1.msra.mxu0 0.0
    %4197 = vmatprep.subr.mxu0 0.0
    %4198 = vmatpush1.msra.mxu0 0.0
    %4199 = vmatprep.subr.mxu0 0.0
    %4200 = vmatpush1.msra.mxu0 0.0
    %4201 = vmatprep.subr.mxu0 0.0
    %4202 = vmatpush1.msra.mxu0 0.0
    %4203 = vmatprep.subr.mxu0 0.0
    %4204 = vmatpush1.msra.mxu0 0.0
    %4205 = vmatprep.subr.mxu0 0.0
    %4206 = vmatpush1.msra.mxu0 0.0
    %4207 = vmatprep.subr.mxu0 0.0
    %4208 = vmatpush1.msra.mxu0 0.0
    %4209 = vmatprep.subr.mxu0 0.0
    %4210 = vmatpush1.msra.mxu0 0.0
    %4211 = vmatprep.subr.mxu0 0.0
    %4212 = vmatpush1.msra.mxu0 0.0
    %4213 = vmatprep.subr.mxu0 0.0
    %4214 = vmatpush1.msra.mxu0 0.0
    %4215 = vmatprep.subr.mxu0 0.0
    %4216 = vmatpush1.msra.mxu0 0.0
    %4217 = vmatprep.subr.mxu0 0.0
    %4218 = vmatpush1.msra.mxu0 0.0
    %4219 = vmatprep.subr.mxu0 0.0
    %4220 = vmatpush1.msra.mxu0 0.0
    %4221 = vmatprep.subr.mxu0 0.0
    %4222 = vmatpush1.msra.mxu0 0.0
    %4223 = vmatprep.subr.mxu0 0.0
    %4224 = vmatpush1.msra.mxu0 0.0
    %4225 = vmatprep.subr.mxu0 0.0
    %4226 = vmatpush1.msra.mxu0 0.0
    %4227 = vmatprep.subr.mxu0 0.0
    %4228 = vmatpush1.msra.mxu0 0.0
    %4229 = vmatprep.mubr.f32.mxu0 0.0
    %4230 = vmatmul.mubr.f32.gmra.mrb[0].mxu0 %v4163
    %v4231 = vpop.f32.mrb[0].mxu0
    %v4232 = vadd.f32 0.0, %v4231
    %v4233 = vpop.f32.mrb[0].mxu0
    %4234 = vdwg.mxu0
    %4235 = vset.pattern.permute.xlu0 1
    %4236 = vperm.xlu0 %4235, %v3386
    %v4237 = vpop.permute.xlu0 %4236
    %v4239 = vmul.f32 %v4232, %v4237
    %v4242 = vsel %vm3580, %v4160, 0
    %4244 = vmatprep.subr.mxu0 0.0
    %4245 = vmatpush1.msra.mxu0 %v3966
    %4246 = vmatprep.subr.mxu0 0.0
    %4247 = vmatpush1.msra.mxu0 0.0
    %4248 = vmatprep.subr.mxu0 0.0
    %4249 = vmatpush1.msra.mxu0 0.0
    %4250 = vmatprep.subr.mxu0 0.0
    %4251 = vmatpush1.msra.mxu0 0.0
    %4252 = vmatprep.subr.mxu0 0.0
    %4253 = vmatpush1.msra.mxu0 0.0
    %4254 = vmatprep.subr.mxu0 0.0
    %4255 = vmatpush1.msra.mxu0 0.0
    %4256 = vmatprep.subr.mxu0 0.0
    %4257 = vmatpush1.msra.mxu0 0.0
    %4258 = vmatprep.subr.mxu0 0.0
    %4259 = vmatpush1.msra.mxu0 0.0
    %4260 = vmatprep.subr.mxu0 0.0
    %4261 = vmatpush1.msra.mxu0 0.0
    %4262 = vmatprep.subr.mxu0 0.0
    %4263 = vmatpush1.msra.mxu0 0.0
    %4264 = vmatprep.subr.mxu0 0.0
    %4265 = vmatpush1.msra.mxu0 0.0
    %4266 = vmatprep.subr.mxu0 0.0
    %4267 = vmatpush1.msra.mxu0 0.0
    %4268 = vmatprep.subr.mxu0 0.0
    %4269 = vmatpush1.msra.mxu0 0.0
    %4270 = vmatprep.subr.mxu0 0.0
    %4271 = vmatpush1.msra.mxu0 0.0
    %4272 = vmatprep.subr.mxu0 0.0
    %4273 = vmatpush1.msra.mxu0 0.0
    %4274 = vmatprep.subr.mxu0 0.0
    %4275 = vmatpush1.msra.mxu0 0.0
    %4276 = vmatprep.subr.mxu0 0.0
    %4277 = vmatpush1.msra.mxu0 0.0
    %4278 = vmatprep.subr.mxu0 0.0
    %4279 = vmatpush1.msra.mxu0 0.0
    %4280 = vmatprep.subr.mxu0 0.0
    %4281 = vmatpush1.msra.mxu0 0.0
    %4282 = vmatprep.subr.mxu0 0.0
    %4283 = vmatpush1.msra.mxu0 0.0
    %4284 = vmatprep.subr.mxu0 0.0
    %4285 = vmatpush1.msra.mxu0 0.0
    %4286 = vmatprep.subr.mxu0 0.0
    %4287 = vmatpush1.msra.mxu0 0.0
    %4288 = vmatprep.subr.mxu0 0.0
    %4289 = vmatpush1.msra.mxu0 0.0
    %4290 = vmatprep.subr.mxu0 0.0
    %4291 = vmatpush1.msra.mxu0 0.0
    %4292 = vmatprep.subr.mxu0 0.0
    %4293 = vmatpush1.msra.mxu0 0.0
    %4294 = vmatprep.subr.mxu0 0.0
    %4295 = vmatpush1.msra.mxu0 0.0
    %4296 = vmatprep.subr.mxu0 0.0
    %4297 = vmatpush1.msra.mxu0 0.0
    %4298 = vmatprep.subr.mxu0 0.0
    %4299 = vmatpush1.msra.mxu0 0.0
    %4300 = vmatprep.subr.mxu0 0.0
    %4301 = vmatpush1.msra.mxu0 0.0
    %4302 = vmatprep.subr.mxu0 0.0
    %4303 = vmatpush1.msra.mxu0 0.0
    %4304 = vmatprep.subr.mxu0 0.0
    %4305 = vmatpush1.msra.mxu0 0.0
    %4306 = vmatprep.subr.mxu0 0.0
    %4307 = vmatpush1.msra.mxu0 0.0
    %4308 = vmatprep.mubr.f32.mxu0 0.0
    %4309 = vmatmul.mubr.f32.gmra.mrb[0].mxu0 %v4242
    %v4310 = vpop.f32.mrb[0].mxu0
    %v4311 = vadd.f32 0.0, %v4310
    %v4312 = vpop.f32.mrb[0].mxu0
    %4313 = vdwg.mxu0
    %4314 = vset.pattern.permute.xlu0 3
    %4315 = vperm.xlu0 %4314, %v3386
    %v4316 = vpop.permute.xlu0 %4315
    %v4318 = vmul.f32 %v4311, %v4316
    %v4320 = vrot.slane %v4239, 7
    %v4321 = vrot.slane %v4239, 1
    %v4322 = vrot.slane %v4239, 2
    %v4323 = vrot.slane %v4239, 3
    %v4324 = vrot.slane %v4239, 4
    %v4325 = vrot.slane %v4239, 5
    %v4326 = vrot.slane %v4239, 6
    %v4335 = vsub.f32 %v3377, %v4320
    %v4336 = vsub.f32 %v3378, %v4239
    %v4337 = vsub.f32 %v3379, %v4321
    %v4338 = vsub.f32 %v3380, %v4322
    %v4339 = vsub.f32 %v3381, %v4323
    %v4340 = vsub.f32 %v3382, %v4324
    %v4341 = vsub.f32 %v3383, %v4325
    %v4342 = vsub.f32 %v3384, %v4326
    %v4343 = vmul.f32 %v3377, %v4320
    %v4344 = vmul.f32 %v3378, %v4239
    %v4345 = vmul.f32 %v3379, %v4321
    %v4346 = vmul.f32 %v3380, %v4322
    %v4347 = vmul.f32 %v3381, %v4323
    %v4348 = vmul.f32 %v3382, %v4324
    %v4349 = vmul.f32 %v3383, %v4325
    %v4350 = vmul.f32 %v3384, %v4326
    %v4351 = vsel %vm3399, %v3395, %v3377
    %v4352 = vsel %vm3402, %v3398, %v4351
    %v4353 = vsel %vm3405, %v3401, %v4352
    %v4354 = vsel %vm3408, %v3404, %v4353
    %v4355 = vsel %vm3411, %v3407, %v4354
    %v4356 = vsel %vm3414, %v3410, %v4355
    %4359 = vrot.lane.b32.xlu0 %v4320, 64
    %v4360 = vpop.permute.xlu0 %4359
    %v4370 = vrot.slane %v4336, 7
    %v4371 = vsel %vm3399, %v4370, %v4335
    %v4372 = vrot.slane %v4337, 6
    %v4373 = vsel %vm3402, %v4372, %v4371
    %v4374 = vrot.slane %v4338, 5
    %v4375 = vsel %vm3405, %v4374, %v4373
    %v4376 = vrot.slane %v4339, 4
    %v4377 = vsel %vm3408, %v4376, %v4375
    %v4378 = vrot.slane %v4340, 3
    %v4379 = vsel %vm3411, %v4378, %v4377
    %v4380 = vrot.slane %v4341, 2
    %v4381 = vsel %vm3414, %v4380, %v4379
    %v4382 = vrot.slane %v4342, 1
    %v4393 = vrot.slane %v4344, 7
    %v4394 = vsel %vm3399, %v4393, %v4343
    %v4395 = vrot.slane %v4345, 6
    %v4396 = vsel %vm3402, %v4395, %v4394
    %v4397 = vrot.slane %v4346, 5
    %v4398 = vsel %vm3405, %v4397, %v4396
    %v4399 = vrot.slane %v4347, 4
    %v4400 = vsel %vm3408, %v4399, %v4398
    %v4401 = vrot.slane %v4348, 3
    %v4402 = vsel %vm3411, %v4401, %v4400
    %v4403 = vrot.slane %v4349, 2
    %v4404 = vsel %vm3414, %v4403, %v4402
    %v4405 = vrot.slane %v4350, 1
    %4406 = vrot.lane.b32.xlu0 %v4404, 64
    %v4407 = vpop.permute.xlu0 %4406
    %4408 = vrot.lane.b32.xlu0 %v4405, 64
    %v4409 = vpop.permute.xlu0 %4408
    %v4412 = vsel %vm3430, %v4356, %v4360
    %v4413 = vsel %vm3430, %v3413, %v4360
    %v4414 = vsel %vm3430, %v4381, %v4407
    %v4415 = vsel %vm3430, %v4382, %v4409
    %v4417 = vrot.slane %v4318, 5
    %v4418 = vrot.slane %v4318, 6
    %v4419 = vrot.slane %v4318, 7
    %v4420 = vrot.slane %v4318, 1
    %v4421 = vrot.slane %v4318, 2
    %v4422 = vrot.slane %v4318, 3
    %v4423 = vrot.slane %v4318, 4
    %v4432 = vsub.f32 %v3377, %v4417
    %v4433 = vsub.f32 %v3378, %v4418
    %v4434 = vsub.f32 %v3379, %v4419
    %v4435 = vsub.f32 %v3380, %v4318
    %v4436 = vsub.f32 %v3381, %v4420
    %v4437 = vsub.f32 %v3382, %v4421
    %v4438 = vsub.f32 %v3383, %v4422
    %v4439 = vsub.f32 %v3384, %v4423
    %v4440 = vmul.f32 %v3377, %v4417
    %v4441 = vmul.f32 %v3378, %v4418
    %v4442 = vmul.f32 %v3379, %v4419
    %v4443 = vmul.f32 %v3380, %v4318
    %v4444 = vmul.f32 %v3381, %v4420
    %v4445 = vmul.f32 %v3382, %v4421
    %v4446 = vmul.f32 %v3383, %v4422
    %v4447 = vmul.f32 %v3384, %v4423
    %v4448 = vsel %vm3405, %v3395, %v3377
    %v4449 = vsel %vm3408, %v3398, %v4448
    %v4450 = vsel %vm3411, %v3401, %v4449
    %v4451 = vsel %vm3414, %v3404, %v4450
    %v4452 = vsel %vm3396, %v3410, %v3407
    %v4453 = vsel %vm3399, %v3413, %v4452
    %4456 = vrot.lane.b32.xlu0 %v4417, 64
    %v4457 = vpop.permute.xlu0 %4456
    %v4467 = vrot.slane %v4433, 7
    %v4468 = vsel %vm3405, %v4467, %v4432
    %v4469 = vrot.slane %v4434, 6
    %v4470 = vsel %vm3408, %v4469, %v4468
    %v4471 = vrot.slane %v4435, 5
    %v4472 = vsel %vm3411, %v4471, %v4470
    %v4473 = vrot.slane %v4436, 4
    %v4474 = vsel %vm3414, %v4473, %v4472
    %v4475 = vrot.slane %v4437, 3
    %v4476 = vrot.slane %v4438, 2
    %v4477 = vsel %vm3396, %v4476, %v4475
    %v4478 = vrot.slane %v4439, 1
    %v4479 = vsel %vm3399, %v4478, %v4477
    %v4490 = vrot.slane %v4441, 7
    %v4491 = vsel %vm3405, %v4490, %v4440
    %v4492 = vrot.slane %v4442, 6
    %v4493 = vsel %vm3408, %v4492, %v4491
    %v4494 = vrot.slane %v4443, 5
    %v4495 = vsel %vm3411, %v4494, %v4493
    %v4496 = vrot.slane %v4444, 4
    %v4497 = vsel %vm3414, %v4496, %v4495
    %v4498 = vrot.slane %v4445, 3
    %v4499 = vrot.slane %v4446, 2
    %v4500 = vsel %vm3396, %v4499, %v4498
    %v4501 = vrot.slane %v4447, 1
    %v4502 = vsel %vm3399, %v4501, %v4500
    %4503 = vrot.lane.b32.xlu0 %v4497, 64
    %v4504 = vpop.permute.xlu0 %4503
    %4505 = vrot.lane.b32.xlu0 %v4502, 64
    %v4506 = vpop.permute.xlu0 %4505
    %v4509 = vsel %vm3430, %v4451, %v4457
    %v4510 = vsel %vm3430, %v4453, %v4457
    %v4511 = vsel %vm3430, %v4474, %v4504
    %v4512 = vsel %vm3430, %v4479, %v4506
    %vm4517 = vcmask 1046528
    %v4518 = vrot.slane %v4412, 1
    %v4519 = vrot.slane %v4413, 1
    %v4520 = vsel %vm4517, %v4518, %v4519
    %v4521 = vrot.slane %v4414, 1
    %v4522 = vrot.slane %v4415, 1
    %v4523 = vsel %vm4517, %v4521, %v4522
    %v4530 = vrot.slane %v3949, 2
    %v4531 = vrot.slane %v3950, 2
    %v4532 = vsel %vm1704, %v4530, %v4531
    %v4533 = vrot.slane %v3951, 2
    %v4534 = vrot.slane %v3952, 2
    %v4535 = vsel %vm1704, %v4533, %v4534
    %vm4542 = vcmask 1044480
    %v4543 = vrot.slane %v4509, 3
    %v4544 = vrot.slane %v4510, 3
    %v4545 = vsel %vm4542, %v4543, %v4544
    %v4546 = vrot.slane %v4511, 3
    %v4547 = vrot.slane %v4512, 3
    %v4548 = vsel %vm4542, %v4546, %v4547
    %v4551 = vld [vmem:[%s16] sm:$0xff]
    %v4552 = vld [vmem:[%s16 + $0x8] sm:$0xff]
    %v4553 = vld [vmem:[%s16 + $0x10] sm:$0xff]
    %v4554 = vld [vmem:[%s16 + $0x18] sm:$0xff]
    %v4555 = vld [vmem:[%s16 + $0x20] sm:$0xff]
    %v4556 = vld [vmem:[%s16 + $0x28] sm:$0xff]
    %v4557 = vld [vmem:[%s16 + $0x30] sm:$0xff]
    %v4558 = vld [vmem:[%s16 + $0x38] sm:$0xff]
    %v4559 = vld [vmem:[%s16 + $0x40] sm:$0xff]
    %v4560 = vld [vmem:[%s16 + $0x48] sm:$0xff]
    %v4561 = vld [vmem:[%s16 + $0x50] sm:$0xff]
    %v4562 = vld [vmem:[%s16 + $0x58] sm:$0xff]
    %v4563 = vld [vmem:[%s16 + $0x60] sm:$0xff]
    %v4564 = vld [vmem:[%s16 + $0x68] sm:$0xff]
    %v4565 = vld [vmem:[%s16 + $0x70] sm:$0xff]
    %v4566 = vld [vmem:[%s16 + $0x78] sm:$0xff]
    %v4567 = vld [vmem:[%s16 + $0x80] sm:$0xff]
    %v4568 = vld [vmem:[%s16 + $0x88] sm:$0xff]
    %v4569 = vld [vmem:[%s16 + $0x90] sm:$0xff]
    %v4570 = vld [vmem:[%s16 + $0x98] sm:$0xff]
    %v4571 = vld [vmem:[%s16 + $0xa0] sm:$0xff]
    %v4572 = vld [vmem:[%s16 + $0xa8] sm:$0xff]
    %v4573 = vld [vmem:[%s16 + $0xb0] sm:$0xff]
    %v4574 = vld [vmem:[%s16 + $0xb8] sm:$0xff]
    %v4575 = vld [vmem:[%s16 + $0xc0] sm:$0xff]
    %v4576 = vld [vmem:[%s16 + $0xc8] sm:$0xff]
    %v4577 = vld [vmem:[%s16 + $0xd0] sm:$0xff]
    %v4578 = vld [vmem:[%s16 + $0xd8] sm:$0xff]
    %v4579 = vld [vmem:[%s16 + $0xe0] sm:$0xff]
    %v4580 = vld [vmem:[%s16 + $0xe8] sm:$0xff]
    %v4581 = vld [vmem:[%s16 + $0xf0] sm:$0xff]
    %v4582 = vld [vmem:[%s16 + $0xf8] sm:$0xff]
    %v4583 = vld [vmem:[%s17] sm:$0x1]
    %v4585 = vlaneseq
    %v4586 = vshrl.u32 %v4585, 7
    %v4587 = vsub.s32 0, %v4586
    %v4588 = vrot.slane %v4583, %v4587
    %4590 = vmatprep.subr.mxu0 0.0
    %4591 = vmatpush1.msra.mxu0 %v4551
    %4592 = vmatprep.subr.mxu0 0.0
    %4593 = vmatpush1.msra.mxu0 %v4552
    %4594 = vmatprep.subr.mxu0 0.0
    %4595 = vmatpush1.msra.mxu0 %v4553
    %4596 = vmatprep.subr.mxu0 0.0
    %4597 = vmatpush1.msra.mxu0 %v4554
    %4598 = vmatprep.subr.mxu0 0.0
    %4599 = vmatpush1.msra.mxu0 %v4555
    %4600 = vmatprep.subr.mxu0 0.0
    %4601 = vmatpush1.msra.mxu0 %v4556
    %4602 = vmatprep.subr.mxu0 0.0
    %4603 = vmatpush1.msra.mxu0 %v4557
    %4604 = vmatprep.subr.mxu0 0.0
    %4605 = vmatpush1.msra.mxu0 %v4558
    %4606 = vmatprep.subr.mxu0 0.0
    %4607 = vmatpush1.msra.mxu0 %v4559
    %4608 = vmatprep.subr.mxu0 0.0
    %4609 = vmatpush1.msra.mxu0 %v4560
    %4610 = vmatprep.subr.mxu0 0.0
    %4611 = vmatpush1.msra.mxu0 %v4561
    %4612 = vmatprep.subr.mxu0 0.0
    %4613 = vmatpush1.msra.mxu0 %v4562
    %4614 = vmatprep.subr.mxu0 0.0
    %4615 = vmatpush1.msra.mxu0 %v4563
    %4616 = vmatprep.subr.mxu0 0.0
    %4617 = vmatpush1.msra.mxu0 %v4564
    %4618 = vmatprep.subr.mxu0 0.0
    %4619 = vmatpush1.msra.mxu0 %v4565
    %4620 = vmatprep.subr.mxu0 0.0
    %4621 = vmatpush1.msra.mxu0 %v4566
    %4622 = vmatprep.subr.mxu0 0.0
    %4623 = vmatpush1.msra.mxu0 %v4567
    %4624 = vmatprep.subr.mxu0 0.0
    %4625 = vmatpush1.msra.mxu0 %v4568
    %4626 = vmatprep.subr.mxu0 0.0
    %4627 = vmatpush1.msra.mxu0 %v4569
    %4628 = vmatprep.subr.mxu0 0.0
    %4629 = vmatpush1.msra.mxu0 %v4570
    %4630 = vmatprep.subr.mxu0 0.0
    %4631 = vmatpush1.msra.mxu0 %v4571
    %4632 = vmatprep.subr.mxu0 0.0
    %4633 = vmatpush1.msra.mxu0 %v4572
    %4634 = vmatprep.subr.mxu0 0.0
    %4635 = vmatpush1.msra.mxu0 %v4573
    %4636 = vmatprep.subr.mxu0 0.0
    %4637 = vmatpush1.msra.mxu0 %v4574
    %4638 = vmatprep.subr.mxu0 0.0
    %4639 = vmatpush1.msra.mxu0 %v4575
    %4640 = vmatprep.subr.mxu0 0.0
    %4641 = vmatpush1.msra.mxu0 %v4576
    %4642 = vmatprep.subr.mxu0 0.0
    %4643 = vmatpush1.msra.mxu0 %v4577
    %4644 = vmatprep.subr.mxu0 0.0
    %4645 = vmatpush1.msra.mxu0 %v4578
    %4646 = vmatprep.subr.mxu0 0.0
    %4647 = vmatpush1.msra.mxu0 %v4579
    %4648 = vmatprep.subr.mxu0 0.0
    %4649 = vmatpush1.msra.mxu0 %v4580
    %4650 = vmatprep.subr.mxu0 0.0
    %4651 = vmatpush1.msra.mxu0 %v4581
    %4652 = vmatprep.subr.mxu0 0.0
    %4653 = vmatpush1.msra.mxu0 %v4582
    %4654 = vmatprep.mubr.f32.mxu0 %v3855
    %4655 = vmatmul.mubr.f32.gmra.mrb[0].mxu0 %v3854
    %v4656 = vpop.f32.mrb[0].mxu0
    %v4657 = vadd.f32 %v4588, %v4656
    %v4658 = vpop.f32.mrb[0].mxu0
    %4659 = vmatprep.mubr.f32.mxu0 %v4523
    %4660 = vmatmul.mubr.f32.gmra.mrb[0].mxu0 %v4520
    %v4661 = vpop.f32.mrb[0].mxu0
    %v4662 = vadd.f32 %v4588, %v4661
    %v4663 = vpop.f32.mrb[0].mxu0
    %4664 = vmatprep.mubr.f32.mxu0 %v4535
    %4665 = vmatmul.mubr.f32.gmra.mrb[0].mxu0 %v4532
    %v4666 = vpop.f32.mrb[0].mxu0
    %v4667 = vadd.f32 %v4588, %v4666
    %v4668 = vpop.f32.mrb[0].mxu0
    %4669 = vmatprep.mubr.f32.mxu0 %v4548
    %4670 = vmatmul.mubr.f32.gmra.mrb[0].mxu0 %v4545
    %v4671 = vpop.f32.mrb[0].mxu0
    %v4672 = vadd.f32 %v4588, %v4671
    %v4673 = vpop.f32.mrb[0].mxu0
    %4674 = vdwg.mxu0
    %v4675 = vmax.f32 %v4657, 0.0
    %v4676 = vmax.f32 %v4662, 0.0
    %v4677 = vmax.f32 %v4667, 0.0
    %v4678 = vmax.f32 %v4672, 0.0
    %v4680 = vrot.slane %v4676, 7
    %v4683 = vrot.slane %v4677, 6
    %v4686 = vrot.slane %v4678, 5
    %v4689 = vrot.slane %v4675, 5
    %v4691 = vrot.slane %v4676, 4
    %v4693 = vrot.slane %v4677, 3
    %v4695 = vrot.slane %v4678, 2
    %v4697 = vrot.slane %v4675, 2
    %v4699 = vrot.slane %v4676, 1
    %v4701 = vrot.slane %v4678, 7
    %v4703 = vrot.slane %v4675, 7
    %v4705 = vrot.slane %v4676, 6
    %v4707 = vrot.slane %v4677, 5
    %v4709 = vrot.slane %v4678, 4
    %vm4711 = vcmask 1040384
    %v4712 = vsel %vm4711, %v4675, %v4680
    %v4713 = vsel %vm1701, %v4712, %v4683
    %vm4714 = vcmask 1042432
    %v4715 = vsel %vm4714, %v4713, %v4686
    %v4716 = vsel %vm295, %v4715, %v4689
    %v4717 = vsel %vm4542, %v4716, %v4691
    %v4718 = vsel %vm1704, %v4717, %v4693
    %v4719 = vsel %vm4517, %v4718, %v4695
    %v4720 = vsel %vm4711, %v4697, %v4699
    %v4721 = vsel %vm1701, %v4720, %v4677
    %v4722 = vsel %vm4714, %v4721, %v4701
    %v4723 = vsel %vm295, %v4722, %v4703
    %v4724 = vsel %vm4542, %v4723, %v4705
    %v4725 = vsel %vm1704, %v4724, %v4707
    %v4726 = vsel %vm4517, %v4725, %v4709
    %v4727 = vrot.slane %v4675, 4
    %v4729 = vrot.slane %v4676, 3
    %v4731 = vrot.slane %v4677, 2
    %v4733 = vrot.slane %v4678, 1
    %v4735 = vrot.slane %v4675, 1
    %v4737 = vrot.slane %v4677, 7
    %v4739 = vrot.slane %v4678, 6
    %v4741 = vrot.slane %v4675, 6
    %v4743 = vrot.slane %v4676, 5
    %v4745 = vrot.slane %v4677, 4
    %v4747 = vrot.slane %v4678, 3
    %v4749 = vrot.slane %v4675, 3
    %v4751 = vrot.slane %v4676, 2
    %v4753 = vrot.slane %v4677, 1
    %v4755 = vsel %vm4711, %v4727, %v4729
    %v4756 = vsel %vm1701, %v4755, %v4731
    %v4757 = vsel %vm4714, %v4756, %v4733
    %v4758 = vsel %vm295, %v4757, %v4735
    %v4759 = vsel %vm4542, %v4758, %v4676
    %v4760 = vsel %vm1704, %v4759, %v4737
    %v4761 = vsel %vm4517, %v4760, %v4739
    %v4762 = vsel %vm4711, %v4741, %v4743
    %v4763 = vsel %vm1701, %v4762, %v4745
    %v4764 = vsel %vm4714, %v4763, %v4747
    %v4765 = vsel %vm295, %v4764, %v4749
    %v4766 = vsel %vm4542, %v4765, %v4751
    %v4767 = vsel %vm1704, %v4766, %v4753
    %v4768 = vsel %vm4517, %v4767, %v4678
    %v4769 = vld [vmem:[%s10] sm:$0xff]
    %v4770 = vld [vmem:[%s10 + $0x8] sm:$0xff]
    %v4771 = vld [vmem:[%s10 + $0x10] sm:$0xff]
    %v4772 = vld [vmem:[%s10 + $0x18] sm:$0xff]
    %v4773 = vld [vmem:[%s12] sm:$0x1]
    %v4775 = vlaneseq
    %v4776 = vshrl.u32 %v4775, 7
    %v4777 = vsub.s32 0, %v4776
    %v4778 = vrot.slane %v4773, %v4777
    %v4781 = vsel %vm90, %v4719, 0
    %v4784 = vsel %vm90, %v4726, 0
    %v4787 = vsel %vm90, %v4761, 0
    %v4790 = vsel %vm90, %v4768, 0
    %4792 = vmatprep.subr.mxu0 0.0
    %4793 = vmatpush1.msra.mxu0 %v4769
    %4794 = vmatprep.subr.mxu0 0.0
    %4795 = vmatpush1.msra.mxu0 %v4770
    %4796 = vmatprep.subr.mxu0 0.0
    %4797 = vmatpush1.msra.mxu0 %v4771
    %4798 = vmatprep.subr.mxu0 0.0
    %4799 = vmatpush1.msra.mxu0 %v4772
    %4800 = vmatprep.subr.mxu0 0.0
    %4801 = vmatpush1.msra.mxu0 0.0
    %4802 = vmatprep.subr.mxu0 0.0
    %4803 = vmatpush1.msra.mxu0 0.0
    %4804 = vmatprep.subr.mxu0 0.0
    %4805 = vmatpush1.msra.mxu0 0.0
    %4806 = vmatprep.subr.mxu0 0.0
    %4807 = vmatpush1.msra.mxu0 0.0
    %4808 = vmatprep.subr.mxu0 0.0
    %4809 = vmatpush1.msra.mxu0 0.0
    %4810 = vmatprep.subr.mxu0 0.0
    %4811 = vmatpush1.msra.mxu0 0.0
    %4812 = vmatprep.subr.mxu0 0.0
    %4813 = vmatpush1.msra.mxu0 0.0
    %4814 = vmatprep.subr.mxu0 0.0
    %4815 = vmatpush1.msra.mxu0 0.0
    %4816 = vmatprep.subr.mxu0 0.0
    %4817 = vmatpush1.msra.mxu0 0.0
    %4818 = vmatprep.subr.mxu0 0.0
    %4819 = vmatpush1.msra.mxu0 0.0
    %4820 = vmatprep.subr.mxu0 0.0
    %4821 = vmatpush1.msra.mxu0 0.0
    %4822 = vmatprep.subr.mxu0 0.0
    %4823 = vmatpush1.msra.mxu0 0.0
    %4824 = vmatprep.subr.mxu0 0.0
    %4825 = vmatpush1.msra.mxu0 0.0
    %4826 = vmatprep.subr.mxu0 0.0
    %4827 = vmatpush1.msra.mxu0 0.0
    %4828 = vmatprep.subr.mxu0 0.0
    %4829 = vmatpush1.msra.mxu0 0.0
    %4830 = vmatprep.subr.mxu0 0.0
    %4831 = vmatpush1.msra.mxu0 0.0
    %4832 = vmatprep.subr.mxu0 0.0
    %4833 = vmatpush1.msra.mxu0 0.0
    %4834 = vmatprep.subr.mxu0 0.0
    %4835 = vmatpush1.msra.mxu0 0.0
    %4836 = vmatprep.subr.mxu0 0.0
    %4837 = vmatpush1.msra.mxu0 0.0
    %4838 = vmatprep.subr.mxu0 0.0
    %4839 = vmatpush1.msra.mxu0 0.0
    %4840 = vmatprep.subr.mxu0 0.0
    %4841 = vmatpush1.msra.mxu0 0.0
    %4842 = vmatprep.subr.mxu0 0.0
    %4843 = vmatpush1.msra.mxu0 0.0
    %4844 = vmatprep.subr.mxu0 0.0
    %4845 = vmatpush1.msra.mxu0 0.0
    %4846 = vmatprep.subr.mxu0 0.0
    %4847 = vmatpush1.msra.mxu0 0.0
    %4848 = vmatprep.subr.mxu0 0.0
    %4849 = vmatpush1.msra.mxu0 0.0
    %4850 = vmatprep.subr.mxu0 0.0
    %4851 = vmatpush1.msra.mxu0 0.0
    %4852 = vmatprep.subr.mxu0 0.0
    %4853 = vmatpush1.msra.mxu0 0.0
    %4854 = vmatprep.subr.mxu0 0.0
    %4855 = vmatpush1.msra.mxu0 0.0
    %4856 = vmatprep.mubr.f32.mxu0 0.0
    %4857 = vmatmul.mubr.f32.gmra.mrb[0].mxu0 %v4781
    %v4858 = vpop.f32.mrb[0].mxu0
    %v4859 = vadd.f32 %v4778, %v4858
    %v4860 = vpop.f32.mrb[0].mxu0
    %4861 = vmatprep.mubr.f32.mxu0 0.0
    %4862 = vmatmul.mubr.f32.gmra.mrb[0].mxu0 %v4784
    %v4863 = vpop.f32.mrb[0].mxu0
    %v4864 = vadd.f32 %v4778, %v4863
    %v4865 = vpop.f32.mrb[0].mxu0
    %4866 = vmatprep.mubr.f32.mxu0 0.0
    %4867 = vmatmul.mubr.f32.gmra.mrb[0].mxu0 %v4787
    %v4868 = vpop.f32.mrb[0].mxu0
    %v4869 = vadd.f32 %v4778, %v4868
    %v4870 = vpop.f32.mrb[0].mxu0
    %4871 = vmatprep.mubr.f32.mxu0 0.0
    %4872 = vmatmul.mubr.f32.gmra.mrb[0].mxu0 %v4790
    %v4873 = vpop.f32.mrb[0].mxu0
    %v4874 = vadd.f32 %v4778, %v4873
    %v4875 = vpop.f32.mrb[0].mxu0
    %4876 = vdwg.mxu0
    %s4877 = scalar_lea.vmem %s10, 32
    %v4878 = vld [vmem:[%s4877] sm:$0xff]
    %v4879 = vld [vmem:[%s4877 + $0x8] sm:$0xff]
    %v4880 = vld [vmem:[%s4877 + $0x10] sm:$0xff]
    %v4881 = vld [vmem:[%s4877 + $0x18] sm:$0xff]
    %s4882 = scalar_lea.vmem %s12, 1
    %v4883 = vld [vmem:[%s4882] sm:$0x1]
    %v4885 = vlaneseq
    %v4886 = vshrl.u32 %v4885, 7
    %v4887 = vsub.s32 0, %v4886
    %v4888 = vrot.slane %v4883, %v4887
    %4890 = vmatprep.subr.mxu0 0.0
    %4891 = vmatpush1.msra.mxu0 %v4878
    %4892 = vmatprep.subr.mxu0 0.0
    %4893 = vmatpush1.msra.mxu0 %v4879
    %4894 = vmatprep.subr.mxu0 0.0
    %4895 = vmatpush1.msra.mxu0 %v4880
    %4896 = vmatprep.subr.mxu0 0.0
    %4897 = vmatpush1.msra.mxu0 %v4881
    %4898 = vmatprep.subr.mxu0 0.0
    %4899 = vmatpush1.msra.mxu0 0.0
    %4900 = vmatprep.subr.mxu0 0.0
    %4901 = vmatpush1.msra.mxu0 0.0
    %4902 = vmatprep.subr.mxu0 0.0
    %4903 = vmatpush1.msra.mxu0 0.0
    %4904 = vmatprep.subr.mxu0 0.0
    %4905 = vmatpush1.msra.mxu0 0.0
    %4906 = vmatprep.subr.mxu0 0.0
    %4907 = vmatpush1.msra.mxu0 0.0
    %4908 = vmatprep.subr.mxu0 0.0
    %4909 = vmatpush1.msra.mxu0 0.0
    %4910 = vmatprep.subr.mxu0 0.0
    %4911 = vmatpush1.msra.mxu0 0.0
    %4912 = vmatprep.subr.mxu0 0.0
    %4913 = vmatpush1.msra.mxu0 0.0
    %4914 = vmatprep.subr.mxu0 0.0
    %4915 = vmatpush1.msra.mxu0 0.0
    %4916 = vmatprep.subr.mxu0 0.0
    %4917 = vmatpush1.msra.mxu0 0.0
    %4918 = vmatprep.subr.mxu0 0.0
    %4919 = vmatpush1.msra.mxu0 0.0
    %4920 = vmatprep.subr.mxu0 0.0
    %4921 = vmatpush1.msra.mxu0 0.0
    %4922 = vmatprep.subr.mxu0 0.0
    %4923 = vmatpush1.msra.mxu0 0.0
    %4924 = vmatprep.subr.mxu0 0.0
    %4925 = vmatpush1.msra.mxu0 0.0
    %4926 = vmatprep.subr.mxu0 0.0
    %4927 = vmatpush1.msra.mxu0 0.0
    %4928 = vmatprep.subr.mxu0 0.0
    %4929 = vmatpush1.msra.mxu0 0.0
    %4930 = vmatprep.subr.mxu0 0.0
    %4931 = vmatpush1.msra.mxu0 0.0
    %4932 = vmatprep.subr.mxu0 0.0
    %4933 = vmatpush1.msra.mxu0 0.0
    %4934 = vmatprep.subr.mxu0 0.0
    %4935 = vmatpush1.msra.mxu0 0.0
    %4936 = vmatprep.subr.mxu0 0.0
    %4937 = vmatpush1.msra.mxu0 0.0
    %4938 = vmatprep.subr.mxu0 0.0
    %4939 = vmatpush1.msra.mxu0 0.0
    %4940 = vmatprep.subr.mxu0 0.0
    %4941 = vmatpush1.msra.mxu0 0.0
    %4942 = vmatprep.subr.mxu0 0.0
    %4943 = vmatpush1.msra.mxu0 0.0
    %4944 = vmatprep.subr.mxu0 0.0
    %4945 = vmatpush1.msra.mxu0 0.0
    %4946 = vmatprep.subr.mxu0 0.0
    %4947 = vmatpush1.msra.mxu0 0.0
    %4948 = vmatprep.subr.mxu0 0.0
    %4949 = vmatpush1.msra.mxu0 0.0
    %4950 = vmatprep.subr.mxu0 0.0
    %4951 = vmatpush1.msra.mxu0 0.0
    %4952 = vmatprep.subr.mxu0 0.0
    %4953 = vmatpush1.msra.mxu0 0.0
    %4954 = vmatprep.mubr.f32.mxu0 0.0
    %4955 = vmatmul.mubr.f32.gmra.mrb[0].mxu0 %v4781
    %v4956 = vpop.f32.mrb[0].mxu0
    %v4957 = vadd.f32 %v4888, %v4956
    %v4958 = vpop.f32.mrb[0].mxu0
    %4959 = vmatprep.mubr.f32.mxu0 0.0
    %4960 = vmatmul.mubr.f32.gmra.mrb[0].mxu0 %v4784
    %v4961 = vpop.f32.mrb[0].mxu0
    %v4962 = vadd.f32 %v4888, %v4961
    %v4963 = vpop.f32.mrb[0].mxu0
    %4964 = vmatprep.mubr.f32.mxu0 0.0
    %4965 = vmatmul.mubr.f32.gmra.mrb[0].mxu0 %v4787
    %v4966 = vpop.f32.mrb[0].mxu0
    %v4967 = vadd.f32 %v4888, %v4966
    %v4968 = vpop.f32.mrb[0].mxu0
    %4969 = vmatprep.mubr.f32.mxu0 0.0
    %4970 = vmatmul.mubr.f32.gmra.mrb[0].mxu0 %v4790
    %v4971 = vpop.f32.mrb[0].mxu0
    %v4972 = vadd.f32 %v4888, %v4971
    %v4973 = vpop.f32.mrb[0].mxu0
    %4974 = vdwg.mxu0
    %v4975 = vld [vmem:[%s11] sm:$0xff]
    %v4976 = vld [vmem:[%s11 + $0x8] sm:$0xff]
    %v4977 = vld [vmem:[%s11 + $0x10] sm:$0xff]
    %v4978 = vld [vmem:[%s11 + $0x18] sm:$0xff]
    %s4979 = scalar_lea.vmem %s11, 32
    %v4980 = vld [vmem:[%s4979] sm:$0xff]
    %v4981 = vld [vmem:[%s4979 + $0x8] sm:$0xff]
    %v4982 = vld [vmem:[%s4979 + $0x10] sm:$0xff]
    %v4983 = vld [vmem:[%s4979 + $0x18] sm:$0xff]
    %v4984 = vsel %vm295, %v4859, %v4972
    %4985 = vmatprep.subr.mxu0 0.0
    %4986 = vmatpush1.msra.mxu0 %v4975
    %4987 = vmatprep.subr.mxu0 0.0
    %4988 = vmatpush1.msra.mxu0 %v4976
    %4989 = vmatprep.subr.mxu0 0.0
    %4990 = vmatpush1.msra.mxu0 %v4977
    %4991 = vmatprep.subr.mxu0 0.0
    %4992 = vmatpush1.msra.mxu0 %v4978
    %4993 = vmatprep.subr.mxu0 0.0
    %4994 = vmatpush1.msra.mxu0 0.0
    %4995 = vmatprep.subr.mxu0 0.0
    %4996 = vmatpush1.msra.mxu0 0.0
    %4997 = vmatprep.subr.mxu0 0.0
    %4998 = vmatpush1.msra.mxu0 0.0
    %4999 = vmatprep.subr.mxu0 0.0
    %5000 = vmatpush1.msra.mxu0 0.0
    %5001 = vmatprep.subr.mxu0 0.0
    %5002 = vmatpush1.msra.mxu0 0.0
    %5003 = vmatprep.subr.mxu0 0.0
    %5004 = vmatpush1.msra.mxu0 0.0
    %5005 = vmatprep.subr.mxu0 0.0
    %5006 = vmatpush1.msra.mxu0 0.0
    %5007 = vmatprep.subr.mxu0 0.0
    %5008 = vmatpush1.msra.mxu0 0.0
    %5009 = vmatprep.subr.mxu0 0.0
    %5010 = vmatpush1.msra.mxu0 0.0
    %5011 = vmatprep.subr.mxu0 0.0
    %5012 = vmatpush1.msra.mxu0 0.0
    %5013 = vmatprep.subr.mxu0 0.0
    %5014 = vmatpush1.msra.mxu0 0.0
    %5015 = vmatprep.subr.mxu0 0.0
    %5016 = vmatpush1.msra.mxu0 0.0
    %5017 = vmatprep.subr.mxu0 0.0
    %5018 = vmatpush1.msra.mxu0 0.0
    %5019 = vmatprep.subr.mxu0 0.0
    %5020 = vmatpush1.msra.mxu0 0.0
    %5021 = vmatprep.subr.mxu0 0.0
    %5022 = vmatpush1.msra.mxu0 0.0
    %5023 = vmatprep.subr.mxu0 0.0
    %5024 = vmatpush1.msra.mxu0 0.0
    %5025 = vmatprep.subr.mxu0 0.0
    %5026 = vmatpush1.msra.mxu0 0.0
    %5027 = vmatprep.subr.mxu0 0.0
    %5028 = vmatpush1.msra.mxu0 0.0
    %5029 = vmatprep.subr.mxu0 0.0
    %5030 = vmatpush1.msra.mxu0 0.0
    %5031 = vmatprep.subr.mxu0 0.0
    %5032 = vmatpush1.msra.mxu0 0.0
    %5033 = vmatprep.subr.mxu0 0.0
    %5034 = vmatpush1.msra.mxu0 0.0
    %5035 = vmatprep.subr.mxu0 0.0
    %5036 = vmatpush1.msra.mxu0 0.0
    %5037 = vmatprep.subr.mxu0 0.0
    %5038 = vmatpush1.msra.mxu0 0.0
    %5039 = vmatprep.subr.mxu0 0.0
    %5040 = vmatpush1.msra.mxu0 0.0
    %5041 = vmatprep.subr.mxu0 0.0
    %5042 = vmatpush1.msra.mxu0 0.0
    %5043 = vmatprep.subr.mxu0 0.0
    %5044 = vmatpush1.msra.mxu0 0.0
    %5045 = vmatprep.subr.mxu0 0.0
    %5046 = vmatpush1.msra.mxu0 0.0
    %5047 = vmatprep.subr.mxu0 0.0
    %5048 = vmatpush1.msra.mxu0 0.0
    %5049 = vmatprep.mubr.f32.mxu0 0.0
    %5050 = vmatmul.mubr.f32.gmra.mrb[0].mxu0 %v298
    %v5051 = vpop.f32.mrb[0].mxu0
    %v5052 = vadd.f32 0.0, %v5051
    %v5053 = vpop.f32.mrb[0].mxu0
    %5054 = vdwg.mxu0
    %5055 = vmatprep.subr.mxu0 0.0
    %5056 = vmatpush1.msra.mxu0 %v4980
    %5057 = vmatprep.subr.mxu0 0.0
    %5058 = vmatpush1.msra.mxu0 %v4981
    %5059 = vmatprep.subr.mxu0 0.0
    %5060 = vmatpush1.msra.mxu0 %v4982
    %5061 = vmatprep.subr.mxu0 0.0
    %5062 = vmatpush1.msra.mxu0 %v4983
    %5063 = vmatprep.subr.mxu0 0.0
    %5064 = vmatpush1.msra.mxu0 0.0
    %5065 = vmatprep.subr.mxu0 0.0
    %5066 = vmatpush1.msra.mxu0 0.0
    %5067 = vmatprep.subr.mxu0 0.0
    %5068 = vmatpush1.msra.mxu0 0.0
    %5069 = vmatprep.subr.mxu0 0.0
    %5070 = vmatpush1.msra.mxu0 0.0
    %5071 = vmatprep.subr.mxu0 0.0
    %5072 = vmatpush1.msra.mxu0 0.0
    %5073 = vmatprep.subr.mxu0 0.0
    %5074 = vmatpush1.msra.mxu0 0.0
    %5075 = vmatprep.subr.mxu0 0.0
    %5076 = vmatpush1.msra.mxu0 0.0
    %5077 = vmatprep.subr.mxu0 0.0
    %5078 = vmatpush1.msra.mxu0 0.0
    %5079 = vmatprep.subr.mxu0 0.0
    %5080 = vmatpush1.msra.mxu0 0.0
    %5081 = vmatprep.subr.mxu0 0.0
    %5082 = vmatpush1.msra.mxu0 0.0
    %5083 = vmatprep.subr.mxu0 0.0
    %5084 = vmatpush1.msra.mxu0 0.0
    %5085 = vmatprep.subr.mxu0 0.0
    %5086 = vmatpush1.msra.mxu0 0.0
    %5087 = vmatprep.subr.mxu0 0.0
    %5088 = vmatpush1.msra.mxu0 0.0
    %5089 = vmatprep.subr.mxu0 0.0
    %5090 = vmatpush1.msra.mxu0 0.0
    %5091 = vmatprep.subr.mxu0 0.0
    %5092 = vmatpush1.msra.mxu0 0.0
    %5093 = vmatprep.subr.mxu0 0.0
    %5094 = vmatpush1.msra.mxu0 0.0
    %5095 = vmatprep.subr.mxu0 0.0
    %5096 = vmatpush1.msra.mxu0 0.0
    %5097 = vmatprep.subr.mxu0 0.0
    %5098 = vmatpush1.msra.mxu0 0.0
    %5099 = vmatprep.subr.mxu0 0.0
    %5100 = vmatpush1.msra.mxu0 0.0
    %5101 = vmatprep.subr.mxu0 0.0
    %5102 = vmatpush1.msra.mxu0 0.0
    %5103 = vmatprep.subr.mxu0 0.0
    %5104 = vmatpush1.msra.mxu0 0.0
    %5105 = vmatprep.subr.mxu0 0.0
    %5106 = vmatpush1.msra.mxu0 0.0
    %5107 = vmatprep.subr.mxu0 0.0
    %5108 = vmatpush1.msra.mxu0 0.0
    %5109 = vmatprep.subr.mxu0 0.0
    %5110 = vmatpush1.msra.mxu0 0.0
    %5111 = vmatprep.subr.mxu0 0.0
    %5112 = vmatpush1.msra.mxu0 0.0
    %5113 = vmatprep.subr.mxu0 0.0
    %5114 = vmatpush1.msra.mxu0 0.0
    %5115 = vmatprep.subr.mxu0 0.0
    %5116 = vmatpush1.msra.mxu0 0.0
    %5117 = vmatprep.subr.mxu0 0.0
    %5118 = vmatpush1.msra.mxu0 0.0
    %5119 = vmatprep.mubr.f32.mxu0 0.0
    %5120 = vmatmul.mubr.f32.gmra.mrb[0].mxu0 %v298
    %v5121 = vpop.f32.mrb[0].mxu0
    %v5122 = vadd.f32 0.0, %v5121
    %v5123 = vpop.f32.mrb[0].mxu0
    %5124 = vdwg.mxu0
    %v5125 = vsel %vm441, %v5052, %v5122
    %v5126 = vadd.f32 %v4984, %v5125
    %v5127 = vxor.u32 %v5126, 2147483648
    %v5128 = vmul.f32 %v5127, 1.442695
    %v5129 = vpow.pop %v5128
    %v5130 = vadd.f32 %v5129, 1.0
    %v5131 = vrcp.pop %v5130
    %v5132 = vmul.f32 1.0, %v5131
    %v5133 = vtanh.pop %v5126
    %v5134 = vmul.f32 %v5132, 0.0
    %5136 = vrot.lane.b32.xlu0 %v5133, 64
    %v5137 = vpop.permute.xlu0 %5136
    %v5139 = vmul.f32 %v5132, %v5137
    %5141 = vrot.lane.b32.xlu0 %v5139, 32
    %v5142 = vpop.permute.xlu0 %5141
    %v5144 = vadd.f32 %v5134, %v5142
    %v5145 = vtanh.pop %v5144
    %5147 = vrot.lane.b32.xlu0 %v5145, 64
    %v5148 = vpop.permute.xlu0 %5147
    %v5150 = vmul.f32 %v5132, %v5148
    %v5152 = vrot.slane %v4859, 4
    %v5155 = vrot.slane %v4972, 4
    %v5157 = vsel %vm295, %v5152, %v5155
    %5159 = vrot.lane.b32.xlu0 %v5150, 32
    %v5160 = vpop.permute.xlu0 %5159
    %v5161 = vsel %vm90, %v5160, 0
    %5163 = vmatprep.subr.mxu0 0.0
    %5164 = vmatpush1.msra.mxu0 %v4975
    %5165 = vmatprep.subr.mxu0 0.0
    %5166 = vmatpush1.msra.mxu0 %v4976
    %5167 = vmatprep.subr.mxu0 0.0
    %5168 = vmatpush1.msra.mxu0 %v4977
    %5169 = vmatprep.subr.mxu0 0.0
    %5170 = vmatpush1.msra.mxu0 %v4978
    %5171 = vmatprep.subr.mxu0 0.0
    %5172 = vmatpush1.msra.mxu0 0.0
    %5173 = vmatprep.subr.mxu0 0.0
    %5174 = vmatpush1.msra.mxu0 0.0
    %5175 = vmatprep.subr.mxu0 0.0
    %5176 = vmatpush1.msra.mxu0 0.0
    %5177 = vmatprep.subr.mxu0 0.0
    %5178 = vmatpush1.msra.mxu0 0.0
    %5179 = vmatprep.subr.mxu0 0.0
    %5180 = vmatpush1.msra.mxu0 0.0
    %5181 = vmatprep.subr.mxu0 0.0
    %5182 = vmatpush1.msra.mxu0 0.0
    %5183 = vmatprep.subr.mxu0 0.0
    %5184 = vmatpush1.msra.mxu0 0.0
    %5185 = vmatprep.subr.mxu0 0.0
    %5186 = vmatpush1.msra.mxu0 0.0
    %5187 = vmatprep.subr.mxu0 0.0
    %5188 = vmatpush1.msra.mxu0 0.0
    %5189 = vmatprep.subr.mxu0 0.0
    %5190 = vmatpush1.msra.mxu0 0.0
    %5191 = vmatprep.subr.mxu0 0.0
    %5192 = vmatpush1.msra.mxu0 0.0
    %5193 = vmatprep.subr.mxu0 0.0
    %5194 = vmatpush1.msra.mxu0 0.0
    %5195 = vmatprep.subr.mxu0 0.0
    %5196 = vmatpush1.msra.mxu0 0.0
    %5197 = vmatprep.subr.mxu0 0.0
    %5198 = vmatpush1.msra.mxu0 0.0
    %5199 = vmatprep.subr.mxu0 0.0
    %5200 = vmatpush1.msra.mxu0 0.0
    %5201 = vmatprep.subr.mxu0 0.0
    %5202 = vmatpush1.msra.mxu0 0.0
    %5203 = vmatprep.subr.mxu0 0.0
    %5204 = vmatpush1.msra.mxu0 0.0
    %5205 = vmatprep.subr.mxu0 0.0
    %5206 = vmatpush1.msra.mxu0 0.0
    %5207 = vmatprep.subr.mxu0 0.0
    %5208 = vmatpush1.msra.mxu0 0.0
    %5209 = vmatprep.subr.mxu0 0.0
    %5210 = vmatpush1.msra.mxu0 0.0
    %5211 = vmatprep.subr.mxu0 0.0
    %5212 = vmatpush1.msra.mxu0 0.0
    %5213 = vmatprep.subr.mxu0 0.0
    %5214 = vmatpush1.msra.mxu0 0.0
    %5215 = vmatprep.subr.mxu0 0.0
    %5216 = vmatpush1.msra.mxu0 0.0
    %5217 = vmatprep.subr.mxu0 0.0
    %5218 = vmatpush1.msra.mxu0 0.0
    %5219 = vmatprep.subr.mxu0 0.0
    %5220 = vmatpush1.msra.mxu0 0.0
    %5221 = vmatprep.subr.mxu0 0.0
    %5222 = vmatpush1.msra.mxu0 0.0
    %5223 = vmatprep.subr.mxu0 0.0
    %5224 = vmatpush1.msra.mxu0 0.0
    %5225 = vmatprep.subr.mxu0 0.0
    %5226 = vmatpush1.msra.mxu0 0.0
    %5227 = vmatprep.mubr.f32.mxu0 0.0
    %5228 = vmatmul.mubr.f32.gmra.mrb[0].mxu0 %v5161
    %v5229 = vpop.f32.mrb[0].mxu0
    %v5230 = vadd.f32 0.0, %v5229
    %v5231 = vpop.f32.mrb[0].mxu0
    %5232 = vdwg.mxu0
    %5233 = vmatprep.subr.mxu0 0.0
    %5234 = vmatpush1.msra.mxu0 %v4980
    %5235 = vmatprep.subr.mxu0 0.0
    %5236 = vmatpush1.msra.mxu0 %v4981
    %5237 = vmatprep.subr.mxu0 0.0
    %5238 = vmatpush1.msra.mxu0 %v4982
    %5239 = vmatprep.subr.mxu0 0.0
    %5240 = vmatpush1.msra.mxu0 %v4983
    %5241 = vmatprep.subr.mxu0 0.0
    %5242 = vmatpush1.msra.mxu0 0.0
    %5243 = vmatprep.subr.mxu0 0.0
    %5244 = vmatpush1.msra.mxu0 0.0
    %5245 = vmatprep.subr.mxu0 0.0
    %5246 = vmatpush1.msra.mxu0 0.0
    %5247 = vmatprep.subr.mxu0 0.0
    %5248 = vmatpush1.msra.mxu0 0.0
    %5249 = vmatprep.subr.mxu0 0.0
    %5250 = vmatpush1.msra.mxu0 0.0
    %5251 = vmatprep.subr.mxu0 0.0
    %5252 = vmatpush1.msra.mxu0 0.0
    %5253 = vmatprep.subr.mxu0 0.0
    %5254 = vmatpush1.msra.mxu0 0.0
    %5255 = vmatprep.subr.mxu0 0.0
    %5256 = vmatpush1.msra.mxu0 0.0
    %5257 = vmatprep.subr.mxu0 0.0
    %5258 = vmatpush1.msra.mxu0 0.0
    %5259 = vmatprep.subr.mxu0 0.0
    %5260 = vmatpush1.msra.mxu0 0.0
    %5261 = vmatprep.subr.mxu0 0.0
    %5262 = vmatpush1.msra.mxu0 0.0
    %5263 = vmatprep.subr.mxu0 0.0
    %5264 = vmatpush1.msra.mxu0 0.0
    %5265 = vmatprep.subr.mxu0 0.0
    %5266 = vmatpush1.msra.mxu0 0.0
    %5267 = vmatprep.subr.mxu0 0.0
    %5268 = vmatpush1.msra.mxu0 0.0
    %5269 = vmatprep.subr.mxu0 0.0
    %5270 = vmatpush1.msra.mxu0 0.0
    %5271 = vmatprep.subr.mxu0 0.0
    %5272 = vmatpush1.msra.mxu0 0.0
    %5273 = vmatprep.subr.mxu0 0.0
    %5274 = vmatpush1.msra.mxu0 0.0
    %5275 = vmatprep.subr.mxu0 0.0
    %5276 = vmatpush1.msra.mxu0 0.0
    %5277 = vmatprep.subr.mxu0 0.0
    %5278 = vmatpush1.msra.mxu0 0.0
    %5279 = vmatprep.subr.mxu0 0.0
    %5280 = vmatpush1.msra.mxu0 0.0
    %5281 = vmatprep.subr.mxu0 0.0
    %5282 = vmatpush1.msra.mxu0 0.0
    %5283 = vmatprep.subr.mxu0 0.0
    %5284 = vmatpush1.msra.mxu0 0.0
    %5285 = vmatprep.subr.mxu0 0.0
    %5286 = vmatpush1.msra.mxu0 0.0
    %5287 = vmatprep.subr.mxu0 0.0
    %5288 = vmatpush1.msra.mxu0 0.0
    %5289 = vmatprep.subr.mxu0 0.0
    %5290 = vmatpush1.msra.mxu0 0.0
    %5291 = vmatprep.subr.mxu0 0.0
    %5292 = vmatpush1.msra.mxu0 0.0
    %5293 = vmatprep.subr.mxu0 0.0
    %5294 = vmatpush1.msra.mxu0 0.0
    %5295 = vmatprep.subr.mxu0 0.0
    %5296 = vmatpush1.msra.mxu0 0.0
    %5297 = vmatprep.mubr.f32.mxu0 0.0
    %5298 = vmatmul.mubr.f32.gmra.mrb[0].mxu0 %v5161
    %v5299 = vpop.f32.mrb[0].mxu0
    %v5300 = vadd.f32 0.0, %v5299
    %v5301 = vpop.f32.mrb[0].mxu0
    %5302 = vdwg.mxu0
    %v5303 = vsel %vm441, %v5230, %v5300
    %v5304 = vadd.f32 %v5157, %v5303
    %v5305 = vxor.u32 %v5304, 2147483648
    %v5306 = vmul.f32 %v5305, 1.442695
    %v5307 = vpow.pop %v5306
    %v5308 = vadd.f32 %v5307, 1.0
    %v5309 = vrcp.pop %v5308
    %v5310 = vmul.f32 1.0, %v5309
    %v5311 = vtanh.pop %v5304
    %v5312 = vmul.f32 %v5310, %v5144
    %5314 = vrot.lane.b32.xlu0 %v5311, 64
    %v5315 = vpop.permute.xlu0 %5314
    %v5317 = vmul.f32 %v5310, %v5315
    %5319 = vrot.lane.b32.xlu0 %v5317, 32
    %v5320 = vpop.permute.xlu0 %5319
    %v5322 = vadd.f32 %v5312, %v5320
    %v5323 = vtanh.pop %v5322
    %5325 = vrot.lane.b32.xlu0 %v5323, 64
    %v5326 = vpop.permute.xlu0 %5325
    %v5328 = vmul.f32 %v5310, %v5326
    %v5329 = vsel %vm295, %v4864, %v4967
    %5331 = vrot.lane.b32.xlu0 %v5328, 32
    %v5332 = vpop.permute.xlu0 %5331
    %v5333 = vsel %vm90, %v5332, 0
    %5335 = vmatprep.subr.mxu0 0.0
    %5336 = vmatpush1.msra.mxu0 %v4975
    %5337 = vmatprep.subr.mxu0 0.0
    %5338 = vmatpush1.msra.mxu0 %v4976
    %5339 = vmatprep.subr.mxu0 0.0
    %5340 = vmatpush1.msra.mxu0 %v4977
    %5341 = vmatprep.subr.mxu0 0.0
    %5342 = vmatpush1.msra.mxu0 %v4978
    %5343 = vmatprep.subr.mxu0 0.0
    %5344 = vmatpush1.msra.mxu0 0.0
    %5345 = vmatprep.subr.mxu0 0.0
    %5346 = vmatpush1.msra.mxu0 0.0
    %5347 = vmatprep.subr.mxu0 0.0
    %5348 = vmatpush1.msra.mxu0 0.0
    %5349 = vmatprep.subr.mxu0 0.0
    %5350 = vmatpush1.msra.mxu0 0.0
    %5351 = vmatprep.subr.mxu0 0.0
    %5352 = vmatpush1.msra.mxu0 0.0
    %5353 = vmatprep.subr.mxu0 0.0
    %5354 = vmatpush1.msra.mxu0 0.0
    %5355 = vmatprep.subr.mxu0 0.0
    %5356 = vmatpush1.msra.mxu0 0.0
    %5357 = vmatprep.subr.mxu0 0.0
    %5358 = vmatpush1.msra.mxu0 0.0
    %5359 = vmatprep.subr.mxu0 0.0
    %5360 = vmatpush1.msra.mxu0 0.0
    %5361 = vmatprep.subr.mxu0 0.0
    %5362 = vmatpush1.msra.mxu0 0.0
    %5363 = vmatprep.subr.mxu0 0.0
    %5364 = vmatpush1.msra.mxu0 0.0
    %5365 = vmatprep.subr.mxu0 0.0
    %5366 = vmatpush1.msra.mxu0 0.0
    %5367 = vmatprep.subr.mxu0 0.0
    %5368 = vmatpush1.msra.mxu0 0.0
    %5369 = vmatprep.subr.mxu0 0.0
    %5370 = vmatpush1.msra.mxu0 0.0
    %5371 = vmatprep.subr.mxu0 0.0
    %5372 = vmatpush1.msra.mxu0 0.0
    %5373 = vmatprep.subr.mxu0 0.0
    %5374 = vmatpush1.msra.mxu0 0.0
    %5375 = vmatprep.subr.mxu0 0.0
    %5376 = vmatpush1.msra.mxu0 0.0
    %5377 = vmatprep.subr.mxu0 0.0
    %5378 = vmatpush1.msra.mxu0 0.0
    %5379 = vmatprep.subr.mxu0 0.0
    %5380 = vmatpush1.msra.mxu0 0.0
    %5381 = vmatprep.subr.mxu0 0.0
    %5382 = vmatpush1.msra.mxu0 0.0
    %5383 = vmatprep.subr.mxu0 0.0
    %5384 = vmatpush1.msra.mxu0 0.0
    %5385 = vmatprep.subr.mxu0 0.0
    %5386 = vmatpush1.msra.mxu0 0.0
    %5387 = vmatprep.subr.mxu0 0.0
    %5388 = vmatpush1.msra.mxu0 0.0
    %5389 = vmatprep.subr.mxu0 0.0
    %5390 = vmatpush1.msra.mxu0 0.0
    %5391 = vmatprep.subr.mxu0 0.0
    %5392 = vmatpush1.msra.mxu0 0.0
    %5393 = vmatprep.subr.mxu0 0.0
    %5394 = vmatpush1.msra.mxu0 0.0
    %5395 = vmatprep.subr.mxu0 0.0
    %5396 = vmatpush1.msra.mxu0 0.0
    %5397 = vmatprep.subr.mxu0 0.0
    %5398 = vmatpush1.msra.mxu0 0.0
    %5399 = vmatprep.mubr.f32.mxu0 0.0
    %5400 = vmatmul.mubr.f32.gmra.mrb[0].mxu0 %v5333
    %v5401 = vpop.f32.mrb[0].mxu0
    %v5402 = vadd.f32 0.0, %v5401
    %v5403 = vpop.f32.mrb[0].mxu0
    %5404 = vdwg.mxu0
    %5405 = vmatprep.subr.mxu0 0.0
    %5406 = vmatpush1.msra.mxu0 %v4980
    %5407 = vmatprep.subr.mxu0 0.0
    %5408 = vmatpush1.msra.mxu0 %v4981
    %5409 = vmatprep.subr.mxu0 0.0
    %5410 = vmatpush1.msra.mxu0 %v4982
    %5411 = vmatprep.subr.mxu0 0.0
    %5412 = vmatpush1.msra.mxu0 %v4983
    %5413 = vmatprep.subr.mxu0 0.0
    %5414 = vmatpush1.msra.mxu0 0.0
    %5415 = vmatprep.subr.mxu0 0.0
    %5416 = vmatpush1.msra.mxu0 0.0
    %5417 = vmatprep.subr.mxu0 0.0
    %5418 = vmatpush1.msra.mxu0 0.0
    %5419 = vmatprep.subr.mxu0 0.0
    %5420 = vmatpush1.msra.mxu0 0.0
    %5421 = vmatprep.subr.mxu0 0.0
    %5422 = vmatpush1.msra.mxu0 0.0
    %5423 = vmatprep.subr.mxu0 0.0
    %5424 = vmatpush1.msra.mxu0 0.0
    %5425 = vmatprep.subr.mxu0 0.0
    %5426 = vmatpush1.msra.mxu0 0.0
    %5427 = vmatprep.subr.mxu0 0.0
    %5428 = vmatpush1.msra.mxu0 0.0
    %5429 = vmatprep.subr.mxu0 0.0
    %5430 = vmatpush1.msra.mxu0 0.0
    %5431 = vmatprep.subr.mxu0 0.0
    %5432 = vmatpush1.msra.mxu0 0.0
    %5433 = vmatprep.subr.mxu0 0.0
    %5434 = vmatpush1.msra.mxu0 0.0
    %5435 = vmatprep.subr.mxu0 0.0
    %5436 = vmatpush1.msra.mxu0 0.0
    %5437 = vmatprep.subr.mxu0 0.0
    %5438 = vmatpush1.msra.mxu0 0.0
    %5439 = vmatprep.subr.mxu0 0.0
    %5440 = vmatpush1.msra.mxu0 0.0
    %5441 = vmatprep.subr.mxu0 0.0
    %5442 = vmatpush1.msra.mxu0 0.0
    %5443 = vmatprep.subr.mxu0 0.0
    %5444 = vmatpush1.msra.mxu0 0.0
    %5445 = vmatprep.subr.mxu0 0.0
    %5446 = vmatpush1.msra.mxu0 0.0
    %5447 = vmatprep.subr.mxu0 0.0
    %5448 = vmatpush1.msra.mxu0 0.0
    %5449 = vmatprep.subr.mxu0 0.0
    %5450 = vmatpush1.msra.mxu0 0.0
    %5451 = vmatprep.subr.mxu0 0.0
    %5452 = vmatpush1.msra.mxu0 0.0
    %5453 = vmatprep.subr.mxu0 0.0
    %5454 = vmatpush1.msra.mxu0 0.0
    %5455 = vmatprep.subr.mxu0 0.0
    %5456 = vmatpush1.msra.mxu0 0.0
    %5457 = vmatprep.subr.mxu0 0.0
    %5458 = vmatpush1.msra.mxu0 0.0
    %5459 = vmatprep.subr.mxu0 0.0
    %5460 = vmatpush1.msra.mxu0 0.0
    %5461 = vmatprep.subr.mxu0 0.0
    %5462 = vmatpush1.msra.mxu0 0.0
    %5463 = vmatprep.subr.mxu0 0.0
    %5464 = vmatpush1.msra.mxu0 0.0
    %5465 = vmatprep.subr.mxu0 0.0
    %5466 = vmatpush1.msra.mxu0 0.0
    %5467 = vmatprep.subr.mxu0 0.0
    %5468 = vmatpush1.msra.mxu0 0.0
    %5469 = vmatprep.mubr.f32.mxu0 0.0
    %5470 = vmatmul.mubr.f32.gmra.mrb[0].mxu0 %v5333
    %v5471 = vpop.f32.mrb[0].mxu0
    %v5472 = vadd.f32 0.0, %v5471
    %v5473 = vpop.f32.mrb[0].mxu0
    %5474 = vdwg.mxu0
    %v5475 = vsel %vm441, %v5402, %v5472
    %v5476 = vadd.f32 %v5329, %v5475
    %v5477 = vxor.u32 %v5476, 2147483648
    %v5478 = vmul.f32 %v5477, 1.442695
    %v5479 = vpow.pop %v5478
    %v5480 = vadd.f32 %v5479, 1.0
    %v5481 = vrcp.pop %v5480
    %v5482 = vmul.f32 1.0, %v5481
    %v5483 = vtanh.pop %v5476
    %v5484 = vmul.f32 %v5482, %v5322
    %5486 = vrot.lane.b32.xlu0 %v5483, 64
    %v5487 = vpop.permute.xlu0 %5486
    %v5489 = vmul.f32 %v5482, %v5487
    %5491 = vrot.lane.b32.xlu0 %v5489, 32
    %v5492 = vpop.permute.xlu0 %5491
    %v5494 = vadd.f32 %v5484, %v5492
    %v5495 = vtanh.pop %v5494
    %5497 = vrot.lane.b32.xlu0 %v5495, 64
    %v5498 = vpop.permute.xlu0 %5497
    %v5500 = vmul.f32 %v5482, %v5498
    %v5502 = vrot.slane %v4864, 4
    %v5505 = vrot.slane %v4967, 4
    %v5507 = vsel %vm295, %v5502, %v5505
    %5509 = vrot.lane.b32.xlu0 %v5500, 32
    %v5510 = vpop.permute.xlu0 %5509
    %v5511 = vsel %vm90, %v5510, 0
    %5513 = vmatprep.subr.mxu0 0.0
    %5514 = vmatpush1.msra.mxu0 %v4975
    %5515 = vmatprep.subr.mxu0 0.0
    %5516 = vmatpush1.msra.mxu0 %v4976
    %5517 = vmatprep.subr.mxu0 0.0
    %5518 = vmatpush1.msra.mxu0 %v4977
    %5519 = vmatprep.subr.mxu0 0.0
    %5520 = vmatpush1.msra.mxu0 %v4978
    %5521 = vmatprep.subr.mxu0 0.0
    %5522 = vmatpush1.msra.mxu0 0.0
    %5523 = vmatprep.subr.mxu0 0.0
    %5524 = vmatpush1.msra.mxu0 0.0
    %5525 = vmatprep.subr.mxu0 0.0
    %5526 = vmatpush1.msra.mxu0 0.0
    %5527 = vmatprep.subr.mxu0 0.0
    %5528 = vmatpush1.msra.mxu0 0.0
    %5529 = vmatprep.subr.mxu0 0.0
    %5530 = vmatpush1.msra.mxu0 0.0
    %5531 = vmatprep.subr.mxu0 0.0
    %5532 = vmatpush1.msra.mxu0 0.0
    %5533 = vmatprep.subr.mxu0 0.0
    %5534 = vmatpush1.msra.mxu0 0.0
    %5535 = vmatprep.subr.mxu0 0.0
    %5536 = vmatpush1.msra.mxu0 0.0
    %5537 = vmatprep.subr.mxu0 0.0
    %5538 = vmatpush1.msra.mxu0 0.0
    %5539 = vmatprep.subr.mxu0 0.0
    %5540 = vmatpush1.msra.mxu0 0.0
    %5541 = vmatprep.subr.mxu0 0.0
    %5542 = vmatpush1.msra.mxu0 0.0
    %5543 = vmatprep.subr.mxu0 0.0
    %5544 = vmatpush1.msra.mxu0 0.0
    %5545 = vmatprep.subr.mxu0 0.0
    %5546 = vmatpush1.msra.mxu0 0.0
    %5547 = vmatprep.subr.mxu0 0.0
    %5548 = vmatpush1.msra.mxu0 0.0
    %5549 = vmatprep.subr.mxu0 0.0
    %5550 = vmatpush1.msra.mxu0 0.0
    %5551 = vmatprep.subr.mxu0 0.0
    %5552 = vmatpush1.msra.mxu0 0.0
    %5553 = vmatprep.subr.mxu0 0.0
    %5554 = vmatpush1.msra.mxu0 0.0
    %5555 = vmatprep.subr.mxu0 0.0
    %5556 = vmatpush1.msra.mxu0 0.0
    %5557 = vmatprep.subr.mxu0 0.0
    %5558 = vmatpush1.msra.mxu0 0.0
    %5559 = vmatprep.subr.mxu0 0.0
    %5560 = vmatpush1.msra.mxu0 0.0
    %5561 = vmatprep.subr.mxu0 0.0
    %5562 = vmatpush1.msra.mxu0 0.0
    %5563 = vmatprep.subr.mxu0 0.0
    %5564 = vmatpush1.msra.mxu0 0.0
    %5565 = vmatprep.subr.mxu0 0.0
    %5566 = vmatpush1.msra.mxu0 0.0
    %5567 = vmatprep.subr.mxu0 0.0
    %5568 = vmatpush1.msra.mxu0 0.0
    %5569 = vmatprep.subr.mxu0 0.0
    %5570 = vmatpush1.msra.mxu0 0.0
    %5571 = vmatprep.subr.mxu0 0.0
    %5572 = vmatpush1.msra.mxu0 0.0
    %5573 = vmatprep.subr.mxu0 0.0
    %5574 = vmatpush1.msra.mxu0 0.0
    %5575 = vmatprep.subr.mxu0 0.0
    %5576 = vmatpush1.msra.mxu0 0.0
    %5577 = vmatprep.mubr.f32.mxu0 0.0
    %5578 = vmatmul.mubr.f32.gmra.mrb[0].mxu0 %v5511
    %v5579 = vpop.f32.mrb[0].mxu0
    %v5580 = vadd.f32 0.0, %v5579
    %v5581 = vpop.f32.mrb[0].mxu0
    %5582 = vdwg.mxu0
    %5583 = vmatprep.subr.mxu0 0.0
    %5584 = vmatpush1.msra.mxu0 %v4980
    %5585 = vmatprep.subr.mxu0 0.0
    %5586 = vmatpush1.msra.mxu0 %v4981
    %5587 = vmatprep.subr.mxu0 0.0
    %5588 = vmatpush1.msra.mxu0 %v4982
    %5589 = vmatprep.subr.mxu0 0.0
    %5590 = vmatpush1.msra.mxu0 %v4983
    %5591 = vmatprep.subr.mxu0 0.0
    %5592 = vmatpush1.msra.mxu0 0.0
    %5593 = vmatprep.subr.mxu0 0.0
    %5594 = vmatpush1.msra.mxu0 0.0
    %5595 = vmatprep.subr.mxu0 0.0
    %5596 = vmatpush1.msra.mxu0 0.0
    %5597 = vmatprep.subr.mxu0 0.0
    %5598 = vmatpush1.msra.mxu0 0.0
    %5599 = vmatprep.subr.mxu0 0.0
    %5600 = vmatpush1.msra.mxu0 0.0
    %5601 = vmatprep.subr.mxu0 0.0
    %5602 = vmatpush1.msra.mxu0 0.0
    %5603 = vmatprep.subr.mxu0 0.0
    %5604 = vmatpush1.msra.mxu0 0.0
    %5605 = vmatprep.subr.mxu0 0.0
    %5606 = vmatpush1.msra.mxu0 0.0
    %5607 = vmatprep.subr.mxu0 0.0
    %5608 = vmatpush1.msra.mxu0 0.0
    %5609 = vmatprep.subr.mxu0 0.0
    %5610 = vmatpush1.msra.mxu0 0.0
    %5611 = vmatprep.subr.mxu0 0.0
    %5612 = vmatpush1.msra.mxu0 0.0
    %5613 = vmatprep.subr.mxu0 0.0
    %5614 = vmatpush1.msra.mxu0 0.0
    %5615 = vmatprep.subr.mxu0 0.0
    %5616 = vmatpush1.msra.mxu0 0.0
    %5617 = vmatprep.subr.mxu0 0.0
    %5618 = vmatpush1.msra.mxu0 0.0
    %5619 = vmatprep.subr.mxu0 0.0
    %5620 = vmatpush1.msra.mxu0 0.0
    %5621 = vmatprep.subr.mxu0 0.0
    %5622 = vmatpush1.msra.mxu0 0.0
    %5623 = vmatprep.subr.mxu0 0.0
    %5624 = vmatpush1.msra.mxu0 0.0
    %5625 = vmatprep.subr.mxu0 0.0
    %5626 = vmatpush1.msra.mxu0 0.0
    %5627 = vmatprep.subr.mxu0 0.0
    %5628 = vmatpush1.msra.mxu0 0.0
    %5629 = vmatprep.subr.mxu0 0.0
    %5630 = vmatpush1.msra.mxu0 0.0
    %5631 = vmatprep.subr.mxu0 0.0
    %5632 = vmatpush1.msra.mxu0 0.0
    %5633 = vmatprep.subr.mxu0 0.0
    %5634 = vmatpush1.msra.mxu0 0.0
    %5635 = vmatprep.subr.mxu0 0.0
    %5636 = vmatpush1.msra.mxu0 0.0
    %5637 = vmatprep.subr.mxu0 0.0
    %5638 = vmatpush1.msra.mxu0 0.0
    %5639 = vmatprep.subr.mxu0 0.0
    %5640 = vmatpush1.msra.mxu0 0.0
    %5641 = vmatprep.subr.mxu0 0.0
    %5642 = vmatpush1.msra.mxu0 0.0
    %5643 = vmatprep.subr.mxu0 0.0
    %5644 = vmatpush1.msra.mxu0 0.0
    %5645 = vmatprep.subr.mxu0 0.0
    %5646 = vmatpush1.msra.mxu0 0.0
    %5647 = vmatprep.mubr.f32.mxu0 0.0
    %5648 = vmatmul.mubr.f32.gmra.mrb[0].mxu0 %v5511
    %v5649 = vpop.f32.mrb[0].mxu0
    %v5650 = vadd.f32 0.0, %v5649
    %v5651 = vpop.f32.mrb[0].mxu0
    %5652 = vdwg.mxu0
    %v5653 = vsel %vm441, %v5580, %v5650
    %v5654 = vadd.f32 %v5507, %v5653
    %v5655 = vxor.u32 %v5654, 2147483648
    %v5656 = vmul.f32 %v5655, 1.442695
    %v5657 = vpow.pop %v5656
    %v5658 = vadd.f32 %v5657, 1.0
    %v5659 = vrcp.pop %v5658
    %v5660 = vmul.f32 1.0, %v5659
    %v5661 = vtanh.pop %v5654
    %v5662 = vmul.f32 %v5660, %v5494
    %5664 = vrot.lane.b32.xlu0 %v5661, 64
    %v5665 = vpop.permute.xlu0 %5664
    %v5667 = vmul.f32 %v5660, %v5665
    %5669 = vrot.lane.b32.xlu0 %v5667, 32
    %v5670 = vpop.permute.xlu0 %5669
    %v5672 = vadd.f32 %v5662, %v5670
    %v5673 = vtanh.pop %v5672
    %5675 = vrot.lane.b32.xlu0 %v5673, 64
    %v5676 = vpop.permute.xlu0 %5675
    %v5678 = vmul.f32 %v5660, %v5676
    %v5679 = vsel %vm295, %v4869, %v4962
    %5681 = vrot.lane.b32.xlu0 %v5678, 32
    %v5682 = vpop.permute.xlu0 %5681
    %v5683 = vsel %vm90, %v5682, 0
    %5685 = vmatprep.subr.mxu0 0.0
    %5686 = vmatpush1.msra.mxu0 %v4975
    %5687 = vmatprep.subr.mxu0 0.0
    %5688 = vmatpush1.msra.mxu0 %v4976
    %5689 = vmatprep.subr.mxu0 0.0
    %5690 = vmatpush1.msra.mxu0 %v4977
    %5691 = vmatprep.subr.mxu0 0.0
    %5692 = vmatpush1.msra.mxu0 %v4978
    %5693 = vmatprep.subr.mxu0 0.0
    %5694 = vmatpush1.msra.mxu0 0.0
    %5695 = vmatprep.subr.mxu0 0.0
    %5696 = vmatpush1.msra.mxu0 0.0
    %5697 = vmatprep.subr.mxu0 0.0
    %5698 = vmatpush1.msra.mxu0 0.0
    %5699 = vmatprep.subr.mxu0 0.0
    %5700 = vmatpush1.msra.mxu0 0.0
    %5701 = vmatprep.subr.mxu0 0.0
    %5702 = vmatpush1.msra.mxu0 0.0
    %5703 = vmatprep.subr.mxu0 0.0
    %5704 = vmatpush1.msra.mxu0 0.0
    %5705 = vmatprep.subr.mxu0 0.0
    %5706 = vmatpush1.msra.mxu0 0.0
    %5707 = vmatprep.subr.mxu0 0.0
    %5708 = vmatpush1.msra.mxu0 0.0
    %5709 = vmatprep.subr.mxu0 0.0
    %5710 = vmatpush1.msra.mxu0 0.0
    %5711 = vmatprep.subr.mxu0 0.0
    %5712 = vmatpush1.msra.mxu0 0.0
    %5713 = vmatprep.subr.mxu0 0.0
    %5714 = vmatpush1.msra.mxu0 0.0
    %5715 = vmatprep.subr.mxu0 0.0
    %5716 = vmatpush1.msra.mxu0 0.0
    %5717 = vmatprep.subr.mxu0 0.0
    %5718 = vmatpush1.msra.mxu0 0.0
    %5719 = vmatprep.subr.mxu0 0.0
    %5720 = vmatpush1.msra.mxu0 0.0
    %5721 = vmatprep.subr.mxu0 0.0
    %5722 = vmatpush1.msra.mxu0 0.0
    %5723 = vmatprep.subr.mxu0 0.0
    %5724 = vmatpush1.msra.mxu0 0.0
    %5725 = vmatprep.subr.mxu0 0.0
    %5726 = vmatpush1.msra.mxu0 0.0
    %5727 = vmatprep.subr.mxu0 0.0
    %5728 = vmatpush1.msra.mxu0 0.0
    %5729 = vmatprep.subr.mxu0 0.0
    %5730 = vmatpush1.msra.mxu0 0.0
    %5731 = vmatprep.subr.mxu0 0.0
    %5732 = vmatpush1.msra.mxu0 0.0
    %5733 = vmatprep.subr.mxu0 0.0
    %5734 = vmatpush1.msra.mxu0 0.0
    %5735 = vmatprep.subr.mxu0 0.0
    %5736 = vmatpush1.msra.mxu0 0.0
    %5737 = vmatprep.subr.mxu0 0.0
    %5738 = vmatpush1.msra.mxu0 0.0
    %5739 = vmatprep.subr.mxu0 0.0
    %5740 = vmatpush1.msra.mxu0 0.0
    %5741 = vmatprep.subr.mxu0 0.0
    %5742 = vmatpush1.msra.mxu0 0.0
    %5743 = vmatprep.subr.mxu0 0.0
    %5744 = vmatpush1.msra.mxu0 0.0
    %5745 = vmatprep.subr.mxu0 0.0
    %5746 = vmatpush1.msra.mxu0 0.0
    %5747 = vmatprep.subr.mxu0 0.0
    %5748 = vmatpush1.msra.mxu0 0.0
    %5749 = vmatprep.mubr.f32.mxu0 0.0
    %5750 = vmatmul.mubr.f32.gmra.mrb[0].mxu0 %v5683
    %v5751 = vpop.f32.mrb[0].mxu0
    %v5752 = vadd.f32 0.0, %v5751
    %v5753 = vpop.f32.mrb[0].mxu0
    %5754 = vdwg.mxu0
    %5755 = vmatprep.subr.mxu0 0.0
    %5756 = vmatpush1.msra.mxu0 %v4980
    %5757 = vmatprep.subr.mxu0 0.0
    %5758 = vmatpush1.msra.mxu0 %v4981
    %5759 = vmatprep.subr.mxu0 0.0
    %5760 = vmatpush1.msra.mxu0 %v4982
    %5761 = vmatprep.subr.mxu0 0.0
    %5762 = vmatpush1.msra.mxu0 %v4983
    %5763 = vmatprep.subr.mxu0 0.0
    %5764 = vmatpush1.msra.mxu0 0.0
    %5765 = vmatprep.subr.mxu0 0.0
    %5766 = vmatpush1.msra.mxu0 0.0
    %5767 = vmatprep.subr.mxu0 0.0
    %5768 = vmatpush1.msra.mxu0 0.0
    %5769 = vmatprep.subr.mxu0 0.0
    %5770 = vmatpush1.msra.mxu0 0.0
    %5771 = vmatprep.subr.mxu0 0.0
    %5772 = vmatpush1.msra.mxu0 0.0
    %5773 = vmatprep.subr.mxu0 0.0
    %5774 = vmatpush1.msra.mxu0 0.0
    %5775 = vmatprep.subr.mxu0 0.0
    %5776 = vmatpush1.msra.mxu0 0.0
    %5777 = vmatprep.subr.mxu0 0.0
    %5778 = vmatpush1.msra.mxu0 0.0
    %5779 = vmatprep.subr.mxu0 0.0
    %5780 = vmatpush1.msra.mxu0 0.0
    %5781 = vmatprep.subr.mxu0 0.0
    %5782 = vmatpush1.msra.mxu0 0.0
    %5783 = vmatprep.subr.mxu0 0.0
    %5784 = vmatpush1.msra.mxu0 0.0
    %5785 = vmatprep.subr.mxu0 0.0
    %5786 = vmatpush1.msra.mxu0 0.0
    %5787 = vmatprep.subr.mxu0 0.0
    %5788 = vmatpush1.msra.mxu0 0.0
    %5789 = vmatprep.subr.mxu0 0.0
    %5790 = vmatpush1.msra.mxu0 0.0
    %5791 = vmatprep.subr.mxu0 0.0
    %5792 = vmatpush1.msra.mxu0 0.0
    %5793 = vmatprep.subr.mxu0 0.0
    %5794 = vmatpush1.msra.mxu0 0.0
    %5795 = vmatprep.subr.mxu0 0.0
    %5796 = vmatpush1.msra.mxu0 0.0
    %5797 = vmatprep.subr.mxu0 0.0
    %5798 = vmatpush1.msra.mxu0 0.0
    %5799 = vmatprep.subr.mxu0 0.0
    %5800 = vmatpush1.msra.mxu0 0.0
    %5801 = vmatprep.subr.mxu0 0.0
    %5802 = vmatpush1.msra.mxu0 0.0
    %5803 = vmatprep.subr.mxu0 0.0
    %5804 = vmatpush1.msra.mxu0 0.0
    %5805 = vmatprep.subr.mxu0 0.0
    %5806 = vmatpush1.msra.mxu0 0.0
    %5807 = vmatprep.subr.mxu0 0.0
    %5808 = vmatpush1.msra.mxu0 0.0
    %5809 = vmatprep.subr.mxu0 0.0
    %5810 = vmatpush1.msra.mxu0 0.0
    %5811 = vmatprep.subr.mxu0 0.0
    %5812 = vmatpush1.msra.mxu0 0.0
    %5813 = vmatprep.subr.mxu0 0.0
    %5814 = vmatpush1.msra.mxu0 0.0
    %5815 = vmatprep.subr.mxu0 0.0
    %5816 = vmatpush1.msra.mxu0 0.0
    %5817 = vmatprep.subr.mxu0 0.0
    %5818 = vmatpush1.msra.mxu0 0.0
    %5819 = vmatprep.mubr.f32.mxu0 0.0
    %5820 = vmatmul.mubr.f32.gmra.mrb[0].mxu0 %v5683
    %v5821 = vpop.f32.mrb[0].mxu0
    %v5822 = vadd.f32 0.0, %v5821
    %v5823 = vpop.f32.mrb[0].mxu0
    %5824 = vdwg.mxu0
    %v5825 = vsel %vm441, %v5752, %v5822
    %v5826 = vadd.f32 %v5679, %v5825
    %v5827 = vxor.u32 %v5826, 2147483648
    %v5828 = vmul.f32 %v5827, 1.442695
    %v5829 = vpow.pop %v5828
    %v5830 = vadd.f32 %v5829, 1.0
    %v5831 = vrcp.pop %v5830
    %v5832 = vmul.f32 1.0, %v5831
    %v5833 = vtanh.pop %v5826
    %v5834 = vmul.f32 %v5832, %v5672
    %5836 = vrot.lane.b32.xlu0 %v5833, 64
    %v5837 = vpop.permute.xlu0 %5836
    %v5839 = vmul.f32 %v5832, %v5837
    %5841 = vrot.lane.b32.xlu0 %v5839, 32
    %v5842 = vpop.permute.xlu0 %5841
    %v5844 = vadd.f32 %v5834, %v5842
    %v5845 = vtanh.pop %v5844
    %5847 = vrot.lane.b32.xlu0 %v5845, 64
    %v5848 = vpop.permute.xlu0 %5847
    %v5850 = vmul.f32 %v5832, %v5848
    %v5852 = vrot.slane %v4869, 4
    %v5855 = vrot.slane %v4962, 4
    %v5857 = vsel %vm295, %v5852, %v5855
    %5859 = vrot.lane.b32.xlu0 %v5850, 32
    %v5860 = vpop.permute.xlu0 %5859
    %v5861 = vsel %vm90, %v5860, 0
    %5863 = vmatprep.subr.mxu0 0.0
    %5864 = vmatpush1.msra.mxu0 %v4975
    %5865 = vmatprep.subr.mxu0 0.0
    %5866 = vmatpush1.msra.mxu0 %v4976
    %5867 = vmatprep.subr.mxu0 0.0
    %5868 = vmatpush1.msra.mxu0 %v4977
    %5869 = vmatprep.subr.mxu0 0.0
    %5870 = vmatpush1.msra.mxu0 %v4978
    %5871 = vmatprep.subr.mxu0 0.0
    %5872 = vmatpush1.msra.mxu0 0.0
    %5873 = vmatprep.subr.mxu0 0.0
    %5874 = vmatpush1.msra.mxu0 0.0
    %5875 = vmatprep.subr.mxu0 0.0
    %5876 = vmatpush1.msra.mxu0 0.0
    %5877 = vmatprep.subr.mxu0 0.0
    %5878 = vmatpush1.msra.mxu0 0.0
    %5879 = vmatprep.subr.mxu0 0.0
    %5880 = vmatpush1.msra.mxu0 0.0
    %5881 = vmatprep.subr.mxu0 0.0
    %5882 = vmatpush1.msra.mxu0 0.0
    %5883 = vmatprep.subr.mxu0 0.0
    %5884 = vmatpush1.msra.mxu0 0.0
    %5885 = vmatprep.subr.mxu0 0.0
    %5886 = vmatpush1.msra.mxu0 0.0
    %5887 = vmatprep.subr.mxu0 0.0
    %5888 = vmatpush1.msra.mxu0 0.0
    %5889 = vmatprep.subr.mxu0 0.0
    %5890 = vmatpush1.msra.mxu0 0.0
    %5891 = vmatprep.subr.mxu0 0.0
    %5892 = vmatpush1.msra.mxu0 0.0
    %5893 = vmatprep.subr.mxu0 0.0
    %5894 = vmatpush1.msra.mxu0 0.0
    %5895 = vmatprep.subr.mxu0 0.0
    %5896 = vmatpush1.msra.mxu0 0.0
    %5897 = vmatprep.subr.mxu0 0.0
    %5898 = vmatpush1.msra.mxu0 0.0
    %5899 = vmatprep.subr.mxu0 0.0
    %5900 = vmatpush1.msra.mxu0 0.0
    %5901 = vmatprep.subr.mxu0 0.0
    %5902 = vmatpush1.msra.mxu0 0.0
    %5903 = vmatprep.subr.mxu0 0.0
    %5904 = vmatpush1.msra.mxu0 0.0
    %5905 = vmatprep.subr.mxu0 0.0
    %5906 = vmatpush1.msra.mxu0 0.0
    %5907 = vmatprep.subr.mxu0 0.0
    %5908 = vmatpush1.msra.mxu0 0.0
    %5909 = vmatprep.subr.mxu0 0.0
    %5910 = vmatpush1.msra.mxu0 0.0
    %5911 = vmatprep.subr.mxu0 0.0
    %5912 = vmatpush1.msra.mxu0 0.0
    %5913 = vmatprep.subr.mxu0 0.0
    %5914 = vmatpush1.msra.mxu0 0.0
    %5915 = vmatprep.subr.mxu0 0.0
    %5916 = vmatpush1.msra.mxu0 0.0
    %5917 = vmatprep.subr.mxu0 0.0
    %5918 = vmatpush1.msra.mxu0 0.0
    %5919 = vmatprep.subr.mxu0 0.0
    %5920 = vmatpush1.msra.mxu0 0.0
    %5921 = vmatprep.subr.mxu0 0.0
    %5922 = vmatpush1.msra.mxu0 0.0
    %5923 = vmatprep.subr.mxu0 0.0
    %5924 = vmatpush1.msra.mxu0 0.0
    %5925 = vmatprep.subr.mxu0 0.0
    %5926 = vmatpush1.msra.mxu0 0.0
    %5927 = vmatprep.mubr.f32.mxu0 0.0
    %5928 = vmatmul.mubr.f32.gmra.mrb[0].mxu0 %v5861
    %v5929 = vpop.f32.mrb[0].mxu0
    %v5930 = vadd.f32 0.0, %v5929
    %v5931 = vpop.f32.mrb[0].mxu0
    %5932 = vdwg.mxu0
    %5933 = vmatprep.subr.mxu0 0.0
    %5934 = vmatpush1.msra.mxu0 %v4980
    %5935 = vmatprep.subr.mxu0 0.0
    %5936 = vmatpush1.msra.mxu0 %v4981
    %5937 = vmatprep.subr.mxu0 0.0
    %5938 = vmatpush1.msra.mxu0 %v4982
    %5939 = vmatprep.subr.mxu0 0.0
    %5940 = vmatpush1.msra.mxu0 %v4983
    %5941 = vmatprep.subr.mxu0 0.0
    %5942 = vmatpush1.msra.mxu0 0.0
    %5943 = vmatprep.subr.mxu0 0.0
    %5944 = vmatpush1.msra.mxu0 0.0
    %5945 = vmatprep.subr.mxu0 0.0
    %5946 = vmatpush1.msra.mxu0 0.0
    %5947 = vmatprep.subr.mxu0 0.0
    %5948 = vmatpush1.msra.mxu0 0.0
    %5949 = vmatprep.subr.mxu0 0.0
    %5950 = vmatpush1.msra.mxu0 0.0
    %5951 = vmatprep.subr.mxu0 0.0
    %5952 = vmatpush1.msra.mxu0 0.0
    %5953 = vmatprep.subr.mxu0 0.0
    %5954 = vmatpush1.msra.mxu0 0.0
    %5955 = vmatprep.subr.mxu0 0.0
    %5956 = vmatpush1.msra.mxu0 0.0
    %5957 = vmatprep.subr.mxu0 0.0
    %5958 = vmatpush1.msra.mxu0 0.0
    %5959 = vmatprep.subr.mxu0 0.0
    %5960 = vmatpush1.msra.mxu0 0.0
    %5961 = vmatprep.subr.mxu0 0.0
    %5962 = vmatpush1.msra.mxu0 0.0
    %5963 = vmatprep.subr.mxu0 0.0
    %5964 = vmatpush1.msra.mxu0 0.0
    %5965 = vmatprep.subr.mxu0 0.0
    %5966 = vmatpush1.msra.mxu0 0.0
    %5967 = vmatprep.subr.mxu0 0.0
    %5968 = vmatpush1.msra.mxu0 0.0
    %5969 = vmatprep.subr.mxu0 0.0
    %5970 = vmatpush1.msra.mxu0 0.0
    %5971 = vmatprep.subr.mxu0 0.0
    %5972 = vmatpush1.msra.mxu0 0.0
    %5973 = vmatprep.subr.mxu0 0.0
    %5974 = vmatpush1.msra.mxu0 0.0
    %5975 = vmatprep.subr.mxu0 0.0
    %5976 = vmatpush1.msra.mxu0 0.0
    %5977 = vmatprep.subr.mxu0 0.0
    %5978 = vmatpush1.msra.mxu0 0.0
    %5979 = vmatprep.subr.mxu0 0.0
    %5980 = vmatpush1.msra.mxu0 0.0
    %5981 = vmatprep.subr.mxu0 0.0
    %5982 = vmatpush1.msra.mxu0 0.0
    %5983 = vmatprep.subr.mxu0 0.0
    %5984 = vmatpush1.msra.mxu0 0.0
    %5985 = vmatprep.subr.mxu0 0.0
    %5986 = vmatpush1.msra.mxu0 0.0
    %5987 = vmatprep.subr.mxu0 0.0
    %5988 = vmatpush1.msra.mxu0 0.0
    %5989 = vmatprep.subr.mxu0 0.0
    %5990 = vmatpush1.msra.mxu0 0.0
    %5991 = vmatprep.subr.mxu0 0.0
    %5992 = vmatpush1.msra.mxu0 0.0
    %5993 = vmatprep.subr.mxu0 0.0
    %5994 = vmatpush1.msra.mxu0 0.0
    %5995 = vmatprep.subr.mxu0 0.0
    %5996 = vmatpush1.msra.mxu0 0.0
    %5997 = vmatprep.mubr.f32.mxu0 0.0
    %5998 = vmatmul.mubr.f32.gmra.mrb[0].mxu0 %v5861
    %v5999 = vpop.f32.mrb[0].mxu0
    %v6000 = vadd.f32 0.0, %v5999
    %v6001 = vpop.f32.mrb[0].mxu0
    %6002 = vdwg.mxu0
    %v6003 = vsel %vm441, %v5930, %v6000
    %v6004 = vadd.f32 %v5857, %v6003
    %v6005 = vxor.u32 %v6004, 2147483648
    %v6006 = vmul.f32 %v6005, 1.442695
    %v6007 = vpow.pop %v6006
    %v6008 = vadd.f32 %v6007, 1.0
    %v6009 = vrcp.pop %v6008
    %v6010 = vmul.f32 1.0, %v6009
    %v6011 = vtanh.pop %v6004
    %v6012 = vmul.f32 %v6010, %v5844
    %6014 = vrot.lane.b32.xlu0 %v6011, 64
    %v6015 = vpop.permute.xlu0 %6014
    %v6017 = vmul.f32 %v6010, %v6015
    %6019 = vrot.lane.b32.xlu0 %v6017, 32
    %v6020 = vpop.permute.xlu0 %6019
    %v6022 = vadd.f32 %v6012, %v6020
    %v6023 = vtanh.pop %v6022
    %6025 = vrot.lane.b32.xlu0 %v6023, 64
    %v6026 = vpop.permute.xlu0 %6025
    %v6028 = vmul.f32 %v6010, %v6026
    %v6029 = vsel %vm295, %v4874, %v4957
    %6031 = vrot.lane.b32.xlu0 %v6028, 32
    %v6032 = vpop.permute.xlu0 %6031
    %v6033 = vsel %vm90, %v6032, 0
    %6035 = vmatprep.subr.mxu0 0.0
    %6036 = vmatpush1.msra.mxu0 %v4975
    %6037 = vmatprep.subr.mxu0 0.0
    %6038 = vmatpush1.msra.mxu0 %v4976
    %6039 = vmatprep.subr.mxu0 0.0
    %6040 = vmatpush1.msra.mxu0 %v4977
    %6041 = vmatprep.subr.mxu0 0.0
    %6042 = vmatpush1.msra.mxu0 %v4978
    %6043 = vmatprep.subr.mxu0 0.0
    %6044 = vmatpush1.msra.mxu0 0.0
    %6045 = vmatprep.subr.mxu0 0.0
    %6046 = vmatpush1.msra.mxu0 0.0
    %6047 = vmatprep.subr.mxu0 0.0
    %6048 = vmatpush1.msra.mxu0 0.0
    %6049 = vmatprep.subr.mxu0 0.0
    %6050 = vmatpush1.msra.mxu0 0.0
    %6051 = vmatprep.subr.mxu0 0.0
    %6052 = vmatpush1.msra.mxu0 0.0
    %6053 = vmatprep.subr.mxu0 0.0
    %6054 = vmatpush1.msra.mxu0 0.0
    %6055 = vmatprep.subr.mxu0 0.0
    %6056 = vmatpush1.msra.mxu0 0.0
    %6057 = vmatprep.subr.mxu0 0.0
    %6058 = vmatpush1.msra.mxu0 0.0
    %6059 = vmatprep.subr.mxu0 0.0
    %6060 = vmatpush1.msra.mxu0 0.0
    %6061 = vmatprep.subr.mxu0 0.0
    %6062 = vmatpush1.msra.mxu0 0.0
    %6063 = vmatprep.subr.mxu0 0.0
    %6064 = vmatpush1.msra.mxu0 0.0
    %6065 = vmatprep.subr.mxu0 0.0
    %6066 = vmatpush1.msra.mxu0 0.0
    %6067 = vmatprep.subr.mxu0 0.0
    %6068 = vmatpush1.msra.mxu0 0.0
    %6069 = vmatprep.subr.mxu0 0.0
    %6070 = vmatpush1.msra.mxu0 0.0
    %6071 = vmatprep.subr.mxu0 0.0
    %6072 = vmatpush1.msra.mxu0 0.0
    %6073 = vmatprep.subr.mxu0 0.0
    %6074 = vmatpush1.msra.mxu0 0.0
    %6075 = vmatprep.subr.mxu0 0.0
    %6076 = vmatpush1.msra.mxu0 0.0
    %6077 = vmatprep.subr.mxu0 0.0
    %6078 = vmatpush1.msra.mxu0 0.0
    %6079 = vmatprep.subr.mxu0 0.0
    %6080 = vmatpush1.msra.mxu0 0.0
    %6081 = vmatprep.subr.mxu0 0.0
    %6082 = vmatpush1.msra.mxu0 0.0
    %6083 = vmatprep.subr.mxu0 0.0
    %6084 = vmatpush1.msra.mxu0 0.0
    %6085 = vmatprep.subr.mxu0 0.0
    %6086 = vmatpush1.msra.mxu0 0.0
    %6087 = vmatprep.subr.mxu0 0.0
    %6088 = vmatpush1.msra.mxu0 0.0
    %6089 = vmatprep.subr.mxu0 0.0
    %6090 = vmatpush1.msra.mxu0 0.0
    %6091 = vmatprep.subr.mxu0 0.0
    %6092 = vmatpush1.msra.mxu0 0.0
    %6093 = vmatprep.subr.mxu0 0.0
    %6094 = vmatpush1.msra.mxu0 0.0
    %6095 = vmatprep.subr.mxu0 0.0
    %6096 = vmatpush1.msra.mxu0 0.0
    %6097 = vmatprep.subr.mxu0 0.0
    %6098 = vmatpush1.msra.mxu0 0.0
    %6099 = vmatprep.mubr.f32.mxu0 0.0
    %6100 = vmatmul.mubr.f32.gmra.mrb[0].mxu0 %v6033
    %v6101 = vpop.f32.mrb[0].mxu0
    %v6102 = vadd.f32 0.0, %v6101
    %v6103 = vpop.f32.mrb[0].mxu0
    %6104 = vdwg.mxu0
    %6105 = vmatprep.subr.mxu0 0.0
    %6106 = vmatpush1.msra.mxu0 %v4980
    %6107 = vmatprep.subr.mxu0 0.0
    %6108 = vmatpush1.msra.mxu0 %v4981
    %6109 = vmatprep.subr.mxu0 0.0
    %6110 = vmatpush1.msra.mxu0 %v4982
    %6111 = vmatprep.subr.mxu0 0.0
    %6112 = vmatpush1.msra.mxu0 %v4983
    %6113 = vmatprep.subr.mxu0 0.0
    %6114 = vmatpush1.msra.mxu0 0.0
    %6115 = vmatprep.subr.mxu0 0.0
    %6116 = vmatpush1.msra.mxu0 0.0
    %6117 = vmatprep.subr.mxu0 0.0
    %6118 = vmatpush1.msra.mxu0 0.0
    %6119 = vmatprep.subr.mxu0 0.0
    %6120 = vmatpush1.msra.mxu0 0.0
    %6121 = vmatprep.subr.mxu0 0.0
    %6122 = vmatpush1.msra.mxu0 0.0
    %6123 = vmatprep.subr.mxu0 0.0
    %6124 = vmatpush1.msra.mxu0 0.0
    %6125 = vmatprep.subr.mxu0 0.0
    %6126 = vmatpush1.msra.mxu0 0.0
    %6127 = vmatprep.subr.mxu0 0.0
    %6128 = vmatpush1.msra.mxu0 0.0
    %6129 = vmatprep.subr.mxu0 0.0
    %6130 = vmatpush1.msra.mxu0 0.0
    %6131 = vmatprep.subr.mxu0 0.0
    %6132 = vmatpush1.msra.mxu0 0.0
    %6133 = vmatprep.subr.mxu0 0.0
    %6134 = vmatpush1.msra.mxu0 0.0
    %6135 = vmatprep.subr.mxu0 0.0
    %6136 = vmatpush1.msra.mxu0 0.0
    %6137 = vmatprep.subr.mxu0 0.0
    %6138 = vmatpush1.msra.mxu0 0.0
    %6139 = vmatprep.subr.mxu0 0.0
    %6140 = vmatpush1.msra.mxu0 0.0
    %6141 = vmatprep.subr.mxu0 0.0
    %6142 = vmatpush1.msra.mxu0 0.0
    %6143 = vmatprep.subr.mxu0 0.0
    %6144 = vmatpush1.msra.mxu0 0.0
    %6145 = vmatprep.subr.mxu0 0.0
    %6146 = vmatpush1.msra.mxu0 0.0
    %6147 = vmatprep.subr.mxu0 0.0
    %6148 = vmatpush1.msra.mxu0 0.0
    %6149 = vmatprep.subr.mxu0 0.0
    %6150 = vmatpush1.msra.mxu0 0.0
    %6151 = vmatprep.subr.mxu0 0.0
    %6152 = vmatpush1.msra.mxu0 0.0
    %6153 = vmatprep.subr.mxu0 0.0
    %6154 = vmatpush1.msra.mxu0 0.0
    %6155 = vmatprep.subr.mxu0 0.0
    %6156 = vmatpush1.msra.mxu0 0.0
    %6157 = vmatprep.subr.mxu0 0.0
    %6158 = vmatpush1.msra.mxu0 0.0
    %6159 = vmatprep.subr.mxu0 0.0
    %6160 = vmatpush1.msra.mxu0 0.0
    %6161 = vmatprep.subr.mxu0 0.0
    %6162 = vmatpush1.msra.mxu0 0.0
    %6163 = vmatprep.subr.mxu0 0.0
    %6164 = vmatpush1.msra.mxu0 0.0
    %6165 = vmatprep.subr.mxu0 0.0
    %6166 = vmatpush1.msra.mxu0 0.0
    %6167 = vmatprep.subr.mxu0 0.0
    %6168 = vmatpush1.msra.mxu0 0.0
    %6169 = vmatprep.mubr.f32.mxu0 0.0
    %6170 = vmatmul.mubr.f32.gmra.mrb[0].mxu0 %v6033
    %v6171 = vpop.f32.mrb[0].mxu0
    %v6172 = vadd.f32 0.0, %v6171
    %v6173 = vpop.f32.mrb[0].mxu0
    %6174 = vdwg.mxu0
    %v6175 = vsel %vm441, %v6102, %v6172
    %v6176 = vadd.f32 %v6029, %v6175
    %v6177 = vxor.u32 %v6176, 2147483648
    %v6178 = vmul.f32 %v6177, 1.442695
    %v6179 = vpow.pop %v6178
    %v6180 = vadd.f32 %v6179, 1.0
    %v6181 = vrcp.pop %v6180
    %v6182 = vmul.f32 1.0, %v6181
    %v6183 = vtanh.pop %v6176
    %v6184 = vmul.f32 %v6182, %v6022
    %6186 = vrot.lane.b32.xlu0 %v6183, 64
    %v6187 = vpop.permute.xlu0 %6186
    %v6189 = vmul.f32 %v6182, %v6187
    %6191 = vrot.lane.b32.xlu0 %v6189, 32
    %v6192 = vpop.permute.xlu0 %6191
    %v6194 = vadd.f32 %v6184, %v6192
    %v6195 = vtanh.pop %v6194
    %6197 = vrot.lane.b32.xlu0 %v6195, 64
    %v6198 = vpop.permute.xlu0 %6197
    %v6200 = vmul.f32 %v6182, %v6198
    %v6202 = vrot.slane %v4874, 4
    %v6205 = vrot.slane %v4957, 4
    %v6207 = vsel %vm295, %v6202, %v6205
    %6209 = vrot.lane.b32.xlu0 %v6200, 32
    %v6210 = vpop.permute.xlu0 %6209
    %v6211 = vsel %vm90, %v6210, 0
    %6213 = vmatprep.subr.mxu0 0.0
    %6214 = vmatpush1.msra.mxu0 %v4975
    %6215 = vmatprep.subr.mxu0 0.0
    %6216 = vmatpush1.msra.mxu0 %v4976
    %6217 = vmatprep.subr.mxu0 0.0
    %6218 = vmatpush1.msra.mxu0 %v4977
    %6219 = vmatprep.subr.mxu0 0.0
    %6220 = vmatpush1.msra.mxu0 %v4978
    %6221 = vmatprep.subr.mxu0 0.0
    %6222 = vmatpush1.msra.mxu0 0.0
    %6223 = vmatprep.subr.mxu0 0.0
    %6224 = vmatpush1.msra.mxu0 0.0
    %6225 = vmatprep.subr.mxu0 0.0
    %6226 = vmatpush1.msra.mxu0 0.0
    %6227 = vmatprep.subr.mxu0 0.0
    %6228 = vmatpush1.msra.mxu0 0.0
    %6229 = vmatprep.subr.mxu0 0.0
    %6230 = vmatpush1.msra.mxu0 0.0
    %6231 = vmatprep.subr.mxu0 0.0
    %6232 = vmatpush1.msra.mxu0 0.0
    %6233 = vmatprep.subr.mxu0 0.0
    %6234 = vmatpush1.msra.mxu0 0.0
    %6235 = vmatprep.subr.mxu0 0.0
    %6236 = vmatpush1.msra.mxu0 0.0
    %6237 = vmatprep.subr.mxu0 0.0
    %6238 = vmatpush1.msra.mxu0 0.0
    %6239 = vmatprep.subr.mxu0 0.0
    %6240 = vmatpush1.msra.mxu0 0.0
    %6241 = vmatprep.subr.mxu0 0.0
    %6242 = vmatpush1.msra.mxu0 0.0
    %6243 = vmatprep.subr.mxu0 0.0
    %6244 = vmatpush1.msra.mxu0 0.0
    %6245 = vmatprep.subr.mxu0 0.0
    %6246 = vmatpush1.msra.mxu0 0.0
    %6247 = vmatprep.subr.mxu0 0.0
    %6248 = vmatpush1.msra.mxu0 0.0
    %6249 = vmatprep.subr.mxu0 0.0
    %6250 = vmatpush1.msra.mxu0 0.0
    %6251 = vmatprep.subr.mxu0 0.0
    %6252 = vmatpush1.msra.mxu0 0.0
    %6253 = vmatprep.subr.mxu0 0.0
    %6254 = vmatpush1.msra.mxu0 0.0
    %6255 = vmatprep.subr.mxu0 0.0
    %6256 = vmatpush1.msra.mxu0 0.0
    %6257 = vmatprep.subr.mxu0 0.0
    %6258 = vmatpush1.msra.mxu0 0.0
    %6259 = vmatprep.subr.mxu0 0.0
    %6260 = vmatpush1.msra.mxu0 0.0
    %6261 = vmatprep.subr.mxu0 0.0
    %6262 = vmatpush1.msra.mxu0 0.0
    %6263 = vmatprep.subr.mxu0 0.0
    %6264 = vmatpush1.msra.mxu0 0.0
    %6265 = vmatprep.subr.mxu0 0.0
    %6266 = vmatpush1.msra.mxu0 0.0
    %6267 = vmatprep.subr.mxu0 0.0
    %6268 = vmatpush1.msra.mxu0 0.0
    %6269 = vmatprep.subr.mxu0 0.0
    %6270 = vmatpush1.msra.mxu0 0.0
    %6271 = vmatprep.subr.mxu0 0.0
    %6272 = vmatpush1.msra.mxu0 0.0
    %6273 = vmatprep.subr.mxu0 0.0
    %6274 = vmatpush1.msra.mxu0 0.0
    %6275 = vmatprep.subr.mxu0 0.0
    %6276 = vmatpush1.msra.mxu0 0.0
    %6277 = vmatprep.mubr.f32.mxu0 0.0
    %6278 = vmatmul.mubr.f32.gmra.mrb[0].mxu0 %v6211
    %v6279 = vpop.f32.mrb[0].mxu0
    %v6280 = vadd.f32 0.0, %v6279
    %v6281 = vpop.f32.mrb[0].mxu0
    %6282 = vdwg.mxu0
    %6283 = vmatprep.subr.mxu0 0.0
    %6284 = vmatpush1.msra.mxu0 %v4980
    %6285 = vmatprep.subr.mxu0 0.0
    %6286 = vmatpush1.msra.mxu0 %v4981
    %6287 = vmatprep.subr.mxu0 0.0
    %6288 = vmatpush1.msra.mxu0 %v4982
    %6289 = vmatprep.subr.mxu0 0.0
    %6290 = vmatpush1.msra.mxu0 %v4983
    %6291 = vmatprep.subr.mxu0 0.0
    %6292 = vmatpush1.msra.mxu0 0.0
    %6293 = vmatprep.subr.mxu0 0.0
    %6294 = vmatpush1.msra.mxu0 0.0
    %6295 = vmatprep.subr.mxu0 0.0
    %6296 = vmatpush1.msra.mxu0 0.0
    %6297 = vmatprep.subr.mxu0 0.0
    %6298 = vmatpush1.msra.mxu0 0.0
    %6299 = vmatprep.subr.mxu0 0.0
    %6300 = vmatpush1.msra.mxu0 0.0
    %6301 = vmatprep.subr.mxu0 0.0
    %6302 = vmatpush1.msra.mxu0 0.0
    %6303 = vmatprep.subr.mxu0 0.0
    %6304 = vmatpush1.msra.mxu0 0.0
    %6305 = vmatprep.subr.mxu0 0.0
    %6306 = vmatpush1.msra.mxu0 0.0
    %6307 = vmatprep.subr.mxu0 0.0
    %6308 = vmatpush1.msra.mxu0 0.0
    %6309 = vmatprep.subr.mxu0 0.0
    %6310 = vmatpush1.msra.mxu0 0.0
    %6311 = vmatprep.subr.mxu0 0.0
    %6312 = vmatpush1.msra.mxu0 0.0
    %6313 = vmatprep.subr.mxu0 0.0
    %6314 = vmatpush1.msra.mxu0 0.0
    %6315 = vmatprep.subr.mxu0 0.0
    %6316 = vmatpush1.msra.mxu0 0.0
    %6317 = vmatprep.subr.mxu0 0.0
    %6318 = vmatpush1.msra.mxu0 0.0
    %6319 = vmatprep.subr.mxu0 0.0
    %6320 = vmatpush1.msra.mxu0 0.0
    %6321 = vmatprep.subr.mxu0 0.0
    %6322 = vmatpush1.msra.mxu0 0.0
    %6323 = vmatprep.subr.mxu0 0.0
    %6324 = vmatpush1.msra.mxu0 0.0
    %6325 = vmatprep.subr.mxu0 0.0
    %6326 = vmatpush1.msra.mxu0 0.0
    %6327 = vmatprep.subr.mxu0 0.0
    %6328 = vmatpush1.msra.mxu0 0.0
    %6329 = vmatprep.subr.mxu0 0.0
    %6330 = vmatpush1.msra.mxu0 0.0
    %6331 = vmatprep.subr.mxu0 0.0
    %6332 = vmatpush1.msra.mxu0 0.0
    %6333 = vmatprep.subr.mxu0 0.0
    %6334 = vmatpush1.msra.mxu0 0.0
    %6335 = vmatprep.subr.mxu0 0.0
    %6336 = vmatpush1.msra.mxu0 0.0
    %6337 = vmatprep.subr.mxu0 0.0
    %6338 = vmatpush1.msra.mxu0 0.0
    %6339 = vmatprep.subr.mxu0 0.0
    %6340 = vmatpush1.msra.mxu0 0.0
    %6341 = vmatprep.subr.mxu0 0.0
    %6342 = vmatpush1.msra.mxu0 0.0
    %6343 = vmatprep.subr.mxu0 0.0
    %6344 = vmatpush1.msra.mxu0 0.0
    %6345 = vmatprep.subr.mxu0 0.0
    %6346 = vmatpush1.msra.mxu0 0.0
    %6347 = vmatprep.mubr.f32.mxu0 0.0
    %6348 = vmatmul.mubr.f32.gmra.mrb[0].mxu0 %v6211
    %v6349 = vpop.f32.mrb[0].mxu0
    %v6350 = vadd.f32 0.0, %v6349
    %v6351 = vpop.f32.mrb[0].mxu0
    %6352 = vdwg.mxu0
    %v6353 = vsel %vm441, %v6280, %v6350
    %v6354 = vadd.f32 %v6207, %v6353
    %v6355 = vxor.u32 %v6354, 2147483648
    %v6356 = vmul.f32 %v6355, 1.442695
    %v6357 = vpow.pop %v6356
    %v6358 = vadd.f32 %v6357, 1.0
    %v6359 = vrcp.pop %v6358
    %v6360 = vmul.f32 1.0, %v6359
    %v6361 = vtanh.pop %v6354
    %v6362 = vmul.f32 %v6360, %v6194
    %6364 = vrot.lane.b32.xlu0 %v6361, 64
    %v6365 = vpop.permute.xlu0 %6364
    %v6367 = vmul.f32 %v6360, %v6365
    %6369 = vrot.lane.b32.xlu0 %v6367, 32
    %v6370 = vpop.permute.xlu0 %6369
    %v6372 = vadd.f32 %v6362, %v6370
    %v6373 = vtanh.pop %v6372
    %6375 = vrot.lane.b32.xlu0 %v6373, 64
    %v6376 = vpop.permute.xlu0 %6375
    %v6378 = vmul.f32 %v6360, %v6376
    %v6380 = vrot.slane %v6378, 2
    %v6382 = vrot.slane %v6378, 6
    %v6384 = vsel %vm1701, %v6380, %v6382
    %v6385 = vsel %vm295, %v6384, %v6380
    %v6386 = vsel %vm1704, %v6385, %v6382
    %v6388 = vrot.slane %v6372, 2
    %v6390 = vrot.slane %v6372, 6
    %v6392 = vsel %vm1701, %v6388, %v6390
    %v6393 = vsel %vm295, %v6392, %v6388
    %v6394 = vsel %vm1704, %v6393, %v6390
    %v6395 = vld [vmem:[%s13] sm:$0xff]
    %v6396 = vld [vmem:[%s13 + $0x8] sm:$0xff]
    %v6397 = vld [vmem:[%s13 + $0x10] sm:$0xff]
    %v6398 = vld [vmem:[%s13 + $0x18] sm:$0xff]
    %v6399 = vld [vmem:[%s15] sm:$0x1]
    %v6401 = vlaneseq
    %v6402 = vshrl.u32 %v6401, 7
    %v6403 = vsub.s32 0, %v6402
    %v6404 = vrot.slane %v6399, %v6403
    %6406 = vmatprep.subr.mxu0 0.0
    %6407 = vmatpush1.msra.mxu0 %v6395
    %6408 = vmatprep.subr.mxu0 0.0
    %6409 = vmatpush1.msra.mxu0 %v6396
    %6410 = vmatprep.subr.mxu0 0.0
    %6411 = vmatpush1.msra.mxu0 %v6397
    %6412 = vmatprep.subr.mxu0 0.0
    %6413 = vmatpush1.msra.mxu0 %v6398
    %6414 = vmatprep.subr.mxu0 0.0
    %6415 = vmatpush1.msra.mxu0 0.0
    %6416 = vmatprep.subr.mxu0 0.0
    %6417 = vmatpush1.msra.mxu0 0.0
    %6418 = vmatprep.subr.mxu0 0.0
    %6419 = vmatpush1.msra.mxu0 0.0
    %6420 = vmatprep.subr.mxu0 0.0
    %6421 = vmatpush1.msra.mxu0 0.0
    %6422 = vmatprep.subr.mxu0 0.0
    %6423 = vmatpush1.msra.mxu0 0.0
    %6424 = vmatprep.subr.mxu0 0.0
    %6425 = vmatpush1.msra.mxu0 0.0
    %6426 = vmatprep.subr.mxu0 0.0
    %6427 = vmatpush1.msra.mxu0 0.0
    %6428 = vmatprep.subr.mxu0 0.0
    %6429 = vmatpush1.msra.mxu0 0.0
    %6430 = vmatprep.subr.mxu0 0.0
    %6431 = vmatpush1.msra.mxu0 0.0
    %6432 = vmatprep.subr.mxu0 0.0
    %6433 = vmatpush1.msra.mxu0 0.0
    %6434 = vmatprep.subr.mxu0 0.0
    %6435 = vmatpush1.msra.mxu0 0.0
    %6436 = vmatprep.subr.mxu0 0.0
    %6437 = vmatpush1.msra.mxu0 0.0
    %6438 = vmatprep.subr.mxu0 0.0
    %6439 = vmatpush1.msra.mxu0 0.0
    %6440 = vmatprep.subr.mxu0 0.0
    %6441 = vmatpush1.msra.mxu0 0.0
    %6442 = vmatprep.subr.mxu0 0.0
    %6443 = vmatpush1.msra.mxu0 0.0
    %6444 = vmatprep.subr.mxu0 0.0
    %6445 = vmatpush1.msra.mxu0 0.0
    %6446 = vmatprep.subr.mxu0 0.0
    %6447 = vmatpush1.msra.mxu0 0.0
    %6448 = vmatprep.subr.mxu0 0.0
    %6449 = vmatpush1.msra.mxu0 0.0
    %6450 = vmatprep.subr.mxu0 0.0
    %6451 = vmatpush1.msra.mxu0 0.0
    %6452 = vmatprep.subr.mxu0 0.0
    %6453 = vmatpush1.msra.mxu0 0.0
    %6454 = vmatprep.subr.mxu0 0.0
    %6455 = vmatpush1.msra.mxu0 0.0
    %6456 = vmatprep.subr.mxu0 0.0
    %6457 = vmatpush1.msra.mxu0 0.0
    %6458 = vmatprep.subr.mxu0 0.0
    %6459 = vmatpush1.msra.mxu0 0.0
    %6460 = vmatprep.subr.mxu0 0.0
    %6461 = vmatpush1.msra.mxu0 0.0
    %6462 = vmatprep.subr.mxu0 0.0
    %6463 = vmatpush1.msra.mxu0 0.0
    %6464 = vmatprep.subr.mxu0 0.0
    %6465 = vmatpush1.msra.mxu0 0.0
    %6466 = vmatprep.subr.mxu0 0.0
    %6467 = vmatpush1.msra.mxu0 0.0
    %6468 = vmatprep.subr.mxu0 0.0
    %6469 = vmatpush1.msra.mxu0 0.0
    %6470 = vmatprep.mubr.f32.mxu0 0.0
    %6471 = vmatmul.mubr.f32.gmra.mrb[0].mxu0 %v4781
    %v6472 = vpop.f32.mrb[0].mxu0
    %v6473 = vadd.f32 %v6404, %v6472
    %v6474 = vpop.f32.mrb[0].mxu0
    %6475 = vmatprep.mubr.f32.mxu0 0.0
    %6476 = vmatmul.mubr.f32.gmra.mrb[0].mxu0 %v4784
    %v6477 = vpop.f32.mrb[0].mxu0
    %v6478 = vadd.f32 %v6404, %v6477
    %v6479 = vpop.f32.mrb[0].mxu0
    %6480 = vmatprep.mubr.f32.mxu0 0.0
    %6481 = vmatmul.mubr.f32.gmra.mrb[0].mxu0 %v4787
    %v6482 = vpop.f32.mrb[0].mxu0
    %v6483 = vadd.f32 %v6404, %v6482
    %v6484 = vpop.f32.mrb[0].mxu0
    %6485 = vmatprep.mubr.f32.mxu0 0.0
    %6486 = vmatmul.mubr.f32.gmra.mrb[0].mxu0 %v4790
    %v6487 = vpop.f32.mrb[0].mxu0
    %v6488 = vadd.f32 %v6404, %v6487
    %v6489 = vpop.f32.mrb[0].mxu0
    %6490 = vdwg.mxu0
    %s6491 = scalar_lea.vmem %s13, 32
    %v6492 = vld [vmem:[%s6491] sm:$0xff]
    %v6493 = vld [vmem:[%s6491 + $0x8] sm:$0xff]
    %v6494 = vld [vmem:[%s6491 + $0x10] sm:$0xff]
    %v6495 = vld [vmem:[%s6491 + $0x18] sm:$0xff]
    %s6496 = scalar_lea.vmem %s15, 1
    %v6497 = vld [vmem:[%s6496] sm:$0x1]
    %v6499 = vlaneseq
    %v6500 = vshrl.u32 %v6499, 7
    %v6501 = vsub.s32 0, %v6500
    %v6502 = vrot.slane %v6497, %v6501
    %6504 = vmatprep.subr.mxu0 0.0
    %6505 = vmatpush1.msra.mxu0 %v6492
    %6506 = vmatprep.subr.mxu0 0.0
    %6507 = vmatpush1.msra.mxu0 %v6493
    %6508 = vmatprep.subr.mxu0 0.0
    %6509 = vmatpush1.msra.mxu0 %v6494
    %6510 = vmatprep.subr.mxu0 0.0
    %6511 = vmatpush1.msra.mxu0 %v6495
    %6512 = vmatprep.subr.mxu0 0.0
    %6513 = vmatpush1.msra.mxu0 0.0
    %6514 = vmatprep.subr.mxu0 0.0
    %6515 = vmatpush1.msra.mxu0 0.0
    %6516 = vmatprep.subr.mxu0 0.0
    %6517 = vmatpush1.msra.mxu0 0.0
    %6518 = vmatprep.subr.mxu0 0.0
    %6519 = vmatpush1.msra.mxu0 0.0
    %6520 = vmatprep.subr.mxu0 0.0
    %6521 = vmatpush1.msra.mxu0 0.0
    %6522 = vmatprep.subr.mxu0 0.0
    %6523 = vmatpush1.msra.mxu0 0.0
    %6524 = vmatprep.subr.mxu0 0.0
    %6525 = vmatpush1.msra.mxu0 0.0
    %6526 = vmatprep.subr.mxu0 0.0
    %6527 = vmatpush1.msra.mxu0 0.0
    %6528 = vmatprep.subr.mxu0 0.0
    %6529 = vmatpush1.msra.mxu0 0.0
    %6530 = vmatprep.subr.mxu0 0.0
    %6531 = vmatpush1.msra.mxu0 0.0
    %6532 = vmatprep.subr.mxu0 0.0
    %6533 = vmatpush1.msra.mxu0 0.0
    %6534 = vmatprep.subr.mxu0 0.0
    %6535 = vmatpush1.msra.mxu0 0.0
    %6536 = vmatprep.subr.mxu0 0.0
    %6537 = vmatpush1.msra.mxu0 0.0
    %6538 = vmatprep.subr.mxu0 0.0
    %6539 = vmatpush1.msra.mxu0 0.0
    %6540 = vmatprep.subr.mxu0 0.0
    %6541 = vmatpush1.msra.mxu0 0.0
    %6542 = vmatprep.subr.mxu0 0.0
    %6543 = vmatpush1.msra.mxu0 0.0
    %6544 = vmatprep.subr.mxu0 0.0
    %6545 = vmatpush1.msra.mxu0 0.0
    %6546 = vmatprep.subr.mxu0 0.0
    %6547 = vmatpush1.msra.mxu0 0.0
    %6548 = vmatprep.subr.mxu0 0.0
    %6549 = vmatpush1.msra.mxu0 0.0
    %6550 = vmatprep.subr.mxu0 0.0
    %6551 = vmatpush1.msra.mxu0 0.0
    %6552 = vmatprep.subr.mxu0 0.0
    %6553 = vmatpush1.msra.mxu0 0.0
    %6554 = vmatprep.subr.mxu0 0.0
    %6555 = vmatpush1.msra.mxu0 0.0
    %6556 = vmatprep.subr.mxu0 0.0
    %6557 = vmatpush1.msra.mxu0 0.0
    %6558 = vmatprep.subr.mxu0 0.0
    %6559 = vmatpush1.msra.mxu0 0.0
    %6560 = vmatprep.subr.mxu0 0.0
    %6561 = vmatpush1.msra.mxu0 0.0
    %6562 = vmatprep.subr.mxu0 0.0
    %6563 = vmatpush1.msra.mxu0 0.0
    %6564 = vmatprep.subr.mxu0 0.0
    %6565 = vmatpush1.msra.mxu0 0.0
    %6566 = vmatprep.subr.mxu0 0.0
    %6567 = vmatpush1.msra.mxu0 0.0
    %6568 = vmatprep.mubr.f32.mxu0 0.0
    %6569 = vmatmul.mubr.f32.gmra.mrb[0].mxu0 %v4781
    %v6570 = vpop.f32.mrb[0].mxu0
    %v6571 = vadd.f32 %v6502, %v6570
    %v6572 = vpop.f32.mrb[0].mxu0
    %6573 = vmatprep.mubr.f32.mxu0 0.0
    %6574 = vmatmul.mubr.f32.gmra.mrb[0].mxu0 %v4784
    %v6575 = vpop.f32.mrb[0].mxu0
    %v6576 = vadd.f32 %v6502, %v6575
    %v6577 = vpop.f32.mrb[0].mxu0
    %6578 = vmatprep.mubr.f32.mxu0 0.0
    %6579 = vmatmul.mubr.f32.gmra.mrb[0].mxu0 %v4787
    %v6580 = vpop.f32.mrb[0].mxu0
    %v6581 = vadd.f32 %v6502, %v6580
    %v6582 = vpop.f32.mrb[0].mxu0
    %6583 = vmatprep.mubr.f32.mxu0 0.0
    %6584 = vmatmul.mubr.f32.gmra.mrb[0].mxu0 %v4790
    %v6585 = vpop.f32.mrb[0].mxu0
    %v6586 = vadd.f32 %v6502, %v6585
    %v6587 = vpop.f32.mrb[0].mxu0
    %6588 = vdwg.mxu0
    %v6589 = vld [vmem:[%s14] sm:$0xff]
    %v6590 = vld [vmem:[%s14 + $0x8] sm:$0xff]
    %v6591 = vld [vmem:[%s14 + $0x10] sm:$0xff]
    %v6592 = vld [vmem:[%s14 + $0x18] sm:$0xff]
    %s6593 = scalar_lea.vmem %s14, 32
    %v6594 = vld [vmem:[%s6593] sm:$0xff]
    %v6595 = vld [vmem:[%s6593 + $0x8] sm:$0xff]
    %v6596 = vld [vmem:[%s6593 + $0x10] sm:$0xff]
    %v6597 = vld [vmem:[%s6593 + $0x18] sm:$0xff]
    %v6598 = vsel %vm295, %v6473, %v6586
    %6600 = vrot.lane.b32.xlu0 %v6386, 32
    %v6601 = vpop.permute.xlu0 %6600
    %v6602 = vsel %vm90, %v6601, 0
    %6604 = vmatprep.subr.mxu0 0.0
    %6605 = vmatpush1.msra.mxu0 %v6589
    %6606 = vmatprep.subr.mxu0 0.0
    %6607 = vmatpush1.msra.mxu0 %v6590
    %6608 = vmatprep.subr.mxu0 0.0
    %6609 = vmatpush1.msra.mxu0 %v6591
    %6610 = vmatprep.subr.mxu0 0.0
    %6611 = vmatpush1.msra.mxu0 %v6592
    %6612 = vmatprep.subr.mxu0 0.0
    %6613 = vmatpush1.msra.mxu0 0.0
    %6614 = vmatprep.subr.mxu0 0.0
    %6615 = vmatpush1.msra.mxu0 0.0
    %6616 = vmatprep.subr.mxu0 0.0
    %6617 = vmatpush1.msra.mxu0 0.0
    %6618 = vmatprep.subr.mxu0 0.0
    %6619 = vmatpush1.msra.mxu0 0.0
    %6620 = vmatprep.subr.mxu0 0.0
    %6621 = vmatpush1.msra.mxu0 0.0
    %6622 = vmatprep.subr.mxu0 0.0
    %6623 = vmatpush1.msra.mxu0 0.0
    %6624 = vmatprep.subr.mxu0 0.0
    %6625 = vmatpush1.msra.mxu0 0.0
    %6626 = vmatprep.subr.mxu0 0.0
    %6627 = vmatpush1.msra.mxu0 0.0
    %6628 = vmatprep.subr.mxu0 0.0
    %6629 = vmatpush1.msra.mxu0 0.0
    %6630 = vmatprep.subr.mxu0 0.0
    %6631 = vmatpush1.msra.mxu0 0.0
    %6632 = vmatprep.subr.mxu0 0.0
    %6633 = vmatpush1.msra.mxu0 0.0
    %6634 = vmatprep.subr.mxu0 0.0
    %6635 = vmatpush1.msra.mxu0 0.0
    %6636 = vmatprep.subr.mxu0 0.0
    %6637 = vmatpush1.msra.mxu0 0.0
    %6638 = vmatprep.subr.mxu0 0.0
    %6639 = vmatpush1.msra.mxu0 0.0
    %6640 = vmatprep.subr.mxu0 0.0
    %6641 = vmatpush1.msra.mxu0 0.0
    %6642 = vmatprep.subr.mxu0 0.0
    %6643 = vmatpush1.msra.mxu0 0.0
    %6644 = vmatprep.subr.mxu0 0.0
    %6645 = vmatpush1.msra.mxu0 0.0
    %6646 = vmatprep.subr.mxu0 0.0
    %6647 = vmatpush1.msra.mxu0 0.0
    %6648 = vmatprep.subr.mxu0 0.0
    %6649 = vmatpush1.msra.mxu0 0.0
    %6650 = vmatprep.subr.mxu0 0.0
    %6651 = vmatpush1.msra.mxu0 0.0
    %6652 = vmatprep.subr.mxu0 0.0
    %6653 = vmatpush1.msra.mxu0 0.0
    %6654 = vmatprep.subr.mxu0 0.0
    %6655 = vmatpush1.msra.mxu0 0.0
    %6656 = vmatprep.subr.mxu0 0.0
    %6657 = vmatpush1.msra.mxu0 0.0
    %6658 = vmatprep.subr.mxu0 0.0
    %6659 = vmatpush1.msra.mxu0 0.0
    %6660 = vmatprep.subr.mxu0 0.0
    %6661 = vmatpush1.msra.mxu0 0.0
    %6662 = vmatprep.subr.mxu0 0.0
    %6663 = vmatpush1.msra.mxu0 0.0
    %6664 = vmatprep.subr.mxu0 0.0
    %6665 = vmatpush1.msra.mxu0 0.0
    %6666 = vmatprep.subr.mxu0 0.0
    %6667 = vmatpush1.msra.mxu0 0.0
    %6668 = vmatprep.mubr.f32.mxu0 0.0
    %6669 = vmatmul.mubr.f32.gmra.mrb[0].mxu0 %v6602
    %v6670 = vpop.f32.mrb[0].mxu0
    %v6671 = vadd.f32 0.0, %v6670
    %v6672 = vpop.f32.mrb[0].mxu0
    %6673 = vdwg.mxu0
    %6674 = vmatprep.subr.mxu0 0.0
    %6675 = vmatpush1.msra.mxu0 %v6594
    %6676 = vmatprep.subr.mxu0 0.0
    %6677 = vmatpush1.msra.mxu0 %v6595
    %6678 = vmatprep.subr.mxu0 0.0
    %6679 = vmatpush1.msra.mxu0 %v6596
    %6680 = vmatprep.subr.mxu0 0.0
    %6681 = vmatpush1.msra.mxu0 %v6597
    %6682 = vmatprep.subr.mxu0 0.0
    %6683 = vmatpush1.msra.mxu0 0.0
    %6684 = vmatprep.subr.mxu0 0.0
    %6685 = vmatpush1.msra.mxu0 0.0
    %6686 = vmatprep.subr.mxu0 0.0
    %6687 = vmatpush1.msra.mxu0 0.0
    %6688 = vmatprep.subr.mxu0 0.0
    %6689 = vmatpush1.msra.mxu0 0.0
    %6690 = vmatprep.subr.mxu0 0.0
    %6691 = vmatpush1.msra.mxu0 0.0
    %6692 = vmatprep.subr.mxu0 0.0
    %6693 = vmatpush1.msra.mxu0 0.0
    %6694 = vmatprep.subr.mxu0 0.0
    %6695 = vmatpush1.msra.mxu0 0.0
    %6696 = vmatprep.subr.mxu0 0.0
    %6697 = vmatpush1.msra.mxu0 0.0
    %6698 = vmatprep.subr.mxu0 0.0
    %6699 = vmatpush1.msra.mxu0 0.0
    %6700 = vmatprep.subr.mxu0 0.0
    %6701 = vmatpush1.msra.mxu0 0.0
    %6702 = vmatprep.subr.mxu0 0.0
    %6703 = vmatpush1.msra.mxu0 0.0
    %6704 = vmatprep.subr.mxu0 0.0
    %6705 = vmatpush1.msra.mxu0 0.0
    %6706 = vmatprep.subr.mxu0 0.0
    %6707 = vmatpush1.msra.mxu0 0.0
    %6708 = vmatprep.subr.mxu0 0.0
    %6709 = vmatpush1.msra.mxu0 0.0
    %6710 = vmatprep.subr.mxu0 0.0
    %6711 = vmatpush1.msra.mxu0 0.0
    %6712 = vmatprep.subr.mxu0 0.0
    %6713 = vmatpush1.msra.mxu0 0.0
    %6714 = vmatprep.subr.mxu0 0.0
    %6715 = vmatpush1.msra.mxu0 0.0
    %6716 = vmatprep.subr.mxu0 0.0
    %6717 = vmatpush1.msra.mxu0 0.0
    %6718 = vmatprep.subr.mxu0 0.0
    %6719 = vmatpush1.msra.mxu0 0.0
    %6720 = vmatprep.subr.mxu0 0.0
    %6721 = vmatpush1.msra.mxu0 0.0
    %6722 = vmatprep.subr.mxu0 0.0
    %6723 = vmatpush1.msra.mxu0 0.0
    %6724 = vmatprep.subr.mxu0 0.0
    %6725 = vmatpush1.msra.mxu0 0.0
    %6726 = vmatprep.subr.mxu0 0.0
    %6727 = vmatpush1.msra.mxu0 0.0
    %6728 = vmatprep.subr.mxu0 0.0
    %6729 = vmatpush1.msra.mxu0 0.0
    %6730 = vmatprep.subr.mxu0 0.0
    %6731 = vmatpush1.msra.mxu0 0.0
    %6732 = vmatprep.subr.mxu0 0.0
    %6733 = vmatpush1.msra.mxu0 0.0
    %6734 = vmatprep.subr.mxu0 0.0
    %6735 = vmatpush1.msra.mxu0 0.0
    %6736 = vmatprep.subr.mxu0 0.0
    %6737 = vmatpush1.msra.mxu0 0.0
    %6738 = vmatprep.mubr.f32.mxu0 0.0
    %6739 = vmatmul.mubr.f32.gmra.mrb[0].mxu0 %v6602
    %v6740 = vpop.f32.mrb[0].mxu0
    %v6741 = vadd.f32 0.0, %v6740
    %v6742 = vpop.f32.mrb[0].mxu0
    %6743 = vdwg.mxu0
    %v6744 = vsel %vm441, %v6671, %v6741
    %v6745 = vadd.f32 %v6598, %v6744
    %v6746 = vxor.u32 %v6745, 2147483648
    %v6747 = vmul.f32 %v6746, 1.442695
    %v6748 = vpow.pop %v6747
    %v6749 = vadd.f32 %v6748, 1.0
    %v6750 = vrcp.pop %v6749
    %v6751 = vmul.f32 1.0, %v6750
    %v6752 = vtanh.pop %v6745
    %v6753 = vmul.f32 %v6751, %v6394
    %6755 = vrot.lane.b32.xlu0 %v6752, 64
    %v6756 = vpop.permute.xlu0 %6755
    %v6758 = vmul.f32 %v6751, %v6756
    %6760 = vrot.lane.b32.xlu0 %v6758, 32
    %v6761 = vpop.permute.xlu0 %6760
    %v6763 = vadd.f32 %v6753, %v6761
    %v6764 = vtanh.pop %v6763
    %6766 = vrot.lane.b32.xlu0 %v6764, 64
    %v6767 = vpop.permute.xlu0 %6766
    %v6769 = vmul.f32 %v6751, %v6767
    %6771 = vrot.lane.b32.xlu0 %v6769, 32
    %v6772 = vpop.permute.xlu0 %6771
    %6774 = vst.msk [vmem:[#allocation3] sm:$0xf] %vm2093, %v6772
    %6775 = vrot.lane.b32.xlu0 %v6769, 64
    %v6776 = vpop.permute.xlu0 %6775
    %s6778 = scalar_lea.vmem [#allocation3], 28
    %6779 = vst.msk [vmem:[%s6778 - $0x4] sm:$0xf0] %vm2099, %v6776
    %v6781 = vrot.slane %v6473, 4
    %v6784 = vrot.slane %v6586, 4
    %v6786 = vsel %vm295, %v6781, %v6784
    %v6787 = vsel %vm90, %v6772, 0
    %6789 = vmatprep.subr.mxu0 0.0
    %6790 = vmatpush1.msra.mxu0 %v6589
    %6791 = vmatprep.subr.mxu0 0.0
    %6792 = vmatpush1.msra.mxu0 %v6590
    %6793 = vmatprep.subr.mxu0 0.0
    %6794 = vmatpush1.msra.mxu0 %v6591
    %6795 = vmatprep.subr.mxu0 0.0
    %6796 = vmatpush1.msra.mxu0 %v6592
    %6797 = vmatprep.subr.mxu0 0.0
    %6798 = vmatpush1.msra.mxu0 0.0
    %6799 = vmatprep.subr.mxu0 0.0
    %6800 = vmatpush1.msra.mxu0 0.0
    %6801 = vmatprep.subr.mxu0 0.0
    %6802 = vmatpush1.msra.mxu0 0.0
    %6803 = vmatprep.subr.mxu0 0.0
    %6804 = vmatpush1.msra.mxu0 0.0
    %6805 = vmatprep.subr.mxu0 0.0
    %6806 = vmatpush1.msra.mxu0 0.0
    %6807 = vmatprep.subr.mxu0 0.0
    %6808 = vmatpush1.msra.mxu0 0.0
    %6809 = vmatprep.subr.mxu0 0.0
    %6810 = vmatpush1.msra.mxu0 0.0
    %6811 = vmatprep.subr.mxu0 0.0
    %6812 = vmatpush1.msra.mxu0 0.0
    %6813 = vmatprep.subr.mxu0 0.0
    %6814 = vmatpush1.msra.mxu0 0.0
    %6815 = vmatprep.subr.mxu0 0.0
    %6816 = vmatpush1.msra.mxu0 0.0
    %6817 = vmatprep.subr.mxu0 0.0
    %6818 = vmatpush1.msra.mxu0 0.0
    %6819 = vmatprep.subr.mxu0 0.0
    %6820 = vmatpush1.msra.mxu0 0.0
    %6821 = vmatprep.subr.mxu0 0.0
    %6822 = vmatpush1.msra.mxu0 0.0
    %6823 = vmatprep.subr.mxu0 0.0
    %6824 = vmatpush1.msra.mxu0 0.0
    %6825 = vmatprep.subr.mxu0 0.0
    %6826 = vmatpush1.msra.mxu0 0.0
    %6827 = vmatprep.subr.mxu0 0.0
    %6828 = vmatpush1.msra.mxu0 0.0
    %6829 = vmatprep.subr.mxu0 0.0
    %6830 = vmatpush1.msra.mxu0 0.0
    %6831 = vmatprep.subr.mxu0 0.0
    %6832 = vmatpush1.msra.mxu0 0.0
    %6833 = vmatprep.subr.mxu0 0.0
    %6834 = vmatpush1.msra.mxu0 0.0
    %6835 = vmatprep.subr.mxu0 0.0
    %6836 = vmatpush1.msra.mxu0 0.0
    %6837 = vmatprep.subr.mxu0 0.0
    %6838 = vmatpush1.msra.mxu0 0.0
    %6839 = vmatprep.subr.mxu0 0.0
    %6840 = vmatpush1.msra.mxu0 0.0
    %6841 = vmatprep.subr.mxu0 0.0
    %6842 = vmatpush1.msra.mxu0 0.0
    %6843 = vmatprep.subr.mxu0 0.0
    %6844 = vmatpush1.msra.mxu0 0.0
    %6845 = vmatprep.subr.mxu0 0.0
    %6846 = vmatpush1.msra.mxu0 0.0
    %6847 = vmatprep.subr.mxu0 0.0
    %6848 = vmatpush1.msra.mxu0 0.0
    %6849 = vmatprep.subr.mxu0 0.0
    %6850 = vmatpush1.msra.mxu0 0.0
    %6851 = vmatprep.subr.mxu0 0.0
    %6852 = vmatpush1.msra.mxu0 0.0
    %6853 = vmatprep.mubr.f32.mxu0 0.0
    %6854 = vmatmul.mubr.f32.gmra.mrb[0].mxu0 %v6787
    %v6855 = vpop.f32.mrb[0].mxu0
    %v6856 = vadd.f32 0.0, %v6855
    %v6857 = vpop.f32.mrb[0].mxu0
    %6858 = vdwg.mxu0
    %6859 = vmatprep.subr.mxu0 0.0
    %6860 = vmatpush1.msra.mxu0 %v6594
    %6861 = vmatprep.subr.mxu0 0.0
    %6862 = vmatpush1.msra.mxu0 %v6595
    %6863 = vmatprep.subr.mxu0 0.0
    %6864 = vmatpush1.msra.mxu0 %v6596
    %6865 = vmatprep.subr.mxu0 0.0
    %6866 = vmatpush1.msra.mxu0 %v6597
    %6867 = vmatprep.subr.mxu0 0.0
    %6868 = vmatpush1.msra.mxu0 0.0
    %6869 = vmatprep.subr.mxu0 0.0
    %6870 = vmatpush1.msra.mxu0 0.0
    %6871 = vmatprep.subr.mxu0 0.0
    %6872 = vmatpush1.msra.mxu0 0.0
    %6873 = vmatprep.subr.mxu0 0.0
    %6874 = vmatpush1.msra.mxu0 0.0
    %6875 = vmatprep.subr.mxu0 0.0
    %6876 = vmatpush1.msra.mxu0 0.0
    %6877 = vmatprep.subr.mxu0 0.0
    %6878 = vmatpush1.msra.mxu0 0.0
    %6879 = vmatprep.subr.mxu0 0.0
    %6880 = vmatpush1.msra.mxu0 0.0
    %6881 = vmatprep.subr.mxu0 0.0
    %6882 = vmatpush1.msra.mxu0 0.0
    %6883 = vmatprep.subr.mxu0 0.0
    %6884 = vmatpush1.msra.mxu0 0.0
    %6885 = vmatprep.subr.mxu0 0.0
    %6886 = vmatpush1.msra.mxu0 0.0
    %6887 = vmatprep.subr.mxu0 0.0
    %6888 = vmatpush1.msra.mxu0 0.0
    %6889 = vmatprep.subr.mxu0 0.0
    %6890 = vmatpush1.msra.mxu0 0.0
    %6891 = vmatprep.subr.mxu0 0.0
    %6892 = vmatpush1.msra.mxu0 0.0
    %6893 = vmatprep.subr.mxu0 0.0
    %6894 = vmatpush1.msra.mxu0 0.0
    %6895 = vmatprep.subr.mxu0 0.0
    %6896 = vmatpush1.msra.mxu0 0.0
    %6897 = vmatprep.subr.mxu0 0.0
    %6898 = vmatpush1.msra.mxu0 0.0
    %6899 = vmatprep.subr.mxu0 0.0
    %6900 = vmatpush1.msra.mxu0 0.0
    %6901 = vmatprep.subr.mxu0 0.0
    %6902 = vmatpush1.msra.mxu0 0.0
    %6903 = vmatprep.subr.mxu0 0.0
    %6904 = vmatpush1.msra.mxu0 0.0
    %6905 = vmatprep.subr.mxu0 0.0
    %6906 = vmatpush1.msra.mxu0 0.0
    %6907 = vmatprep.subr.mxu0 0.0
    %6908 = vmatpush1.msra.mxu0 0.0
    %6909 = vmatprep.subr.mxu0 0.0
    %6910 = vmatpush1.msra.mxu0 0.0
    %6911 = vmatprep.subr.mxu0 0.0
    %6912 = vmatpush1.msra.mxu0 0.0
    %6913 = vmatprep.subr.mxu0 0.0
    %6914 = vmatpush1.msra.mxu0 0.0
    %6915 = vmatprep.subr.mxu0 0.0
    %6916 = vmatpush1.msra.mxu0 0.0
    %6917 = vmatprep.subr.mxu0 0.0
    %6918 = vmatpush1.msra.mxu0 0.0
    %6919 = vmatprep.subr.mxu0 0.0
    %6920 = vmatpush1.msra.mxu0 0.0
    %6921 = vmatprep.subr.mxu0 0.0
    %6922 = vmatpush1.msra.mxu0 0.0
    %6923 = vmatprep.mubr.f32.mxu0 0.0
    %6924 = vmatmul.mubr.f32.gmra.mrb[0].mxu0 %v6787
    %v6925 = vpop.f32.mrb[0].mxu0
    %v6926 = vadd.f32 0.0, %v6925
    %v6927 = vpop.f32.mrb[0].mxu0
    %6928 = vdwg.mxu0
    %v6929 = vsel %vm441, %v6856, %v6926
    %v6930 = vadd.f32 %v6786, %v6929
    %v6931 = vxor.u32 %v6930, 2147483648
    %v6932 = vmul.f32 %v6931, 1.442695
    %v6933 = vpow.pop %v6932
    %v6934 = vadd.f32 %v6933, 1.0
    %v6935 = vrcp.pop %v6934
    %v6936 = vmul.f32 1.0, %v6935
    %v6937 = vtanh.pop %v6930
    %v6938 = vmul.f32 %v6936, %v6763
    %6940 = vrot.lane.b32.xlu0 %v6937, 64
    %v6941 = vpop.permute.xlu0 %6940
    %v6943 = vmul.f32 %v6936, %v6941
    %6945 = vrot.lane.b32.xlu0 %v6943, 32
    %v6946 = vpop.permute.xlu0 %6945
    %v6948 = vadd.f32 %v6938, %v6946
    %v6949 = vtanh.pop %v6948
    %6951 = vrot.lane.b32.xlu0 %v6949, 64
    %v6952 = vpop.permute.xlu0 %6951
    %v6954 = vmul.f32 %v6936, %v6952
    %6956 = vrot.lane.b32.xlu0 %v6954, 32
    %v6957 = vpop.permute.xlu0 %6956
    %s6959 = scalar_lea.vmem [#allocation3], 4
    %6960 = vst.msk [vmem:[%s6959] sm:$0xf] %vm2093, %v6957
    %6961 = vrot.lane.b32.xlu0 %v6954, 64
    %v6962 = vpop.permute.xlu0 %6961
    %s6964 = scalar_lea.vmem [#allocation3], 24
    %6965 = vst.msk [vmem:[%s6964 - $0x4] sm:$0xf0] %vm2099, %v6962
    %v6966 = vsel %vm295, %v6478, %v6581
    %v6967 = vsel %vm90, %v6957, 0
    %6969 = vmatprep.subr.mxu0 0.0
    %6970 = vmatpush1.msra.mxu0 %v6589
    %6971 = vmatprep.subr.mxu0 0.0
    %6972 = vmatpush1.msra.mxu0 %v6590
    %6973 = vmatprep.subr.mxu0 0.0
    %6974 = vmatpush1.msra.mxu0 %v6591
    %6975 = vmatprep.subr.mxu0 0.0
    %6976 = vmatpush1.msra.mxu0 %v6592
    %6977 = vmatprep.subr.mxu0 0.0
    %6978 = vmatpush1.msra.mxu0 0.0
    %6979 = vmatprep.subr.mxu0 0.0
    %6980 = vmatpush1.msra.mxu0 0.0
    %6981 = vmatprep.subr.mxu0 0.0
    %6982 = vmatpush1.msra.mxu0 0.0
    %6983 = vmatprep.subr.mxu0 0.0
    %6984 = vmatpush1.msra.mxu0 0.0
    %6985 = vmatprep.subr.mxu0 0.0
    %6986 = vmatpush1.msra.mxu0 0.0
    %6987 = vmatprep.subr.mxu0 0.0
    %6988 = vmatpush1.msra.mxu0 0.0
    %6989 = vmatprep.subr.mxu0 0.0
    %6990 = vmatpush1.msra.mxu0 0.0
    %6991 = vmatprep.subr.mxu0 0.0
    %6992 = vmatpush1.msra.mxu0 0.0
    %6993 = vmatprep.subr.mxu0 0.0
    %6994 = vmatpush1.msra.mxu0 0.0
    %6995 = vmatprep.subr.mxu0 0.0
    %6996 = vmatpush1.msra.mxu0 0.0
    %6997 = vmatprep.subr.mxu0 0.0
    %6998 = vmatpush1.msra.mxu0 0.0
    %6999 = vmatprep.subr.mxu0 0.0
    %7000 = vmatpush1.msra.mxu0 0.0
    %7001 = vmatprep.subr.mxu0 0.0
    %7002 = vmatpush1.msra.mxu0 0.0
    %7003 = vmatprep.subr.mxu0 0.0
    %7004 = vmatpush1.msra.mxu0 0.0
    %7005 = vmatprep.subr.mxu0 0.0
    %7006 = vmatpush1.msra.mxu0 0.0
    %7007 = vmatprep.subr.mxu0 0.0
    %7008 = vmatpush1.msra.mxu0 0.0
    %7009 = vmatprep.subr.mxu0 0.0
    %7010 = vmatpush1.msra.mxu0 0.0
    %7011 = vmatprep.subr.mxu0 0.0
    %7012 = vmatpush1.msra.mxu0 0.0
    %7013 = vmatprep.subr.mxu0 0.0
    %7014 = vmatpush1.msra.mxu0 0.0
    %7015 = vmatprep.subr.mxu0 0.0
    %7016 = vmatpush1.msra.mxu0 0.0
    %7017 = vmatprep.subr.mxu0 0.0
    %7018 = vmatpush1.msra.mxu0 0.0
    %7019 = vmatprep.subr.mxu0 0.0
    %7020 = vmatpush1.msra.mxu0 0.0
    %7021 = vmatprep.subr.mxu0 0.0
    %7022 = vmatpush1.msra.mxu0 0.0
    %7023 = vmatprep.subr.mxu0 0.0
    %7024 = vmatpush1.msra.mxu0 0.0
    %7025 = vmatprep.subr.mxu0 0.0
    %7026 = vmatpush1.msra.mxu0 0.0
    %7027 = vmatprep.subr.mxu0 0.0
    %7028 = vmatpush1.msra.mxu0 0.0
    %7029 = vmatprep.subr.mxu0 0.0
    %7030 = vmatpush1.msra.mxu0 0.0
    %7031 = vmatprep.subr.mxu0 0.0
    %7032 = vmatpush1.msra.mxu0 0.0
    %7033 = vmatprep.mubr.f32.mxu0 0.0
    %7034 = vmatmul.mubr.f32.gmra.mrb[0].mxu0 %v6967
    %v7035 = vpop.f32.mrb[0].mxu0
    %v7036 = vadd.f32 0.0, %v7035
    %v7037 = vpop.f32.mrb[0].mxu0
    %7038 = vdwg.mxu0
    %7039 = vmatprep.subr.mxu0 0.0
    %7040 = vmatpush1.msra.mxu0 %v6594
    %7041 = vmatprep.subr.mxu0 0.0
    %7042 = vmatpush1.msra.mxu0 %v6595
    %7043 = vmatprep.subr.mxu0 0.0
    %7044 = vmatpush1.msra.mxu0 %v6596
    %7045 = vmatprep.subr.mxu0 0.0
    %7046 = vmatpush1.msra.mxu0 %v6597
    %7047 = vmatprep.subr.mxu0 0.0
    %7048 = vmatpush1.msra.mxu0 0.0
    %7049 = vmatprep.subr.mxu0 0.0
    %7050 = vmatpush1.msra.mxu0 0.0
    %7051 = vmatprep.subr.mxu0 0.0
    %7052 = vmatpush1.msra.mxu0 0.0
    %7053 = vmatprep.subr.mxu0 0.0
    %7054 = vmatpush1.msra.mxu0 0.0
    %7055 = vmatprep.subr.mxu0 0.0
    %7056 = vmatpush1.msra.mxu0 0.0
    %7057 = vmatprep.subr.mxu0 0.0
    %7058 = vmatpush1.msra.mxu0 0.0
    %7059 = vmatprep.subr.mxu0 0.0
    %7060 = vmatpush1.msra.mxu0 0.0
    %7061 = vmatprep.subr.mxu0 0.0
    %7062 = vmatpush1.msra.mxu0 0.0
    %7063 = vmatprep.subr.mxu0 0.0
    %7064 = vmatpush1.msra.mxu0 0.0
    %7065 = vmatprep.subr.mxu0 0.0
    %7066 = vmatpush1.msra.mxu0 0.0
    %7067 = vmatprep.subr.mxu0 0.0
    %7068 = vmatpush1.msra.mxu0 0.0
    %7069 = vmatprep.subr.mxu0 0.0
    %7070 = vmatpush1.msra.mxu0 0.0
    %7071 = vmatprep.subr.mxu0 0.0
    %7072 = vmatpush1.msra.mxu0 0.0
    %7073 = vmatprep.subr.mxu0 0.0
    %7074 = vmatpush1.msra.mxu0 0.0
    %7075 = vmatprep.subr.mxu0 0.0
    %7076 = vmatpush1.msra.mxu0 0.0
    %7077 = vmatprep.subr.mxu0 0.0
    %7078 = vmatpush1.msra.mxu0 0.0
    %7079 = vmatprep.subr.mxu0 0.0
    %7080 = vmatpush1.msra.mxu0 0.0
    %7081 = vmatprep.subr.mxu0 0.0
    %7082 = vmatpush1.msra.mxu0 0.0
    %7083 = vmatprep.subr.mxu0 0.0
    %7084 = vmatpush1.msra.mxu0 0.0
    %7085 = vmatprep.subr.mxu0 0.0
    %7086 = vmatpush1.msra.mxu0 0.0
    %7087 = vmatprep.subr.mxu0 0.0
    %7088 = vmatpush1.msra.mxu0 0.0
    %7089 = vmatprep.subr.mxu0 0.0
    %7090 = vmatpush1.msra.mxu0 0.0
    %7091 = vmatprep.subr.mxu0 0.0
    %7092 = vmatpush1.msra.mxu0 0.0
    %7093 = vmatprep.subr.mxu0 0.0
    %7094 = vmatpush1.msra.mxu0 0.0
    %7095 = vmatprep.subr.mxu0 0.0
    %7096 = vmatpush1.msra.mxu0 0.0
    %7097 = vmatprep.subr.mxu0 0.0
    %7098 = vmatpush1.msra.mxu0 0.0
    %7099 = vmatprep.subr.mxu0 0.0
    %7100 = vmatpush1.msra.mxu0 0.0
    %7101 = vmatprep.subr.mxu0 0.0
    %7102 = vmatpush1.msra.mxu0 0.0
    %7103 = vmatprep.mubr.f32.mxu0 0.0
    %7104 = vmatmul.mubr.f32.gmra.mrb[0].mxu0 %v6967
    %v7105 = vpop.f32.mrb[0].mxu0
    %v7106 = vadd.f32 0.0, %v7105
    %v7107 = vpop.f32.mrb[0].mxu0
    %7108 = vdwg.mxu0
    %v7109 = vsel %vm441, %v7036, %v7106
    %v7110 = vadd.f32 %v6966, %v7109
    %v7111 = vxor.u32 %v7110, 2147483648
    %v7112 = vmul.f32 %v7111, 1.442695
    %v7113 = vpow.pop %v7112
    %v7114 = vadd.f32 %v7113, 1.0
    %v7115 = vrcp.pop %v7114
    %v7116 = vmul.f32 1.0, %v7115
    %v7117 = vtanh.pop %v7110
    %v7118 = vmul.f32 %v7116, %v6948
    %7120 = vrot.lane.b32.xlu0 %v7117, 64
    %v7121 = vpop.permute.xlu0 %7120
    %v7123 = vmul.f32 %v7116, %v7121
    %7125 = vrot.lane.b32.xlu0 %v7123, 32
    %v7126 = vpop.permute.xlu0 %7125
    %v7128 = vadd.f32 %v7118, %v7126
    %v7129 = vtanh.pop %v7128
    %7131 = vrot.lane.b32.xlu0 %v7129, 64
    %v7132 = vpop.permute.xlu0 %7131
    %v7134 = vmul.f32 %v7116, %v7132
    %7136 = vrot.lane.b32.xlu0 %v7134, 32
    %v7137 = vpop.permute.xlu0 %7136
    %s7139 = scalar_lea.vmem [#allocation3], 8
    %7140 = vst.msk [vmem:[%s7139] sm:$0xf] %vm2093, %v7137
    %7141 = vrot.lane.b32.xlu0 %v7134, 64
    %v7142 = vpop.permute.xlu0 %7141
    %s7144 = scalar_lea.vmem [#allocation3], 20
    %7145 = vst.msk [vmem:[%s7144 - $0x4] sm:$0xf0] %vm2099, %v7142
    %v7147 = vrot.slane %v6478, 4
    %v7150 = vrot.slane %v6581, 4
    %v7152 = vsel %vm295, %v7147, %v7150
    %v7153 = vsel %vm90, %v7137, 0
    %7155 = vmatprep.subr.mxu0 0.0
    %7156 = vmatpush1.msra.mxu0 %v6589
    %7157 = vmatprep.subr.mxu0 0.0
    %7158 = vmatpush1.msra.mxu0 %v6590
    %7159 = vmatprep.subr.mxu0 0.0
    %7160 = vmatpush1.msra.mxu0 %v6591
    %7161 = vmatprep.subr.mxu0 0.0
    %7162 = vmatpush1.msra.mxu0 %v6592
    %7163 = vmatprep.subr.mxu0 0.0
    %7164 = vmatpush1.msra.mxu0 0.0
    %7165 = vmatprep.subr.mxu0 0.0
    %7166 = vmatpush1.msra.mxu0 0.0
    %7167 = vmatprep.subr.mxu0 0.0
    %7168 = vmatpush1.msra.mxu0 0.0
    %7169 = vmatprep.subr.mxu0 0.0
    %7170 = vmatpush1.msra.mxu0 0.0
    %7171 = vmatprep.subr.mxu0 0.0
    %7172 = vmatpush1.msra.mxu0 0.0
    %7173 = vmatprep.subr.mxu0 0.0
    %7174 = vmatpush1.msra.mxu0 0.0
    %7175 = vmatprep.subr.mxu0 0.0
    %7176 = vmatpush1.msra.mxu0 0.0
    %7177 = vmatprep.subr.mxu0 0.0
    %7178 = vmatpush1.msra.mxu0 0.0
    %7179 = vmatprep.subr.mxu0 0.0
    %7180 = vmatpush1.msra.mxu0 0.0
    %7181 = vmatprep.subr.mxu0 0.0
    %7182 = vmatpush1.msra.mxu0 0.0
    %7183 = vmatprep.subr.mxu0 0.0
    %7184 = vmatpush1.msra.mxu0 0.0
    %7185 = vmatprep.subr.mxu0 0.0
    %7186 = vmatpush1.msra.mxu0 0.0
    %7187 = vmatprep.subr.mxu0 0.0
    %7188 = vmatpush1.msra.mxu0 0.0
    %7189 = vmatprep.subr.mxu0 0.0
    %7190 = vmatpush1.msra.mxu0 0.0
    %7191 = vmatprep.subr.mxu0 0.0
    %7192 = vmatpush1.msra.mxu0 0.0
    %7193 = vmatprep.subr.mxu0 0.0
    %7194 = vmatpush1.msra.mxu0 0.0
    %7195 = vmatprep.subr.mxu0 0.0
    %7196 = vmatpush1.msra.mxu0 0.0
    %7197 = vmatprep.subr.mxu0 0.0
    %7198 = vmatpush1.msra.mxu0 0.0
    %7199 = vmatprep.subr.mxu0 0.0
    %7200 = vmatpush1.msra.mxu0 0.0
    %7201 = vmatprep.subr.mxu0 0.0
    %7202 = vmatpush1.msra.mxu0 0.0
    %7203 = vmatprep.subr.mxu0 0.0
    %7204 = vmatpush1.msra.mxu0 0.0
    %7205 = vmatprep.subr.mxu0 0.0
    %7206 = vmatpush1.msra.mxu0 0.0
    %7207 = vmatprep.subr.mxu0 0.0
    %7208 = vmatpush1.msra.mxu0 0.0
    %7209 = vmatprep.subr.mxu0 0.0
    %7210 = vmatpush1.msra.mxu0 0.0
    %7211 = vmatprep.subr.mxu0 0.0
    %7212 = vmatpush1.msra.mxu0 0.0
    %7213 = vmatprep.subr.mxu0 0.0
    %7214 = vmatpush1.msra.mxu0 0.0
    %7215 = vmatprep.subr.mxu0 0.0
    %7216 = vmatpush1.msra.mxu0 0.0
    %7217 = vmatprep.subr.mxu0 0.0
    %7218 = vmatpush1.msra.mxu0 0.0
    %7219 = vmatprep.mubr.f32.mxu0 0.0
    %7220 = vmatmul.mubr.f32.gmra.mrb[0].mxu0 %v7153
    %v7221 = vpop.f32.mrb[0].mxu0
    %v7222 = vadd.f32 0.0, %v7221
    %v7223 = vpop.f32.mrb[0].mxu0
    %7224 = vdwg.mxu0
    %7225 = vmatprep.subr.mxu0 0.0
    %7226 = vmatpush1.msra.mxu0 %v6594
    %7227 = vmatprep.subr.mxu0 0.0
    %7228 = vmatpush1.msra.mxu0 %v6595
    %7229 = vmatprep.subr.mxu0 0.0
    %7230 = vmatpush1.msra.mxu0 %v6596
    %7231 = vmatprep.subr.mxu0 0.0
    %7232 = vmatpush1.msra.mxu0 %v6597
    %7233 = vmatprep.subr.mxu0 0.0
    %7234 = vmatpush1.msra.mxu0 0.0
    %7235 = vmatprep.subr.mxu0 0.0
    %7236 = vmatpush1.msra.mxu0 0.0
    %7237 = vmatprep.subr.mxu0 0.0
    %7238 = vmatpush1.msra.mxu0 0.0
    %7239 = vmatprep.subr.mxu0 0.0
    %7240 = vmatpush1.msra.mxu0 0.0
    %7241 = vmatprep.subr.mxu0 0.0
    %7242 = vmatpush1.msra.mxu0 0.0
    %7243 = vmatprep.subr.mxu0 0.0
    %7244 = vmatpush1.msra.mxu0 0.0
    %7245 = vmatprep.subr.mxu0 0.0
    %7246 = vmatpush1.msra.mxu0 0.0
    %7247 = vmatprep.subr.mxu0 0.0
    %7248 = vmatpush1.msra.mxu0 0.0
    %7249 = vmatprep.subr.mxu0 0.0
    %7250 = vmatpush1.msra.mxu0 0.0
    %7251 = vmatprep.subr.mxu0 0.0
    %7252 = vmatpush1.msra.mxu0 0.0
    %7253 = vmatprep.subr.mxu0 0.0
    %7254 = vmatpush1.msra.mxu0 0.0
    %7255 = vmatprep.subr.mxu0 0.0
    %7256 = vmatpush1.msra.mxu0 0.0
    %7257 = vmatprep.subr.mxu0 0.0
    %7258 = vmatpush1.msra.mxu0 0.0
    %7259 = vmatprep.subr.mxu0 0.0
    %7260 = vmatpush1.msra.mxu0 0.0
    %7261 = vmatprep.subr.mxu0 0.0
    %7262 = vmatpush1.msra.mxu0 0.0
    %7263 = vmatprep.subr.mxu0 0.0
    %7264 = vmatpush1.msra.mxu0 0.0
    %7265 = vmatprep.subr.mxu0 0.0
    %7266 = vmatpush1.msra.mxu0 0.0
    %7267 = vmatprep.subr.mxu0 0.0
    %7268 = vmatpush1.msra.mxu0 0.0
    %7269 = vmatprep.subr.mxu0 0.0
    %7270 = vmatpush1.msra.mxu0 0.0
    %7271 = vmatprep.subr.mxu0 0.0
    %7272 = vmatpush1.msra.mxu0 0.0
    %7273 = vmatprep.subr.mxu0 0.0
    %7274 = vmatpush1.msra.mxu0 0.0
    %7275 = vmatprep.subr.mxu0 0.0
    %7276 = vmatpush1.msra.mxu0 0.0
    %7277 = vmatprep.subr.mxu0 0.0
    %7278 = vmatpush1.msra.mxu0 0.0
    %7279 = vmatprep.subr.mxu0 0.0
    %7280 = vmatpush1.msra.mxu0 0.0
    %7281 = vmatprep.subr.mxu0 0.0
    %7282 = vmatpush1.msra.mxu0 0.0
    %7283 = vmatprep.subr.mxu0 0.0
    %7284 = vmatpush1.msra.mxu0 0.0
    %7285 = vmatprep.subr.mxu0 0.0
    %7286 = vmatpush1.msra.mxu0 0.0
    %7287 = vmatprep.subr.mxu0 0.0
    %7288 = vmatpush1.msra.mxu0 0.0
    %7289 = vmatprep.mubr.f32.mxu0 0.0
    %7290 = vmatmul.mubr.f32.gmra.mrb[0].mxu0 %v7153
    %v7291 = vpop.f32.mrb[0].mxu0
    %v7292 = vadd.f32 0.0, %v7291
    %v7293 = vpop.f32.mrb[0].mxu0
    %7294 = vdwg.mxu0
    %v7295 = vsel %vm441, %v7222, %v7292
    %v7296 = vadd.f32 %v7152, %v7295
    %v7297 = vxor.u32 %v7296, 2147483648
    %v7298 = vmul.f32 %v7297, 1.442695
    %v7299 = vpow.pop %v7298
    %v7300 = vadd.f32 %v7299, 1.0
    %v7301 = vrcp.pop %v7300
    %v7302 = vmul.f32 1.0, %v7301
    %v7303 = vtanh.pop %v7296
    %v7304 = vmul.f32 %v7302, %v7128
    %7306 = vrot.lane.b32.xlu0 %v7303, 64
    %v7307 = vpop.permute.xlu0 %7306
    %v7309 = vmul.f32 %v7302, %v7307
    %7311 = vrot.lane.b32.xlu0 %v7309, 32
    %v7312 = vpop.permute.xlu0 %7311
    %v7314 = vadd.f32 %v7304, %v7312
    %v7315 = vtanh.pop %v7314
    %7317 = vrot.lane.b32.xlu0 %v7315, 64
    %v7318 = vpop.permute.xlu0 %7317
    %v7320 = vmul.f32 %v7302, %v7318
    %7322 = vrot.lane.b32.xlu0 %v7320, 32
    %v7323 = vpop.permute.xlu0 %7322
    %s7325 = scalar_lea.vmem [#allocation3], 12
    %7326 = vst.msk [vmem:[%s7325] sm:$0xf] %vm2093, %v7323
    %7327 = vrot.lane.b32.xlu0 %v7320, 64
    %v7328 = vpop.permute.xlu0 %7327
    %s7330 = scalar_lea.vmem [#allocation3], 16
    %7331 = vst.msk [vmem:[%s7330 - $0x4] sm:$0xf0] %vm2099, %v7328
    %v7332 = vsel %vm295, %v6483, %v6576
    %v7333 = vsel %vm90, %v7323, 0
    %7335 = vmatprep.subr.mxu0 0.0
    %7336 = vmatpush1.msra.mxu0 %v6589
    %7337 = vmatprep.subr.mxu0 0.0
    %7338 = vmatpush1.msra.mxu0 %v6590
    %7339 = vmatprep.subr.mxu0 0.0
    %7340 = vmatpush1.msra.mxu0 %v6591
    %7341 = vmatprep.subr.mxu0 0.0
    %7342 = vmatpush1.msra.mxu0 %v6592
    %7343 = vmatprep.subr.mxu0 0.0
    %7344 = vmatpush1.msra.mxu0 0.0
    %7345 = vmatprep.subr.mxu0 0.0
    %7346 = vmatpush1.msra.mxu0 0.0
    %7347 = vmatprep.subr.mxu0 0.0
    %7348 = vmatpush1.msra.mxu0 0.0
    %7349 = vmatprep.subr.mxu0 0.0
    %7350 = vmatpush1.msra.mxu0 0.0
    %7351 = vmatprep.subr.mxu0 0.0
    %7352 = vmatpush1.msra.mxu0 0.0
    %7353 = vmatprep.subr.mxu0 0.0
    %7354 = vmatpush1.msra.mxu0 0.0
    %7355 = vmatprep.subr.mxu0 0.0
    %7356 = vmatpush1.msra.mxu0 0.0
    %7357 = vmatprep.subr.mxu0 0.0
    %7358 = vmatpush1.msra.mxu0 0.0
    %7359 = vmatprep.subr.mxu0 0.0
    %7360 = vmatpush1.msra.mxu0 0.0
    %7361 = vmatprep.subr.mxu0 0.0
    %7362 = vmatpush1.msra.mxu0 0.0
    %7363 = vmatprep.subr.mxu0 0.0
    %7364 = vmatpush1.msra.mxu0 0.0
    %7365 = vmatprep.subr.mxu0 0.0
    %7366 = vmatpush1.msra.mxu0 0.0
    %7367 = vmatprep.subr.mxu0 0.0
    %7368 = vmatpush1.msra.mxu0 0.0
    %7369 = vmatprep.subr.mxu0 0.0
    %7370 = vmatpush1.msra.mxu0 0.0
    %7371 = vmatprep.subr.mxu0 0.0
    %7372 = vmatpush1.msra.mxu0 0.0
    %7373 = vmatprep.subr.mxu0 0.0
    %7374 = vmatpush1.msra.mxu0 0.0
    %7375 = vmatprep.subr.mxu0 0.0
    %7376 = vmatpush1.msra.mxu0 0.0
    %7377 = vmatprep.subr.mxu0 0.0
    %7378 = vmatpush1.msra.mxu0 0.0
    %7379 = vmatprep.subr.mxu0 0.0
    %7380 = vmatpush1.msra.mxu0 0.0
    %7381 = vmatprep.subr.mxu0 0.0
    %7382 = vmatpush1.msra.mxu0 0.0
    %7383 = vmatprep.subr.mxu0 0.0
    %7384 = vmatpush1.msra.mxu0 0.0
    %7385 = vmatprep.subr.mxu0 0.0
    %7386 = vmatpush1.msra.mxu0 0.0
    %7387 = vmatprep.subr.mxu0 0.0
    %7388 = vmatpush1.msra.mxu0 0.0
    %7389 = vmatprep.subr.mxu0 0.0
    %7390 = vmatpush1.msra.mxu0 0.0
    %7391 = vmatprep.subr.mxu0 0.0
    %7392 = vmatpush1.msra.mxu0 0.0
    %7393 = vmatprep.subr.mxu0 0.0
    %7394 = vmatpush1.msra.mxu0 0.0
    %7395 = vmatprep.subr.mxu0 0.0
    %7396 = vmatpush1.msra.mxu0 0.0
    %7397 = vmatprep.subr.mxu0 0.0
    %7398 = vmatpush1.msra.mxu0 0.0
    %7399 = vmatprep.mubr.f32.mxu0 0.0
    %7400 = vmatmul.mubr.f32.gmra.mrb[0].mxu0 %v7333
    %v7401 = vpop.f32.mrb[0].mxu0
    %v7402 = vadd.f32 0.0, %v7401
    %v7403 = vpop.f32.mrb[0].mxu0
    %7404 = vdwg.mxu0
    %7405 = vmatprep.subr.mxu0 0.0
    %7406 = vmatpush1.msra.mxu0 %v6594
    %7407 = vmatprep.subr.mxu0 0.0
    %7408 = vmatpush1.msra.mxu0 %v6595
    %7409 = vmatprep.subr.mxu0 0.0
    %7410 = vmatpush1.msra.mxu0 %v6596
    %7411 = vmatprep.subr.mxu0 0.0
    %7412 = vmatpush1.msra.mxu0 %v6597
    %7413 = vmatprep.subr.mxu0 0.0
    %7414 = vmatpush1.msra.mxu0 0.0
    %7415 = vmatprep.subr.mxu0 0.0
    %7416 = vmatpush1.msra.mxu0 0.0
    %7417 = vmatprep.subr.mxu0 0.0
    %7418 = vmatpush1.msra.mxu0 0.0
    %7419 = vmatprep.subr.mxu0 0.0
    %7420 = vmatpush1.msra.mxu0 0.0
    %7421 = vmatprep.subr.mxu0 0.0
    %7422 = vmatpush1.msra.mxu0 0.0
    %7423 = vmatprep.subr.mxu0 0.0
    %7424 = vmatpush1.msra.mxu0 0.0
    %7425 = vmatprep.subr.mxu0 0.0
    %7426 = vmatpush1.msra.mxu0 0.0
    %7427 = vmatprep.subr.mxu0 0.0
    %7428 = vmatpush1.msra.mxu0 0.0
    %7429 = vmatprep.subr.mxu0 0.0
    %7430 = vmatpush1.msra.mxu0 0.0
    %7431 = vmatprep.subr.mxu0 0.0
    %7432 = vmatpush1.msra.mxu0 0.0
    %7433 = vmatprep.subr.mxu0 0.0
    %7434 = vmatpush1.msra.mxu0 0.0
    %7435 = vmatprep.subr.mxu0 0.0
    %7436 = vmatpush1.msra.mxu0 0.0
    %7437 = vmatprep.subr.mxu0 0.0
    %7438 = vmatpush1.msra.mxu0 0.0
    %7439 = vmatprep.subr.mxu0 0.0
    %7440 = vmatpush1.msra.mxu0 0.0
    %7441 = vmatprep.subr.mxu0 0.0
    %7442 = vmatpush1.msra.mxu0 0.0
    %7443 = vmatprep.subr.mxu0 0.0
    %7444 = vmatpush1.msra.mxu0 0.0
    %7445 = vmatprep.subr.mxu0 0.0
    %7446 = vmatpush1.msra.mxu0 0.0
    %7447 = vmatprep.subr.mxu0 0.0
    %7448 = vmatpush1.msra.mxu0 0.0
    %7449 = vmatprep.subr.mxu0 0.0
    %7450 = vmatpush1.msra.mxu0 0.0
    %7451 = vmatprep.subr.mxu0 0.0
    %7452 = vmatpush1.msra.mxu0 0.0
    %7453 = vmatprep.subr.mxu0 0.0
    %7454 = vmatpush1.msra.mxu0 0.0
    %7455 = vmatprep.subr.mxu0 0.0
    %7456 = vmatpush1.msra.mxu0 0.0
    %7457 = vmatprep.subr.mxu0 0.0
    %7458 = vmatpush1.msra.mxu0 0.0
    %7459 = vmatprep.subr.mxu0 0.0
    %7460 = vmatpush1.msra.mxu0 0.0
    %7461 = vmatprep.subr.mxu0 0.0
    %7462 = vmatpush1.msra.mxu0 0.0
    %7463 = vmatprep.subr.mxu0 0.0
    %7464 = vmatpush1.msra.mxu0 0.0
    %7465 = vmatprep.subr.mxu0 0.0
    %7466 = vmatpush1.msra.mxu0 0.0
    %7467 = vmatprep.subr.mxu0 0.0
    %7468 = vmatpush1.msra.mxu0 0.0
    %7469 = vmatprep.mubr.f32.mxu0 0.0
    %7470 = vmatmul.mubr.f32.gmra.mrb[0].mxu0 %v7333
    %v7471 = vpop.f32.mrb[0].mxu0
    %v7472 = vadd.f32 0.0, %v7471
    %v7473 = vpop.f32.mrb[0].mxu0
    %7474 = vdwg.mxu0
    %v7475 = vsel %vm441, %v7402, %v7472
    %v7476 = vadd.f32 %v7332, %v7475
    %v7477 = vxor.u32 %v7476, 2147483648
    %v7478 = vmul.f32 %v7477, 1.442695
    %v7479 = vpow.pop %v7478
    %v7480 = vadd.f32 %v7479, 1.0
    %v7481 = vrcp.pop %v7480
    %v7482 = vmul.f32 1.0, %v7481
    %v7483 = vtanh.pop %v7476
    %v7484 = vmul.f32 %v7482, %v7314
    %7486 = vrot.lane.b32.xlu0 %v7483, 64
    %v7487 = vpop.permute.xlu0 %7486
    %v7489 = vmul.f32 %v7482, %v7487
    %7491 = vrot.lane.b32.xlu0 %v7489, 32
    %v7492 = vpop.permute.xlu0 %7491
    %v7494 = vadd.f32 %v7484, %v7492
    %v7495 = vtanh.pop %v7494
    %7497 = vrot.lane.b32.xlu0 %v7495, 64
    %v7498 = vpop.permute.xlu0 %7497
    %v7500 = vmul.f32 %v7482, %v7498
    %7502 = vrot.lane.b32.xlu0 %v7500, 32
    %v7503 = vpop.permute.xlu0 %7502
    %7505 = vst.msk [vmem:[%s7330] sm:$0xf] %vm2093, %v7503
    %7506 = vrot.lane.b32.xlu0 %v7500, 64
    %v7507 = vpop.permute.xlu0 %7506
    %7509 = vst.msk [vmem:[%s7325 - $0x4] sm:$0xf0] %vm2099, %v7507
    %v7511 = vrot.slane %v6483, 4
    %v7514 = vrot.slane %v6576, 4
    %v7516 = vsel %vm295, %v7511, %v7514
    %v7517 = vsel %vm90, %v7503, 0
    %7519 = vmatprep.subr.mxu0 0.0
    %7520 = vmatpush1.msra.mxu0 %v6589
    %7521 = vmatprep.subr.mxu0 0.0
    %7522 = vmatpush1.msra.mxu0 %v6590
    %7523 = vmatprep.subr.mxu0 0.0
    %7524 = vmatpush1.msra.mxu0 %v6591
    %7525 = vmatprep.subr.mxu0 0.0
    %7526 = vmatpush1.msra.mxu0 %v6592
    %7527 = vmatprep.subr.mxu0 0.0
    %7528 = vmatpush1.msra.mxu0 0.0
    %7529 = vmatprep.subr.mxu0 0.0
    %7530 = vmatpush1.msra.mxu0 0.0
    %7531 = vmatprep.subr.mxu0 0.0
    %7532 = vmatpush1.msra.mxu0 0.0
    %7533 = vmatprep.subr.mxu0 0.0
    %7534 = vmatpush1.msra.mxu0 0.0
    %7535 = vmatprep.subr.mxu0 0.0
    %7536 = vmatpush1.msra.mxu0 0.0
    %7537 = vmatprep.subr.mxu0 0.0
    %7538 = vmatpush1.msra.mxu0 0.0
    %7539 = vmatprep.subr.mxu0 0.0
    %7540 = vmatpush1.msra.mxu0 0.0
    %7541 = vmatprep.subr.mxu0 0.0
    %7542 = vmatpush1.msra.mxu0 0.0
    %7543 = vmatprep.subr.mxu0 0.0
    %7544 = vmatpush1.msra.mxu0 0.0
    %7545 = vmatprep.subr.mxu0 0.0
    %7546 = vmatpush1.msra.mxu0 0.0
    %7547 = vmatprep.subr.mxu0 0.0
    %7548 = vmatpush1.msra.mxu0 0.0
    %7549 = vmatprep.subr.mxu0 0.0
    %7550 = vmatpush1.msra.mxu0 0.0
    %7551 = vmatprep.subr.mxu0 0.0
    %7552 = vmatpush1.msra.mxu0 0.0
    %7553 = vmatprep.subr.mxu0 0.0
    %7554 = vmatpush1.msra.mxu0 0.0
    %7555 = vmatprep.subr.mxu0 0.0
    %7556 = vmatpush1.msra.mxu0 0.0
    %7557 = vmatprep.subr.mxu0 0.0
    %7558 = vmatpush1.msra.mxu0 0.0
    %7559 = vmatprep.subr.mxu0 0.0
    %7560 = vmatpush1.msra.mxu0 0.0
    %7561 = vmatprep.subr.mxu0 0.0
    %7562 = vmatpush1.msra.mxu0 0.0
    %7563 = vmatprep.subr.mxu0 0.0
    %7564 = vmatpush1.msra.mxu0 0.0
    %7565 = vmatprep.subr.mxu0 0.0
    %7566 = vmatpush1.msra.mxu0 0.0
    %7567 = vmatprep.subr.mxu0 0.0
    %7568 = vmatpush1.msra.mxu0 0.0
    %7569 = vmatprep.subr.mxu0 0.0
    %7570 = vmatpush1.msra.mxu0 0.0
    %7571 = vmatprep.subr.mxu0 0.0
    %7572 = vmatpush1.msra.mxu0 0.0
    %7573 = vmatprep.subr.mxu0 0.0
    %7574 = vmatpush1.msra.mxu0 0.0
    %7575 = vmatprep.subr.mxu0 0.0
    %7576 = vmatpush1.msra.mxu0 0.0
    %7577 = vmatprep.subr.mxu0 0.0
    %7578 = vmatpush1.msra.mxu0 0.0
    %7579 = vmatprep.subr.mxu0 0.0
    %7580 = vmatpush1.msra.mxu0 0.0
    %7581 = vmatprep.subr.mxu0 0.0
    %7582 = vmatpush1.msra.mxu0 0.0
    %7583 = vmatprep.mubr.f32.mxu0 0.0
    %7584 = vmatmul.mubr.f32.gmra.mrb[0].mxu0 %v7517
    %v7585 = vpop.f32.mrb[0].mxu0
    %v7586 = vadd.f32 0.0, %v7585
    %v7587 = vpop.f32.mrb[0].mxu0
    %7588 = vdwg.mxu0
    %7589 = vmatprep.subr.mxu0 0.0
    %7590 = vmatpush1.msra.mxu0 %v6594
    %7591 = vmatprep.subr.mxu0 0.0
    %7592 = vmatpush1.msra.mxu0 %v6595
    %7593 = vmatprep.subr.mxu0 0.0
    %7594 = vmatpush1.msra.mxu0 %v6596
    %7595 = vmatprep.subr.mxu0 0.0
    %7596 = vmatpush1.msra.mxu0 %v6597
    %7597 = vmatprep.subr.mxu0 0.0
    %7598 = vmatpush1.msra.mxu0 0.0
    %7599 = vmatprep.subr.mxu0 0.0
    %7600 = vmatpush1.msra.mxu0 0.0
    %7601 = vmatprep.subr.mxu0 0.0
    %7602 = vmatpush1.msra.mxu0 0.0
    %7603 = vmatprep.subr.mxu0 0.0
    %7604 = vmatpush1.msra.mxu0 0.0
    %7605 = vmatprep.subr.mxu0 0.0
    %7606 = vmatpush1.msra.mxu0 0.0
    %7607 = vmatprep.subr.mxu0 0.0
    %7608 = vmatpush1.msra.mxu0 0.0
    %7609 = vmatprep.subr.mxu0 0.0
    %7610 = vmatpush1.msra.mxu0 0.0
    %7611 = vmatprep.subr.mxu0 0.0
    %7612 = vmatpush1.msra.mxu0 0.0
    %7613 = vmatprep.subr.mxu0 0.0
    %7614 = vmatpush1.msra.mxu0 0.0
    %7615 = vmatprep.subr.mxu0 0.0
    %7616 = vmatpush1.msra.mxu0 0.0
    %7617 = vmatprep.subr.mxu0 0.0
    %7618 = vmatpush1.msra.mxu0 0.0
    %7619 = vmatprep.subr.mxu0 0.0
    %7620 = vmatpush1.msra.mxu0 0.0
    %7621 = vmatprep.subr.mxu0 0.0
    %7622 = vmatpush1.msra.mxu0 0.0
    %7623 = vmatprep.subr.mxu0 0.0
    %7624 = vmatpush1.msra.mxu0 0.0
    %7625 = vmatprep.subr.mxu0 0.0
    %7626 = vmatpush1.msra.mxu0 0.0
    %7627 = vmatprep.subr.mxu0 0.0
    %7628 = vmatpush1.msra.mxu0 0.0
    %7629 = vmatprep.subr.mxu0 0.0
    %7630 = vmatpush1.msra.mxu0 0.0
    %7631 = vmatprep.subr.mxu0 0.0
    %7632 = vmatpush1.msra.mxu0 0.0
    %7633 = vmatprep.subr.mxu0 0.0
    %7634 = vmatpush1.msra.mxu0 0.0
    %7635 = vmatprep.subr.mxu0 0.0
    %7636 = vmatpush1.msra.mxu0 0.0
    %7637 = vmatprep.subr.mxu0 0.0
    %7638 = vmatpush1.msra.mxu0 0.0
    %7639 = vmatprep.subr.mxu0 0.0
    %7640 = vmatpush1.msra.mxu0 0.0
    %7641 = vmatprep.subr.mxu0 0.0
    %7642 = vmatpush1.msra.mxu0 0.0
    %7643 = vmatprep.subr.mxu0 0.0
    %7644 = vmatpush1.msra.mxu0 0.0
    %7645 = vmatprep.subr.mxu0 0.0
    %7646 = vmatpush1.msra.mxu0 0.0
    %7647 = vmatprep.subr.mxu0 0.0
    %7648 = vmatpush1.msra.mxu0 0.0
    %7649 = vmatprep.subr.mxu0 0.0
    %7650 = vmatpush1.msra.mxu0 0.0
    %7651 = vmatprep.subr.mxu0 0.0
    %7652 = vmatpush1.msra.mxu0 0.0
    %7653 = vmatprep.mubr.f32.mxu0 0.0
    %7654 = vmatmul.mubr.f32.gmra.mrb[0].mxu0 %v7517
    %v7655 = vpop.f32.mrb[0].mxu0
    %v7656 = vadd.f32 0.0, %v7655
    %v7657 = vpop.f32.mrb[0].mxu0
    %7658 = vdwg.mxu0
    %v7659 = vsel %vm441, %v7586, %v7656
    %v7660 = vadd.f32 %v7516, %v7659
    %v7661 = vxor.u32 %v7660, 2147483648
    %v7662 = vmul.f32 %v7661, 1.442695
    %v7663 = vpow.pop %v7662
    %v7664 = vadd.f32 %v7663, 1.0
    %v7665 = vrcp.pop %v7664
    %v7666 = vmul.f32 1.0, %v7665
    %v7667 = vtanh.pop %v7660
    %v7668 = vmul.f32 %v7666, %v7494
    %7670 = vrot.lane.b32.xlu0 %v7667, 64
    %v7671 = vpop.permute.xlu0 %7670
    %v7673 = vmul.f32 %v7666, %v7671
    %7675 = vrot.lane.b32.xlu0 %v7673, 32
    %v7676 = vpop.permute.xlu0 %7675
    %v7678 = vadd.f32 %v7668, %v7676
    %v7679 = vtanh.pop %v7678
    %7681 = vrot.lane.b32.xlu0 %v7679, 64
    %v7682 = vpop.permute.xlu0 %7681
    %v7684 = vmul.f32 %v7666, %v7682
    %7686 = vrot.lane.b32.xlu0 %v7684, 32
    %v7687 = vpop.permute.xlu0 %7686
    %7689 = vst.msk [vmem:[%s7144] sm:$0xf] %vm2093, %v7687
    %7690 = vrot.lane.b32.xlu0 %v7684, 64
    %v7691 = vpop.permute.xlu0 %7690
    %7693 = vst.msk [vmem:[%s7139 - $0x4] sm:$0xf0] %vm2099, %v7691
    %v7694 = vsel %vm295, %v6488, %v6571
    %v7695 = vsel %vm90, %v7687, 0
    %7697 = vmatprep.subr.mxu0 0.0
    %7698 = vmatpush1.msra.mxu0 %v6589
    %7699 = vmatprep.subr.mxu0 0.0
    %7700 = vmatpush1.msra.mxu0 %v6590
    %7701 = vmatprep.subr.mxu0 0.0
    %7702 = vmatpush1.msra.mxu0 %v6591
    %7703 = vmatprep.subr.mxu0 0.0
    %7704 = vmatpush1.msra.mxu0 %v6592
    %7705 = vmatprep.subr.mxu0 0.0
    %7706 = vmatpush1.msra.mxu0 0.0
    %7707 = vmatprep.subr.mxu0 0.0
    %7708 = vmatpush1.msra.mxu0 0.0
    %7709 = vmatprep.subr.mxu0 0.0
    %7710 = vmatpush1.msra.mxu0 0.0
    %7711 = vmatprep.subr.mxu0 0.0
    %7712 = vmatpush1.msra.mxu0 0.0
    %7713 = vmatprep.subr.mxu0 0.0
    %7714 = vmatpush1.msra.mxu0 0.0
    %7715 = vmatprep.subr.mxu0 0.0
    %7716 = vmatpush1.msra.mxu0 0.0
    %7717 = vmatprep.subr.mxu0 0.0
    %7718 = vmatpush1.msra.mxu0 0.0
    %7719 = vmatprep.subr.mxu0 0.0
    %7720 = vmatpush1.msra.mxu0 0.0
    %7721 = vmatprep.subr.mxu0 0.0
    %7722 = vmatpush1.msra.mxu0 0.0
    %7723 = vmatprep.subr.mxu0 0.0
    %7724 = vmatpush1.msra.mxu0 0.0
    %7725 = vmatprep.subr.mxu0 0.0
    %7726 = vmatpush1.msra.mxu0 0.0
    %7727 = vmatprep.subr.mxu0 0.0
    %7728 = vmatpush1.msra.mxu0 0.0
    %7729 = vmatprep.subr.mxu0 0.0
    %7730 = vmatpush1.msra.mxu0 0.0
    %7731 = vmatprep.subr.mxu0 0.0
    %7732 = vmatpush1.msra.mxu0 0.0
    %7733 = vmatprep.subr.mxu0 0.0
    %7734 = vmatpush1.msra.mxu0 0.0
    %7735 = vmatprep.subr.mxu0 0.0
    %7736 = vmatpush1.msra.mxu0 0.0
    %7737 = vmatprep.subr.mxu0 0.0
    %7738 = vmatpush1.msra.mxu0 0.0
    %7739 = vmatprep.subr.mxu0 0.0
    %7740 = vmatpush1.msra.mxu0 0.0
    %7741 = vmatprep.subr.mxu0 0.0
    %7742 = vmatpush1.msra.mxu0 0.0
    %7743 = vmatprep.subr.mxu0 0.0
    %7744 = vmatpush1.msra.mxu0 0.0
    %7745 = vmatprep.subr.mxu0 0.0
    %7746 = vmatpush1.msra.mxu0 0.0
    %7747 = vmatprep.subr.mxu0 0.0
    %7748 = vmatpush1.msra.mxu0 0.0
    %7749 = vmatprep.subr.mxu0 0.0
    %7750 = vmatpush1.msra.mxu0 0.0
    %7751 = vmatprep.subr.mxu0 0.0
    %7752 = vmatpush1.msra.mxu0 0.0
    %7753 = vmatprep.subr.mxu0 0.0
    %7754 = vmatpush1.msra.mxu0 0.0
    %7755 = vmatprep.subr.mxu0 0.0
    %7756 = vmatpush1.msra.mxu0 0.0
    %7757 = vmatprep.subr.mxu0 0.0
    %7758 = vmatpush1.msra.mxu0 0.0
    %7759 = vmatprep.subr.mxu0 0.0
    %7760 = vmatpush1.msra.mxu0 0.0
    %7761 = vmatprep.mubr.f32.mxu0 0.0
    %7762 = vmatmul.mubr.f32.gmra.mrb[0].mxu0 %v7695
    %v7763 = vpop.f32.mrb[0].mxu0
    %v7764 = vadd.f32 0.0, %v7763
    %v7765 = vpop.f32.mrb[0].mxu0
    %7766 = vdwg.mxu0
    %7767 = vmatprep.subr.mxu0 0.0
    %7768 = vmatpush1.msra.mxu0 %v6594
    %7769 = vmatprep.subr.mxu0 0.0
    %7770 = vmatpush1.msra.mxu0 %v6595
    %7771 = vmatprep.subr.mxu0 0.0
    %7772 = vmatpush1.msra.mxu0 %v6596
    %7773 = vmatprep.subr.mxu0 0.0
    %7774 = vmatpush1.msra.mxu0 %v6597
    %7775 = vmatprep.subr.mxu0 0.0
    %7776 = vmatpush1.msra.mxu0 0.0
    %7777 = vmatprep.subr.mxu0 0.0
    %7778 = vmatpush1.msra.mxu0 0.0
    %7779 = vmatprep.subr.mxu0 0.0
    %7780 = vmatpush1.msra.mxu0 0.0
    %7781 = vmatprep.subr.mxu0 0.0
    %7782 = vmatpush1.msra.mxu0 0.0
    %7783 = vmatprep.subr.mxu0 0.0
    %7784 = vmatpush1.msra.mxu0 0.0
    %7785 = vmatprep.subr.mxu0 0.0
    %7786 = vmatpush1.msra.mxu0 0.0
    %7787 = vmatprep.subr.mxu0 0.0
    %7788 = vmatpush1.msra.mxu0 0.0
    %7789 = vmatprep.subr.mxu0 0.0
    %7790 = vmatpush1.msra.mxu0 0.0
    %7791 = vmatprep.subr.mxu0 0.0
    %7792 = vmatpush1.msra.mxu0 0.0
    %7793 = vmatprep.subr.mxu0 0.0
    %7794 = vmatpush1.msra.mxu0 0.0
    %7795 = vmatprep.subr.mxu0 0.0
    %7796 = vmatpush1.msra.mxu0 0.0
    %7797 = vmatprep.subr.mxu0 0.0
    %7798 = vmatpush1.msra.mxu0 0.0
    %7799 = vmatprep.subr.mxu0 0.0
    %7800 = vmatpush1.msra.mxu0 0.0
    %7801 = vmatprep.subr.mxu0 0.0
    %7802 = vmatpush1.msra.mxu0 0.0
    %7803 = vmatprep.subr.mxu0 0.0
    %7804 = vmatpush1.msra.mxu0 0.0
    %7805 = vmatprep.subr.mxu0 0.0
    %7806 = vmatpush1.msra.mxu0 0.0
    %7807 = vmatprep.subr.mxu0 0.0
    %7808 = vmatpush1.msra.mxu0 0.0
    %7809 = vmatprep.subr.mxu0 0.0
    %7810 = vmatpush1.msra.mxu0 0.0
    %7811 = vmatprep.subr.mxu0 0.0
    %7812 = vmatpush1.msra.mxu0 0.0
    %7813 = vmatprep.subr.mxu0 0.0
    %7814 = vmatpush1.msra.mxu0 0.0
    %7815 = vmatprep.subr.mxu0 0.0
    %7816 = vmatpush1.msra.mxu0 0.0
    %7817 = vmatprep.subr.mxu0 0.0
    %7818 = vmatpush1.msra.mxu0 0.0
    %7819 = vmatprep.subr.mxu0 0.0
    %7820 = vmatpush1.msra.mxu0 0.0
    %7821 = vmatprep.subr.mxu0 0.0
    %7822 = vmatpush1.msra.mxu0 0.0
    %7823 = vmatprep.subr.mxu0 0.0
    %7824 = vmatpush1.msra.mxu0 0.0
    %7825 = vmatprep.subr.mxu0 0.0
    %7826 = vmatpush1.msra.mxu0 0.0
    %7827 = vmatprep.subr.mxu0 0.0
    %7828 = vmatpush1.msra.mxu0 0.0
    %7829 = vmatprep.subr.mxu0 0.0
    %7830 = vmatpush1.msra.mxu0 0.0
    %7831 = vmatprep.mubr.f32.mxu0 0.0
    %7832 = vmatmul.mubr.f32.gmra.mrb[0].mxu0 %v7695
    %v7833 = vpop.f32.mrb[0].mxu0
    %v7834 = vadd.f32 0.0, %v7833
    %v7835 = vpop.f32.mrb[0].mxu0
    %7836 = vdwg.mxu0
    %v7837 = vsel %vm441, %v7764, %v7834
    %v7838 = vadd.f32 %v7694, %v7837
    %v7839 = vxor.u32 %v7838, 2147483648
    %v7840 = vmul.f32 %v7839, 1.442695
    %v7841 = vpow.pop %v7840
    %v7842 = vadd.f32 %v7841, 1.0
    %v7843 = vrcp.pop %v7842
    %v7844 = vmul.f32 1.0, %v7843
    %v7845 = vtanh.pop %v7838
    %v7846 = vmul.f32 %v7844, %v7678
    %7848 = vrot.lane.b32.xlu0 %v7845, 64
    %v7849 = vpop.permute.xlu0 %7848
    %v7851 = vmul.f32 %v7844, %v7849
    %7853 = vrot.lane.b32.xlu0 %v7851, 32
    %v7854 = vpop.permute.xlu0 %7853
    %v7856 = vadd.f32 %v7846, %v7854
    %v7857 = vtanh.pop %v7856
    %7859 = vrot.lane.b32.xlu0 %v7857, 64
    %v7860 = vpop.permute.xlu0 %7859
    %v7862 = vmul.f32 %v7844, %v7860
    %7864 = vrot.lane.b32.xlu0 %v7862, 32
    %v7865 = vpop.permute.xlu0 %7864
    %7867 = vst.msk [vmem:[%s6964] sm:$0xf] %vm2093, %v7865
    %7868 = vrot.lane.b32.xlu0 %v7862, 64
    %v7869 = vpop.permute.xlu0 %7868
    %7871 = vst.msk [vmem:[%s6959 - $0x4] sm:$0xf0] %vm2099, %v7869
    %v7873 = vrot.slane %v6488, 4
    %v7876 = vrot.slane %v6571, 4
    %v7878 = vsel %vm295, %v7873, %v7876
    %v7879 = vsel %vm90, %v7865, 0
    %7881 = vmatprep.subr.mxu0 0.0
    %7882 = vmatpush1.msra.mxu0 %v6589
    %7883 = vmatprep.subr.mxu0 0.0
    %7884 = vmatpush1.msra.mxu0 %v6590
    %7885 = vmatprep.subr.mxu0 0.0
    %7886 = vmatpush1.msra.mxu0 %v6591
    %7887 = vmatprep.subr.mxu0 0.0
    %7888 = vmatpush1.msra.mxu0 %v6592
    %7889 = vmatprep.subr.mxu0 0.0
    %7890 = vmatpush1.msra.mxu0 0.0
    %7891 = vmatprep.subr.mxu0 0.0
    %7892 = vmatpush1.msra.mxu0 0.0
    %7893 = vmatprep.subr.mxu0 0.0
    %7894 = vmatpush1.msra.mxu0 0.0
    %7895 = vmatprep.subr.mxu0 0.0
    %7896 = vmatpush1.msra.mxu0 0.0
    %7897 = vmatprep.subr.mxu0 0.0
    %7898 = vmatpush1.msra.mxu0 0.0
    %7899 = vmatprep.subr.mxu0 0.0
    %7900 = vmatpush1.msra.mxu0 0.0
    %7901 = vmatprep.subr.mxu0 0.0
    %7902 = vmatpush1.msra.mxu0 0.0
    %7903 = vmatprep.subr.mxu0 0.0
    %7904 = vmatpush1.msra.mxu0 0.0
    %7905 = vmatprep.subr.mxu0 0.0
    %7906 = vmatpush1.msra.mxu0 0.0
    %7907 = vmatprep.subr.mxu0 0.0
    %7908 = vmatpush1.msra.mxu0 0.0
    %7909 = vmatprep.subr.mxu0 0.0
    %7910 = vmatpush1.msra.mxu0 0.0
    %7911 = vmatprep.subr.mxu0 0.0
    %7912 = vmatpush1.msra.mxu0 0.0
    %7913 = vmatprep.subr.mxu0 0.0
    %7914 = vmatpush1.msra.mxu0 0.0
    %7915 = vmatprep.subr.mxu0 0.0
    %7916 = vmatpush1.msra.mxu0 0.0
    %7917 = vmatprep.subr.mxu0 0.0
    %7918 = vmatpush1.msra.mxu0 0.0
    %7919 = vmatprep.subr.mxu0 0.0
    %7920 = vmatpush1.msra.mxu0 0.0
    %7921 = vmatprep.subr.mxu0 0.0
    %7922 = vmatpush1.msra.mxu0 0.0
    %7923 = vmatprep.subr.mxu0 0.0
    %7924 = vmatpush1.msra.mxu0 0.0
    %7925 = vmatprep.subr.mxu0 0.0
    %7926 = vmatpush1.msra.mxu0 0.0
    %7927 = vmatprep.subr.mxu0 0.0
    %7928 = vmatpush1.msra.mxu0 0.0
    %7929 = vmatprep.subr.mxu0 0.0
    %7930 = vmatpush1.msra.mxu0 0.0
    %7931 = vmatprep.subr.mxu0 0.0
    %7932 = vmatpush1.msra.mxu0 0.0
    %7933 = vmatprep.subr.mxu0 0.0
    %7934 = vmatpush1.msra.mxu0 0.0
    %7935 = vmatprep.subr.mxu0 0.0
    %7936 = vmatpush1.msra.mxu0 0.0
    %7937 = vmatprep.subr.mxu0 0.0
    %7938 = vmatpush1.msra.mxu0 0.0
    %7939 = vmatprep.subr.mxu0 0.0
    %7940 = vmatpush1.msra.mxu0 0.0
    %7941 = vmatprep.subr.mxu0 0.0
    %7942 = vmatpush1.msra.mxu0 0.0
    %7943 = vmatprep.subr.mxu0 0.0
    %7944 = vmatpush1.msra.mxu0 0.0
    %7945 = vmatprep.mubr.f32.mxu0 0.0
    %7946 = vmatmul.mubr.f32.gmra.mrb[0].mxu0 %v7879
    %v7947 = vpop.f32.mrb[0].mxu0
    %v7948 = vadd.f32 0.0, %v7947
    %v7949 = vpop.f32.mrb[0].mxu0
    %7950 = vdwg.mxu0
    %7951 = vmatprep.subr.mxu0 0.0
    %7952 = vmatpush1.msra.mxu0 %v6594
    %7953 = vmatprep.subr.mxu0 0.0
    %7954 = vmatpush1.msra.mxu0 %v6595
    %7955 = vmatprep.subr.mxu0 0.0
    %7956 = vmatpush1.msra.mxu0 %v6596
    %7957 = vmatprep.subr.mxu0 0.0
    %7958 = vmatpush1.msra.mxu0 %v6597
    %7959 = vmatprep.subr.mxu0 0.0
    %7960 = vmatpush1.msra.mxu0 0.0
    %7961 = vmatprep.subr.mxu0 0.0
    %7962 = vmatpush1.msra.mxu0 0.0
    %7963 = vmatprep.subr.mxu0 0.0
    %7964 = vmatpush1.msra.mxu0 0.0
    %7965 = vmatprep.subr.mxu0 0.0
    %7966 = vmatpush1.msra.mxu0 0.0
    %7967 = vmatprep.subr.mxu0 0.0
    %7968 = vmatpush1.msra.mxu0 0.0
    %7969 = vmatprep.subr.mxu0 0.0
    %7970 = vmatpush1.msra.mxu0 0.0
    %7971 = vmatprep.subr.mxu0 0.0
    %7972 = vmatpush1.msra.mxu0 0.0
    %7973 = vmatprep.subr.mxu0 0.0
    %7974 = vmatpush1.msra.mxu0 0.0
    %7975 = vmatprep.subr.mxu0 0.0
    %7976 = vmatpush1.msra.mxu0 0.0
    %7977 = vmatprep.subr.mxu0 0.0
    %7978 = vmatpush1.msra.mxu0 0.0
    %7979 = vmatprep.subr.mxu0 0.0
    %7980 = vmatpush1.msra.mxu0 0.0
    %7981 = vmatprep.subr.mxu0 0.0
    %7982 = vmatpush1.msra.mxu0 0.0
    %7983 = vmatprep.subr.mxu0 0.0
    %7984 = vmatpush1.msra.mxu0 0.0
    %7985 = vmatprep.subr.mxu0 0.0
    %7986 = vmatpush1.msra.mxu0 0.0
    %7987 = vmatprep.subr.mxu0 0.0
    %7988 = vmatpush1.msra.mxu0 0.0
    %7989 = vmatprep.subr.mxu0 0.0
    %7990 = vmatpush1.msra.mxu0 0.0
    %7991 = vmatprep.subr.mxu0 0.0
    %7992 = vmatpush1.msra.mxu0 0.0
    %7993 = vmatprep.subr.mxu0 0.0
    %7994 = vmatpush1.msra.mxu0 0.0
    %7995 = vmatprep.subr.mxu0 0.0
    %7996 = vmatpush1.msra.mxu0 0.0
    %7997 = vmatprep.subr.mxu0 0.0
    %7998 = vmatpush1.msra.mxu0 0.0
    %7999 = vmatprep.subr.mxu0 0.0
    %8000 = vmatpush1.msra.mxu0 0.0
    %8001 = vmatprep.subr.mxu0 0.0
    %8002 = vmatpush1.msra.mxu0 0.0
    %8003 = vmatprep.subr.mxu0 0.0
    %8004 = vmatpush1.msra.mxu0 0.0
    %8005 = vmatprep.subr.mxu0 0.0
    %8006 = vmatpush1.msra.mxu0 0.0
    %8007 = vmatprep.subr.mxu0 0.0
    %8008 = vmatpush1.msra.mxu0 0.0
    %8009 = vmatprep.subr.mxu0 0.0
    %8010 = vmatpush1.msra.mxu0 0.0
    %8011 = vmatprep.subr.mxu0 0.0
    %8012 = vmatpush1.msra.mxu0 0.0
    %8013 = vmatprep.subr.mxu0 0.0
    %8014 = vmatpush1.msra.mxu0 0.0
    %8015 = vmatprep.mubr.f32.mxu0 0.0
    %8016 = vmatmul.mubr.f32.gmra.mrb[0].mxu0 %v7879
    %v8017 = vpop.f32.mrb[0].mxu0
    %v8018 = vadd.f32 0.0, %v8017
    %v8019 = vpop.f32.mrb[0].mxu0
    %8020 = vdwg.mxu0
    %v8021 = vsel %vm441, %v7948, %v8018
    %v8022 = vadd.f32 %v7878, %v8021
    %v8023 = vxor.u32 %v8022, 2147483648
    %v8024 = vmul.f32 %v8023, 1.442695
    %v8025 = vpow.pop %v8024
    %v8026 = vadd.f32 %v8025, 1.0
    %v8027 = vrcp.pop %v8026
    %v8028 = vmul.f32 1.0, %v8027
    %v8029 = vtanh.pop %v8022
    %v8030 = vmul.f32 %v8028, %v7856
    %8032 = vrot.lane.b32.xlu0 %v8029, 64
    %v8033 = vpop.permute.xlu0 %8032
    %v8035 = vmul.f32 %v8028, %v8033
    %8037 = vrot.lane.b32.xlu0 %v8035, 32
    %v8038 = vpop.permute.xlu0 %8037
    %v8040 = vadd.f32 %v8030, %v8038
    %v8041 = vtanh.pop %v8040
    %8043 = vrot.lane.b32.xlu0 %v8041, 64
    %v8044 = vpop.permute.xlu0 %8043
    %v8046 = vmul.f32 %v8028, %v8044
    %8048 = vrot.lane.b32.xlu0 %v8046, 32
    %v8049 = vpop.permute.xlu0 %8048
    %8051 = vst.msk [vmem:[%s6778] sm:$0xf] %vm2093, %v8049
    %8052 = vrot.lane.b32.xlu0 %v8046, 64
    %v8053 = vpop.permute.xlu0 %8052
    %8055 = vst.msk [vmem:[#allocation3 - $0x4] sm:$0xf0] %vm2099, %v8053
    %v8056 = vld [vmem:[%s3] sm:$0xf]
    %v8057 = vld [vmem:[%s3 + $0x4] sm:$0xf]
    %v8058 = vld [vmem:[%s3 + $0x8] sm:$0xf]
    %v8059 = vld [vmem:[%s3 + $0xc] sm:$0xf]
    %v8060 = vld [vmem:[%s3 + $0x10] sm:$0xf]
    %v8061 = vld [vmem:[%s3 + $0x14] sm:$0xf]
    %v8062 = vld [vmem:[%s3 + $0x18] sm:$0xf]
    %v8063 = vld [vmem:[%s3 + $0x1c] sm:$0xf]
    %vm8064 = vcmp.gt.f32.partialorder %v8056, 0.0
    %vm8065 = vcmp.gt.f32.partialorder %v8057, 0.0
    %vm8066 = vcmp.gt.f32.partialorder %v8058, 0.0
    %vm8067 = vcmp.gt.f32.partialorder %v8059, 0.0
    %vm8068 = vcmp.gt.f32.partialorder %v8060, 0.0
    %vm8069 = vcmp.gt.f32.partialorder %v8061, 0.0
    %vm8070 = vcmp.gt.f32.partialorder %v8062, 0.0
    %vm8071 = vcmp.gt.f32.partialorder %v8063, 0.0
    %v8072 = vld [vmem:[#allocation2] sm:$0xf]
    %v8073 = vld [vmem:[#allocation2 + $0x4] sm:$0xf]
    %v8074 = vld [vmem:[#allocation2 + $0x8] sm:$0xf]
    %v8075 = vld [vmem:[#allocation2 + $0xc] sm:$0xf]
    %v8076 = vld [vmem:[#allocation2 + $0x10] sm:$0xf]
    %v8077 = vld [vmem:[#allocation2 + $0x14] sm:$0xf]
    %v8078 = vld [vmem:[#allocation2 + $0x18] sm:$0xf]
    %v8079 = vld [vmem:[#allocation2 + $0x1c] sm:$0xf]
    %v8080 = vsel %vm8064, 1, 0
    %v8081 = vsel %vm8065, 1, 0
    %v8082 = vsel %vm8066, 1, 0
    %v8083 = vsel %vm8067, 1, 0
    %v8084 = vsel %vm8068, 1, 0
    %v8085 = vsel %vm8069, 1, 0
    %v8086 = vsel %vm8070, 1, 0
    %v8087 = vsel %vm8071, 1, 0
    %8088 = vset.pattern.permute.xlu0 0
    %8089 = vperm.xlu0 %8088, %v8080
    %v8090 = vpop.permute.xlu0 %8089
    %8091 = vset.pattern.permute.xlu0 0
    %8092 = vperm.xlu0 %8091, %v8081
    %v8093 = vpop.permute.xlu0 %8092
    %8094 = vset.pattern.permute.xlu0 0
    %8095 = vperm.xlu0 %8094, %v8082
    %v8096 = vpop.permute.xlu0 %8095
    %8097 = vset.pattern.permute.xlu0 0
    %8098 = vperm.xlu0 %8097, %v8083
    %v8099 = vpop.permute.xlu0 %8098
    %8100 = vset.pattern.permute.xlu0 0
    %8101 = vperm.xlu0 %8100, %v8084
    %v8102 = vpop.permute.xlu0 %8101
    %8103 = vset.pattern.permute.xlu0 0
    %8104 = vperm.xlu0 %8103, %v8085
    %v8105 = vpop.permute.xlu0 %8104
    %8106 = vset.pattern.permute.xlu0 0
    %8107 = vperm.xlu0 %8106, %v8086
    %v8108 = vpop.permute.xlu0 %8107
    %8109 = vset.pattern.permute.xlu0 0
    %8110 = vperm.xlu0 %8109, %v8087
    %v8111 = vpop.permute.xlu0 %8110
    %vm8112 = vcmp.eq.s32.totalorder %v8090, 1
    %vm8113 = vcmp.eq.s32.totalorder %v8093, 1
    %vm8114 = vcmp.eq.s32.totalorder %v8096, 1
    %vm8115 = vcmp.eq.s32.totalorder %v8099, 1
    %vm8116 = vcmp.eq.s32.totalorder %v8102, 1
    %vm8117 = vcmp.eq.s32.totalorder %v8105, 1
    %vm8118 = vcmp.eq.s32.totalorder %v8108, 1
    %vm8119 = vcmp.eq.s32.totalorder %v8111, 1
    %v8120 = vsel %vm8112, %v8072, -1e+30
    %v8121 = vsel %vm8113, %v8073, -1e+30
    %v8122 = vsel %vm8114, %v8074, -1e+30
    %v8123 = vsel %vm8115, %v8075, -1e+30
    %v8124 = vsel %vm8116, %v8076, -1e+30
    %v8125 = vsel %vm8117, %v8077, -1e+30
    %v8126 = vsel %vm8118, %v8078, -1e+30
    %v8127 = vsel %vm8119, %v8079, -1e+30
    %vm8128 = vcmask 519168
    %v8129 = vsel %vm8128, %v8120, -inf
    %v8130 = vsel %vm8128, %v8121, -inf
    %v8131 = vsel %vm8128, %v8122, -inf
    %v8132 = vsel %vm8128, %v8123, -inf
    %v8133 = vsel %vm8128, %v8124, -inf
    %v8134 = vmax.f32 %v8129, %v8133
    %v8135 = vsel %vm8128, %v8125, -inf
    %v8136 = vmax.f32 %v8130, %v8135
    %v8137 = vsel %vm8128, %v8126, -inf
    %v8138 = vmax.f32 %v8131, %v8137
    %v8139 = vsel %vm8128, %v8127, -inf
    %v8140 = vmax.f32 %v8132, %v8139
    %v8141 = vmax.f32 %v8134, %v8136
    %v8142 = vmax.f32 %v8138, %v8140
    %v8143 = vmax.f32 %v8141, %v8142
    %v8144 = vld [vmem:[#allocation3] sm:$0xf]
    %v8145 = vld [vmem:[#allocation3 + $0x4] sm:$0xf]
    %v8146 = vld [vmem:[#allocation3 + $0x8] sm:$0xf]
    %v8147 = vld [vmem:[#allocation3 + $0xc] sm:$0xf]
    %v8148 = vld [vmem:[#allocation3 + $0x10] sm:$0xf]
    %v8149 = vld [vmem:[#allocation3 + $0x14] sm:$0xf]
    %v8150 = vld [vmem:[#allocation3 + $0x18] sm:$0xf]
    %v8151 = vld [vmem:[#allocation3 + $0x1c] sm:$0xf]
    %8153 = vset.pattern.permute.xlu0 0
    %8154 = vperm.xlu0 %8153, %v8056
    %v8155 = vpop.permute.xlu0 %8154
    %8158 = vset.pattern.permute.xlu0 0
    %8159 = vperm.xlu0 %8158, %v8057
    %v8160 = vpop.permute.xlu0 %8159
    %8163 = vset.pattern.permute.xlu0 0
    %8164 = vperm.xlu0 %8163, %v8058
    %v8165 = vpop.permute.xlu0 %8164
    %8168 = vset.pattern.permute.xlu0 0
    %8169 = vperm.xlu0 %8168, %v8059
    %v8170 = vpop.permute.xlu0 %8169
    %8173 = vset.pattern.permute.xlu0 0
    %8174 = vperm.xlu0 %8173, %v8060
    %v8175 = vpop.permute.xlu0 %8174
    %8178 = vset.pattern.permute.xlu0 0
    %8179 = vperm.xlu0 %8178, %v8061
    %v8180 = vpop.permute.xlu0 %8179
    %8183 = vset.pattern.permute.xlu0 0
    %8184 = vperm.xlu0 %8183, %v8062
    %v8185 = vpop.permute.xlu0 %8184
    %8188 = vset.pattern.permute.xlu0 0
    %8189 = vperm.xlu0 %8188, %v8063
    %v8190 = vpop.permute.xlu0 %8189
    %v8192 = vmul.f32 %v8144, %v8155
    %v8193 = vmul.f32 %v8145, %v8160
    %v8194 = vmul.f32 %v8146, %v8165
    %v8195 = vmul.f32 %v8147, %v8170
    %v8196 = vmul.f32 %v8148, %v8175
    %v8197 = vmul.f32 %v8149, %v8180
    %v8198 = vmul.f32 %v8150, %v8185
    %v8199 = vmul.f32 %v8151, %v8190
    %v8200 = vsel %vm8128, %v8192, 0.0
    %v8201 = vsel %vm8128, %v8193, 0.0
    %v8202 = vadd.f32 %v8200, %v8201
    %v8203 = vsel %vm8128, %v8194, 0.0
    %v8204 = vadd.f32 %v8202, %v8203
    %v8205 = vsel %vm8128, %v8195, 0.0
    %v8206 = vadd.f32 %v8204, %v8205
    %v8207 = vsel %vm8128, %v8196, 0.0
    %v8208 = vadd.f32 %v8206, %v8207
    %v8209 = vsel %vm8128, %v8197, 0.0
    %v8210 = vadd.f32 %v8208, %v8209
    %v8211 = vsel %vm8128, %v8198, 0.0
    %v8212 = vadd.f32 %v8210, %v8211
    %v8213 = vsel %vm8128, %v8199, 0.0
    %v8214 = vadd.f32 %v8212, %v8213
    %vm8215 = vcmask 3072
    %v8216 = vsel %vm8215, %v8056, 0.0
    %v8217 = vsel %vm8215, %v8057, 0.0
    %v8218 = vadd.f32 %v8216, %v8217
    %v8219 = vsel %vm8215, %v8058, 0.0
    %v8220 = vadd.f32 %v8218, %v8219
    %v8221 = vsel %vm8215, %v8059, 0.0
    %v8222 = vadd.f32 %v8220, %v8221
    %v8223 = vsel %vm8215, %v8060, 0.0
    %v8224 = vadd.f32 %v8222, %v8223
    %v8225 = vsel %vm8215, %v8061, 0.0
    %v8226 = vadd.f32 %v8224, %v8225
    %v8227 = vsel %vm8215, %v8062, 0.0
    %v8228 = vadd.f32 %v8226, %v8227
    %v8229 = vsel %vm8215, %v8063, 0.0
    %v8230 = vadd.f32 %v8228, %v8229
    %v8231 = vrcp.pop %v8230
    %8233 = vset.pattern.permute.xlu0 0
    %8234 = vperm.xlu0 %8233, %v8231
    %v8235 = vpop.permute.xlu0 %8234
    %v8237 = vmul.f32 %v8214, %v8235
    %8239 = vrot.lane.b32.xlu0 %v8237, 64
    %v8240 = vpop.permute.xlu0 %8239
    %v8243 = vrot.slane %v8143, 2
    %v8245 = vrot.slane %v8237, 2
    %8246 = vrot.lane.b32.xlu0 %v8245, 64
    %v8247 = vpop.permute.xlu0 %8246
    %v8249 = vsel %vm3430, %v8143, %v8240
    %v8250 = vsel %vm3430, %v8243, %v8247
    %v8251 = vld [vmem:[%s18] sm:$0xff]
    %v8252 = vld [vmem:[%s18 + $0x8] sm:$0xff]
    %v8253 = vld [vmem:[%s18 + $0x10] sm:$0xff]
    %v8254 = vld [vmem:[%s18 + $0x18] sm:$0xff]
    %v8255 = vld [vmem:[%s18 + $0x20] sm:$0xff]
    %v8256 = vld [vmem:[%s18 + $0x28] sm:$0xff]
    %v8257 = vld [vmem:[%s18 + $0x30] sm:$0xff]
    %v8258 = vld [vmem:[%s18 + $0x38] sm:$0xff]
    %v8259 = vld [vmem:[%s18 + $0x40] sm:$0xff]
    %v8260 = vld [vmem:[%s18 + $0x48] sm:$0xff]
    %v8261 = vld [vmem:[%s18 + $0x50] sm:$0xff]
    %v8262 = vld [vmem:[%s18 + $0x58] sm:$0xff]
    %v8263 = vld [vmem:[%s18 + $0x60] sm:$0xff]
    %v8264 = vld [vmem:[%s18 + $0x68] sm:$0xff]
    %v8265 = vld [vmem:[%s18 + $0x70] sm:$0xff]
    %v8266 = vld [vmem:[%s18 + $0x78] sm:$0xff]
    %v8267 = vld [vmem:[%s18 + $0x80] sm:$0xff]
    %v8268 = vld [vmem:[%s18 + $0x88] sm:$0xff]
    %v8269 = vld [vmem:[%s18 + $0x90] sm:$0xff]
    %v8270 = vld [vmem:[%s18 + $0x98] sm:$0xff]
    %v8271 = vld [vmem:[%s18 + $0xa0] sm:$0xff]
    %v8272 = vld [vmem:[%s18 + $0xa8] sm:$0xff]
    %v8273 = vld [vmem:[%s18 + $0xb0] sm:$0xff]
    %v8274 = vld [vmem:[%s18 + $0xb8] sm:$0xff]
    %v8275 = vld [vmem:[%s18 + $0xc0] sm:$0xff]
    %v8276 = vld [vmem:[%s18 + $0xc8] sm:$0xff]
    %v8277 = vld [vmem:[%s18 + $0xd0] sm:$0xff]
    %v8278 = vld [vmem:[%s18 + $0xd8] sm:$0xff]
    %v8279 = vld [vmem:[%s18 + $0xe0] sm:$0xff]
    %v8280 = vld [vmem:[%s18 + $0xe8] sm:$0xff]
    %v8281 = vld [vmem:[%s18 + $0xf0] sm:$0xff]
    %v8282 = vld [vmem:[%s18 + $0xf8] sm:$0xff]
    %v8283 = vld [vmem:[%s19] sm:$0x1]
    %v8285 = vlaneseq
    %v8286 = vshrl.u32 %v8285, 7
    %v8287 = vsub.s32 0, %v8286
    %v8288 = vrot.slane %v8283, %v8287
    %8290 = vmatprep.subr.mxu0 0.0
    %8291 = vmatpush1.msra.mxu0 %v8251
    %8292 = vmatprep.subr.mxu0 0.0
    %8293 = vmatpush1.msra.mxu0 %v8252
    %8294 = vmatprep.subr.mxu0 0.0
    %8295 = vmatpush1.msra.mxu0 %v8253
    %8296 = vmatprep.subr.mxu0 0.0
    %8297 = vmatpush1.msra.mxu0 %v8254
    %8298 = vmatprep.subr.mxu0 0.0
    %8299 = vmatpush1.msra.mxu0 %v8255
    %8300 = vmatprep.subr.mxu0 0.0
    %8301 = vmatpush1.msra.mxu0 %v8256
    %8302 = vmatprep.subr.mxu0 0.0
    %8303 = vmatpush1.msra.mxu0 %v8257
    %8304 = vmatprep.subr.mxu0 0.0
    %8305 = vmatpush1.msra.mxu0 %v8258
    %8306 = vmatprep.subr.mxu0 0.0
    %8307 = vmatpush1.msra.mxu0 %v8259
    %8308 = vmatprep.subr.mxu0 0.0
    %8309 = vmatpush1.msra.mxu0 %v8260
    %8310 = vmatprep.subr.mxu0 0.0
    %8311 = vmatpush1.msra.mxu0 %v8261
    %8312 = vmatprep.subr.mxu0 0.0
    %8313 = vmatpush1.msra.mxu0 %v8262
    %8314 = vmatprep.subr.mxu0 0.0
    %8315 = vmatpush1.msra.mxu0 %v8263
    %8316 = vmatprep.subr.mxu0 0.0
    %8317 = vmatpush1.msra.mxu0 %v8264
    %8318 = vmatprep.subr.mxu0 0.0
    %8319 = vmatpush1.msra.mxu0 %v8265
    %8320 = vmatprep.subr.mxu0 0.0
    %8321 = vmatpush1.msra.mxu0 %v8266
    %8322 = vmatprep.subr.mxu0 0.0
    %8323 = vmatpush1.msra.mxu0 %v8267
    %8324 = vmatprep.subr.mxu0 0.0
    %8325 = vmatpush1.msra.mxu0 %v8268
    %8326 = vmatprep.subr.mxu0 0.0
    %8327 = vmatpush1.msra.mxu0 %v8269
    %8328 = vmatprep.subr.mxu0 0.0
    %8329 = vmatpush1.msra.mxu0 %v8270
    %8330 = vmatprep.subr.mxu0 0.0
    %8331 = vmatpush1.msra.mxu0 %v8271
    %8332 = vmatprep.subr.mxu0 0.0
    %8333 = vmatpush1.msra.mxu0 %v8272
    %8334 = vmatprep.subr.mxu0 0.0
    %8335 = vmatpush1.msra.mxu0 %v8273
    %8336 = vmatprep.subr.mxu0 0.0
    %8337 = vmatpush1.msra.mxu0 %v8274
    %8338 = vmatprep.subr.mxu0 0.0
    %8339 = vmatpush1.msra.mxu0 %v8275
    %8340 = vmatprep.subr.mxu0 0.0
    %8341 = vmatpush1.msra.mxu0 %v8276
    %8342 = vmatprep.subr.mxu0 0.0
    %8343 = vmatpush1.msra.mxu0 %v8277
    %8344 = vmatprep.subr.mxu0 0.0
    %8345 = vmatpush1.msra.mxu0 %v8278
    %8346 = vmatprep.subr.mxu0 0.0
    %8347 = vmatpush1.msra.mxu0 %v8279
    %8348 = vmatprep.subr.mxu0 0.0
    %8349 = vmatpush1.msra.mxu0 %v8280
    %8350 = vmatprep.subr.mxu0 0.0
    %8351 = vmatpush1.msra.mxu0 %v8281
    %8352 = vmatprep.subr.mxu0 0.0
    %8353 = vmatpush1.msra.mxu0 %v8282
    %8354 = vmatprep.mubr.f32.mxu0 %v8250
    %8355 = vmatmul.mubr.f32.gmra.mrb[0].mxu0 %v8249
    %v8356 = vpop.f32.mrb[0].mxu0
    %v8357 = vadd.f32 %v8288, %v8356
    %v8358 = vpop.f32.mrb[0].mxu0
    %8359 = vdwg.mxu0
    %v8360 = vtanh.pop %v8357
    %v8361 = vld [vmem:[%s20] sm:$0xff]
    %v8362 = vld [vmem:[%s20 + $0x8] sm:$0xff]
    %v8363 = vld [vmem:[%s20 + $0x10] sm:$0xff]
    %v8364 = vld [vmem:[%s20 + $0x18] sm:$0xff]
    %v8365 = vld [vmem:[%s21] sm:$0x1]
    %v8367 = vlaneseq
    %v8368 = vshrl.u32 %v8367, 7
    %v8369 = vsub.s32 0, %v8368
    %v8370 = vrot.slane %v8365, %v8369
    %v8373 = vsel %vm90, %v8360, 0
    %8375 = vmatprep.subr.mxu0 0.0
    %8376 = vmatpush1.msra.mxu0 %v8361
    %8377 = vmatprep.subr.mxu0 0.0
    %8378 = vmatpush1.msra.mxu0 %v8362
    %8379 = vmatprep.subr.mxu0 0.0
    %8380 = vmatpush1.msra.mxu0 %v8363
    %8381 = vmatprep.subr.mxu0 0.0
    %8382 = vmatpush1.msra.mxu0 %v8364
    %8383 = vmatprep.subr.mxu0 0.0
    %8384 = vmatpush1.msra.mxu0 0.0
    %8385 = vmatprep.subr.mxu0 0.0
    %8386 = vmatpush1.msra.mxu0 0.0
    %8387 = vmatprep.subr.mxu0 0.0
    %8388 = vmatpush1.msra.mxu0 0.0
    %8389 = vmatprep.subr.mxu0 0.0
    %8390 = vmatpush1.msra.mxu0 0.0
    %8391 = vmatprep.subr.mxu0 0.0
    %8392 = vmatpush1.msra.mxu0 0.0
    %8393 = vmatprep.subr.mxu0 0.0
    %8394 = vmatpush1.msra.mxu0 0.0
    %8395 = vmatprep.subr.mxu0 0.0
    %8396 = vmatpush1.msra.mxu0 0.0
    %8397 = vmatprep.subr.mxu0 0.0
    %8398 = vmatpush1.msra.mxu0 0.0
    %8399 = vmatprep.subr.mxu0 0.0
    %8400 = vmatpush1.msra.mxu0 0.0
    %8401 = vmatprep.subr.mxu0 0.0
    %8402 = vmatpush1.msra.mxu0 0.0
    %8403 = vmatprep.subr.mxu0 0.0
    %8404 = vmatpush1.msra.mxu0 0.0
    %8405 = vmatprep.subr.mxu0 0.0
    %8406 = vmatpush1.msra.mxu0 0.0
    %8407 = vmatprep.subr.mxu0 0.0
    %8408 = vmatpush1.msra.mxu0 0.0
    %8409 = vmatprep.subr.mxu0 0.0
    %8410 = vmatpush1.msra.mxu0 0.0
    %8411 = vmatprep.subr.mxu0 0.0
    %8412 = vmatpush1.msra.mxu0 0.0
    %8413 = vmatprep.subr.mxu0 0.0
    %8414 = vmatpush1.msra.mxu0 0.0
    %8415 = vmatprep.subr.mxu0 0.0
    %8416 = vmatpush1.msra.mxu0 0.0
    %8417 = vmatprep.subr.mxu0 0.0
    %8418 = vmatpush1.msra.mxu0 0.0
    %8419 = vmatprep.subr.mxu0 0.0
    %8420 = vmatpush1.msra.mxu0 0.0
    %8421 = vmatprep.subr.mxu0 0.0
    %8422 = vmatpush1.msra.mxu0 0.0
    %8423 = vmatprep.subr.mxu0 0.0
    %8424 = vmatpush1.msra.mxu0 0.0
    %8425 = vmatprep.subr.mxu0 0.0
    %8426 = vmatpush1.msra.mxu0 0.0
    %8427 = vmatprep.subr.mxu0 0.0
    %8428 = vmatpush1.msra.mxu0 0.0
    %8429 = vmatprep.subr.mxu0 0.0
    %8430 = vmatpush1.msra.mxu0 0.0
    %8431 = vmatprep.subr.mxu0 0.0
    %8432 = vmatpush1.msra.mxu0 0.0
    %8433 = vmatprep.subr.mxu0 0.0
    %8434 = vmatpush1.msra.mxu0 0.0
    %8435 = vmatprep.subr.mxu0 0.0
    %8436 = vmatpush1.msra.mxu0 0.0
    %8437 = vmatprep.subr.mxu0 0.0
    %8438 = vmatpush1.msra.mxu0 0.0
    %8439 = vmatprep.mubr.f32.mxu0 0.0
    %8440 = vmatmul.mubr.f32.gmra.mrb[0].mxu0 %v8373
    %v8441 = vpop.f32.mrb[0].mxu0
    %v8442 = vadd.f32 %v8370, %v8441
    %v8443 = vpop.f32.mrb[0].mxu0
    %8444 = vdwg.mxu0
    %vm8445 = vcmask 17408
    %8446 = vst.msk [vmem:[#allocation4] sm:$0x3] %vm8445, %v8442
    // Predicated region
    $region90: #{drlstm_forward.1} parent=1 // pred_check
      _
    $region91: #{drlstm_forward.1} parent=1 // pred_check_branch
      %8448 = sbr.rel (0) target = $region93
    $region92: #{drlstm_forward.1} parent=1 // pred_region
      %s8450 = ssub.s32 32, 32
      %8451 = vsyncadd [#allocation5], %s8450
      %s8453 = sshll.u32 [#allocation4], 4
      %s8454 = int_to_ptr.vmem [resolvable:$true] %s8453
      %8456 = dma.vmem_to_hbm [thread:$0]  %s8454, 32, %s22, [#allocation5]
    $region93: #{drlstm_forward.1} parent=1 // pred_fallthru
      _
    // Predicated region
    $region94: #{drlstm_forward.1} parent=1 // pred_check
      _
    $region95: #{drlstm_forward.1} parent=1 // pred_check_branch
      %8458 = sbr.rel (0) target = $region97
    $region96: #{drlstm_forward.1} parent=1 // pred_region
      %8459 = dma.done [#allocation5], 32
    $region97: #{drlstm_forward.1} parent=1 // pred_fallthru
      _
    %8460 = vsyncpa [#allocation5], 1

</llo_original>
